<compile_context>
chip_gen: v6e
topology: v6e:2x2x1
jax: 0.10.0
libtpu: 0.0.40
codegen_flags: <defaults>
</compile_context>

<pallas_src>
import functools

import jax
import jax.numpy as jnp
from jax.experimental import pallas as pl
from jax.experimental.pallas import tpu as pltpu

# ---- scaled-down bert-base config (synthetic weights, no checkpoint) ----
VOCAB = 100
HIDDEN = 32
N_HEADS = 4
HEAD_DIM = HIDDEN // N_HEADS
N_LAYERS = 2
INTERMEDIATE = 64
MAX_POS = 16
NUM_CLASSES = 5
NUM_CLASSES_PAD = 128          # lane-dense logits slab; sliced back in the wrapper
LN_EPS = 1e-12

# NOTE: matmul operands kept f32 for numerical parity with the PyTorch reference at
# this toy size; at real BERT sizes cast weights/activations at the dot sites to
# bf16 (accumulate f32) on v6e/v7x for ~2x MXU throughput and half the VMEM.


# ------------------------- fused Pallas kernel -------------------------

def _layernorm(h, g, b):
    mu = jnp.mean(h, axis=-1, keepdims=True)
    var = jnp.mean(jnp.square(h - mu), axis=-1, keepdims=True)
    return (h - mu) * jax.lax.rsqrt(var + LN_EPS) * g + b


def _gelu(x):
    # TODO(synk): HF BERT default is exact erf-GELU; tanh approximation used here.
    c = 0.7978845608028654  # sqrt(2/pi)
    return 0.5 * x * (1.0 + jnp.tanh(c * (x + 0.044715 * x * x * x)))


def _fused_model_kernel(tb, seq_len,
                        emb_ref, mask_ref, eg_ref, eb_ref,
                        wqkv_ref, bqkv_ref, wo_ref, bo_ref,
                        ln1g_ref, ln1b_ref, w1_ref, b1_ref,
                        w2_ref, b2_ref, ln2g_ref, ln2b_ref,
                        pw_ref, pb_ref, cw_ref, cb_ref,
                        out_ref):
    # One grid step == TB batch elements, flattened to a (TB*S, H) row slab so the
    # projection / FFN / LayerNorm math is sublane-dense on the MXU/VPU.
    rows = tb * seq_len
    xr = emb_ref[...].reshape(rows, HIDDEN)            # (TB*S, H)
    bias = mask_ref[...]                               # (TB, 1, S) additive key mask
    xr = _layernorm(xr, eg_ref[...], eb_ref[...])

    for l in range(N_LAYERS):
        # TODO(synk): at real depth (L=12, H=768) move the layer axis into the grid
        # ("arbitrary", innermost), stream per-layer weights via index_map, and use
        # lax.fori_loop -- the all-layers-resident pattern only works at toy scale.

        # Fused QKV projection; Q columns already carry the 1/sqrt(Dh) scale.
        qkv = (jnp.dot(xr, wqkv_ref[l], preferred_element_type=jnp.float32)
               + bqkv_ref[l])                          # (TB*S, 3H)
        qkv3 = qkv.reshape(tb, seq_len, 3 * HIDDEN)

        ctxs = []
        for h in range(N_HEADS):
            lo = h * HEAD_DIM
            q = qkv3[:, :, lo:lo + HEAD_DIM]                              # (TB,S,Dh)
            k = qkv3[:, :, HIDDEN + lo:HIDDEN + lo + HEAD_DIM]            # (TB,S,Dh)
            v = qkv3[:, :, 2 * HIDDEN + lo:2 * HIDDEN + lo + HEAD_DIM]    # (TB,S,Dh)
            s = jnp.einsum('bqd,bkd->bqk', q, k,
                           preferred_element_type=jnp.float32) + bias     # (TB,S,S)
            s = s - jnp.max(s, axis=-1, keepdims=True)
            p = jnp.exp(s)
            p = p / jnp.sum(p, axis=-1, keepdims=True)   # exact divide (parity)
            ctxs.append(jnp.einsum('bqk,bkd->bqd', p, v,
                                   preferred_element_type=jnp.float32))   # (TB,S,Dh)

        # Single output-projection matmul over all heads (1 MXU push, no per-head
        # accumulation of tiny dots).
        ctx_all = jnp.concatenate(ctxs, axis=-1).reshape(rows, HIDDEN)
        attn = (jnp.dot(ctx_all, wo_ref[l], preferred_element_type=jnp.float32)
                + bo_ref[l])

        xr = _layernorm(attn + xr, ln1g_ref[l], ln1b_ref[l])

        inter = jnp.dot(xr, w1_ref[l], preferred_element_type=jnp.float32) + b1_ref[l]
        inter = _gelu(inter)
        ffn = jnp.dot(inter, w2_ref[l], preferred_element_type=jnp.float32) + b2_ref[l]
        xr = _layernorm(ffn + xr, ln2g_ref[l], ln2b_ref[l])

    # Fused pooler (CLS token -> dense -> tanh) + classifier tail for the whole tile.
    cls_tok = xr.reshape(tb, seq_len, HIDDEN)[:, 0, :]                    # (TB, H)
    pooled = jnp.tanh(jnp.dot(cls_tok, pw_ref[...],
                              preferred_element_type=jnp.float32) + pb_ref[...])
    logits = (jnp.dot(pooled, cw_ref[...],
                      preferred_element_type=jnp.float32) + cb_ref[...])  # (TB, C_PAD)
    out_ref[...] = logits[:, None, :]                                     # lane-dense store


# ------------------------- parameters -------------------------

def init_params(key):
    keys = iter(jax.random.split(key, 16 * N_LAYERS + 16))

    def nrm(shape):
        return 0.02 * jax.random.normal(next(keys), shape, jnp.float32)

    params = {
        "word_emb": nrm((VOCAB, HIDDEN)),
        "pos_emb": nrm((MAX_POS, HIDDEN)),
        "type_emb": nrm((2, HIDDEN)),
        "emb_ln_g": jnp.ones((HIDDEN,), jnp.float32),
        "emb_ln_b": jnp.zeros((HIDDEN,), jnp.float32),
        "layers": [],
        "pool_w": nrm((HIDDEN, HIDDEN)),
        "pool_b": jnp.zeros((HIDDEN,), jnp.float32),
        "cls_w": nrm((HIDDEN, NUM_CLASSES)),
        "cls_b": jnp.zeros((NUM_CLASSES,), jnp.float32),
    }
    for _ in range(N_LAYERS):
        params["layers"].append({
            "wq": nrm((HIDDEN, HIDDEN)), "bq": jnp.zeros((HIDDEN,), jnp.float32),
            "wk": nrm((HIDDEN, HIDDEN)), "bk": jnp.zeros((HIDDEN,), jnp.float32),
            "wv": nrm((HIDDEN, HIDDEN)), "bv": jnp.zeros((HIDDEN,), jnp.float32),
            "wo": nrm((HIDDEN, HIDDEN)), "bo": jnp.zeros((HIDDEN,), jnp.float32),
            "ln1_g": jnp.ones((HIDDEN,), jnp.float32),
            "ln1_b": jnp.zeros((HIDDEN,), jnp.float32),
            "w1": nrm((HIDDEN, INTERMEDIATE)), "b1": jnp.zeros((INTERMEDIATE,), jnp.float32),
            "w2": nrm((INTERMEDIATE, HIDDEN)), "b2": jnp.zeros((HIDDEN,), jnp.float32),
            "ln2_g": jnp.ones((HIDDEN,), jnp.float32),
            "ln2_b": jnp.zeros((HIDDEN,), jnp.float32),
        })
    return params


# ------------------------- forward pass -------------------------

def _pick_batch_tile(batch, seq):
    # Prefer TB*S >= 128 rows (MXU width) but keep grid length >= 2 so v7x megacore
    # can shard grid steps across both TensorCores.
    tb = max(1, batch // 2)
    tb = min(tb, max(1, pl.cdiv(128, seq)))
    return tb


def transformer_forward(params, input_ids, attention_mask):
    B, S = input_ids.shape
    tb = _pick_batch_tile(B, S)
    b_pad = pl.cdiv(B, tb) * tb

    # Embedding gather is plain-JAX glue (table lookup); everything downstream runs
    # in one fused Pallas kernel.
    pos_ids = jnp.arange(S)
    emb = (params["word_emb"][input_ids]
           + params["pos_emb"][pos_ids][None, :, :]
           + params["type_emb"][0][None, None, :])                      # (B, S, H)
    # TODO(synk): token_type_ids hard-coded to segment 0 (matches the reference call).

    # BERT extended attention mask: additive (1 - mask) * -10000.
    mask_bias = ((1.0 - attention_mask.astype(jnp.float32)) * -10000.0)[:, None, :]

    if b_pad != B:
        emb = jnp.pad(emb, ((0, b_pad - B), (0, 0), (0, 0)))
        mask_bias = jnp.pad(mask_bias, ((0, b_pad - B), (0, 0), (0, 0)))

    # Stack per-layer weights (layer axis leading) so one kernel holds them all, and
    # fuse Q/K/V into a single (H, 3H) projection.  The 1/sqrt(Dh) attention scale is
    # folded into the Q columns + bias here (removes the per-head score multiply).
    def stack(name):
        return jnp.stack([lp[name] for lp in params["layers"]])

    L = N_LAYERS
    scale = 1.0 / (HEAD_DIM ** 0.5)
    wqkv = jnp.concatenate([stack("wq") * scale, stack("wk"), stack("wv")], axis=-1)
    bqkv = jnp.concatenate([stack("bq") * scale, stack("bk"), stack("bv")],
                           axis=-1)[:, None, :]
    wo = stack("wo")
    bo = stack("bo")[:, None, :]
    ln1g = stack("ln1_g")[:, None, :]
    ln1b = stack("ln1_b")[:, None, :]
    w1 = stack("w1")
    b1 = stack("b1")[:, None, :]
    w2 = stack("w2")
    b2 = stack("b2")[:, None, :]
    ln2g = stack("ln2_g")[:, None, :]
    ln2b = stack("ln2_b")[:, None, :]

    # Pad the classifier to a lane-dense 128-wide output slab.
    cls_w_pad = jnp.zeros((HIDDEN, NUM_CLASSES_PAD), jnp.float32)
    cls_w_pad = cls_w_pad.at[:, :NUM_CLASSES].set(params["cls_w"])
    cls_b_pad = jnp.zeros((1, NUM_CLASSES_PAD), jnp.float32)
    cls_b_pad = cls_b_pad.at[0, :NUM_CLASSES].set(params["cls_b"])

    def resident(shape):
        # Whole-array block, same block every grid step -> stays in VMEM, no re-DMA.
        return pl.BlockSpec(shape, lambda b: (0,) * len(shape))

    kernel = functools.partial(_fused_model_kernel, tb, S)

    out = pl.pallas_call(
        kernel,
        out_shape=jax.ShapeDtypeStruct((b_pad, 1, NUM_CLASSES_PAD), jnp.float32),
        grid=(b_pad // tb,),
        in_specs=[
            pl.BlockSpec((tb, S, HIDDEN), lambda b: (b, 0, 0)),       # embeddings
            pl.BlockSpec((tb, 1, S), lambda b: (b, 0, 0)),            # mask bias
            resident((1, HIDDEN)), resident((1, HIDDEN)),             # emb LayerNorm
            resident((L, HIDDEN, 3 * HIDDEN)), resident((L, 1, 3 * HIDDEN)),  # QKV
            resident((L, HIDDEN, HIDDEN)), resident((L, 1, HIDDEN)),          # attn out
            resident((L, 1, HIDDEN)), resident((L, 1, HIDDEN)),               # LN1
            resident((L, HIDDEN, INTERMEDIATE)), resident((L, 1, INTERMEDIATE)),
            resident((L, INTERMEDIATE, HIDDEN)), resident((L, 1, HIDDEN)),    # FFN
            resident((L, 1, HIDDEN)), resident((L, 1, HIDDEN)),               # LN2
            resident((HIDDEN, HIDDEN)), resident((1, HIDDEN)),                # pooler
            resident((HIDDEN, NUM_CLASSES_PAD)), resident((1, NUM_CLASSES_PAD)),
        ],
        out_specs=pl.BlockSpec((tb, 1, NUM_CLASSES_PAD), lambda b: (b, 0, 0)),
        compiler_params=pltpu.CompilerParams(
            dimension_semantics=("parallel",),        # megacore on v7x (grid >= 2)
            vmem_limit_bytes=32 * 1024 * 1024),       # explicit, with headroom
    )(emb, mask_bias,
      params["emb_ln_g"].reshape(1, HIDDEN), params["emb_ln_b"].reshape(1, HIDDEN),
      wqkv, bqkv, wo, bo, ln1g, ln1b, w1, b1, w2, b2, ln2g, ln2b,
      params["pool_w"], params["pool_b"].reshape(1, HIDDEN),
      cls_w_pad, cls_b_pad)

    return out[:B, 0, :NUM_CLASSES]                                   # (B, NUM_CLASSES)


if __name__ == "__main__":
    key = jax.random.PRNGKey(0)
    pkey, ikey = jax.random.split(key)
    params = init_params(pkey)

    B, S = 8, 8
    input_ids = jax.random.randint(ikey, (B, S), 0, VOCAB, dtype=jnp.int32)
    attention_mask = jnp.ones((B, S), jnp.int32).at[:, 6:].set(0)  # last 2 tokens padded

    logits = jax.jit(transformer_forward)(params, input_ids, attention_mask)
    jax.block_until_ready(logits)
    assert logits.shape == (B, NUM_CLASSES)
    assert logits.dtype == jnp.float32
    assert bool(jnp.all(jnp.isfinite(logits)))
    print("KERNEL_OK")
</pallas_src>

<mosaic_0001>
module attributes {stable_mosaic.version = 11 : i64} {
  func.func @_fused_model_kernel(%arg0: i32, %arg1: memref<4x8x32xf32, #tpu.memory_space<vmem>>, %arg2: memref<4x1x8xf32, #tpu.memory_space<vmem>>, %arg3: memref<1x32xf32, #tpu.memory_space<vmem>>, %arg4: memref<1x32xf32, #tpu.memory_space<vmem>>, %arg5: memref<2x32x96xf32, #tpu.memory_space<vmem>>, %arg6: memref<2x1x96xf32, #tpu.memory_space<vmem>>, %arg7: memref<2x32x32xf32, #tpu.memory_space<vmem>>, %arg8: memref<2x1x32xf32, #tpu.memory_space<vmem>>, %arg9: memref<2x1x32xf32, #tpu.memory_space<vmem>>, %arg10: memref<2x1x32xf32, #tpu.memory_space<vmem>>, %arg11: memref<2x32x64xf32, #tpu.memory_space<vmem>>, %arg12: memref<2x1x64xf32, #tpu.memory_space<vmem>>, %arg13: memref<2x64x32xf32, #tpu.memory_space<vmem>>, %arg14: memref<2x1x32xf32, #tpu.memory_space<vmem>>, %arg15: memref<2x1x32xf32, #tpu.memory_space<vmem>>, %arg16: memref<2x1x32xf32, #tpu.memory_space<vmem>>, %arg17: memref<32x32xf32, #tpu.memory_space<vmem>>, %arg18: memref<1x32xf32, #tpu.memory_space<vmem>>, %arg19: memref<32x128xf32, #tpu.memory_space<vmem>>, %arg20: memref<1x128xf32, #tpu.memory_space<vmem>>, %arg21: memref<4x1x128xf32, #tpu.memory_space<vmem>>) attributes {dimension_semantics = [#tpu.dimension_semantics<parallel>], iteration_bounds = array<i64: 2>, scalar_prefetch = 0 : i64, scratch_operands = 0 : i64, tpu.core_type = #tpu.core_type<tc>, window_params = [{transform_indices = @transform_0, window_bounds = array<i64: 4, 8, 32>}, {transform_indices = @transform_1, window_bounds = array<i64: 4, 1, 8>}, {pipeline_mode = #tpu.pipeline_mode<synchronous>, transform_indices = @transform_2, window_bounds = array<i64: 1, 32>}, {pipeline_mode = #tpu.pipeline_mode<synchronous>, transform_indices = @transform_3, window_bounds = array<i64: 1, 32>}, {pipeline_mode = #tpu.pipeline_mode<synchronous>, transform_indices = @transform_4, window_bounds = array<i64: 2, 32, 96>}, {pipeline_mode = #tpu.pipeline_mode<synchronous>, transform_indices = @transform_5, window_bounds = array<i64: 2, 1, 96>}, {pipeline_mode = #tpu.pipeline_mode<synchronous>, transform_indices = @transform_6, window_bounds = array<i64: 2, 32, 32>}, {pipeline_mode = #tpu.pipeline_mode<synchronous>, transform_indices = @transform_7, window_bounds = array<i64: 2, 1, 32>}, {pipeline_mode = #tpu.pipeline_mode<synchronous>, transform_indices = @transform_8, window_bounds = array<i64: 2, 1, 32>}, {pipeline_mode = #tpu.pipeline_mode<synchronous>, transform_indices = @transform_9, window_bounds = array<i64: 2, 1, 32>}, {pipeline_mode = #tpu.pipeline_mode<synchronous>, transform_indices = @transform_10, window_bounds = array<i64: 2, 32, 64>}, {pipeline_mode = #tpu.pipeline_mode<synchronous>, transform_indices = @transform_11, window_bounds = array<i64: 2, 1, 64>}, {pipeline_mode = #tpu.pipeline_mode<synchronous>, transform_indices = @transform_12, window_bounds = array<i64: 2, 64, 32>}, {pipeline_mode = #tpu.pipeline_mode<synchronous>, transform_indices = @transform_13, window_bounds = array<i64: 2, 1, 32>}, {pipeline_mode = #tpu.pipeline_mode<synchronous>, transform_indices = @transform_14, window_bounds = array<i64: 2, 1, 32>}, {pipeline_mode = #tpu.pipeline_mode<synchronous>, transform_indices = @transform_15, window_bounds = array<i64: 2, 1, 32>}, {pipeline_mode = #tpu.pipeline_mode<synchronous>, transform_indices = @transform_16, window_bounds = array<i64: 32, 32>}, {pipeline_mode = #tpu.pipeline_mode<synchronous>, transform_indices = @transform_17, window_bounds = array<i64: 1, 32>}, {pipeline_mode = #tpu.pipeline_mode<synchronous>, transform_indices = @transform_18, window_bounds = array<i64: 32, 128>}, {pipeline_mode = #tpu.pipeline_mode<synchronous>, transform_indices = @transform_19, window_bounds = array<i64: 1, 128>}, {transform_indices = @transform_20, window_bounds = array<i64: 4, 1, 128>}]} {
    %c0 = arith.constant 0 : index
    %c0_0 = arith.constant 0 : index
    %c0_1 = arith.constant 0 : index
    %0 = vector.load %arg1[%c0, %c0_0, %c0_1] : memref<4x8x32xf32, #tpu.memory_space<vmem>>, vector<4x8x32xf32>
    %1 = vector.shape_cast %0 : vector<4x8x32xf32> to vector<32x32xf32>
    %c0_2 = arith.constant 0 : index
    %c0_3 = arith.constant 0 : index
    %c0_4 = arith.constant 0 : index
    %2 = vector.load %arg2[%c0_2, %c0_3, %c0_4] : memref<4x1x8xf32, #tpu.memory_space<vmem>>, vector<4x1x8xf32>
    %c0_5 = arith.constant 0 : index
    %c0_6 = arith.constant 0 : index
    %3 = vector.load %arg3[%c0_5, %c0_6] : memref<1x32xf32, #tpu.memory_space<vmem>>, vector<1x32xf32>
    %c0_7 = arith.constant 0 : index
    %c0_8 = arith.constant 0 : index
    %4 = vector.load %arg4[%c0_7, %c0_8] : memref<1x32xf32, #tpu.memory_space<vmem>>, vector<1x32xf32>
    %cst = arith.constant dense<0.000000e+00> : vector<32xf32>
    %5 = vector.multi_reduction <add>, %1, %cst [1] : vector<32x32xf32> to vector<32xf32>
    %6 = vector.shape_cast %5 : vector<32xf32> to vector<32x1xf32>
    %cst_9 = arith.constant 3.200000e+01 : f32
    %7 = vector.broadcast %cst_9 : f32 to vector<32x1xf32>
    %8 = arith.divf %6, %7 : vector<32x1xf32>
    %9 = vector.broadcast %8 : vector<32x1xf32> to vector<32x32xf32>
    %10 = arith.subf %1, %9 : vector<32x32xf32>
    %11 = arith.mulf %10, %10 : vector<32x32xf32>
    %cst_10 = arith.constant dense<0.000000e+00> : vector<32xf32>
    %12 = vector.multi_reduction <add>, %11, %cst_10 [1] : vector<32x32xf32> to vector<32xf32>
    %13 = vector.shape_cast %12 : vector<32xf32> to vector<32x1xf32>
    %cst_11 = arith.constant 3.200000e+01 : f32
    %14 = vector.broadcast %cst_11 : f32 to vector<32x1xf32>
    %15 = arith.divf %13, %14 : vector<32x1xf32>
    %16 = vector.broadcast %8 : vector<32x1xf32> to vector<32x32xf32>
    %17 = arith.subf %1, %16 : vector<32x32xf32>
    %cst_12 = arith.constant 9.99999996E-13 : f32
    %18 = vector.broadcast %cst_12 : f32 to vector<32x1xf32>
    %19 = arith.addf %15, %18 : vector<32x1xf32>
    %20 = math.rsqrt %19 : vector<32x1xf32>
    %21 = vector.broadcast %20 : vector<32x1xf32> to vector<32x32xf32>
    %22 = arith.mulf %17, %21 : vector<32x32xf32>
    %23 = vector.broadcast %3 : vector<1x32xf32> to vector<32x32xf32>
    %24 = arith.mulf %22, %23 : vector<32x32xf32>
    %25 = vector.broadcast %4 : vector<1x32xf32> to vector<32x32xf32>
    %26 = arith.addf %24, %25 : vector<32x32xf32>
    %c0_13 = arith.constant 0 : index
    %c0_14 = arith.constant 0 : index
    %c0_15 = arith.constant 0 : index
    %27 = vector.load %arg5[%c0_13, %c0_14, %c0_15] : memref<2x32x96xf32, #tpu.memory_space<vmem>>, vector<1x32x96xf32>
    %28 = vector.shape_cast %27 : vector<1x32x96xf32> to vector<32x96xf32>
    %cst_16 = arith.constant dense<0.000000e+00> : vector<32x96xf32>
    %29 = tpu.matmul %26, %28, %cst_16 {dimension_numbers = #tpu.dot_dimension_numbers<[1], [0], [0], [1], [0, 0, 1, 1], [], []>} : vector<32x32xf32>, vector<32x96xf32>, vector<32x96xf32> -> vector<32x96xf32>
    %c0_17 = arith.constant 0 : index
    %c0_18 = arith.constant 0 : index
    %c0_19 = arith.constant 0 : index
    %30 = vector.load %arg6[%c0_17, %c0_18, %c0_19] : memref<2x1x96xf32, #tpu.memory_space<vmem>>, vector<1x1x96xf32>
    %31 = vector.shape_cast %30 : vector<1x1x96xf32> to vector<1x96xf32>
    %32 = vector.broadcast %31 : vector<1x96xf32> to vector<32x96xf32>
    %33 = arith.addf %29, %32 : vector<32x96xf32>
    %34 = vector.shape_cast %33 : vector<32x96xf32> to vector<4x8x96xf32>
    %35 = vector.extract_strided_slice %34 {offsets = [0, 0, 0], sizes = [4, 8, 8], strides = [1, 1, 1]} : vector<4x8x96xf32> to vector<4x8x8xf32>
    %36 = vector.extract_strided_slice %34 {offsets = [0, 0, 32], sizes = [4, 8, 8], strides = [1, 1, 1]} : vector<4x8x96xf32> to vector<4x8x8xf32>
    %37 = vector.extract_strided_slice %34 {offsets = [0, 0, 64], sizes = [4, 8, 8], strides = [1, 1, 1]} : vector<4x8x96xf32> to vector<4x8x8xf32>
    "tpu.trace_start"() <{level = 10 : i32, message = "bqd,bkd->bqk"}> : () -> ()
    %cst_20 = arith.constant dense<0.000000e+00> : vector<4x8x8xf32>
    %38 = tpu.matmul %35, %36, %cst_20 {dimension_numbers = #tpu.dot_dimension_numbers<[2], [2], [1], [1], [0, 0, 0, 1, 1, 1], [0], [0]>} : vector<4x8x8xf32>, vector<4x8x8xf32>, vector<4x8x8xf32> -> vector<4x8x8xf32>
    "tpu.trace_stop"() : () -> ()
    %39 = vector.broadcast %2 : vector<4x1x8xf32> to vector<4x8x8xf32>
    %40 = arith.addf %38, %39 : vector<4x8x8xf32>
    %cst_21 = arith.constant dense<0xFF800000> : vector<4x8xf32>
    %41 = vector.multi_reduction <maximumf>, %40, %cst_21 [2] : vector<4x8x8xf32> to vector<4x8xf32>
    %42 = vector.shape_cast %41 : vector<4x8xf32> to vector<4x8x1xf32>
    %43 = vector.broadcast %42 : vector<4x8x1xf32> to vector<4x8x8xf32>
    %44 = arith.subf %40, %43 : vector<4x8x8xf32>
    %45 = math.exp %44 : vector<4x8x8xf32>
    %cst_22 = arith.constant dense<0.000000e+00> : vector<4x8xf32>
    %46 = vector.multi_reduction <add>, %45, %cst_22 [2] : vector<4x8x8xf32> to vector<4x8xf32>
    %47 = vector.shape_cast %46 : vector<4x8xf32> to vector<4x8x1xf32>
    %48 = vector.broadcast %47 : vector<4x8x1xf32> to vector<4x8x8xf32>
    %49 = arith.divf %45, %48 : vector<4x8x8xf32>
    "tpu.trace_start"() <{level = 10 : i32, message = "bqk,bkd->bqd"}> : () -> ()
    %cst_23 = arith.constant dense<0.000000e+00> : vector<4x8x8xf32>
    %50 = tpu.matmul %49, %37, %cst_23 {dimension_numbers = #tpu.dot_dimension_numbers<[2], [1], [1], [2], [0, 0, 0, 1, 1, 2], [0], [0]>} : vector<4x8x8xf32>, vector<4x8x8xf32>, vector<4x8x8xf32> -> vector<4x8x8xf32>
    "tpu.trace_stop"() : () -> ()
    %51 = vector.extract_strided_slice %34 {offsets = [0, 0, 8], sizes = [4, 8, 8], strides = [1, 1, 1]} : vector<4x8x96xf32> to vector<4x8x8xf32>
    %52 = vector.extract_strided_slice %34 {offsets = [0, 0, 40], sizes = [4, 8, 8], strides = [1, 1, 1]} : vector<4x8x96xf32> to vector<4x8x8xf32>
    %53 = vector.extract_strided_slice %34 {offsets = [0, 0, 72], sizes = [4, 8, 8], strides = [1, 1, 1]} : vector<4x8x96xf32> to vector<4x8x8xf32>
    "tpu.trace_start"() <{level = 10 : i32, message = "bqd,bkd->bqk"}> : () -> ()
    %cst_24 = arith.constant dense<0.000000e+00> : vector<4x8x8xf32>
    %54 = tpu.matmul %51, %52, %cst_24 {dimension_numbers = #tpu.dot_dimension_numbers<[2], [2], [1], [1], [0, 0, 0, 1, 1, 1], [0], [0]>} : vector<4x8x8xf32>, vector<4x8x8xf32>, vector<4x8x8xf32> -> vector<4x8x8xf32>
    "tpu.trace_stop"() : () -> ()
    %55 = vector.broadcast %2 : vector<4x1x8xf32> to vector<4x8x8xf32>
    %56 = arith.addf %54, %55 : vector<4x8x8xf32>
    %cst_25 = arith.constant dense<0xFF800000> : vector<4x8xf32>
    %57 = vector.multi_reduction <maximumf>, %56, %cst_25 [2] : vector<4x8x8xf32> to vector<4x8xf32>
    %58 = vector.shape_cast %57 : vector<4x8xf32> to vector<4x8x1xf32>
    %59 = vector.broadcast %58 : vector<4x8x1xf32> to vector<4x8x8xf32>
    %60 = arith.subf %56, %59 : vector<4x8x8xf32>
    %61 = math.exp %60 : vector<4x8x8xf32>
    %cst_26 = arith.constant dense<0.000000e+00> : vector<4x8xf32>
    %62 = vector.multi_reduction <add>, %61, %cst_26 [2] : vector<4x8x8xf32> to vector<4x8xf32>
    %63 = vector.shape_cast %62 : vector<4x8xf32> to vector<4x8x1xf32>
    %64 = vector.broadcast %63 : vector<4x8x1xf32> to vector<4x8x8xf32>
    %65 = arith.divf %61, %64 : vector<4x8x8xf32>
    "tpu.trace_start"() <{level = 10 : i32, message = "bqk,bkd->bqd"}> : () -> ()
    %cst_27 = arith.constant dense<0.000000e+00> : vector<4x8x8xf32>
    %66 = tpu.matmul %65, %53, %cst_27 {dimension_numbers = #tpu.dot_dimension_numbers<[2], [1], [1], [2], [0, 0, 0, 1, 1, 2], [0], [0]>} : vector<4x8x8xf32>, vector<4x8x8xf32>, vector<4x8x8xf32> -> vector<4x8x8xf32>
    "tpu.trace_stop"() : () -> ()
    %67 = vector.extract_strided_slice %34 {offsets = [0, 0, 16], sizes = [4, 8, 8], strides = [1, 1, 1]} : vector<4x8x96xf32> to vector<4x8x8xf32>
    %68 = vector.extract_strided_slice %34 {offsets = [0, 0, 48], sizes = [4, 8, 8], strides = [1, 1, 1]} : vector<4x8x96xf32> to vector<4x8x8xf32>
    %69 = vector.extract_strided_slice %34 {offsets = [0, 0, 80], sizes = [4, 8, 8], strides = [1, 1, 1]} : vector<4x8x96xf32> to vector<4x8x8xf32>
    "tpu.trace_start"() <{level = 10 : i32, message = "bqd,bkd->bqk"}> : () -> ()
    %cst_28 = arith.constant dense<0.000000e+00> : vector<4x8x8xf32>
    %70 = tpu.matmul %67, %68, %cst_28 {dimension_numbers = #tpu.dot_dimension_numbers<[2], [2], [1], [1], [0, 0, 0, 1, 1, 1], [0], [0]>} : vector<4x8x8xf32>, vector<4x8x8xf32>, vector<4x8x8xf32> -> vector<4x8x8xf32>
    "tpu.trace_stop"() : () -> ()
    %71 = vector.broadcast %2 : vector<4x1x8xf32> to vector<4x8x8xf32>
    %72 = arith.addf %70, %71 : vector<4x8x8xf32>
    %cst_29 = arith.constant dense<0xFF800000> : vector<4x8xf32>
    %73 = vector.multi_reduction <maximumf>, %72, %cst_29 [2] : vector<4x8x8xf32> to vector<4x8xf32>
    %74 = vector.shape_cast %73 : vector<4x8xf32> to vector<4x8x1xf32>
    %75 = vector.broadcast %74 : vector<4x8x1xf32> to vector<4x8x8xf32>
    %76 = arith.subf %72, %75 : vector<4x8x8xf32>
    %77 = math.exp %76 : vector<4x8x8xf32>
    %cst_30 = arith.constant dense<0.000000e+00> : vector<4x8xf32>
    %78 = vector.multi_reduction <add>, %77, %cst_30 [2] : vector<4x8x8xf32> to vector<4x8xf32>
    %79 = vector.shape_cast %78 : vector<4x8xf32> to vector<4x8x1xf32>
    %80 = vector.broadcast %79 : vector<4x8x1xf32> to vector<4x8x8xf32>
    %81 = arith.divf %77, %80 : vector<4x8x8xf32>
    "tpu.trace_start"() <{level = 10 : i32, message = "bqk,bkd->bqd"}> : () -> ()
    %cst_31 = arith.constant dense<0.000000e+00> : vector<4x8x8xf32>
    %82 = tpu.matmul %81, %69, %cst_31 {dimension_numbers = #tpu.dot_dimension_numbers<[2], [1], [1], [2], [0, 0, 0, 1, 1, 2], [0], [0]>} : vector<4x8x8xf32>, vector<4x8x8xf32>, vector<4x8x8xf32> -> vector<4x8x8xf32>
    "tpu.trace_stop"() : () -> ()
    %83 = vector.extract_strided_slice %34 {offsets = [0, 0, 24], sizes = [4, 8, 8], strides = [1, 1, 1]} : vector<4x8x96xf32> to vector<4x8x8xf32>
    %84 = vector.extract_strided_slice %34 {offsets = [0, 0, 56], sizes = [4, 8, 8], strides = [1, 1, 1]} : vector<4x8x96xf32> to vector<4x8x8xf32>
    %85 = vector.extract_strided_slice %34 {offsets = [0, 0, 88], sizes = [4, 8, 8], strides = [1, 1, 1]} : vector<4x8x96xf32> to vector<4x8x8xf32>
    "tpu.trace_start"() <{level = 10 : i32, message = "bqd,bkd->bqk"}> : () -> ()
    %cst_32 = arith.constant dense<0.000000e+00> : vector<4x8x8xf32>
    %86 = tpu.matmul %83, %84, %cst_32 {dimension_numbers = #tpu.dot_dimension_numbers<[2], [2], [1], [1], [0, 0, 0, 1, 1, 1], [0], [0]>} : vector<4x8x8xf32>, vector<4x8x8xf32>, vector<4x8x8xf32> -> vector<4x8x8xf32>
    "tpu.trace_stop"() : () -> ()
    %87 = vector.broadcast %2 : vector<4x1x8xf32> to vector<4x8x8xf32>
    %88 = arith.addf %86, %87 : vector<4x8x8xf32>
    %cst_33 = arith.constant dense<0xFF800000> : vector<4x8xf32>
    %89 = vector.multi_reduction <maximumf>, %88, %cst_33 [2] : vector<4x8x8xf32> to vector<4x8xf32>
    %90 = vector.shape_cast %89 : vector<4x8xf32> to vector<4x8x1xf32>
    %91 = vector.broadcast %90 : vector<4x8x1xf32> to vector<4x8x8xf32>
    %92 = arith.subf %88, %91 : vector<4x8x8xf32>
    %93 = math.exp %92 : vector<4x8x8xf32>
    %cst_34 = arith.constant dense<0.000000e+00> : vector<4x8xf32>
    %94 = vector.multi_reduction <add>, %93, %cst_34 [2] : vector<4x8x8xf32> to vector<4x8xf32>
    %95 = vector.shape_cast %94 : vector<4x8xf32> to vector<4x8x1xf32>
    %96 = vector.broadcast %95 : vector<4x8x1xf32> to vector<4x8x8xf32>
    %97 = arith.divf %93, %96 : vector<4x8x8xf32>
    "tpu.trace_start"() <{level = 10 : i32, message = "bqk,bkd->bqd"}> : () -> ()
    %cst_35 = arith.constant dense<0.000000e+00> : vector<4x8x8xf32>
    %98 = tpu.matmul %97, %85, %cst_35 {dimension_numbers = #tpu.dot_dimension_numbers<[2], [1], [1], [2], [0, 0, 0, 1, 1, 2], [0], [0]>} : vector<4x8x8xf32>, vector<4x8x8xf32>, vector<4x8x8xf32> -> vector<4x8x8xf32>
    "tpu.trace_stop"() : () -> ()
    %99 = tpu.concatenate %50, %66, %82, %98 in 2 : vector<4x8x8xf32>, vector<4x8x8xf32>, vector<4x8x8xf32>, vector<4x8x8xf32> -> vector<4x8x32xf32>
    %100 = vector.shape_cast %99 : vector<4x8x32xf32> to vector<32x32xf32>
    %c0_36 = arith.constant 0 : index
    %c0_37 = arith.constant 0 : index
    %c0_38 = arith.constant 0 : index
    %101 = vector.load %arg7[%c0_36, %c0_37, %c0_38] : memref<2x32x32xf32, #tpu.memory_space<vmem>>, vector<1x32x32xf32>
    %102 = vector.shape_cast %101 : vector<1x32x32xf32> to vector<32x32xf32>
    %cst_39 = arith.constant dense<0.000000e+00> : vector<32x32xf32>
    %103 = tpu.matmul %100, %102, %cst_39 {dimension_numbers = #tpu.dot_dimension_numbers<[1], [0], [0], [1], [0, 0, 1, 1], [], []>} : vector<32x32xf32>, vector<32x32xf32>, vector<32x32xf32> -> vector<32x32xf32>
    %c0_40 = arith.constant 0 : index
    %c0_41 = arith.constant 0 : index
    %c0_42 = arith.constant 0 : index
    %104 = vector.load %arg8[%c0_40, %c0_41, %c0_42] : memref<2x1x32xf32, #tpu.memory_space<vmem>>, vector<1x1x32xf32>
    %105 = vector.shape_cast %104 : vector<1x1x32xf32> to vector<1x32xf32>
    %106 = vector.broadcast %105 : vector<1x32xf32> to vector<32x32xf32>
    %107 = arith.addf %103, %106 : vector<32x32xf32>
    %108 = arith.addf %107, %26 : vector<32x32xf32>
    %c0_43 = arith.constant 0 : index
    %c0_44 = arith.constant 0 : index
    %c0_45 = arith.constant 0 : index
    %109 = vector.load %arg9[%c0_43, %c0_44, %c0_45] : memref<2x1x32xf32, #tpu.memory_space<vmem>>, vector<1x1x32xf32>
    %110 = vector.shape_cast %109 : vector<1x1x32xf32> to vector<1x32xf32>
    %c0_46 = arith.constant 0 : index
    %c0_47 = arith.constant 0 : index
    %c0_48 = arith.constant 0 : index
    %111 = vector.load %arg10[%c0_46, %c0_47, %c0_48] : memref<2x1x32xf32, #tpu.memory_space<vmem>>, vector<1x1x32xf32>
    %112 = vector.shape_cast %111 : vector<1x1x32xf32> to vector<1x32xf32>
    %cst_49 = arith.constant dense<0.000000e+00> : vector<32xf32>
    %113 = vector.multi_reduction <add>, %108, %cst_49 [1] : vector<32x32xf32> to vector<32xf32>
    %114 = vector.shape_cast %113 : vector<32xf32> to vector<32x1xf32>
    %cst_50 = arith.constant 3.200000e+01 : f32
    %115 = vector.broadcast %cst_50 : f32 to vector<32x1xf32>
    %116 = arith.divf %114, %115 : vector<32x1xf32>
    %117 = vector.broadcast %116 : vector<32x1xf32> to vector<32x32xf32>
    %118 = arith.subf %108, %117 : vector<32x32xf32>
    %119 = arith.mulf %118, %118 : vector<32x32xf32>
    %cst_51 = arith.constant dense<0.000000e+00> : vector<32xf32>
    %120 = vector.multi_reduction <add>, %119, %cst_51 [1] : vector<32x32xf32> to vector<32xf32>
    %121 = vector.shape_cast %120 : vector<32xf32> to vector<32x1xf32>
    %cst_52 = arith.constant 3.200000e+01 : f32
    %122 = vector.broadcast %cst_52 : f32 to vector<32x1xf32>
    %123 = arith.divf %121, %122 : vector<32x1xf32>
    %124 = vector.broadcast %116 : vector<32x1xf32> to vector<32x32xf32>
    %125 = arith.subf %108, %124 : vector<32x32xf32>
    %cst_53 = arith.constant 9.99999996E-13 : f32
    %126 = vector.broadcast %cst_53 : f32 to vector<32x1xf32>
    %127 = arith.addf %123, %126 : vector<32x1xf32>
    %128 = math.rsqrt %127 : vector<32x1xf32>
    %129 = vector.broadcast %128 : vector<32x1xf32> to vector<32x32xf32>
    %130 = arith.mulf %125, %129 : vector<32x32xf32>
    %131 = vector.broadcast %110 : vector<1x32xf32> to vector<32x32xf32>
    %132 = arith.mulf %130, %131 : vector<32x32xf32>
    %133 = vector.broadcast %112 : vector<1x32xf32> to vector<32x32xf32>
    %134 = arith.addf %132, %133 : vector<32x32xf32>
    %c0_54 = arith.constant 0 : index
    %c0_55 = arith.constant 0 : index
    %c0_56 = arith.constant 0 : index
    %135 = vector.load %arg11[%c0_54, %c0_55, %c0_56] : memref<2x32x64xf32, #tpu.memory_space<vmem>>, vector<1x32x64xf32>
    %136 = vector.shape_cast %135 : vector<1x32x64xf32> to vector<32x64xf32>
    %cst_57 = arith.constant dense<0.000000e+00> : vector<32x64xf32>
    %137 = tpu.matmul %134, %136, %cst_57 {dimension_numbers = #tpu.dot_dimension_numbers<[1], [0], [0], [1], [0, 0, 1, 1], [], []>} : vector<32x32xf32>, vector<32x64xf32>, vector<32x64xf32> -> vector<32x64xf32>
    %c0_58 = arith.constant 0 : index
    %c0_59 = arith.constant 0 : index
    %c0_60 = arith.constant 0 : index
    %138 = vector.load %arg12[%c0_58, %c0_59, %c0_60] : memref<2x1x64xf32, #tpu.memory_space<vmem>>, vector<1x1x64xf32>
    %139 = vector.shape_cast %138 : vector<1x1x64xf32> to vector<1x64xf32>
    %140 = vector.broadcast %139 : vector<1x64xf32> to vector<32x64xf32>
    %141 = arith.addf %137, %140 : vector<32x64xf32>
    %cst_61 = arith.constant 5.000000e-01 : f32
    %142 = vector.broadcast %cst_61 : f32 to vector<32x64xf32>
    %143 = arith.mulf %142, %141 : vector<32x64xf32>
    %cst_62 = arith.constant 4.471500e-02 : f32
    %144 = vector.broadcast %cst_62 : f32 to vector<32x64xf32>
    %145 = arith.mulf %144, %141 : vector<32x64xf32>
    %146 = arith.mulf %145, %141 : vector<32x64xf32>
    %147 = arith.mulf %146, %141 : vector<32x64xf32>
    %148 = arith.addf %141, %147 : vector<32x64xf32>
    %cst_63 = arith.constant 0.797884583 : f32
    %149 = vector.broadcast %cst_63 : f32 to vector<32x64xf32>
    %150 = arith.mulf %149, %148 : vector<32x64xf32>
    %151 = math.tanh %150 : vector<32x64xf32>
    %cst_64 = arith.constant 1.000000e+00 : f32
    %152 = vector.broadcast %cst_64 : f32 to vector<32x64xf32>
    %153 = arith.addf %152, %151 : vector<32x64xf32>
    %154 = arith.mulf %143, %153 : vector<32x64xf32>
    %c0_65 = arith.constant 0 : index
    %c0_66 = arith.constant 0 : index
    %c0_67 = arith.constant 0 : index
    %155 = vector.load %arg13[%c0_65, %c0_66, %c0_67] : memref<2x64x32xf32, #tpu.memory_space<vmem>>, vector<1x64x32xf32>
    %156 = vector.shape_cast %155 : vector<1x64x32xf32> to vector<64x32xf32>
    %cst_68 = arith.constant dense<0.000000e+00> : vector<32x32xf32>
    %157 = tpu.matmul %154, %156, %cst_68 {dimension_numbers = #tpu.dot_dimension_numbers<[1], [0], [0], [1], [0, 0, 1, 1], [], []>} : vector<32x64xf32>, vector<64x32xf32>, vector<32x32xf32> -> vector<32x32xf32>
    %c0_69 = arith.constant 0 : index
    %c0_70 = arith.constant 0 : index
    %c0_71 = arith.constant 0 : index
    %158 = vector.load %arg14[%c0_69, %c0_70, %c0_71] : memref<2x1x32xf32, #tpu.memory_space<vmem>>, vector<1x1x32xf32>
    %159 = vector.shape_cast %158 : vector<1x1x32xf32> to vector<1x32xf32>
    %160 = vector.broadcast %159 : vector<1x32xf32> to vector<32x32xf32>
    %161 = arith.addf %157, %160 : vector<32x32xf32>
    %162 = arith.addf %161, %134 : vector<32x32xf32>
    %c0_72 = arith.constant 0 : index
    %c0_73 = arith.constant 0 : index
    %c0_74 = arith.constant 0 : index
    %163 = vector.load %arg15[%c0_72, %c0_73, %c0_74] : memref<2x1x32xf32, #tpu.memory_space<vmem>>, vector<1x1x32xf32>
    %164 = vector.shape_cast %163 : vector<1x1x32xf32> to vector<1x32xf32>
    %c0_75 = arith.constant 0 : index
    %c0_76 = arith.constant 0 : index
    %c0_77 = arith.constant 0 : index
    %165 = vector.load %arg16[%c0_75, %c0_76, %c0_77] : memref<2x1x32xf32, #tpu.memory_space<vmem>>, vector<1x1x32xf32>
    %166 = vector.shape_cast %165 : vector<1x1x32xf32> to vector<1x32xf32>
    %cst_78 = arith.constant dense<0.000000e+00> : vector<32xf32>
    %167 = vector.multi_reduction <add>, %162, %cst_78 [1] : vector<32x32xf32> to vector<32xf32>
    %168 = vector.shape_cast %167 : vector<32xf32> to vector<32x1xf32>
    %cst_79 = arith.constant 3.200000e+01 : f32
    %169 = vector.broadcast %cst_79 : f32 to vector<32x1xf32>
    %170 = arith.divf %168, %169 : vector<32x1xf32>
    %171 = vector.broadcast %170 : vector<32x1xf32> to vector<32x32xf32>
    %172 = arith.subf %162, %171 : vector<32x32xf32>
    %173 = arith.mulf %172, %172 : vector<32x32xf32>
    %cst_80 = arith.constant dense<0.000000e+00> : vector<32xf32>
    %174 = vector.multi_reduction <add>, %173, %cst_80 [1] : vector<32x32xf32> to vector<32xf32>
    %175 = vector.shape_cast %174 : vector<32xf32> to vector<32x1xf32>
    %cst_81 = arith.constant 3.200000e+01 : f32
    %176 = vector.broadcast %cst_81 : f32 to vector<32x1xf32>
    %177 = arith.divf %175, %176 : vector<32x1xf32>
    %178 = vector.broadcast %170 : vector<32x1xf32> to vector<32x32xf32>
    %179 = arith.subf %162, %178 : vector<32x32xf32>
    %cst_82 = arith.constant 9.99999996E-13 : f32
    %180 = vector.broadcast %cst_82 : f32 to vector<32x1xf32>
    %181 = arith.addf %177, %180 : vector<32x1xf32>
    %182 = math.rsqrt %181 : vector<32x1xf32>
    %183 = vector.broadcast %182 : vector<32x1xf32> to vector<32x32xf32>
    %184 = arith.mulf %179, %183 : vector<32x32xf32>
    %185 = vector.broadcast %164 : vector<1x32xf32> to vector<32x32xf32>
    %186 = arith.mulf %184, %185 : vector<32x32xf32>
    %187 = vector.broadcast %166 : vector<1x32xf32> to vector<32x32xf32>
    %188 = arith.addf %186, %187 : vector<32x32xf32>
    %c1 = arith.constant 1 : index
    %c0_83 = arith.constant 0 : index
    %c0_84 = arith.constant 0 : index
    %189 = vector.load %arg5[%c1, %c0_83, %c0_84] : memref<2x32x96xf32, #tpu.memory_space<vmem>>, vector<1x32x96xf32>
    %190 = vector.shape_cast %189 : vector<1x32x96xf32> to vector<32x96xf32>
    %cst_85 = arith.constant dense<0.000000e+00> : vector<32x96xf32>
    %191 = tpu.matmul %188, %190, %cst_85 {dimension_numbers = #tpu.dot_dimension_numbers<[1], [0], [0], [1], [0, 0, 1, 1], [], []>} : vector<32x32xf32>, vector<32x96xf32>, vector<32x96xf32> -> vector<32x96xf32>
    %c1_86 = arith.constant 1 : index
    %c0_87 = arith.constant 0 : index
    %c0_88 = arith.constant 0 : index
    %192 = vector.load %arg6[%c1_86, %c0_87, %c0_88] : memref<2x1x96xf32, #tpu.memory_space<vmem>>, vector<1x1x96xf32>
    %193 = vector.shape_cast %192 : vector<1x1x96xf32> to vector<1x96xf32>
    %194 = vector.broadcast %193 : vector<1x96xf32> to vector<32x96xf32>
    %195 = arith.addf %191, %194 : vector<32x96xf32>
    %196 = vector.shape_cast %195 : vector<32x96xf32> to vector<4x8x96xf32>
    %197 = vector.extract_strided_slice %196 {offsets = [0, 0, 0], sizes = [4, 8, 8], strides = [1, 1, 1]} : vector<4x8x96xf32> to vector<4x8x8xf32>
    %198 = vector.extract_strided_slice %196 {offsets = [0, 0, 32], sizes = [4, 8, 8], strides = [1, 1, 1]} : vector<4x8x96xf32> to vector<4x8x8xf32>
    %199 = vector.extract_strided_slice %196 {offsets = [0, 0, 64], sizes = [4, 8, 8], strides = [1, 1, 1]} : vector<4x8x96xf32> to vector<4x8x8xf32>
    "tpu.trace_start"() <{level = 10 : i32, message = "bqd,bkd->bqk"}> : () -> ()
    %cst_89 = arith.constant dense<0.000000e+00> : vector<4x8x8xf32>
    %200 = tpu.matmul %197, %198, %cst_89 {dimension_numbers = #tpu.dot_dimension_numbers<[2], [2], [1], [1], [0, 0, 0, 1, 1, 1], [0], [0]>} : vector<4x8x8xf32>, vector<4x8x8xf32>, vector<4x8x8xf32> -> vector<4x8x8xf32>
    "tpu.trace_stop"() : () -> ()
    %201 = vector.broadcast %2 : vector<4x1x8xf32> to vector<4x8x8xf32>
    %202 = arith.addf %200, %201 : vector<4x8x8xf32>
    %cst_90 = arith.constant dense<0xFF800000> : vector<4x8xf32>
    %203 = vector.multi_reduction <maximumf>, %202, %cst_90 [2] : vector<4x8x8xf32> to vector<4x8xf32>
    %204 = vector.shape_cast %203 : vector<4x8xf32> to vector<4x8x1xf32>
    %205 = vector.broadcast %204 : vector<4x8x1xf32> to vector<4x8x8xf32>
    %206 = arith.subf %202, %205 : vector<4x8x8xf32>
    %207 = math.exp %206 : vector<4x8x8xf32>
    %cst_91 = arith.constant dense<0.000000e+00> : vector<4x8xf32>
    %208 = vector.multi_reduction <add>, %207, %cst_91 [2] : vector<4x8x8xf32> to vector<4x8xf32>
    %209 = vector.shape_cast %208 : vector<4x8xf32> to vector<4x8x1xf32>
    %210 = vector.broadcast %209 : vector<4x8x1xf32> to vector<4x8x8xf32>
    %211 = arith.divf %207, %210 : vector<4x8x8xf32>
    "tpu.trace_start"() <{level = 10 : i32, message = "bqk,bkd->bqd"}> : () -> ()
    %cst_92 = arith.constant dense<0.000000e+00> : vector<4x8x8xf32>
    %212 = tpu.matmul %211, %199, %cst_92 {dimension_numbers = #tpu.dot_dimension_numbers<[2], [1], [1], [2], [0, 0, 0, 1, 1, 2], [0], [0]>} : vector<4x8x8xf32>, vector<4x8x8xf32>, vector<4x8x8xf32> -> vector<4x8x8xf32>
    "tpu.trace_stop"() : () -> ()
    %213 = vector.extract_strided_slice %196 {offsets = [0, 0, 8], sizes = [4, 8, 8], strides = [1, 1, 1]} : vector<4x8x96xf32> to vector<4x8x8xf32>
    %214 = vector.extract_strided_slice %196 {offsets = [0, 0, 40], sizes = [4, 8, 8], strides = [1, 1, 1]} : vector<4x8x96xf32> to vector<4x8x8xf32>
    %215 = vector.extract_strided_slice %196 {offsets = [0, 0, 72], sizes = [4, 8, 8], strides = [1, 1, 1]} : vector<4x8x96xf32> to vector<4x8x8xf32>
    "tpu.trace_start"() <{level = 10 : i32, message = "bqd,bkd->bqk"}> : () -> ()
    %cst_93 = arith.constant dense<0.000000e+00> : vector<4x8x8xf32>
    %216 = tpu.matmul %213, %214, %cst_93 {dimension_numbers = #tpu.dot_dimension_numbers<[2], [2], [1], [1], [0, 0, 0, 1, 1, 1], [0], [0]>} : vector<4x8x8xf32>, vector<4x8x8xf32>, vector<4x8x8xf32> -> vector<4x8x8xf32>
    "tpu.trace_stop"() : () -> ()
    %217 = vector.broadcast %2 : vector<4x1x8xf32> to vector<4x8x8xf32>
    %218 = arith.addf %216, %217 : vector<4x8x8xf32>
    %cst_94 = arith.constant dense<0xFF800000> : vector<4x8xf32>
    %219 = vector.multi_reduction <maximumf>, %218, %cst_94 [2] : vector<4x8x8xf32> to vector<4x8xf32>
    %220 = vector.shape_cast %219 : vector<4x8xf32> to vector<4x8x1xf32>
    %221 = vector.broadcast %220 : vector<4x8x1xf32> to vector<4x8x8xf32>
    %222 = arith.subf %218, %221 : vector<4x8x8xf32>
    %223 = math.exp %222 : vector<4x8x8xf32>
    %cst_95 = arith.constant dense<0.000000e+00> : vector<4x8xf32>
    %224 = vector.multi_reduction <add>, %223, %cst_95 [2] : vector<4x8x8xf32> to vector<4x8xf32>
    %225 = vector.shape_cast %224 : vector<4x8xf32> to vector<4x8x1xf32>
    %226 = vector.broadcast %225 : vector<4x8x1xf32> to vector<4x8x8xf32>
    %227 = arith.divf %223, %226 : vector<4x8x8xf32>
    "tpu.trace_start"() <{level = 10 : i32, message = "bqk,bkd->bqd"}> : () -> ()
    %cst_96 = arith.constant dense<0.000000e+00> : vector<4x8x8xf32>
    %228 = tpu.matmul %227, %215, %cst_96 {dimension_numbers = #tpu.dot_dimension_numbers<[2], [1], [1], [2], [0, 0, 0, 1, 1, 2], [0], [0]>} : vector<4x8x8xf32>, vector<4x8x8xf32>, vector<4x8x8xf32> -> vector<4x8x8xf32>
    "tpu.trace_stop"() : () -> ()
    %229 = vector.extract_strided_slice %196 {offsets = [0, 0, 16], sizes = [4, 8, 8], strides = [1, 1, 1]} : vector<4x8x96xf32> to vector<4x8x8xf32>
    %230 = vector.extract_strided_slice %196 {offsets = [0, 0, 48], sizes = [4, 8, 8], strides = [1, 1, 1]} : vector<4x8x96xf32> to vector<4x8x8xf32>
    %231 = vector.extract_strided_slice %196 {offsets = [0, 0, 80], sizes = [4, 8, 8], strides = [1, 1, 1]} : vector<4x8x96xf32> to vector<4x8x8xf32>
    "tpu.trace_start"() <{level = 10 : i32, message = "bqd,bkd->bqk"}> : () -> ()
    %cst_97 = arith.constant dense<0.000000e+00> : vector<4x8x8xf32>
    %232 = tpu.matmul %229, %230, %cst_97 {dimension_numbers = #tpu.dot_dimension_numbers<[2], [2], [1], [1], [0, 0, 0, 1, 1, 1], [0], [0]>} : vector<4x8x8xf32>, vector<4x8x8xf32>, vector<4x8x8xf32> -> vector<4x8x8xf32>
    "tpu.trace_stop"() : () -> ()
    %233 = vector.broadcast %2 : vector<4x1x8xf32> to vector<4x8x8xf32>
    %234 = arith.addf %232, %233 : vector<4x8x8xf32>
    %cst_98 = arith.constant dense<0xFF800000> : vector<4x8xf32>
    %235 = vector.multi_reduction <maximumf>, %234, %cst_98 [2] : vector<4x8x8xf32> to vector<4x8xf32>
    %236 = vector.shape_cast %235 : vector<4x8xf32> to vector<4x8x1xf32>
    %237 = vector.broadcast %236 : vector<4x8x1xf32> to vector<4x8x8xf32>
    %238 = arith.subf %234, %237 : vector<4x8x8xf32>
    %239 = math.exp %238 : vector<4x8x8xf32>
    %cst_99 = arith.constant dense<0.000000e+00> : vector<4x8xf32>
    %240 = vector.multi_reduction <add>, %239, %cst_99 [2] : vector<4x8x8xf32> to vector<4x8xf32>
    %241 = vector.shape_cast %240 : vector<4x8xf32> to vector<4x8x1xf32>
    %242 = vector.broadcast %241 : vector<4x8x1xf32> to vector<4x8x8xf32>
    %243 = arith.divf %239, %242 : vector<4x8x8xf32>
    "tpu.trace_start"() <{level = 10 : i32, message = "bqk,bkd->bqd"}> : () -> ()
    %cst_100 = arith.constant dense<0.000000e+00> : vector<4x8x8xf32>
    %244 = tpu.matmul %243, %231, %cst_100 {dimension_numbers = #tpu.dot_dimension_numbers<[2], [1], [1], [2], [0, 0, 0, 1, 1, 2], [0], [0]>} : vector<4x8x8xf32>, vector<4x8x8xf32>, vector<4x8x8xf32> -> vector<4x8x8xf32>
    "tpu.trace_stop"() : () -> ()
    %245 = vector.extract_strided_slice %196 {offsets = [0, 0, 24], sizes = [4, 8, 8], strides = [1, 1, 1]} : vector<4x8x96xf32> to vector<4x8x8xf32>
    %246 = vector.extract_strided_slice %196 {offsets = [0, 0, 56], sizes = [4, 8, 8], strides = [1, 1, 1]} : vector<4x8x96xf32> to vector<4x8x8xf32>
    %247 = vector.extract_strided_slice %196 {offsets = [0, 0, 88], sizes = [4, 8, 8], strides = [1, 1, 1]} : vector<4x8x96xf32> to vector<4x8x8xf32>
    "tpu.trace_start"() <{level = 10 : i32, message = "bqd,bkd->bqk"}> : () -> ()
    %cst_101 = arith.constant dense<0.000000e+00> : vector<4x8x8xf32>
    %248 = tpu.matmul %245, %246, %cst_101 {dimension_numbers = #tpu.dot_dimension_numbers<[2], [2], [1], [1], [0, 0, 0, 1, 1, 1], [0], [0]>} : vector<4x8x8xf32>, vector<4x8x8xf32>, vector<4x8x8xf32> -> vector<4x8x8xf32>
    "tpu.trace_stop"() : () -> ()
    %249 = vector.broadcast %2 : vector<4x1x8xf32> to vector<4x8x8xf32>
    %250 = arith.addf %248, %249 : vector<4x8x8xf32>
    %cst_102 = arith.constant dense<0xFF800000> : vector<4x8xf32>
    %251 = vector.multi_reduction <maximumf>, %250, %cst_102 [2] : vector<4x8x8xf32> to vector<4x8xf32>
    %252 = vector.shape_cast %251 : vector<4x8xf32> to vector<4x8x1xf32>
    %253 = vector.broadcast %252 : vector<4x8x1xf32> to vector<4x8x8xf32>
    %254 = arith.subf %250, %253 : vector<4x8x8xf32>
    %255 = math.exp %254 : vector<4x8x8xf32>
    %cst_103 = arith.constant dense<0.000000e+00> : vector<4x8xf32>
    %256 = vector.multi_reduction <add>, %255, %cst_103 [2] : vector<4x8x8xf32> to vector<4x8xf32>
    %257 = vector.shape_cast %256 : vector<4x8xf32> to vector<4x8x1xf32>
    %258 = vector.broadcast %257 : vector<4x8x1xf32> to vector<4x8x8xf32>
    %259 = arith.divf %255, %258 : vector<4x8x8xf32>
    "tpu.trace_start"() <{level = 10 : i32, message = "bqk,bkd->bqd"}> : () -> ()
    %cst_104 = arith.constant dense<0.000000e+00> : vector<4x8x8xf32>
    %260 = tpu.matmul %259, %247, %cst_104 {dimension_numbers = #tpu.dot_dimension_numbers<[2], [1], [1], [2], [0, 0, 0, 1, 1, 2], [0], [0]>} : vector<4x8x8xf32>, vector<4x8x8xf32>, vector<4x8x8xf32> -> vector<4x8x8xf32>
    "tpu.trace_stop"() : () -> ()
    %261 = tpu.concatenate %212, %228, %244, %260 in 2 : vector<4x8x8xf32>, vector<4x8x8xf32>, vector<4x8x8xf32>, vector<4x8x8xf32> -> vector<4x8x32xf32>
    %262 = vector.shape_cast %261 : vector<4x8x32xf32> to vector<32x32xf32>
    %c1_105 = arith.constant 1 : index
    %c0_106 = arith.constant 0 : index
    %c0_107 = arith.constant 0 : index
    %263 = vector.load %arg7[%c1_105, %c0_106, %c0_107] : memref<2x32x32xf32, #tpu.memory_space<vmem>>, vector<1x32x32xf32>
    %264 = vector.shape_cast %263 : vector<1x32x32xf32> to vector<32x32xf32>
    %cst_108 = arith.constant dense<0.000000e+00> : vector<32x32xf32>
    %265 = tpu.matmul %262, %264, %cst_108 {dimension_numbers = #tpu.dot_dimension_numbers<[1], [0], [0], [1], [0, 0, 1, 1], [], []>} : vector<32x32xf32>, vector<32x32xf32>, vector<32x32xf32> -> vector<32x32xf32>
    %c1_109 = arith.constant 1 : index
    %c0_110 = arith.constant 0 : index
    %c0_111 = arith.constant 0 : index
    %266 = vector.load %arg8[%c1_109, %c0_110, %c0_111] : memref<2x1x32xf32, #tpu.memory_space<vmem>>, vector<1x1x32xf32>
    %267 = vector.shape_cast %266 : vector<1x1x32xf32> to vector<1x32xf32>
    %268 = vector.broadcast %267 : vector<1x32xf32> to vector<32x32xf32>
    %269 = arith.addf %265, %268 : vector<32x32xf32>
    %270 = arith.addf %269, %188 : vector<32x32xf32>
    %c1_112 = arith.constant 1 : index
    %c0_113 = arith.constant 0 : index
    %c0_114 = arith.constant 0 : index
    %271 = vector.load %arg9[%c1_112, %c0_113, %c0_114] : memref<2x1x32xf32, #tpu.memory_space<vmem>>, vector<1x1x32xf32>
    %272 = vector.shape_cast %271 : vector<1x1x32xf32> to vector<1x32xf32>
    %c1_115 = arith.constant 1 : index
    %c0_116 = arith.constant 0 : index
    %c0_117 = arith.constant 0 : index
    %273 = vector.load %arg10[%c1_115, %c0_116, %c0_117] : memref<2x1x32xf32, #tpu.memory_space<vmem>>, vector<1x1x32xf32>
    %274 = vector.shape_cast %273 : vector<1x1x32xf32> to vector<1x32xf32>
    %cst_118 = arith.constant dense<0.000000e+00> : vector<32xf32>
    %275 = vector.multi_reduction <add>, %270, %cst_118 [1] : vector<32x32xf32> to vector<32xf32>
    %276 = vector.shape_cast %275 : vector<32xf32> to vector<32x1xf32>
    %cst_119 = arith.constant 3.200000e+01 : f32
    %277 = vector.broadcast %cst_119 : f32 to vector<32x1xf32>
    %278 = arith.divf %276, %277 : vector<32x1xf32>
    %279 = vector.broadcast %278 : vector<32x1xf32> to vector<32x32xf32>
    %280 = arith.subf %270, %279 : vector<32x32xf32>
    %281 = arith.mulf %280, %280 : vector<32x32xf32>
    %cst_120 = arith.constant dense<0.000000e+00> : vector<32xf32>
    %282 = vector.multi_reduction <add>, %281, %cst_120 [1] : vector<32x32xf32> to vector<32xf32>
    %283 = vector.shape_cast %282 : vector<32xf32> to vector<32x1xf32>
    %cst_121 = arith.constant 3.200000e+01 : f32
    %284 = vector.broadcast %cst_121 : f32 to vector<32x1xf32>
    %285 = arith.divf %283, %284 : vector<32x1xf32>
    %286 = vector.broadcast %278 : vector<32x1xf32> to vector<32x32xf32>
    %287 = arith.subf %270, %286 : vector<32x32xf32>
    %cst_122 = arith.constant 9.99999996E-13 : f32
    %288 = vector.broadcast %cst_122 : f32 to vector<32x1xf32>
    %289 = arith.addf %285, %288 : vector<32x1xf32>
    %290 = math.rsqrt %289 : vector<32x1xf32>
    %291 = vector.broadcast %290 : vector<32x1xf32> to vector<32x32xf32>
    %292 = arith.mulf %287, %291 : vector<32x32xf32>
    %293 = vector.broadcast %272 : vector<1x32xf32> to vector<32x32xf32>
    %294 = arith.mulf %292, %293 : vector<32x32xf32>
    %295 = vector.broadcast %274 : vector<1x32xf32> to vector<32x32xf32>
    %296 = arith.addf %294, %295 : vector<32x32xf32>
    %c1_123 = arith.constant 1 : index
    %c0_124 = arith.constant 0 : index
    %c0_125 = arith.constant 0 : index
    %297 = vector.load %arg11[%c1_123, %c0_124, %c0_125] : memref<2x32x64xf32, #tpu.memory_space<vmem>>, vector<1x32x64xf32>
    %298 = vector.shape_cast %297 : vector<1x32x64xf32> to vector<32x64xf32>
    %cst_126 = arith.constant dense<0.000000e+00> : vector<32x64xf32>
    %299 = tpu.matmul %296, %298, %cst_126 {dimension_numbers = #tpu.dot_dimension_numbers<[1], [0], [0], [1], [0, 0, 1, 1], [], []>} : vector<32x32xf32>, vector<32x64xf32>, vector<32x64xf32> -> vector<32x64xf32>
    %c1_127 = arith.constant 1 : index
    %c0_128 = arith.constant 0 : index
    %c0_129 = arith.constant 0 : index
    %300 = vector.load %arg12[%c1_127, %c0_128, %c0_129] : memref<2x1x64xf32, #tpu.memory_space<vmem>>, vector<1x1x64xf32>
    %301 = vector.shape_cast %300 : vector<1x1x64xf32> to vector<1x64xf32>
    %302 = vector.broadcast %301 : vector<1x64xf32> to vector<32x64xf32>
    %303 = arith.addf %299, %302 : vector<32x64xf32>
    %cst_130 = arith.constant 5.000000e-01 : f32
    %304 = vector.broadcast %cst_130 : f32 to vector<32x64xf32>
    %305 = arith.mulf %304, %303 : vector<32x64xf32>
    %cst_131 = arith.constant 4.471500e-02 : f32
    %306 = vector.broadcast %cst_131 : f32 to vector<32x64xf32>
    %307 = arith.mulf %306, %303 : vector<32x64xf32>
    %308 = arith.mulf %307, %303 : vector<32x64xf32>
    %309 = arith.mulf %308, %303 : vector<32x64xf32>
    %310 = arith.addf %303, %309 : vector<32x64xf32>
    %cst_132 = arith.constant 0.797884583 : f32
    %311 = vector.broadcast %cst_132 : f32 to vector<32x64xf32>
    %312 = arith.mulf %311, %310 : vector<32x64xf32>
    %313 = math.tanh %312 : vector<32x64xf32>
    %cst_133 = arith.constant 1.000000e+00 : f32
    %314 = vector.broadcast %cst_133 : f32 to vector<32x64xf32>
    %315 = arith.addf %314, %313 : vector<32x64xf32>
    %316 = arith.mulf %305, %315 : vector<32x64xf32>
    %c1_134 = arith.constant 1 : index
    %c0_135 = arith.constant 0 : index
    %c0_136 = arith.constant 0 : index
    %317 = vector.load %arg13[%c1_134, %c0_135, %c0_136] : memref<2x64x32xf32, #tpu.memory_space<vmem>>, vector<1x64x32xf32>
    %318 = vector.shape_cast %317 : vector<1x64x32xf32> to vector<64x32xf32>
    %cst_137 = arith.constant dense<0.000000e+00> : vector<32x32xf32>
    %319 = tpu.matmul %316, %318, %cst_137 {dimension_numbers = #tpu.dot_dimension_numbers<[1], [0], [0], [1], [0, 0, 1, 1], [], []>} : vector<32x64xf32>, vector<64x32xf32>, vector<32x32xf32> -> vector<32x32xf32>
    %c1_138 = arith.constant 1 : index
    %c0_139 = arith.constant 0 : index
    %c0_140 = arith.constant 0 : index
    %320 = vector.load %arg14[%c1_138, %c0_139, %c0_140] : memref<2x1x32xf32, #tpu.memory_space<vmem>>, vector<1x1x32xf32>
    %321 = vector.shape_cast %320 : vector<1x1x32xf32> to vector<1x32xf32>
    %322 = vector.broadcast %321 : vector<1x32xf32> to vector<32x32xf32>
    %323 = arith.addf %319, %322 : vector<32x32xf32>
    %324 = arith.addf %323, %296 : vector<32x32xf32>
    %c1_141 = arith.constant 1 : index
    %c0_142 = arith.constant 0 : index
    %c0_143 = arith.constant 0 : index
    %325 = vector.load %arg15[%c1_141, %c0_142, %c0_143] : memref<2x1x32xf32, #tpu.memory_space<vmem>>, vector<1x1x32xf32>
    %326 = vector.shape_cast %325 : vector<1x1x32xf32> to vector<1x32xf32>
    %c1_144 = arith.constant 1 : index
    %c0_145 = arith.constant 0 : index
    %c0_146 = arith.constant 0 : index
    %327 = vector.load %arg16[%c1_144, %c0_145, %c0_146] : memref<2x1x32xf32, #tpu.memory_space<vmem>>, vector<1x1x32xf32>
    %328 = vector.shape_cast %327 : vector<1x1x32xf32> to vector<1x32xf32>
    %cst_147 = arith.constant dense<0.000000e+00> : vector<32xf32>
    %329 = vector.multi_reduction <add>, %324, %cst_147 [1] : vector<32x32xf32> to vector<32xf32>
    %330 = vector.shape_cast %329 : vector<32xf32> to vector<32x1xf32>
    %cst_148 = arith.constant 3.200000e+01 : f32
    %331 = vector.broadcast %cst_148 : f32 to vector<32x1xf32>
    %332 = arith.divf %330, %331 : vector<32x1xf32>
    %333 = vector.broadcast %332 : vector<32x1xf32> to vector<32x32xf32>
    %334 = arith.subf %324, %333 : vector<32x32xf32>
    %335 = arith.mulf %334, %334 : vector<32x32xf32>
    %cst_149 = arith.constant dense<0.000000e+00> : vector<32xf32>
    %336 = vector.multi_reduction <add>, %335, %cst_149 [1] : vector<32x32xf32> to vector<32xf32>
    %337 = vector.shape_cast %336 : vector<32xf32> to vector<32x1xf32>
    %cst_150 = arith.constant 3.200000e+01 : f32
    %338 = vector.broadcast %cst_150 : f32 to vector<32x1xf32>
    %339 = arith.divf %337, %338 : vector<32x1xf32>
    %340 = vector.broadcast %332 : vector<32x1xf32> to vector<32x32xf32>
    %341 = arith.subf %324, %340 : vector<32x32xf32>
    %cst_151 = arith.constant 9.99999996E-13 : f32
    %342 = vector.broadcast %cst_151 : f32 to vector<32x1xf32>
    %343 = arith.addf %339, %342 : vector<32x1xf32>
    %344 = math.rsqrt %343 : vector<32x1xf32>
    %345 = vector.broadcast %344 : vector<32x1xf32> to vector<32x32xf32>
    %346 = arith.mulf %341, %345 : vector<32x32xf32>
    %347 = vector.broadcast %326 : vector<1x32xf32> to vector<32x32xf32>
    %348 = arith.mulf %346, %347 : vector<32x32xf32>
    %349 = vector.broadcast %328 : vector<1x32xf32> to vector<32x32xf32>
    %350 = arith.addf %348, %349 : vector<32x32xf32>
    %351 = vector.shape_cast %350 : vector<32x32xf32> to vector<4x8x32xf32>
    %352 = vector.extract_strided_slice %351 {offsets = [0, 0, 0], sizes = [4, 1, 32], strides = [1, 1, 1]} : vector<4x8x32xf32> to vector<4x1x32xf32>
    %353 = vector.shape_cast %352 : vector<4x1x32xf32> to vector<4x32xf32>
    %c0_152 = arith.constant 0 : index
    %c0_153 = arith.constant 0 : index
    %354 = vector.load %arg17[%c0_152, %c0_153] : memref<32x32xf32, #tpu.memory_space<vmem>>, vector<32x32xf32>
    %cst_154 = arith.constant dense<0.000000e+00> : vector<4x32xf32>
    %355 = tpu.matmul %353, %354, %cst_154 {dimension_numbers = #tpu.dot_dimension_numbers<[1], [0], [0], [1], [0, 0, 1, 1], [], []>} : vector<4x32xf32>, vector<32x32xf32>, vector<4x32xf32> -> vector<4x32xf32>
    %c0_155 = arith.constant 0 : index
    %c0_156 = arith.constant 0 : index
    %356 = vector.load %arg18[%c0_155, %c0_156] : memref<1x32xf32, #tpu.memory_space<vmem>>, vector<1x32xf32>
    %357 = vector.broadcast %356 : vector<1x32xf32> to vector<4x32xf32>
    %358 = arith.addf %355, %357 : vector<4x32xf32>
    %359 = math.tanh %358 : vector<4x32xf32>
    %c0_157 = arith.constant 0 : index
    %c0_158 = arith.constant 0 : index
    %360 = vector.load %arg19[%c0_157, %c0_158] : memref<32x128xf32, #tpu.memory_space<vmem>>, vector<32x128xf32>
    %cst_159 = arith.constant dense<0.000000e+00> : vector<4x128xf32>
    %361 = tpu.matmul %359, %360, %cst_159 {dimension_numbers = #tpu.dot_dimension_numbers<[1], [0], [0], [1], [0, 0, 1, 1], [], []>} : vector<4x32xf32>, vector<32x128xf32>, vector<4x128xf32> -> vector<4x128xf32>
    %c0_160 = arith.constant 0 : index
    %c0_161 = arith.constant 0 : index
    %362 = vector.load %arg20[%c0_160, %c0_161] : memref<1x128xf32, #tpu.memory_space<vmem>>, vector<1x128xf32>
    %363 = vector.broadcast %362 : vector<1x128xf32> to vector<4x128xf32>
    %364 = arith.addf %361, %363 : vector<4x128xf32>
    %365 = vector.shape_cast %364 : vector<4x128xf32> to vector<4x1x128xf32>
    %c0_162 = arith.constant 0 : index
    %c0_163 = arith.constant 0 : index
    %c0_164 = arith.constant 0 : index
    %366 = vector.load %arg21[%c0_162, %c0_163, %c0_164] : memref<4x1x128xf32, #tpu.memory_space<vmem>>, vector<4x1x128xf32>
    tpu.vector_store %arg21[%c0_162, %c0_163, %c0_164], %365 {strides = array<i32>} : memref<4x1x128xf32, #tpu.memory_space<vmem>>, vector<4x1x128xf32>,
    return
  }
  func.func @transform_0(%arg0: i32) -> (i32, i32, i32) {
    %c0_i32 = arith.constant 0 : i32
    %c0_i32_0 = arith.constant 0 : i32
    %c0_i32_1 = arith.constant 0 : i32
    return %arg0, %c0_i32, %c0_i32_0 : i32, i32, i32
  }
  func.func @transform_1(%arg0: i32) -> (i32, i32, i32) {
    %c0_i32 = arith.constant 0 : i32
    %c0_i32_0 = arith.constant 0 : i32
    %c0_i32_1 = arith.constant 0 : i32
    return %arg0, %c0_i32, %c0_i32_0 : i32, i32, i32
  }
  func.func @transform_2(%arg0: i32) -> (i32, i32) {
    %c0_i32 = arith.constant 0 : i32
    %c0_i32_0 = arith.constant 0 : i32
    %c0_i32_1 = arith.constant 0 : i32
    return %c0_i32, %c0_i32_0 : i32, i32
  }
  func.func @transform_3(%arg0: i32) -> (i32, i32) {
    %c0_i32 = arith.constant 0 : i32
    %c0_i32_0 = arith.constant 0 : i32
    %c0_i32_1 = arith.constant 0 : i32
    return %c0_i32, %c0_i32_0 : i32, i32
  }
  func.func @transform_4(%arg0: i32) -> (i32, i32, i32) {
    %c0_i32 = arith.constant 0 : i32
    %c0_i32_0 = arith.constant 0 : i32
    %c0_i32_1 = arith.constant 0 : i32
    %c0_i32_2 = arith.constant 0 : i32
    return %c0_i32, %c0_i32_0, %c0_i32_1 : i32, i32, i32
  }
  func.func @transform_5(%arg0: i32) -> (i32, i32, i32) {
    %c0_i32 = arith.constant 0 : i32
    %c0_i32_0 = arith.constant 0 : i32
    %c0_i32_1 = arith.constant 0 : i32
    %c0_i32_2 = arith.constant 0 : i32
    return %c0_i32, %c0_i32_0, %c0_i32_1 : i32, i32, i32
  }
  func.func @transform_6(%arg0: i32) -> (i32, i32, i32) {
    %c0_i32 = arith.constant 0 : i32
    %c0_i32_0 = arith.constant 0 : i32
    %c0_i32_1 = arith.constant 0 : i32
    %c0_i32_2 = arith.constant 0 : i32
    return %c0_i32, %c0_i32_0, %c0_i32_1 : i32, i32, i32
  }
  func.func @transform_7(%arg0: i32) -> (i32, i32, i32) {
    %c0_i32 = arith.constant 0 : i32
    %c0_i32_0 = arith.constant 0 : i32
    %c0_i32_1 = arith.constant 0 : i32
    %c0_i32_2 = arith.constant 0 : i32
    return %c0_i32, %c0_i32_0, %c0_i32_1 : i32, i32, i32
  }
  func.func @transform_8(%arg0: i32) -> (i32, i32, i32) {
    %c0_i32 = arith.constant 0 : i32
    %c0_i32_0 = arith.constant 0 : i32
    %c0_i32_1 = arith.constant 0 : i32
    %c0_i32_2 = arith.constant 0 : i32
    return %c0_i32, %c0_i32_0, %c0_i32_1 : i32, i32, i32
  }
  func.func @transform_9(%arg0: i32) -> (i32, i32, i32) {
    %c0_i32 = arith.constant 0 : i32
    %c0_i32_0 = arith.constant 0 : i32
    %c0_i32_1 = arith.constant 0 : i32
    %c0_i32_2 = arith.constant 0 : i32
    return %c0_i32, %c0_i32_0, %c0_i32_1 : i32, i32, i32
  }
  func.func @transform_10(%arg0: i32) -> (i32, i32, i32) {
    %c0_i32 = arith.constant 0 : i32
    %c0_i32_0 = arith.constant 0 : i32
    %c0_i32_1 = arith.constant 0 : i32
    %c0_i32_2 = arith.constant 0 : i32
    return %c0_i32, %c0_i32_0, %c0_i32_1 : i32, i32, i32
  }
  func.func @transform_11(%arg0: i32) -> (i32, i32, i32) {
    %c0_i32 = arith.constant 0 : i32
    %c0_i32_0 = arith.constant 0 : i32
    %c0_i32_1 = arith.constant 0 : i32
    %c0_i32_2 = arith.constant 0 : i32
    return %c0_i32, %c0_i32_0, %c0_i32_1 : i32, i32, i32
  }
  func.func @transform_12(%arg0: i32) -> (i32, i32, i32) {
    %c0_i32 = arith.constant 0 : i32
    %c0_i32_0 = arith.constant 0 : i32
    %c0_i32_1 = arith.constant 0 : i32
    %c0_i32_2 = arith.constant 0 : i32
    return %c0_i32, %c0_i32_0, %c0_i32_1 : i32, i32, i32
  }
  func.func @transform_13(%arg0: i32) -> (i32, i32, i32) {
    %c0_i32 = arith.constant 0 : i32
    %c0_i32_0 = arith.constant 0 : i32
    %c0_i32_1 = arith.constant 0 : i32
    %c0_i32_2 = arith.constant 0 : i32
    return %c0_i32, %c0_i32_0, %c0_i32_1 : i32, i32, i32
  }
  func.func @transform_14(%arg0: i32) -> (i32, i32, i32) {
    %c0_i32 = arith.constant 0 : i32
    %c0_i32_0 = arith.constant 0 : i32
    %c0_i32_1 = arith.constant 0 : i32
    %c0_i32_2 = arith.constant 0 : i32
    return %c0_i32, %c0_i32_0, %c0_i32_1 : i32, i32, i32
  }
  func.func @transform_15(%arg0: i32) -> (i32, i32, i32) {
    %c0_i32 = arith.constant 0 : i32
    %c0_i32_0 = arith.constant 0 : i32
    %c0_i32_1 = arith.constant 0 : i32
    %c0_i32_2 = arith.constant 0 : i32
    return %c0_i32, %c0_i32_0, %c0_i32_1 : i32, i32, i32
  }
  func.func @transform_16(%arg0: i32) -> (i32, i32) {
    %c0_i32 = arith.constant 0 : i32
    %c0_i32_0 = arith.constant 0 : i32
    %c0_i32_1 = arith.constant 0 : i32
    return %c0_i32, %c0_i32_0 : i32, i32
  }
  func.func @transform_17(%arg0: i32) -> (i32, i32) {
    %c0_i32 = arith.constant 0 : i32
    %c0_i32_0 = arith.constant 0 : i32
    %c0_i32_1 = arith.constant 0 : i32
    return %c0_i32, %c0_i32_0 : i32, i32
  }
  func.func @transform_18(%arg0: i32) -> (i32, i32) {
    %c0_i32 = arith.constant 0 : i32
    %c0_i32_0 = arith.constant 0 : i32
    %c0_i32_1 = arith.constant 0 : i32
    return %c0_i32, %c0_i32_0 : i32, i32
  }
  func.func @transform_19(%arg0: i32) -> (i32, i32) {
    %c0_i32 = arith.constant 0 : i32
    %c0_i32_0 = arith.constant 0 : i32
    %c0_i32_1 = arith.constant 0 : i32
    return %c0_i32, %c0_i32_0 : i32, i32
  }
  func.func @transform_20(%arg0: i32) -> (i32, i32, i32) {
    %c0_i32 = arith.constant 0 : i32
    %c0_i32_0 = arith.constant 0 : i32
    %c0_i32_1 = arith.constant 0 : i32
    return %arg0, %c0_i32, %c0_i32_0 : i32, i32, i32
  }
}

</mosaic_0001>

<llo_original>
// kernel: transformer_forward.1
$region0: #{transformer_forward.1}
  #allocation0 [shape = 'u32[]', space=smem, size = 0x4, offset = 0x4, fixed_abs, tag = 'smem constant byte address 0x4 - core index']
  #allocation1 [shape = 'u32[144,128]{1,0:T(1,128)}', space=vmem, size = 0x12000, scoped, tag = 'internal scratch']
  %s0 = inlined_call_operand.vmem [shape: f32[8,8,32], index: 0, kind: input, shape index: {}]
  %s1 = inlined_call_operand.vmem [shape: f32[8,1,8], index: 1, kind: input, shape index: {}]
  %s2 = inlined_call_operand.vmem [shape: f32[1,32], index: 2, kind: input, shape index: {}]
  %s3 = inlined_call_operand.vmem [shape: f32[1,32], index: 3, kind: input, shape index: {}]
  %s4 = inlined_call_operand.vmem [shape: f32[2,32,96], index: 4, kind: input, shape index: {}]
  %s5 = inlined_call_operand.vmem [shape: f32[2,1,96], index: 5, kind: input, shape index: {}]
  %s6 = inlined_call_operand.vmem [shape: f32[2,32,32], index: 6, kind: input, shape index: {}]
  %s7 = inlined_call_operand.vmem [shape: f32[2,1,32], index: 7, kind: input, shape index: {}]
  %s8 = inlined_call_operand.vmem [shape: f32[2,1,32], index: 8, kind: input, shape index: {}]
  %s9 = inlined_call_operand.vmem [shape: f32[2,1,32], index: 9, kind: input, shape index: {}]
  %s10 = inlined_call_operand.vmem [shape: f32[2,32,64], index: 10, kind: input, shape index: {}]
  %s11 = inlined_call_operand.vmem [shape: f32[2,1,64], index: 11, kind: input, shape index: {}]
  %s12 = inlined_call_operand.vmem [shape: f32[2,64,32], index: 12, kind: input, shape index: {}]
  %s13 = inlined_call_operand.vmem [shape: f32[2,1,32], index: 13, kind: input, shape index: {}]
  %s14 = inlined_call_operand.vmem [shape: f32[2,1,32], index: 14, kind: input, shape index: {}]
  %s15 = inlined_call_operand.vmem [shape: f32[2,1,32], index: 15, kind: input, shape index: {}]
  %s16 = inlined_call_operand.vmem [shape: f32[32,32], index: 16, kind: input, shape index: {}]
  %s17 = inlined_call_operand.vmem [shape: f32[1,32], index: 17, kind: input, shape index: {}]
  %s18 = inlined_call_operand.vmem [shape: f32[32,128], index: 18, kind: input, shape index: {}]
  %s19 = inlined_call_operand.vmem [shape: f32[1,128], index: 19, kind: input, shape index: {}]
  %s20 = inlined_call_operand.hbm [shape: f32[8,1,128], index: 20, kind: output, shape index: {}]
  %s21 = sld [smem:[#allocation0]]
  $region113: #{transformer_forward.1} parent=0
    _
  %s23 = ssub.s32 1, %s21
  %s24 = scalar_select 0, %s23, %s21
  $region1: #{transformer_forward.1} parent=0
    #allocation2 [shape = 'u8[4096]{0}', space=vmem, size = 0x1000, scoped, tag = 'output window, operand 0']
    #allocation3 [shape = 's32[2]{0}', space=sflag, size = 0x8, scoped, tag = 'scoped memory for transformer_forward.1']
    %25 = vsyncpa [#allocation3], 0
    %s26 = scalar_lea.sflag [#allocation3], 1
    %27 = vsyncpa %s26, 0
    loop: start=0, step=1, limit=4
    $region2: #{transformer_forward.1} parent=1 // loop_pre_header
      _
    $region3: #{transformer_forward.1} parent=1 // loop_header
      %s29 = sphi 0, %s33
      %p30 = scmp.ge.s32.totalorder %s29, 4
      %s39 = sphi 0, %s41
      %s42 = sphi 0, %s39
      %s43 = sphi 0, %s42
      %s59 = sphi 0, %s43
      %s65 = sphi 0, %s67
      %s68 = sphi 0, %s65
      %s69 = sphi 0, %s68
      %s85 = sphi 0, %s69
      %s89 = sphi 0, %s89
      %s91 = sphi 0, %s89
      %s92 = sphi 0, %s91
      %s106 = sphi 0, %s92
      %s110 = sphi 0, %s110
      %s112 = sphi 0, %s110
      %s113 = sphi 0, %s112
      %s127 = sphi 0, %s113
      %s131 = sphi 0, %s131
      %s133 = sphi 0, %s131
      %s134 = sphi 0, %s133
      %s148 = sphi 0, %s134
      %s152 = sphi 0, %s152
      %s154 = sphi 0, %s152
      %s155 = sphi 0, %s154
      %s169 = sphi 0, %s155
      %s173 = sphi 0, %s173
      %s175 = sphi 0, %s173
      %s176 = sphi 0, %s175
      %s190 = sphi 0, %s176
      %s194 = sphi 0, %s194
      %s196 = sphi 0, %s194
      %s197 = sphi 0, %s196
      %s211 = sphi 0, %s197
      %s215 = sphi 0, %s215
      %s217 = sphi 0, %s215
      %s218 = sphi 0, %s217
      %s232 = sphi 0, %s218
      %s236 = sphi 0, %s236
      %s238 = sphi 0, %s236
      %s239 = sphi 0, %s238
      %s253 = sphi 0, %s239
      %s257 = sphi 0, %s257
      %s259 = sphi 0, %s257
      %s260 = sphi 0, %s259
      %s274 = sphi 0, %s260
      %s278 = sphi 0, %s278
      %s280 = sphi 0, %s278
      %s281 = sphi 0, %s280
      %s295 = sphi 0, %s281
      %s299 = sphi 0, %s299
      %s301 = sphi 0, %s299
      %s302 = sphi 0, %s301
      %s316 = sphi 0, %s302
      %s320 = sphi 0, %s320
      %s322 = sphi 0, %s320
      %s323 = sphi 0, %s322
      %s337 = sphi 0, %s323
      %s341 = sphi 0, %s341
      %s343 = sphi 0, %s341
      %s344 = sphi 0, %s343
      %s358 = sphi 0, %s344
      %s362 = sphi 0, %s362
      %s364 = sphi 0, %s362
      %s365 = sphi 0, %s364
      %s379 = sphi 0, %s365
      %s383 = sphi 0, %s383
      %s385 = sphi 0, %s383
      %s386 = sphi 0, %s385
      %s400 = sphi 0, %s386
      %s404 = sphi 0, %s404
      %s406 = sphi 0, %s404
      %s407 = sphi 0, %s406
      %s421 = sphi 0, %s407
      %s425 = sphi 0, %s425
      %s427 = sphi 0, %s425
      %s428 = sphi 0, %s427
      %s442 = sphi 0, %s428
      %s446 = sphi 0, %s446
      %s448 = sphi 0, %s446
      %s449 = sphi 0, %s448
      %s463 = sphi 0, %s449
      %s469 = sphi 0, %s471
      %s472 = sphi 0, %s469
      %s473 = sphi 0, %s472
      %s489 = sphi 0, %s473
    $region4: #{transformer_forward.1} parent=1 // loop_header_branch
      %32 = sbr.rel (%p30) target = $region8
    $region5: #{transformer_forward.1} parent=1 // loop_body
      %s34 = ssub.s32 %s29, 1
      %s35 = ssub.s32 %s29, 2
      %s36 = sadd.s32 %s29, 1
      %s37 = ssub.s32 %s29, %s36
      %p38 = scmp.eq.s32.totalorder %s37, 0
      %s40 = sadd.s32 %s39, 1
      %s41 = scalar_select %p38, %s39, %s40
      %p44 = pneg %p38
      %p45 = scmp.eq.s32.totalorder %s29, 1
      %p46 = por %p44, %p45
      %p47 = scmp.ne.s32.totalorder %s39, %s42
      %p48 = scmp.eq.s32.totalorder %s29, 0
      %p49 = por %p47, %p48
      %p50 = scmp.ne.s32.totalorder %s39, %s42
      %p51 = scmp.eq.s32.totalorder %s34, 1
      %p52 = por %p50, %p51
      %p53 = scmp.ne.s32.totalorder %s42, %s43
      %p54 = scmp.eq.s32.totalorder %s34, 0
      %p55 = por %p53, %p54
      %p56 = scmp.ne.s32.totalorder %s42, %s43
      %p57 = scmp.eq.s32.totalorder %s35, 1
      %p58 = por %p56, %p57
      %p60 = scmp.ne.s32.totalorder %s43, %s59
      %p61 = scmp.eq.s32.totalorder %s35, 0
      %p62 = por %p60, %p61
      %s63 = ssub.s32 %s29, %s36
      %p64 = scmp.eq.s32.totalorder %s63, 0
      %s66 = sadd.s32 %s65, 1
      %s67 = scalar_select %p64, %s65, %s66
      %p70 = pneg %p64
      %p71 = scmp.eq.s32.totalorder %s29, 1
      %p72 = por %p70, %p71
      %p73 = scmp.ne.s32.totalorder %s65, %s68
      %p74 = scmp.eq.s32.totalorder %s29, 0
      %p75 = por %p73, %p74
      %p76 = scmp.ne.s32.totalorder %s65, %s68
      %p77 = scmp.eq.s32.totalorder %s34, 1
      %p78 = por %p76, %p77
      %p79 = scmp.ne.s32.totalorder %s68, %s69
      %p80 = scmp.eq.s32.totalorder %s34, 0
      %p81 = por %p79, %p80
      %p82 = scmp.ne.s32.totalorder %s68, %s69
      %p83 = scmp.eq.s32.totalorder %s35, 1
      %p84 = por %p82, %p83
      %p86 = scmp.ne.s32.totalorder %s69, %s85
      %p87 = scmp.eq.s32.totalorder %s35, 0
      %p88 = por %p86, %p87
      %s90 = sadd.s32 %s89, 1
      %p93 = scmp.eq.s32.totalorder %s29, 1
      %p94 = scmp.ne.s32.totalorder %s89, %s91
      %p95 = scmp.eq.s32.totalorder %s29, 0
      %p96 = por %p94, %p95
      %p97 = scmp.ne.s32.totalorder %s89, %s91
      %p98 = scmp.eq.s32.totalorder %s34, 1
      %p99 = por %p97, %p98
      %p100 = scmp.ne.s32.totalorder %s91, %s92
      %p101 = scmp.eq.s32.totalorder %s34, 0
      %p102 = por %p100, %p101
      %p103 = scmp.ne.s32.totalorder %s91, %s92
      %p104 = scmp.eq.s32.totalorder %s35, 1
      %p105 = por %p103, %p104
      %p107 = scmp.ne.s32.totalorder %s92, %s106
      %p108 = scmp.eq.s32.totalorder %s35, 0
      %p109 = por %p107, %p108
      %s111 = sadd.s32 %s110, 1
      %p114 = scmp.eq.s32.totalorder %s29, 1
      %p115 = scmp.ne.s32.totalorder %s110, %s112
      %p116 = scmp.eq.s32.totalorder %s29, 0
      %p117 = por %p115, %p116
      %p118 = scmp.ne.s32.totalorder %s110, %s112
      %p119 = scmp.eq.s32.totalorder %s34, 1
      %p120 = por %p118, %p119
      %p121 = scmp.ne.s32.totalorder %s112, %s113
      %p122 = scmp.eq.s32.totalorder %s34, 0
      %p123 = por %p121, %p122
      %p124 = scmp.ne.s32.totalorder %s112, %s113
      %p125 = scmp.eq.s32.totalorder %s35, 1
      %p126 = por %p124, %p125
      %p128 = scmp.ne.s32.totalorder %s113, %s127
      %p129 = scmp.eq.s32.totalorder %s35, 0
      %p130 = por %p128, %p129
      %s132 = sadd.s32 %s131, 1
      %p135 = scmp.eq.s32.totalorder %s29, 1
      %p136 = scmp.ne.s32.totalorder %s131, %s133
      %p137 = scmp.eq.s32.totalorder %s29, 0
      %p138 = por %p136, %p137
      %p139 = scmp.ne.s32.totalorder %s131, %s133
      %p140 = scmp.eq.s32.totalorder %s34, 1
      %p141 = por %p139, %p140
      %p142 = scmp.ne.s32.totalorder %s133, %s134
      %p143 = scmp.eq.s32.totalorder %s34, 0
      %p144 = por %p142, %p143
      %p145 = scmp.ne.s32.totalorder %s133, %s134
      %p146 = scmp.eq.s32.totalorder %s35, 1
      %p147 = por %p145, %p146
      %p149 = scmp.ne.s32.totalorder %s134, %s148
      %p150 = scmp.eq.s32.totalorder %s35, 0
      %p151 = por %p149, %p150
      %s153 = sadd.s32 %s152, 1
      %p156 = scmp.eq.s32.totalorder %s29, 1
      %p157 = scmp.ne.s32.totalorder %s152, %s154
      %p158 = scmp.eq.s32.totalorder %s29, 0
      %p159 = por %p157, %p158
      %p160 = scmp.ne.s32.totalorder %s152, %s154
      %p161 = scmp.eq.s32.totalorder %s34, 1
      %p162 = por %p160, %p161
      %p163 = scmp.ne.s32.totalorder %s154, %s155
      %p164 = scmp.eq.s32.totalorder %s34, 0
      %p165 = por %p163, %p164
      %p166 = scmp.ne.s32.totalorder %s154, %s155
      %p167 = scmp.eq.s32.totalorder %s35, 1
      %p168 = por %p166, %p167
      %p170 = scmp.ne.s32.totalorder %s155, %s169
      %p171 = scmp.eq.s32.totalorder %s35, 0
      %p172 = por %p170, %p171
      %s174 = sadd.s32 %s173, 1
      %p177 = scmp.eq.s32.totalorder %s29, 1
      %p178 = scmp.ne.s32.totalorder %s173, %s175
      %p179 = scmp.eq.s32.totalorder %s29, 0
      %p180 = por %p178, %p179
      %p181 = scmp.ne.s32.totalorder %s173, %s175
      %p182 = scmp.eq.s32.totalorder %s34, 1
      %p183 = por %p181, %p182
      %p184 = scmp.ne.s32.totalorder %s175, %s176
      %p185 = scmp.eq.s32.totalorder %s34, 0
      %p186 = por %p184, %p185
      %p187 = scmp.ne.s32.totalorder %s175, %s176
      %p188 = scmp.eq.s32.totalorder %s35, 1
      %p189 = por %p187, %p188
      %p191 = scmp.ne.s32.totalorder %s176, %s190
      %p192 = scmp.eq.s32.totalorder %s35, 0
      %p193 = por %p191, %p192
      %s195 = sadd.s32 %s194, 1
      %p198 = scmp.eq.s32.totalorder %s29, 1
      %p199 = scmp.ne.s32.totalorder %s194, %s196
      %p200 = scmp.eq.s32.totalorder %s29, 0
      %p201 = por %p199, %p200
      %p202 = scmp.ne.s32.totalorder %s194, %s196
      %p203 = scmp.eq.s32.totalorder %s34, 1
      %p204 = por %p202, %p203
      %p205 = scmp.ne.s32.totalorder %s196, %s197
      %p206 = scmp.eq.s32.totalorder %s34, 0
      %p207 = por %p205, %p206
      %p208 = scmp.ne.s32.totalorder %s196, %s197
      %p209 = scmp.eq.s32.totalorder %s35, 1
      %p210 = por %p208, %p209
      %p212 = scmp.ne.s32.totalorder %s197, %s211
      %p213 = scmp.eq.s32.totalorder %s35, 0
      %p214 = por %p212, %p213
      %s216 = sadd.s32 %s215, 1
      %p219 = scmp.eq.s32.totalorder %s29, 1
      %p220 = scmp.ne.s32.totalorder %s215, %s217
      %p221 = scmp.eq.s32.totalorder %s29, 0
      %p222 = por %p220, %p221
      %p223 = scmp.ne.s32.totalorder %s215, %s217
      %p224 = scmp.eq.s32.totalorder %s34, 1
      %p225 = por %p223, %p224
      %p226 = scmp.ne.s32.totalorder %s217, %s218
      %p227 = scmp.eq.s32.totalorder %s34, 0
      %p228 = por %p226, %p227
      %p229 = scmp.ne.s32.totalorder %s217, %s218
      %p230 = scmp.eq.s32.totalorder %s35, 1
      %p231 = por %p229, %p230
      %p233 = scmp.ne.s32.totalorder %s218, %s232
      %p234 = scmp.eq.s32.totalorder %s35, 0
      %p235 = por %p233, %p234
      %s237 = sadd.s32 %s236, 1
      %p240 = scmp.eq.s32.totalorder %s29, 1
      %p241 = scmp.ne.s32.totalorder %s236, %s238
      %p242 = scmp.eq.s32.totalorder %s29, 0
      %p243 = por %p241, %p242
      %p244 = scmp.ne.s32.totalorder %s236, %s238
      %p245 = scmp.eq.s32.totalorder %s34, 1
      %p246 = por %p244, %p245
      %p247 = scmp.ne.s32.totalorder %s238, %s239
      %p248 = scmp.eq.s32.totalorder %s34, 0
      %p249 = por %p247, %p248
      %p250 = scmp.ne.s32.totalorder %s238, %s239
      %p251 = scmp.eq.s32.totalorder %s35, 1
      %p252 = por %p250, %p251
      %p254 = scmp.ne.s32.totalorder %s239, %s253
      %p255 = scmp.eq.s32.totalorder %s35, 0
      %p256 = por %p254, %p255
      %s258 = sadd.s32 %s257, 1
      %p261 = scmp.eq.s32.totalorder %s29, 1
      %p262 = scmp.ne.s32.totalorder %s257, %s259
      %p263 = scmp.eq.s32.totalorder %s29, 0
      %p264 = por %p262, %p263
      %p265 = scmp.ne.s32.totalorder %s257, %s259
      %p266 = scmp.eq.s32.totalorder %s34, 1
      %p267 = por %p265, %p266
      %p268 = scmp.ne.s32.totalorder %s259, %s260
      %p269 = scmp.eq.s32.totalorder %s34, 0
      %p270 = por %p268, %p269
      %p271 = scmp.ne.s32.totalorder %s259, %s260
      %p272 = scmp.eq.s32.totalorder %s35, 1
      %p273 = por %p271, %p272
      %p275 = scmp.ne.s32.totalorder %s260, %s274
      %p276 = scmp.eq.s32.totalorder %s35, 0
      %p277 = por %p275, %p276
      %s279 = sadd.s32 %s278, 1
      %p282 = scmp.eq.s32.totalorder %s29, 1
      %p283 = scmp.ne.s32.totalorder %s278, %s280
      %p284 = scmp.eq.s32.totalorder %s29, 0
      %p285 = por %p283, %p284
      %p286 = scmp.ne.s32.totalorder %s278, %s280
      %p287 = scmp.eq.s32.totalorder %s34, 1
      %p288 = por %p286, %p287
      %p289 = scmp.ne.s32.totalorder %s280, %s281
      %p290 = scmp.eq.s32.totalorder %s34, 0
      %p291 = por %p289, %p290
      %p292 = scmp.ne.s32.totalorder %s280, %s281
      %p293 = scmp.eq.s32.totalorder %s35, 1
      %p294 = por %p292, %p293
      %p296 = scmp.ne.s32.totalorder %s281, %s295
      %p297 = scmp.eq.s32.totalorder %s35, 0
      %p298 = por %p296, %p297
      %s300 = sadd.s32 %s299, 1
      %p303 = scmp.eq.s32.totalorder %s29, 1
      %p304 = scmp.ne.s32.totalorder %s299, %s301
      %p305 = scmp.eq.s32.totalorder %s29, 0
      %p306 = por %p304, %p305
      %p307 = scmp.ne.s32.totalorder %s299, %s301
      %p308 = scmp.eq.s32.totalorder %s34, 1
      %p309 = por %p307, %p308
      %p310 = scmp.ne.s32.totalorder %s301, %s302
      %p311 = scmp.eq.s32.totalorder %s34, 0
      %p312 = por %p310, %p311
      %p313 = scmp.ne.s32.totalorder %s301, %s302
      %p314 = scmp.eq.s32.totalorder %s35, 1
      %p315 = por %p313, %p314
      %p317 = scmp.ne.s32.totalorder %s302, %s316
      %p318 = scmp.eq.s32.totalorder %s35, 0
      %p319 = por %p317, %p318
      %s321 = sadd.s32 %s320, 1
      %p324 = scmp.eq.s32.totalorder %s29, 1
      %p325 = scmp.ne.s32.totalorder %s320, %s322
      %p326 = scmp.eq.s32.totalorder %s29, 0
      %p327 = por %p325, %p326
      %p328 = scmp.ne.s32.totalorder %s320, %s322
      %p329 = scmp.eq.s32.totalorder %s34, 1
      %p330 = por %p328, %p329
      %p331 = scmp.ne.s32.totalorder %s322, %s323
      %p332 = scmp.eq.s32.totalorder %s34, 0
      %p333 = por %p331, %p332
      %p334 = scmp.ne.s32.totalorder %s322, %s323
      %p335 = scmp.eq.s32.totalorder %s35, 1
      %p336 = por %p334, %p335
      %p338 = scmp.ne.s32.totalorder %s323, %s337
      %p339 = scmp.eq.s32.totalorder %s35, 0
      %p340 = por %p338, %p339
      %s342 = sadd.s32 %s341, 1
      %p345 = scmp.eq.s32.totalorder %s29, 1
      %p346 = scmp.ne.s32.totalorder %s341, %s343
      %p347 = scmp.eq.s32.totalorder %s29, 0
      %p348 = por %p346, %p347
      %p349 = scmp.ne.s32.totalorder %s341, %s343
      %p350 = scmp.eq.s32.totalorder %s34, 1
      %p351 = por %p349, %p350
      %p352 = scmp.ne.s32.totalorder %s343, %s344
      %p353 = scmp.eq.s32.totalorder %s34, 0
      %p354 = por %p352, %p353
      %p355 = scmp.ne.s32.totalorder %s343, %s344
      %p356 = scmp.eq.s32.totalorder %s35, 1
      %p357 = por %p355, %p356
      %p359 = scmp.ne.s32.totalorder %s344, %s358
      %p360 = scmp.eq.s32.totalorder %s35, 0
      %p361 = por %p359, %p360
      %s363 = sadd.s32 %s362, 1
      %p366 = scmp.eq.s32.totalorder %s29, 1
      %p367 = scmp.ne.s32.totalorder %s362, %s364
      %p368 = scmp.eq.s32.totalorder %s29, 0
      %p369 = por %p367, %p368
      %p370 = scmp.ne.s32.totalorder %s362, %s364
      %p371 = scmp.eq.s32.totalorder %s34, 1
      %p372 = por %p370, %p371
      %p373 = scmp.ne.s32.totalorder %s364, %s365
      %p374 = scmp.eq.s32.totalorder %s34, 0
      %p375 = por %p373, %p374
      %p376 = scmp.ne.s32.totalorder %s364, %s365
      %p377 = scmp.eq.s32.totalorder %s35, 1
      %p378 = por %p376, %p377
      %p380 = scmp.ne.s32.totalorder %s365, %s379
      %p381 = scmp.eq.s32.totalorder %s35, 0
      %p382 = por %p380, %p381
      %s384 = sadd.s32 %s383, 1
      %p387 = scmp.eq.s32.totalorder %s29, 1
      %p388 = scmp.ne.s32.totalorder %s383, %s385
      %p389 = scmp.eq.s32.totalorder %s29, 0
      %p390 = por %p388, %p389
      %p391 = scmp.ne.s32.totalorder %s383, %s385
      %p392 = scmp.eq.s32.totalorder %s34, 1
      %p393 = por %p391, %p392
      %p394 = scmp.ne.s32.totalorder %s385, %s386
      %p395 = scmp.eq.s32.totalorder %s34, 0
      %p396 = por %p394, %p395
      %p397 = scmp.ne.s32.totalorder %s385, %s386
      %p398 = scmp.eq.s32.totalorder %s35, 1
      %p399 = por %p397, %p398
      %p401 = scmp.ne.s32.totalorder %s386, %s400
      %p402 = scmp.eq.s32.totalorder %s35, 0
      %p403 = por %p401, %p402
      %s405 = sadd.s32 %s404, 1
      %p408 = scmp.eq.s32.totalorder %s29, 1
      %p409 = scmp.ne.s32.totalorder %s404, %s406
      %p410 = scmp.eq.s32.totalorder %s29, 0
      %p411 = por %p409, %p410
      %p412 = scmp.ne.s32.totalorder %s404, %s406
      %p413 = scmp.eq.s32.totalorder %s34, 1
      %p414 = por %p412, %p413
      %p415 = scmp.ne.s32.totalorder %s406, %s407
      %p416 = scmp.eq.s32.totalorder %s34, 0
      %p417 = por %p415, %p416
      %p418 = scmp.ne.s32.totalorder %s406, %s407
      %p419 = scmp.eq.s32.totalorder %s35, 1
      %p420 = por %p418, %p419
      %p422 = scmp.ne.s32.totalorder %s407, %s421
      %p423 = scmp.eq.s32.totalorder %s35, 0
      %p424 = por %p422, %p423
      %s426 = sadd.s32 %s425, 1
      %p429 = scmp.eq.s32.totalorder %s29, 1
      %p430 = scmp.ne.s32.totalorder %s425, %s427
      %p431 = scmp.eq.s32.totalorder %s29, 0
      %p432 = por %p430, %p431
      %p433 = scmp.ne.s32.totalorder %s425, %s427
      %p434 = scmp.eq.s32.totalorder %s34, 1
      %p435 = por %p433, %p434
      %p436 = scmp.ne.s32.totalorder %s427, %s428
      %p437 = scmp.eq.s32.totalorder %s34, 0
      %p438 = por %p436, %p437
      %p439 = scmp.ne.s32.totalorder %s427, %s428
      %p440 = scmp.eq.s32.totalorder %s35, 1
      %p441 = por %p439, %p440
      %p443 = scmp.ne.s32.totalorder %s428, %s442
      %p444 = scmp.eq.s32.totalorder %s35, 0
      %p445 = por %p443, %p444
      %s447 = sadd.s32 %s446, 1
      %p450 = scmp.eq.s32.totalorder %s29, 1
      %p451 = scmp.ne.s32.totalorder %s446, %s448
      %p452 = scmp.eq.s32.totalorder %s29, 0
      %p453 = por %p451, %p452
      %p454 = scmp.ne.s32.totalorder %s446, %s448
      %p455 = scmp.eq.s32.totalorder %s34, 1
      %p456 = por %p454, %p455
      %p457 = scmp.ne.s32.totalorder %s448, %s449
      %p458 = scmp.eq.s32.totalorder %s34, 0
      %p459 = por %p457, %p458
      %p460 = scmp.ne.s32.totalorder %s448, %s449
      %p461 = scmp.eq.s32.totalorder %s35, 1
      %p462 = por %p460, %p461
      %p464 = scmp.ne.s32.totalorder %s449, %s463
      %p465 = scmp.eq.s32.totalorder %s35, 0
      %p466 = por %p464, %p465
      %s467 = ssub.s32 %s29, %s36
      %p468 = scmp.eq.s32.totalorder %s467, 0
      %s470 = sadd.s32 %s469, 1
      %s471 = scalar_select %p468, %s469, %s470
      %p474 = pneg %p468
      %p475 = scmp.eq.s32.totalorder %s29, 1
      %p476 = por %p474, %p475
      %p477 = scmp.ne.s32.totalorder %s469, %s472
      %p478 = scmp.eq.s32.totalorder %s29, 0
      %p479 = por %p477, %p478
      %p480 = scmp.ne.s32.totalorder %s469, %s472
      %p481 = scmp.eq.s32.totalorder %s34, 1
      %p482 = por %p480, %p481
      %p483 = scmp.ne.s32.totalorder %s472, %s473
      %p484 = scmp.eq.s32.totalorder %s34, 0
      %p485 = por %p483, %p484
      %p486 = scmp.ne.s32.totalorder %s472, %s473
      %p487 = scmp.eq.s32.totalorder %s35, 1
      %p488 = por %p486, %p487
      %p490 = scmp.ne.s32.totalorder %s473, %s489
      %p491 = scmp.eq.s32.totalorder %s35, 0
      %p492 = por %p490, %p491
      %p493 = scmp.le.s32.totalorder 1, %s29
      %p494 = scmp.lt.s32.totalorder %s29, 3
      %p495 = pnand %p493, %p494
      %p496 = pneg %p495
      // Predicated region
      $region9: #{transformer_forward.1} parent=5 // pred_check
        _
      $region10: #{transformer_forward.1} parent=5 // pred_check_branch
        %498 = sbr.rel (%p495) target = $region12
      $region11: #{transformer_forward.1} parent=5 // pred_region
        %s499 = ssub.s32 %s29, 1
        // Predicated region
        $region13: #{transformer_forward.1} parent=11 // pred_check
          %p500 = pneg %p102
        $region14: #{transformer_forward.1} parent=11 // pred_check_branch
          %502 = sbr.rel (%p500) target = $region16
        $region15: #{transformer_forward.1} parent=11 // pred_region
          _
        $region16: #{transformer_forward.1} parent=11 // pred_fallthru
          _
        // Predicated region
        $region17: #{transformer_forward.1} parent=11 // pred_check
          %p503 = pneg %p123
        $region18: #{transformer_forward.1} parent=11 // pred_check_branch
          %505 = sbr.rel (%p503) target = $region20
        $region19: #{transformer_forward.1} parent=11 // pred_region
          _
        $region20: #{transformer_forward.1} parent=11 // pred_fallthru
          _
        // Predicated region
        $region21: #{transformer_forward.1} parent=11 // pred_check
          %p506 = pneg %p144
        $region22: #{transformer_forward.1} parent=11 // pred_check_branch
          %508 = sbr.rel (%p506) target = $region24
        $region23: #{transformer_forward.1} parent=11 // pred_region
          _
        $region24: #{transformer_forward.1} parent=11 // pred_fallthru
          _
        // Predicated region
        $region25: #{transformer_forward.1} parent=11 // pred_check
          %p509 = pneg %p165
        $region26: #{transformer_forward.1} parent=11 // pred_check_branch
          %511 = sbr.rel (%p509) target = $region28
        $region27: #{transformer_forward.1} parent=11 // pred_region
          _
        $region28: #{transformer_forward.1} parent=11 // pred_fallthru
          _
        // Predicated region
        $region29: #{transformer_forward.1} parent=11 // pred_check
          %p512 = pneg %p186
        $region30: #{transformer_forward.1} parent=11 // pred_check_branch
          %514 = sbr.rel (%p512) target = $region32
        $region31: #{transformer_forward.1} parent=11 // pred_region
          _
        $region32: #{transformer_forward.1} parent=11 // pred_fallthru
          _
        // Predicated region
        $region33: #{transformer_forward.1} parent=11 // pred_check
          %p515 = pneg %p207
        $region34: #{transformer_forward.1} parent=11 // pred_check_branch
          %517 = sbr.rel (%p515) target = $region36
        $region35: #{transformer_forward.1} parent=11 // pred_region
          _
        $region36: #{transformer_forward.1} parent=11 // pred_fallthru
          _
        // Predicated region
        $region37: #{transformer_forward.1} parent=11 // pred_check
          %p518 = pneg %p228
        $region38: #{transformer_forward.1} parent=11 // pred_check_branch
          %520 = sbr.rel (%p518) target = $region40
        $region39: #{transformer_forward.1} parent=11 // pred_region
          _
        $region40: #{transformer_forward.1} parent=11 // pred_fallthru
          _
        // Predicated region
        $region41: #{transformer_forward.1} parent=11 // pred_check
          %p521 = pneg %p249
        $region42: #{transformer_forward.1} parent=11 // pred_check_branch
          %523 = sbr.rel (%p521) target = $region44
        $region43: #{transformer_forward.1} parent=11 // pred_region
          _
        $region44: #{transformer_forward.1} parent=11 // pred_fallthru
          _
        // Predicated region
        $region45: #{transformer_forward.1} parent=11 // pred_check
          %p524 = pneg %p270
        $region46: #{transformer_forward.1} parent=11 // pred_check_branch
          %526 = sbr.rel (%p524) target = $region48
        $region47: #{transformer_forward.1} parent=11 // pred_region
          _
        $region48: #{transformer_forward.1} parent=11 // pred_fallthru
          _
        // Predicated region
        $region49: #{transformer_forward.1} parent=11 // pred_check
          %p527 = pneg %p291
        $region50: #{transformer_forward.1} parent=11 // pred_check_branch
          %529 = sbr.rel (%p527) target = $region52
        $region51: #{transformer_forward.1} parent=11 // pred_region
          _
        $region52: #{transformer_forward.1} parent=11 // pred_fallthru
          _
        // Predicated region
        $region53: #{transformer_forward.1} parent=11 // pred_check
          %p530 = pneg %p312
        $region54: #{transformer_forward.1} parent=11 // pred_check_branch
          %532 = sbr.rel (%p530) target = $region56
        $region55: #{transformer_forward.1} parent=11 // pred_region
          _
        $region56: #{transformer_forward.1} parent=11 // pred_fallthru
          _
        // Predicated region
        $region57: #{transformer_forward.1} parent=11 // pred_check
          %p533 = pneg %p333
        $region58: #{transformer_forward.1} parent=11 // pred_check_branch
          %535 = sbr.rel (%p533) target = $region60
        $region59: #{transformer_forward.1} parent=11 // pred_region
          _
        $region60: #{transformer_forward.1} parent=11 // pred_fallthru
          _
        // Predicated region
        $region61: #{transformer_forward.1} parent=11 // pred_check
          %p536 = pneg %p354
        $region62: #{transformer_forward.1} parent=11 // pred_check_branch
          %538 = sbr.rel (%p536) target = $region64
        $region63: #{transformer_forward.1} parent=11 // pred_region
          _
        $region64: #{transformer_forward.1} parent=11 // pred_fallthru
          _
        // Predicated region
        $region65: #{transformer_forward.1} parent=11 // pred_check
          %p539 = pneg %p375
        $region66: #{transformer_forward.1} parent=11 // pred_check_branch
          %541 = sbr.rel (%p539) target = $region68
        $region67: #{transformer_forward.1} parent=11 // pred_region
          _
        $region68: #{transformer_forward.1} parent=11 // pred_fallthru
          _
        // Predicated region
        $region69: #{transformer_forward.1} parent=11 // pred_check
          %p542 = pneg %p396
        $region70: #{transformer_forward.1} parent=11 // pred_check_branch
          %544 = sbr.rel (%p542) target = $region72
        $region71: #{transformer_forward.1} parent=11 // pred_region
          _
        $region72: #{transformer_forward.1} parent=11 // pred_fallthru
          _
        // Predicated region
        $region73: #{transformer_forward.1} parent=11 // pred_check
          %p545 = pneg %p417
        $region74: #{transformer_forward.1} parent=11 // pred_check_branch
          %547 = sbr.rel (%p545) target = $region76
        $region75: #{transformer_forward.1} parent=11 // pred_region
          _
        $region76: #{transformer_forward.1} parent=11 // pred_fallthru
          _
        // Predicated region
        $region77: #{transformer_forward.1} parent=11 // pred_check
          %p548 = pneg %p438
        $region78: #{transformer_forward.1} parent=11 // pred_check_branch
          %550 = sbr.rel (%p548) target = $region80
        $region79: #{transformer_forward.1} parent=11 // pred_region
          _
        $region80: #{transformer_forward.1} parent=11 // pred_fallthru
          _
        // Predicated region
        $region81: #{transformer_forward.1} parent=11 // pred_check
          %p551 = pneg %p459
        $region82: #{transformer_forward.1} parent=11 // pred_check_branch
          %553 = sbr.rel (%p551) target = $region84
        $region83: #{transformer_forward.1} parent=11 // pred_region
          _
        $region84: #{transformer_forward.1} parent=11 // pred_fallthru
          _
      $region12: #{transformer_forward.1} parent=5 // pred_fallthru
        _
      %p554 = scmp.lt.s32.totalorder %s29, 2
      // Predicated region
      $region85: #{transformer_forward.1} parent=5 // pred_check
        %p555 = pneg %p554
      $region86: #{transformer_forward.1} parent=5 // pred_check_branch
        %557 = sbr.rel (%p555) target = $region88
      $region87: #{transformer_forward.1} parent=5 // pred_region
        // Predicated region
        $region89: #{transformer_forward.1} parent=87 // pred_check
          %p558 = pneg %p49
        $region90: #{transformer_forward.1} parent=87 // pred_check_branch
          %560 = sbr.rel (%p558) target = $region92
        $region91: #{transformer_forward.1} parent=87 // pred_region
          %s561 = smul.u32 4, %s29
          %p562 = scmp.lt.s32.totalorder %s561, 7
          %s563 = scalar_select %p562, %s561, 7
          %s564 = smul.addr %s563, 8
          %s565 = scalar_lea.vmem %s0, %s564
          %s566 = smul.u32 4, %s29
        $region92: #{transformer_forward.1} parent=87 // pred_fallthru
          _
        // Predicated region
        $region93: #{transformer_forward.1} parent=87 // pred_check
          %p567 = pneg %p75
        $region94: #{transformer_forward.1} parent=87 // pred_check_branch
          %569 = sbr.rel (%p567) target = $region96
        $region95: #{transformer_forward.1} parent=87 // pred_region
          %s570 = smul.u32 4, %s29
          %p571 = scmp.lt.s32.totalorder %s570, 7
          %s572 = scalar_select %p571, %s570, 7
          %s573 = scalar_lea.vmem %s1, %s572
          %s574 = smul.u32 4, %s29
        $region96: #{transformer_forward.1} parent=87 // pred_fallthru
          _
      $region88: #{transformer_forward.1} parent=5 // pred_fallthru
        _
      %p575 = scmp.le.s32.totalorder 1, %s29
      %p576 = scmp.lt.s32.totalorder %s29, 3
      %p577 = pnand %p575, %p576
      %p578 = pneg %p577
      // Predicated region
      $region97: #{transformer_forward.1} parent=5 // pred_check
        _
      $region98: #{transformer_forward.1} parent=5 // pred_check_branch
        %580 = sbr.rel (%p577) target = $region100
      $region99: #{transformer_forward.1} parent=5 // pred_region
        %s581 = ssub.s32 %s29, 1
        %s582 = smul.u32 4, %s34
        %p583 = scmp.lt.s32.totalorder %s582, 7
        %s584 = scalar_select %p583, %s582, 7
        %s585 = smul.addr %s584, 8
        %s586 = scalar_lea.vmem %s0, %s585
        %p587 = pneg %p55
        %p588 = pneg %p52
        %s589 = smul.u32 4, %s34
        %p590 = scmp.lt.s32.totalorder %s589, 7
        %s591 = scalar_select %p590, %s589, 7
        %s592 = scalar_lea.vmem %s1, %s591
        %p593 = pneg %p81
        %p594 = pneg %p78
        %p595 = pneg %p102
        %p596 = pneg %p99
        %p597 = pneg %p123
        %p598 = pneg %p120
        %p599 = pneg %p144
        %p600 = pneg %p141
        %p601 = pneg %p165
        %p602 = pneg %p162
        %p603 = pneg %p186
        %p604 = pneg %p183
        %p605 = pneg %p207
        %p606 = pneg %p204
        %p607 = pneg %p228
        %p608 = pneg %p225
        %p609 = pneg %p249
        %p610 = pneg %p246
        %p611 = pneg %p270
        %p612 = pneg %p267
        %p613 = pneg %p291
        %p614 = pneg %p288
        %p615 = pneg %p312
        %p616 = pneg %p309
        %p617 = pneg %p333
        %p618 = pneg %p330
        %p619 = pneg %p354
        %p620 = pneg %p351
        %p621 = pneg %p375
        %p622 = pneg %p372
        %p623 = pneg %p396
        %p624 = pneg %p393
        %p625 = pneg %p417
        %p626 = pneg %p414
        %p627 = pneg %p438
        %p628 = pneg %p435
        %p629 = pneg %p459
        %p630 = pneg %p456
        %p631 = pneg %p485
        %p632 = pneg %p482
        %s633 = sand.u32 %s472, 1
        %s634 = scalar_lea.sflag [#allocation3], %s633
        %s635 = sand.u32 %s472, 1
        %s636 = smul.addr %s635, 4
        %s637 = scalar_lea.vmem [#allocation2], %s636
        %s638 = smul.u32 4, %s34
        %p639 = scmp.lt.s32.totalorder %s638, 7
        %s640 = scalar_select %p639, %s638, 7
        %s641 = smul.addr %s640, 8
        %s642 = scalar_lea.vmem %s0, %s641
        %s643 = smul.u32 4, %s34
        %s644 = smul.u32 4, %s34
        %p645 = scmp.lt.s32.totalorder %s644, 7
        %s646 = scalar_select %p645, %s644, 7
        %s647 = scalar_lea.vmem %s1, %s646
        %s648 = smul.u32 4, %s34
        %s649 = smul.u32 4, %s34
        %v650 = vld [vmem:[%s642] sm:$0xff]
        %v651 = vld [vmem:[%s642 + $0x8] sm:$0xff]
        %v652 = vld [vmem:[%s642 + $0x10] sm:$0xff]
        %v653 = vld [vmem:[%s642 + $0x18] sm:$0xff]
        %v654 = vld [vmem:[%s647] sm:$0x1]
        %v655 = vld [vmem:[%s647 + $0x1] sm:$0x1]
        %v656 = vld [vmem:[%s647 + $0x2] sm:$0x1]
        %v657 = vld [vmem:[%s647 + $0x3] sm:$0x1]
        %v658 = vld [vmem:[%s2] sm:$0x1]
        %v659 = vld [vmem:[%s3] sm:$0x1]
        %vm660 = vcmask 261120
        %v661 = vsel %vm660, %v650, 0.0
        %662 = vadd.xlane.f32.xlu0 %v661
        %v663 = vpop.xlane.xlu0 %662
        %v664 = vsel %vm660, %v651, 0.0
        %665 = vadd.xlane.f32.xlu0 %v664
        %v666 = vpop.xlane.xlu0 %665
        %v667 = vsel %vm660, %v652, 0.0
        %668 = vadd.xlane.f32.xlu0 %v667
        %v669 = vpop.xlane.xlu0 %668
        %v670 = vsel %vm660, %v653, 0.0
        %671 = vadd.xlane.f32.xlu0 %v670
        %v672 = vpop.xlane.xlu0 %671
        %v673 = vrcp.pop 32.0
        %v674 = vmul.f32 %v663, %v673
        %v675 = vmul.f32 %v666, %v673
        %v676 = vmul.f32 %v669, %v673
        %v677 = vmul.f32 %v672, %v673
        %v678 = vsub.f32 %v650, %v674
        %v679 = vsub.f32 %v651, %v675
        %v680 = vsub.f32 %v652, %v676
        %v681 = vsub.f32 %v653, %v677
        %v682 = vmul.f32 %v678, %v678
        %v683 = vmul.f32 %v679, %v679
        %v684 = vmul.f32 %v680, %v680
        %v685 = vmul.f32 %v681, %v681
        %v686 = vsel %vm660, %v682, 0.0
        %687 = vadd.xlane.f32.xlu0 %v686
        %v688 = vpop.xlane.xlu0 %687
        %v689 = vsel %vm660, %v683, 0.0
        %690 = vadd.xlane.f32.xlu0 %v689
        %v691 = vpop.xlane.xlu0 %690
        %v692 = vsel %vm660, %v684, 0.0
        %693 = vadd.xlane.f32.xlu0 %v692
        %v694 = vpop.xlane.xlu0 %693
        %v695 = vsel %vm660, %v685, 0.0
        %696 = vadd.xlane.f32.xlu0 %v695
        %v697 = vpop.xlane.xlu0 %696
        %v698 = vmul.f32 %v688, %v673
        %v699 = vmul.f32 %v691, %v673
        %v700 = vmul.f32 %v694, %v673
        %v701 = vmul.f32 %v697, %v673
        %v702 = vadd.f32 %v698, 1e-12
        %v703 = vadd.f32 %v699, 1e-12
        %v704 = vadd.f32 %v700, 1e-12
        %v705 = vadd.f32 %v701, 1e-12
        %v706 = vrsqrt.pop %v702
        %v707 = vrsqrt.pop %v703
        %v708 = vrsqrt.pop %v704
        %v709 = vrsqrt.pop %v705
        %v710 = vmul.f32 %v678, %v706
        %v711 = vmul.f32 %v679, %v707
        %v712 = vmul.f32 %v680, %v708
        %v713 = vmul.f32 %v681, %v709
        %v715 = vlaneseq
        %v716 = vshrl.u32 %v715, 7
        %v717 = vsub.s32 0, %v716
        %v718 = vrot.slane %v658, %v717
        %v720 = vmul.f32 %v710, %v718
        %v721 = vmul.f32 %v711, %v718
        %v722 = vmul.f32 %v712, %v718
        %v723 = vmul.f32 %v713, %v718
        %v725 = vlaneseq
        %v726 = vshrl.u32 %v725, 7
        %v727 = vsub.s32 0, %v726
        %v728 = vrot.slane %v659, %v727
        %v730 = vadd.f32 %v720, %v728
        %v731 = vadd.f32 %v721, %v728
        %v732 = vadd.f32 %v722, %v728
        %v733 = vadd.f32 %v723, %v728
        %v734 = vld [vmem:[%s4] sm:$0xff]
        %v735 = vld [vmem:[%s4 + $0x8] sm:$0xff]
        %v736 = vld [vmem:[%s4 + $0x10] sm:$0xff]
        %v737 = vld [vmem:[%s4 + $0x18] sm:$0xff]
        %v738 = vld [vmem:[%s5] sm:$0x1]
        %v740 = vlaneseq
        %v741 = vshrl.u32 %v740, 7
        %v742 = vsub.s32 0, %v741
        %v743 = vrot.slane %v738, %v742
        %v746 = vsel %vm660, %v730, 0
        %v749 = vsel %vm660, %v731, 0
        %v752 = vsel %vm660, %v732, 0
        %v755 = vsel %vm660, %v733, 0
        %757 = vmatprep.subr.mxu0 0.0
        %758 = vmatpush1.msra.mxu0 0.0
        %759 = vmatprep.subr.mxu0 0.0
        %760 = vmatpush1.msra.mxu0 0.0
        %761 = vmatprep.subr.mxu0 0.0
        %762 = vmatpush1.msra.mxu0 0.0
        %763 = vmatprep.subr.mxu0 0.0
        %764 = vmatpush1.msra.mxu0 0.0
        %765 = vmatprep.subr.mxu0 0.0
        %766 = vmatpush1.msra.mxu0 0.0
        %767 = vmatprep.subr.mxu0 0.0
        %768 = vmatpush1.msra.mxu0 0.0
        %769 = vmatprep.subr.mxu0 0.0
        %770 = vmatpush1.msra.mxu0 0.0
        %771 = vmatprep.subr.mxu0 0.0
        %772 = vmatpush1.msra.mxu0 0.0
        %773 = vmatprep.subr.mxu0 0.0
        %774 = vmatpush1.msra.mxu0 0.0
        %775 = vmatprep.subr.mxu0 0.0
        %776 = vmatpush1.msra.mxu0 0.0
        %777 = vmatprep.subr.mxu0 0.0
        %778 = vmatpush1.msra.mxu0 0.0
        %779 = vmatprep.subr.mxu0 0.0
        %780 = vmatpush1.msra.mxu0 0.0
        %781 = vmatprep.subr.mxu0 0.0
        %782 = vmatpush1.msra.mxu0 %v737
        %783 = vmatprep.subr.mxu0 0.0
        %784 = vmatpush1.msra.mxu0 %v736
        %785 = vmatprep.subr.mxu0 0.0
        %786 = vmatpush1.msra.mxu0 %v735
        %787 = vmatprep.subr.mxu0 0.0
        %788 = vmatpush1.msra.mxu0 %v734
        %789 = vmatprep.subr.mxu0 0.0
        %790 = vmatpush2.msra.mxu0 0.0
        %791 = vmatprep.subr.mxu0 0.0
        %792 = vmatpush2.msra.mxu0 0.0
        %793 = vmatprep.subr.mxu0 0.0
        %794 = vmatpush2.msra.mxu0 0.0
        %795 = vmatprep.subr.mxu0 0.0
        %796 = vmatpush2.msra.mxu0 0.0
        %797 = vmatprep.subr.mxu0 0.0
        %798 = vmatpush2.msra.mxu0 0.0
        %799 = vmatprep.subr.mxu0 0.0
        %800 = vmatpush2.msra.mxu0 0.0
        %801 = vmatprep.subr.mxu0 0.0
        %802 = vmatpush2.msra.mxu0 0.0
        %803 = vmatprep.subr.mxu0 0.0
        %804 = vmatpush2.msra.mxu0 0.0
        %805 = vmatprep.subr.mxu0 0.0
        %806 = vmatpush2.msra.mxu0 0.0
        %807 = vmatprep.subr.mxu0 0.0
        %808 = vmatpush2.msra.mxu0 0.0
        %809 = vmatprep.subr.mxu0 0.0
        %810 = vmatpush2.msra.mxu0 0.0
        %811 = vmatprep.subr.mxu0 0.0
        %812 = vmatpush2.msra.mxu0 0.0
        %813 = vmatprep.subr.mxu0 0.0
        %814 = vmatpush2.msra.mxu0 0.0
        %815 = vmatprep.subr.mxu0 0.0
        %816 = vmatpush2.msra.mxu0 0.0
        %817 = vmatprep.subr.mxu0 0.0
        %818 = vmatpush2.msra.mxu0 0.0
        %819 = vmatprep.subr.mxu0 0.0
        %820 = vmatpush2.msra.mxu0 0.0
        %821 = vmatprep.mubr.f32.mxu0 0.0
        %822 = vmatmul.mubr.f32.gmra.mxu0 %v746
        %v823 = vpop.f32.mrf.mxu0
        %v824 = vadd.f32 %v743, %v823
        %v825 = vpop.f32.mrf.mxu0
        %826 = vmatprep.mubr.f32.mxu0 0.0
        %827 = vmatmul.mubr.f32.gmra.mxu0 %v749
        %v828 = vpop.f32.mrf.mxu0
        %v829 = vadd.f32 %v743, %v828
        %v830 = vpop.f32.mrf.mxu0
        %831 = vmatprep.mubr.f32.mxu0 0.0
        %832 = vmatmul.mubr.f32.gmra.mxu0 %v752
        %v833 = vpop.f32.mrf.mxu0
        %v834 = vadd.f32 %v743, %v833
        %v835 = vpop.f32.mrf.mxu0
        %836 = vmatprep.mubr.f32.mxu0 0.0
        %837 = vmatmul.mubr.f32.gmra.mxu0 %v755
        %v838 = vpop.f32.mrf.mxu0
        %v839 = vadd.f32 %v743, %v838
        %v840 = vpop.f32.mrf.mxu0
        %841 = vdwg.mxu0
        %v846 = vlaneseq
        %v847 = vshrl.u32 %v846, 7
        %v848 = vsub.s32 0, %v847
        %v849 = vrot.slane %v654, %v848
        %v850 = vlaneseq
        %v851 = vshrl.u32 %v850, 7
        %v852 = vsub.s32 0, %v851
        %v853 = vrot.slane %v655, %v852
        %v854 = vlaneseq
        %v855 = vshrl.u32 %v854, 7
        %v856 = vsub.s32 0, %v855
        %v857 = vrot.slane %v656, %v856
        %v858 = vlaneseq
        %v859 = vshrl.u32 %v858, 7
        %v860 = vsub.s32 0, %v859
        %v861 = vrot.slane %v657, %v860
        %867 = vrot.lane.b32.xlu0 %v824, 96
        %v868 = vpop.permute.xlu0 %867
        %vm869 = vcmask 64512
        %v870 = vsel %vm869, %v824, 0
        %v872 = vsel %vm869, %v868, 0
        %874 = vmatprep.subr.mxu0 0.0
        %875 = vmatpush1.xpose.msra.mxu0 0.0
        %876 = vmatprep.subr.mxu0 0.0
        %877 = vmatpush1.xpose.msra.mxu0 0.0
        %878 = vmatprep.subr.mxu0 0.0
        %879 = vmatpush1.xpose.msra.mxu0 0.0
        %880 = vmatprep.subr.mxu0 0.0
        %881 = vmatpush1.xpose.msra.mxu0 0.0
        %882 = vmatprep.subr.mxu0 0.0
        %883 = vmatpush1.xpose.msra.mxu0 0.0
        %884 = vmatprep.subr.mxu0 0.0
        %885 = vmatpush1.xpose.msra.mxu0 0.0
        %886 = vmatprep.subr.mxu0 0.0
        %887 = vmatpush1.xpose.msra.mxu0 0.0
        %888 = vmatprep.subr.mxu0 0.0
        %889 = vmatpush1.xpose.msra.mxu0 0.0
        %890 = vmatprep.subr.mxu0 0.0
        %891 = vmatpush1.xpose.msra.mxu0 0.0
        %892 = vmatprep.subr.mxu0 0.0
        %893 = vmatpush1.xpose.msra.mxu0 0.0
        %894 = vmatprep.subr.mxu0 0.0
        %895 = vmatpush1.xpose.msra.mxu0 0.0
        %896 = vmatprep.subr.mxu0 0.0
        %897 = vmatpush1.xpose.msra.mxu0 0.0
        %898 = vmatprep.subr.mxu0 0.0
        %899 = vmatpush1.xpose.msra.mxu0 0.0
        %900 = vmatprep.subr.mxu0 0.0
        %901 = vmatpush1.xpose.msra.mxu0 0.0
        %902 = vmatprep.subr.mxu0 0.0
        %903 = vmatpush1.xpose.msra.mxu0 0.0
        %904 = vmatprep.subr.mxu0 0.0
        %905 = vmatpush1.xpose.msra.mxu0 %v872
        %906 = vmatprep.subr.mxu0 0.0
        %907 = vmatpush2.xpose.msra.mxu0 0.0
        %908 = vmatprep.subr.mxu0 0.0
        %909 = vmatpush2.xpose.msra.mxu0 0.0
        %910 = vmatprep.subr.mxu0 0.0
        %911 = vmatpush2.xpose.msra.mxu0 0.0
        %912 = vmatprep.subr.mxu0 0.0
        %913 = vmatpush2.xpose.msra.mxu0 0.0
        %914 = vmatprep.subr.mxu0 0.0
        %915 = vmatpush2.xpose.msra.mxu0 0.0
        %916 = vmatprep.subr.mxu0 0.0
        %917 = vmatpush2.xpose.msra.mxu0 0.0
        %918 = vmatprep.subr.mxu0 0.0
        %919 = vmatpush2.xpose.msra.mxu0 0.0
        %920 = vmatprep.subr.mxu0 0.0
        %921 = vmatpush2.xpose.msra.mxu0 0.0
        %922 = vmatprep.subr.mxu0 0.0
        %923 = vmatpush2.xpose.msra.mxu0 0.0
        %924 = vmatprep.subr.mxu0 0.0
        %925 = vmatpush2.xpose.msra.mxu0 0.0
        %926 = vmatprep.subr.mxu0 0.0
        %927 = vmatpush2.xpose.msra.mxu0 0.0
        %928 = vmatprep.subr.mxu0 0.0
        %929 = vmatpush2.xpose.msra.mxu0 0.0
        %930 = vmatprep.subr.mxu0 0.0
        %931 = vmatpush2.xpose.msra.mxu0 0.0
        %932 = vmatprep.subr.mxu0 0.0
        %933 = vmatpush2.xpose.msra.mxu0 0.0
        %934 = vmatprep.subr.mxu0 0.0
        %935 = vmatpush2.xpose.msra.mxu0 0.0
        %936 = vmatprep.subr.mxu0 0.0
        %937 = vmatpush2.xpose.msra.mxu0 0.0
        %938 = vmatprep.mubr.f32.mxu0 0.0
        %939 = vmatmul.mubr.f32.gmra.mxu0 %v870
        %v940 = vpop.f32.mrf.mxu0
        %v941 = vadd.f32 %v849, %v940
        %v942 = vpop.f32.mrf.mxu0
        %943 = vdwg.mxu0
        %945 = vrot.lane.b32.xlu0 %v829, 96
        %v946 = vpop.permute.xlu0 %945
        %v947 = vsel %vm869, %v829, 0
        %v949 = vsel %vm869, %v946, 0
        %951 = vmatprep.subr.mxu0 0.0
        %952 = vmatpush1.xpose.msra.mxu0 0.0
        %953 = vmatprep.subr.mxu0 0.0
        %954 = vmatpush1.xpose.msra.mxu0 0.0
        %955 = vmatprep.subr.mxu0 0.0
        %956 = vmatpush1.xpose.msra.mxu0 0.0
        %957 = vmatprep.subr.mxu0 0.0
        %958 = vmatpush1.xpose.msra.mxu0 0.0
        %959 = vmatprep.subr.mxu0 0.0
        %960 = vmatpush1.xpose.msra.mxu0 0.0
        %961 = vmatprep.subr.mxu0 0.0
        %962 = vmatpush1.xpose.msra.mxu0 0.0
        %963 = vmatprep.subr.mxu0 0.0
        %964 = vmatpush1.xpose.msra.mxu0 0.0
        %965 = vmatprep.subr.mxu0 0.0
        %966 = vmatpush1.xpose.msra.mxu0 0.0
        %967 = vmatprep.subr.mxu0 0.0
        %968 = vmatpush1.xpose.msra.mxu0 0.0
        %969 = vmatprep.subr.mxu0 0.0
        %970 = vmatpush1.xpose.msra.mxu0 0.0
        %971 = vmatprep.subr.mxu0 0.0
        %972 = vmatpush1.xpose.msra.mxu0 0.0
        %973 = vmatprep.subr.mxu0 0.0
        %974 = vmatpush1.xpose.msra.mxu0 0.0
        %975 = vmatprep.subr.mxu0 0.0
        %976 = vmatpush1.xpose.msra.mxu0 0.0
        %977 = vmatprep.subr.mxu0 0.0
        %978 = vmatpush1.xpose.msra.mxu0 0.0
        %979 = vmatprep.subr.mxu0 0.0
        %980 = vmatpush1.xpose.msra.mxu0 0.0
        %981 = vmatprep.subr.mxu0 0.0
        %982 = vmatpush1.xpose.msra.mxu0 %v949
        %983 = vmatprep.subr.mxu0 0.0
        %984 = vmatpush2.xpose.msra.mxu0 0.0
        %985 = vmatprep.subr.mxu0 0.0
        %986 = vmatpush2.xpose.msra.mxu0 0.0
        %987 = vmatprep.subr.mxu0 0.0
        %988 = vmatpush2.xpose.msra.mxu0 0.0
        %989 = vmatprep.subr.mxu0 0.0
        %990 = vmatpush2.xpose.msra.mxu0 0.0
        %991 = vmatprep.subr.mxu0 0.0
        %992 = vmatpush2.xpose.msra.mxu0 0.0
        %993 = vmatprep.subr.mxu0 0.0
        %994 = vmatpush2.xpose.msra.mxu0 0.0
        %995 = vmatprep.subr.mxu0 0.0
        %996 = vmatpush2.xpose.msra.mxu0 0.0
        %997 = vmatprep.subr.mxu0 0.0
        %998 = vmatpush2.xpose.msra.mxu0 0.0
        %999 = vmatprep.subr.mxu0 0.0
        %1000 = vmatpush2.xpose.msra.mxu0 0.0
        %1001 = vmatprep.subr.mxu0 0.0
        %1002 = vmatpush2.xpose.msra.mxu0 0.0
        %1003 = vmatprep.subr.mxu0 0.0
        %1004 = vmatpush2.xpose.msra.mxu0 0.0
        %1005 = vmatprep.subr.mxu0 0.0
        %1006 = vmatpush2.xpose.msra.mxu0 0.0
        %1007 = vmatprep.subr.mxu0 0.0
        %1008 = vmatpush2.xpose.msra.mxu0 0.0
        %1009 = vmatprep.subr.mxu0 0.0
        %1010 = vmatpush2.xpose.msra.mxu0 0.0
        %1011 = vmatprep.subr.mxu0 0.0
        %1012 = vmatpush2.xpose.msra.mxu0 0.0
        %1013 = vmatprep.subr.mxu0 0.0
        %1014 = vmatpush2.xpose.msra.mxu0 0.0
        %1015 = vmatprep.mubr.f32.mxu0 0.0
        %1016 = vmatmul.mubr.f32.gmra.mxu0 %v947
        %v1017 = vpop.f32.mrf.mxu0
        %v1018 = vadd.f32 %v853, %v1017
        %v1019 = vpop.f32.mrf.mxu0
        %1020 = vdwg.mxu0
        %1022 = vrot.lane.b32.xlu0 %v834, 96
        %v1023 = vpop.permute.xlu0 %1022
        %v1024 = vsel %vm869, %v834, 0
        %v1026 = vsel %vm869, %v1023, 0
        %1028 = vmatprep.subr.mxu0 0.0
        %1029 = vmatpush1.xpose.msra.mxu0 0.0
        %1030 = vmatprep.subr.mxu0 0.0
        %1031 = vmatpush1.xpose.msra.mxu0 0.0
        %1032 = vmatprep.subr.mxu0 0.0
        %1033 = vmatpush1.xpose.msra.mxu0 0.0
        %1034 = vmatprep.subr.mxu0 0.0
        %1035 = vmatpush1.xpose.msra.mxu0 0.0
        %1036 = vmatprep.subr.mxu0 0.0
        %1037 = vmatpush1.xpose.msra.mxu0 0.0
        %1038 = vmatprep.subr.mxu0 0.0
        %1039 = vmatpush1.xpose.msra.mxu0 0.0
        %1040 = vmatprep.subr.mxu0 0.0
        %1041 = vmatpush1.xpose.msra.mxu0 0.0
        %1042 = vmatprep.subr.mxu0 0.0
        %1043 = vmatpush1.xpose.msra.mxu0 0.0
        %1044 = vmatprep.subr.mxu0 0.0
        %1045 = vmatpush1.xpose.msra.mxu0 0.0
        %1046 = vmatprep.subr.mxu0 0.0
        %1047 = vmatpush1.xpose.msra.mxu0 0.0
        %1048 = vmatprep.subr.mxu0 0.0
        %1049 = vmatpush1.xpose.msra.mxu0 0.0
        %1050 = vmatprep.subr.mxu0 0.0
        %1051 = vmatpush1.xpose.msra.mxu0 0.0
        %1052 = vmatprep.subr.mxu0 0.0
        %1053 = vmatpush1.xpose.msra.mxu0 0.0
        %1054 = vmatprep.subr.mxu0 0.0
        %1055 = vmatpush1.xpose.msra.mxu0 0.0
        %1056 = vmatprep.subr.mxu0 0.0
        %1057 = vmatpush1.xpose.msra.mxu0 0.0
        %1058 = vmatprep.subr.mxu0 0.0
        %1059 = vmatpush1.xpose.msra.mxu0 %v1026
        %1060 = vmatprep.subr.mxu0 0.0
        %1061 = vmatpush2.xpose.msra.mxu0 0.0
        %1062 = vmatprep.subr.mxu0 0.0
        %1063 = vmatpush2.xpose.msra.mxu0 0.0
        %1064 = vmatprep.subr.mxu0 0.0
        %1065 = vmatpush2.xpose.msra.mxu0 0.0
        %1066 = vmatprep.subr.mxu0 0.0
        %1067 = vmatpush2.xpose.msra.mxu0 0.0
        %1068 = vmatprep.subr.mxu0 0.0
        %1069 = vmatpush2.xpose.msra.mxu0 0.0
        %1070 = vmatprep.subr.mxu0 0.0
        %1071 = vmatpush2.xpose.msra.mxu0 0.0
        %1072 = vmatprep.subr.mxu0 0.0
        %1073 = vmatpush2.xpose.msra.mxu0 0.0
        %1074 = vmatprep.subr.mxu0 0.0
        %1075 = vmatpush2.xpose.msra.mxu0 0.0
        %1076 = vmatprep.subr.mxu0 0.0
        %1077 = vmatpush2.xpose.msra.mxu0 0.0
        %1078 = vmatprep.subr.mxu0 0.0
        %1079 = vmatpush2.xpose.msra.mxu0 0.0
        %1080 = vmatprep.subr.mxu0 0.0
        %1081 = vmatpush2.xpose.msra.mxu0 0.0
        %1082 = vmatprep.subr.mxu0 0.0
        %1083 = vmatpush2.xpose.msra.mxu0 0.0
        %1084 = vmatprep.subr.mxu0 0.0
        %1085 = vmatpush2.xpose.msra.mxu0 0.0
        %1086 = vmatprep.subr.mxu0 0.0
        %1087 = vmatpush2.xpose.msra.mxu0 0.0
        %1088 = vmatprep.subr.mxu0 0.0
        %1089 = vmatpush2.xpose.msra.mxu0 0.0
        %1090 = vmatprep.subr.mxu0 0.0
        %1091 = vmatpush2.xpose.msra.mxu0 0.0
        %1092 = vmatprep.mubr.f32.mxu0 0.0
        %1093 = vmatmul.mubr.f32.gmra.mxu0 %v1024
        %v1094 = vpop.f32.mrf.mxu0
        %v1095 = vadd.f32 %v857, %v1094
        %v1096 = vpop.f32.mrf.mxu0
        %1097 = vdwg.mxu0
        %1099 = vrot.lane.b32.xlu0 %v839, 96
        %v1100 = vpop.permute.xlu0 %1099
        %v1101 = vsel %vm869, %v839, 0
        %v1103 = vsel %vm869, %v1100, 0
        %1105 = vmatprep.subr.mxu0 0.0
        %1106 = vmatpush1.xpose.msra.mxu0 0.0
        %1107 = vmatprep.subr.mxu0 0.0
        %1108 = vmatpush1.xpose.msra.mxu0 0.0
        %1109 = vmatprep.subr.mxu0 0.0
        %1110 = vmatpush1.xpose.msra.mxu0 0.0
        %1111 = vmatprep.subr.mxu0 0.0
        %1112 = vmatpush1.xpose.msra.mxu0 0.0
        %1113 = vmatprep.subr.mxu0 0.0
        %1114 = vmatpush1.xpose.msra.mxu0 0.0
        %1115 = vmatprep.subr.mxu0 0.0
        %1116 = vmatpush1.xpose.msra.mxu0 0.0
        %1117 = vmatprep.subr.mxu0 0.0
        %1118 = vmatpush1.xpose.msra.mxu0 0.0
        %1119 = vmatprep.subr.mxu0 0.0
        %1120 = vmatpush1.xpose.msra.mxu0 0.0
        %1121 = vmatprep.subr.mxu0 0.0
        %1122 = vmatpush1.xpose.msra.mxu0 0.0
        %1123 = vmatprep.subr.mxu0 0.0
        %1124 = vmatpush1.xpose.msra.mxu0 0.0
        %1125 = vmatprep.subr.mxu0 0.0
        %1126 = vmatpush1.xpose.msra.mxu0 0.0
        %1127 = vmatprep.subr.mxu0 0.0
        %1128 = vmatpush1.xpose.msra.mxu0 0.0
        %1129 = vmatprep.subr.mxu0 0.0
        %1130 = vmatpush1.xpose.msra.mxu0 0.0
        %1131 = vmatprep.subr.mxu0 0.0
        %1132 = vmatpush1.xpose.msra.mxu0 0.0
        %1133 = vmatprep.subr.mxu0 0.0
        %1134 = vmatpush1.xpose.msra.mxu0 0.0
        %1135 = vmatprep.subr.mxu0 0.0
        %1136 = vmatpush1.xpose.msra.mxu0 %v1103
        %1137 = vmatprep.subr.mxu0 0.0
        %1138 = vmatpush2.xpose.msra.mxu0 0.0
        %1139 = vmatprep.subr.mxu0 0.0
        %1140 = vmatpush2.xpose.msra.mxu0 0.0
        %1141 = vmatprep.subr.mxu0 0.0
        %1142 = vmatpush2.xpose.msra.mxu0 0.0
        %1143 = vmatprep.subr.mxu0 0.0
        %1144 = vmatpush2.xpose.msra.mxu0 0.0
        %1145 = vmatprep.subr.mxu0 0.0
        %1146 = vmatpush2.xpose.msra.mxu0 0.0
        %1147 = vmatprep.subr.mxu0 0.0
        %1148 = vmatpush2.xpose.msra.mxu0 0.0
        %1149 = vmatprep.subr.mxu0 0.0
        %1150 = vmatpush2.xpose.msra.mxu0 0.0
        %1151 = vmatprep.subr.mxu0 0.0
        %1152 = vmatpush2.xpose.msra.mxu0 0.0
        %1153 = vmatprep.subr.mxu0 0.0
        %1154 = vmatpush2.xpose.msra.mxu0 0.0
        %1155 = vmatprep.subr.mxu0 0.0
        %1156 = vmatpush2.xpose.msra.mxu0 0.0
        %1157 = vmatprep.subr.mxu0 0.0
        %1158 = vmatpush2.xpose.msra.mxu0 0.0
        %1159 = vmatprep.subr.mxu0 0.0
        %1160 = vmatpush2.xpose.msra.mxu0 0.0
        %1161 = vmatprep.subr.mxu0 0.0
        %1162 = vmatpush2.xpose.msra.mxu0 0.0
        %1163 = vmatprep.subr.mxu0 0.0
        %1164 = vmatpush2.xpose.msra.mxu0 0.0
        %1165 = vmatprep.subr.mxu0 0.0
        %1166 = vmatpush2.xpose.msra.mxu0 0.0
        %1167 = vmatprep.subr.mxu0 0.0
        %1168 = vmatpush2.xpose.msra.mxu0 0.0
        %1169 = vmatprep.mubr.f32.mxu0 0.0
        %1170 = vmatmul.mubr.f32.gmra.mxu0 %v1101
        %v1171 = vpop.f32.mrf.mxu0
        %v1172 = vadd.f32 %v861, %v1171
        %v1173 = vpop.f32.mrf.mxu0
        %1174 = vdwg.mxu0
        %v1175 = vsel %vm869, %v941, -inf
        %1176 = vmax.xlane.f32.xlu0 %v1175
        %v1177 = vpop.xlane.xlu0 %1176
        %v1178 = vsel %vm869, %v1018, -inf
        %1179 = vmax.xlane.f32.xlu0 %v1178
        %v1180 = vpop.xlane.xlu0 %1179
        %v1181 = vsel %vm869, %v1095, -inf
        %1182 = vmax.xlane.f32.xlu0 %v1181
        %v1183 = vpop.xlane.xlu0 %1182
        %v1184 = vsel %vm869, %v1172, -inf
        %1185 = vmax.xlane.f32.xlu0 %v1184
        %v1186 = vpop.xlane.xlu0 %1185
        %v1187 = vsub.f32 %v941, %v1177
        %v1188 = vsub.f32 %v1018, %v1180
        %v1189 = vsub.f32 %v1095, %v1183
        %v1190 = vsub.f32 %v1172, %v1186
        %v1191 = vmul.f32 %v1187, 1.442695
        %v1192 = vpow.pop %v1191
        %v1193 = vmul.f32 %v1188, 1.442695
        %v1194 = vpow.pop %v1193
        %v1195 = vmul.f32 %v1189, 1.442695
        %v1196 = vpow.pop %v1195
        %v1197 = vmul.f32 %v1190, 1.442695
        %v1198 = vpow.pop %v1197
        %v1199 = vsel %vm869, %v1192, 0.0
        %1200 = vadd.xlane.f32.xlu0 %v1199
        %v1201 = vpop.xlane.xlu0 %1200
        %v1202 = vsel %vm869, %v1194, 0.0
        %1203 = vadd.xlane.f32.xlu0 %v1202
        %v1204 = vpop.xlane.xlu0 %1203
        %v1205 = vsel %vm869, %v1196, 0.0
        %1206 = vadd.xlane.f32.xlu0 %v1205
        %v1207 = vpop.xlane.xlu0 %1206
        %v1208 = vsel %vm869, %v1198, 0.0
        %1209 = vadd.xlane.f32.xlu0 %v1208
        %v1210 = vpop.xlane.xlu0 %1209
        %v1211 = vrcp.pop %v1201
        %v1212 = vmul.f32 %v1192, %v1211
        %v1213 = vrcp.pop %v1204
        %v1214 = vmul.f32 %v1194, %v1213
        %v1215 = vrcp.pop %v1207
        %v1216 = vmul.f32 %v1196, %v1215
        %v1217 = vrcp.pop %v1210
        %v1218 = vmul.f32 %v1198, %v1217
        %1219 = vrot.lane.b32.xlu0 %v824, 64
        %v1220 = vpop.permute.xlu0 %1219
        %v1223 = vsel %vm869, %v1212, 0
        %1225 = vmatprep.subr.mxu0 0.0
        %1226 = vmatpush1.msra.mxu0 0.0
        %1227 = vmatprep.subr.mxu0 0.0
        %1228 = vmatpush1.msra.mxu0 0.0
        %1229 = vmatprep.subr.mxu0 0.0
        %1230 = vmatpush1.msra.mxu0 0.0
        %1231 = vmatprep.subr.mxu0 0.0
        %1232 = vmatpush1.msra.mxu0 0.0
        %1233 = vmatprep.subr.mxu0 0.0
        %1234 = vmatpush1.msra.mxu0 0.0
        %1235 = vmatprep.subr.mxu0 0.0
        %1236 = vmatpush1.msra.mxu0 0.0
        %1237 = vmatprep.subr.mxu0 0.0
        %1238 = vmatpush1.msra.mxu0 0.0
        %1239 = vmatprep.subr.mxu0 0.0
        %1240 = vmatpush1.msra.mxu0 0.0
        %1241 = vmatprep.subr.mxu0 0.0
        %1242 = vmatpush1.msra.mxu0 0.0
        %1243 = vmatprep.subr.mxu0 0.0
        %1244 = vmatpush1.msra.mxu0 0.0
        %1245 = vmatprep.subr.mxu0 0.0
        %1246 = vmatpush1.msra.mxu0 0.0
        %1247 = vmatprep.subr.mxu0 0.0
        %1248 = vmatpush1.msra.mxu0 0.0
        %1249 = vmatprep.subr.mxu0 0.0
        %1250 = vmatpush1.msra.mxu0 0.0
        %1251 = vmatprep.subr.mxu0 0.0
        %1252 = vmatpush1.msra.mxu0 0.0
        %1253 = vmatprep.subr.mxu0 0.0
        %1254 = vmatpush1.msra.mxu0 0.0
        %1255 = vmatprep.subr.mxu0 0.0
        %1256 = vmatpush1.msra.mxu0 %v1220
        %1257 = vmatprep.subr.mxu0 0.0
        %1258 = vmatpush2.msra.mxu0 0.0
        %1259 = vmatprep.subr.mxu0 0.0
        %1260 = vmatpush2.msra.mxu0 0.0
        %1261 = vmatprep.subr.mxu0 0.0
        %1262 = vmatpush2.msra.mxu0 0.0
        %1263 = vmatprep.subr.mxu0 0.0
        %1264 = vmatpush2.msra.mxu0 0.0
        %1265 = vmatprep.subr.mxu0 0.0
        %1266 = vmatpush2.msra.mxu0 0.0
        %1267 = vmatprep.subr.mxu0 0.0
        %1268 = vmatpush2.msra.mxu0 0.0
        %1269 = vmatprep.subr.mxu0 0.0
        %1270 = vmatpush2.msra.mxu0 0.0
        %1271 = vmatprep.subr.mxu0 0.0
        %1272 = vmatpush2.msra.mxu0 0.0
        %1273 = vmatprep.subr.mxu0 0.0
        %1274 = vmatpush2.msra.mxu0 0.0
        %1275 = vmatprep.subr.mxu0 0.0
        %1276 = vmatpush2.msra.mxu0 0.0
        %1277 = vmatprep.subr.mxu0 0.0
        %1278 = vmatpush2.msra.mxu0 0.0
        %1279 = vmatprep.subr.mxu0 0.0
        %1280 = vmatpush2.msra.mxu0 0.0
        %1281 = vmatprep.subr.mxu0 0.0
        %1282 = vmatpush2.msra.mxu0 0.0
        %1283 = vmatprep.subr.mxu0 0.0
        %1284 = vmatpush2.msra.mxu0 0.0
        %1285 = vmatprep.subr.mxu0 0.0
        %1286 = vmatpush2.msra.mxu0 0.0
        %1287 = vmatprep.subr.mxu0 0.0
        %1288 = vmatpush2.msra.mxu0 0.0
        %1289 = vmatprep.mubr.f32.mxu0 0.0
        %1290 = vmatmul.mubr.f32.gmra.mxu0 %v1223
        %v1291 = vpop.f32.mrf.mxu0
        %v1292 = vadd.f32 0.0, %v1291
        %v1293 = vpop.f32.mrf.mxu0
        %1294 = vdwg.mxu0
        %1295 = vrot.lane.b32.xlu0 %v829, 64
        %v1296 = vpop.permute.xlu0 %1295
        %v1299 = vsel %vm869, %v1214, 0
        %1301 = vmatprep.subr.mxu0 0.0
        %1302 = vmatpush1.msra.mxu0 0.0
        %1303 = vmatprep.subr.mxu0 0.0
        %1304 = vmatpush1.msra.mxu0 0.0
        %1305 = vmatprep.subr.mxu0 0.0
        %1306 = vmatpush1.msra.mxu0 0.0
        %1307 = vmatprep.subr.mxu0 0.0
        %1308 = vmatpush1.msra.mxu0 0.0
        %1309 = vmatprep.subr.mxu0 0.0
        %1310 = vmatpush1.msra.mxu0 0.0
        %1311 = vmatprep.subr.mxu0 0.0
        %1312 = vmatpush1.msra.mxu0 0.0
        %1313 = vmatprep.subr.mxu0 0.0
        %1314 = vmatpush1.msra.mxu0 0.0
        %1315 = vmatprep.subr.mxu0 0.0
        %1316 = vmatpush1.msra.mxu0 0.0
        %1317 = vmatprep.subr.mxu0 0.0
        %1318 = vmatpush1.msra.mxu0 0.0
        %1319 = vmatprep.subr.mxu0 0.0
        %1320 = vmatpush1.msra.mxu0 0.0
        %1321 = vmatprep.subr.mxu0 0.0
        %1322 = vmatpush1.msra.mxu0 0.0
        %1323 = vmatprep.subr.mxu0 0.0
        %1324 = vmatpush1.msra.mxu0 0.0
        %1325 = vmatprep.subr.mxu0 0.0
        %1326 = vmatpush1.msra.mxu0 0.0
        %1327 = vmatprep.subr.mxu0 0.0
        %1328 = vmatpush1.msra.mxu0 0.0
        %1329 = vmatprep.subr.mxu0 0.0
        %1330 = vmatpush1.msra.mxu0 0.0
        %1331 = vmatprep.subr.mxu0 0.0
        %1332 = vmatpush1.msra.mxu0 %v1296
        %1333 = vmatprep.subr.mxu0 0.0
        %1334 = vmatpush2.msra.mxu0 0.0
        %1335 = vmatprep.subr.mxu0 0.0
        %1336 = vmatpush2.msra.mxu0 0.0
        %1337 = vmatprep.subr.mxu0 0.0
        %1338 = vmatpush2.msra.mxu0 0.0
        %1339 = vmatprep.subr.mxu0 0.0
        %1340 = vmatpush2.msra.mxu0 0.0
        %1341 = vmatprep.subr.mxu0 0.0
        %1342 = vmatpush2.msra.mxu0 0.0
        %1343 = vmatprep.subr.mxu0 0.0
        %1344 = vmatpush2.msra.mxu0 0.0
        %1345 = vmatprep.subr.mxu0 0.0
        %1346 = vmatpush2.msra.mxu0 0.0
        %1347 = vmatprep.subr.mxu0 0.0
        %1348 = vmatpush2.msra.mxu0 0.0
        %1349 = vmatprep.subr.mxu0 0.0
        %1350 = vmatpush2.msra.mxu0 0.0
        %1351 = vmatprep.subr.mxu0 0.0
        %1352 = vmatpush2.msra.mxu0 0.0
        %1353 = vmatprep.subr.mxu0 0.0
        %1354 = vmatpush2.msra.mxu0 0.0
        %1355 = vmatprep.subr.mxu0 0.0
        %1356 = vmatpush2.msra.mxu0 0.0
        %1357 = vmatprep.subr.mxu0 0.0
        %1358 = vmatpush2.msra.mxu0 0.0
        %1359 = vmatprep.subr.mxu0 0.0
        %1360 = vmatpush2.msra.mxu0 0.0
        %1361 = vmatprep.subr.mxu0 0.0
        %1362 = vmatpush2.msra.mxu0 0.0
        %1363 = vmatprep.subr.mxu0 0.0
        %1364 = vmatpush2.msra.mxu0 0.0
        %1365 = vmatprep.mubr.f32.mxu0 0.0
        %1366 = vmatmul.mubr.f32.gmra.mxu0 %v1299
        %v1367 = vpop.f32.mrf.mxu0
        %v1368 = vadd.f32 0.0, %v1367
        %v1369 = vpop.f32.mrf.mxu0
        %1370 = vdwg.mxu0
        %1371 = vrot.lane.b32.xlu0 %v834, 64
        %v1372 = vpop.permute.xlu0 %1371
        %v1375 = vsel %vm869, %v1216, 0
        %1377 = vmatprep.subr.mxu0 0.0
        %1378 = vmatpush1.msra.mxu0 0.0
        %1379 = vmatprep.subr.mxu0 0.0
        %1380 = vmatpush1.msra.mxu0 0.0
        %1381 = vmatprep.subr.mxu0 0.0
        %1382 = vmatpush1.msra.mxu0 0.0
        %1383 = vmatprep.subr.mxu0 0.0
        %1384 = vmatpush1.msra.mxu0 0.0
        %1385 = vmatprep.subr.mxu0 0.0
        %1386 = vmatpush1.msra.mxu0 0.0
        %1387 = vmatprep.subr.mxu0 0.0
        %1388 = vmatpush1.msra.mxu0 0.0
        %1389 = vmatprep.subr.mxu0 0.0
        %1390 = vmatpush1.msra.mxu0 0.0
        %1391 = vmatprep.subr.mxu0 0.0
        %1392 = vmatpush1.msra.mxu0 0.0
        %1393 = vmatprep.subr.mxu0 0.0
        %1394 = vmatpush1.msra.mxu0 0.0
        %1395 = vmatprep.subr.mxu0 0.0
        %1396 = vmatpush1.msra.mxu0 0.0
        %1397 = vmatprep.subr.mxu0 0.0
        %1398 = vmatpush1.msra.mxu0 0.0
        %1399 = vmatprep.subr.mxu0 0.0
        %1400 = vmatpush1.msra.mxu0 0.0
        %1401 = vmatprep.subr.mxu0 0.0
        %1402 = vmatpush1.msra.mxu0 0.0
        %1403 = vmatprep.subr.mxu0 0.0
        %1404 = vmatpush1.msra.mxu0 0.0
        %1405 = vmatprep.subr.mxu0 0.0
        %1406 = vmatpush1.msra.mxu0 0.0
        %1407 = vmatprep.subr.mxu0 0.0
        %1408 = vmatpush1.msra.mxu0 %v1372
        %1409 = vmatprep.subr.mxu0 0.0
        %1410 = vmatpush2.msra.mxu0 0.0
        %1411 = vmatprep.subr.mxu0 0.0
        %1412 = vmatpush2.msra.mxu0 0.0
        %1413 = vmatprep.subr.mxu0 0.0
        %1414 = vmatpush2.msra.mxu0 0.0
        %1415 = vmatprep.subr.mxu0 0.0
        %1416 = vmatpush2.msra.mxu0 0.0
        %1417 = vmatprep.subr.mxu0 0.0
        %1418 = vmatpush2.msra.mxu0 0.0
        %1419 = vmatprep.subr.mxu0 0.0
        %1420 = vmatpush2.msra.mxu0 0.0
        %1421 = vmatprep.subr.mxu0 0.0
        %1422 = vmatpush2.msra.mxu0 0.0
        %1423 = vmatprep.subr.mxu0 0.0
        %1424 = vmatpush2.msra.mxu0 0.0
        %1425 = vmatprep.subr.mxu0 0.0
        %1426 = vmatpush2.msra.mxu0 0.0
        %1427 = vmatprep.subr.mxu0 0.0
        %1428 = vmatpush2.msra.mxu0 0.0
        %1429 = vmatprep.subr.mxu0 0.0
        %1430 = vmatpush2.msra.mxu0 0.0
        %1431 = vmatprep.subr.mxu0 0.0
        %1432 = vmatpush2.msra.mxu0 0.0
        %1433 = vmatprep.subr.mxu0 0.0
        %1434 = vmatpush2.msra.mxu0 0.0
        %1435 = vmatprep.subr.mxu0 0.0
        %1436 = vmatpush2.msra.mxu0 0.0
        %1437 = vmatprep.subr.mxu0 0.0
        %1438 = vmatpush2.msra.mxu0 0.0
        %1439 = vmatprep.subr.mxu0 0.0
        %1440 = vmatpush2.msra.mxu0 0.0
        %1441 = vmatprep.mubr.f32.mxu0 0.0
        %1442 = vmatmul.mubr.f32.gmra.mxu0 %v1375
        %v1443 = vpop.f32.mrf.mxu0
        %v1444 = vadd.f32 0.0, %v1443
        %v1445 = vpop.f32.mrf.mxu0
        %1446 = vdwg.mxu0
        %1447 = vrot.lane.b32.xlu0 %v839, 64
        %v1448 = vpop.permute.xlu0 %1447
        %v1451 = vsel %vm869, %v1218, 0
        %1453 = vmatprep.subr.mxu0 0.0
        %1454 = vmatpush1.msra.mxu0 0.0
        %1455 = vmatprep.subr.mxu0 0.0
        %1456 = vmatpush1.msra.mxu0 0.0
        %1457 = vmatprep.subr.mxu0 0.0
        %1458 = vmatpush1.msra.mxu0 0.0
        %1459 = vmatprep.subr.mxu0 0.0
        %1460 = vmatpush1.msra.mxu0 0.0
        %1461 = vmatprep.subr.mxu0 0.0
        %1462 = vmatpush1.msra.mxu0 0.0
        %1463 = vmatprep.subr.mxu0 0.0
        %1464 = vmatpush1.msra.mxu0 0.0
        %1465 = vmatprep.subr.mxu0 0.0
        %1466 = vmatpush1.msra.mxu0 0.0
        %1467 = vmatprep.subr.mxu0 0.0
        %1468 = vmatpush1.msra.mxu0 0.0
        %1469 = vmatprep.subr.mxu0 0.0
        %1470 = vmatpush1.msra.mxu0 0.0
        %1471 = vmatprep.subr.mxu0 0.0
        %1472 = vmatpush1.msra.mxu0 0.0
        %1473 = vmatprep.subr.mxu0 0.0
        %1474 = vmatpush1.msra.mxu0 0.0
        %1475 = vmatprep.subr.mxu0 0.0
        %1476 = vmatpush1.msra.mxu0 0.0
        %1477 = vmatprep.subr.mxu0 0.0
        %1478 = vmatpush1.msra.mxu0 0.0
        %1479 = vmatprep.subr.mxu0 0.0
        %1480 = vmatpush1.msra.mxu0 0.0
        %1481 = vmatprep.subr.mxu0 0.0
        %1482 = vmatpush1.msra.mxu0 0.0
        %1483 = vmatprep.subr.mxu0 0.0
        %1484 = vmatpush1.msra.mxu0 %v1448
        %1485 = vmatprep.subr.mxu0 0.0
        %1486 = vmatpush2.msra.mxu0 0.0
        %1487 = vmatprep.subr.mxu0 0.0
        %1488 = vmatpush2.msra.mxu0 0.0
        %1489 = vmatprep.subr.mxu0 0.0
        %1490 = vmatpush2.msra.mxu0 0.0
        %1491 = vmatprep.subr.mxu0 0.0
        %1492 = vmatpush2.msra.mxu0 0.0
        %1493 = vmatprep.subr.mxu0 0.0
        %1494 = vmatpush2.msra.mxu0 0.0
        %1495 = vmatprep.subr.mxu0 0.0
        %1496 = vmatpush2.msra.mxu0 0.0
        %1497 = vmatprep.subr.mxu0 0.0
        %1498 = vmatpush2.msra.mxu0 0.0
        %1499 = vmatprep.subr.mxu0 0.0
        %1500 = vmatpush2.msra.mxu0 0.0
        %1501 = vmatprep.subr.mxu0 0.0
        %1502 = vmatpush2.msra.mxu0 0.0
        %1503 = vmatprep.subr.mxu0 0.0
        %1504 = vmatpush2.msra.mxu0 0.0
        %1505 = vmatprep.subr.mxu0 0.0
        %1506 = vmatpush2.msra.mxu0 0.0
        %1507 = vmatprep.subr.mxu0 0.0
        %1508 = vmatpush2.msra.mxu0 0.0
        %1509 = vmatprep.subr.mxu0 0.0
        %1510 = vmatpush2.msra.mxu0 0.0
        %1511 = vmatprep.subr.mxu0 0.0
        %1512 = vmatpush2.msra.mxu0 0.0
        %1513 = vmatprep.subr.mxu0 0.0
        %1514 = vmatpush2.msra.mxu0 0.0
        %1515 = vmatprep.subr.mxu0 0.0
        %1516 = vmatpush2.msra.mxu0 0.0
        %1517 = vmatprep.mubr.f32.mxu0 0.0
        %1518 = vmatmul.mubr.f32.gmra.mxu0 %v1451
        %v1519 = vpop.f32.mrf.mxu0
        %v1520 = vadd.f32 0.0, %v1519
        %v1521 = vpop.f32.mrf.mxu0
        %1522 = vdwg.mxu0
        %1523 = vrot.lane.b32.xlu0 %v824, 120
        %v1524 = vpop.permute.xlu0 %1523
        %1525 = vrot.lane.b32.xlu0 %v824, 88
        %v1526 = vpop.permute.xlu0 %1525
        %v1527 = vsel %vm869, %v1524, 0
        %v1529 = vsel %vm869, %v1526, 0
        %1531 = vmatprep.subr.mxu0 0.0
        %1532 = vmatpush1.xpose.msra.mxu0 0.0
        %1533 = vmatprep.subr.mxu0 0.0
        %1534 = vmatpush1.xpose.msra.mxu0 0.0
        %1535 = vmatprep.subr.mxu0 0.0
        %1536 = vmatpush1.xpose.msra.mxu0 0.0
        %1537 = vmatprep.subr.mxu0 0.0
        %1538 = vmatpush1.xpose.msra.mxu0 0.0
        %1539 = vmatprep.subr.mxu0 0.0
        %1540 = vmatpush1.xpose.msra.mxu0 0.0
        %1541 = vmatprep.subr.mxu0 0.0
        %1542 = vmatpush1.xpose.msra.mxu0 0.0
        %1543 = vmatprep.subr.mxu0 0.0
        %1544 = vmatpush1.xpose.msra.mxu0 0.0
        %1545 = vmatprep.subr.mxu0 0.0
        %1546 = vmatpush1.xpose.msra.mxu0 0.0
        %1547 = vmatprep.subr.mxu0 0.0
        %1548 = vmatpush1.xpose.msra.mxu0 0.0
        %1549 = vmatprep.subr.mxu0 0.0
        %1550 = vmatpush1.xpose.msra.mxu0 0.0
        %1551 = vmatprep.subr.mxu0 0.0
        %1552 = vmatpush1.xpose.msra.mxu0 0.0
        %1553 = vmatprep.subr.mxu0 0.0
        %1554 = vmatpush1.xpose.msra.mxu0 0.0
        %1555 = vmatprep.subr.mxu0 0.0
        %1556 = vmatpush1.xpose.msra.mxu0 0.0
        %1557 = vmatprep.subr.mxu0 0.0
        %1558 = vmatpush1.xpose.msra.mxu0 0.0
        %1559 = vmatprep.subr.mxu0 0.0
        %1560 = vmatpush1.xpose.msra.mxu0 0.0
        %1561 = vmatprep.subr.mxu0 0.0
        %1562 = vmatpush1.xpose.msra.mxu0 %v1529
        %1563 = vmatprep.subr.mxu0 0.0
        %1564 = vmatpush2.xpose.msra.mxu0 0.0
        %1565 = vmatprep.subr.mxu0 0.0
        %1566 = vmatpush2.xpose.msra.mxu0 0.0
        %1567 = vmatprep.subr.mxu0 0.0
        %1568 = vmatpush2.xpose.msra.mxu0 0.0
        %1569 = vmatprep.subr.mxu0 0.0
        %1570 = vmatpush2.xpose.msra.mxu0 0.0
        %1571 = vmatprep.subr.mxu0 0.0
        %1572 = vmatpush2.xpose.msra.mxu0 0.0
        %1573 = vmatprep.subr.mxu0 0.0
        %1574 = vmatpush2.xpose.msra.mxu0 0.0
        %1575 = vmatprep.subr.mxu0 0.0
        %1576 = vmatpush2.xpose.msra.mxu0 0.0
        %1577 = vmatprep.subr.mxu0 0.0
        %1578 = vmatpush2.xpose.msra.mxu0 0.0
        %1579 = vmatprep.subr.mxu0 0.0
        %1580 = vmatpush2.xpose.msra.mxu0 0.0
        %1581 = vmatprep.subr.mxu0 0.0
        %1582 = vmatpush2.xpose.msra.mxu0 0.0
        %1583 = vmatprep.subr.mxu0 0.0
        %1584 = vmatpush2.xpose.msra.mxu0 0.0
        %1585 = vmatprep.subr.mxu0 0.0
        %1586 = vmatpush2.xpose.msra.mxu0 0.0
        %1587 = vmatprep.subr.mxu0 0.0
        %1588 = vmatpush2.xpose.msra.mxu0 0.0
        %1589 = vmatprep.subr.mxu0 0.0
        %1590 = vmatpush2.xpose.msra.mxu0 0.0
        %1591 = vmatprep.subr.mxu0 0.0
        %1592 = vmatpush2.xpose.msra.mxu0 0.0
        %1593 = vmatprep.subr.mxu0 0.0
        %1594 = vmatpush2.xpose.msra.mxu0 0.0
        %1595 = vmatprep.mubr.f32.mxu0 0.0
        %1596 = vmatmul.mubr.f32.gmra.mxu0 %v1527
        %v1597 = vpop.f32.mrf.mxu0
        %v1598 = vadd.f32 %v849, %v1597
        %v1599 = vpop.f32.mrf.mxu0
        %1600 = vdwg.mxu0
        %1601 = vrot.lane.b32.xlu0 %v829, 120
        %v1602 = vpop.permute.xlu0 %1601
        %1603 = vrot.lane.b32.xlu0 %v829, 88
        %v1604 = vpop.permute.xlu0 %1603
        %v1605 = vsel %vm869, %v1602, 0
        %v1607 = vsel %vm869, %v1604, 0
        %1609 = vmatprep.subr.mxu0 0.0
        %1610 = vmatpush1.xpose.msra.mxu0 0.0
        %1611 = vmatprep.subr.mxu0 0.0
        %1612 = vmatpush1.xpose.msra.mxu0 0.0
        %1613 = vmatprep.subr.mxu0 0.0
        %1614 = vmatpush1.xpose.msra.mxu0 0.0
        %1615 = vmatprep.subr.mxu0 0.0
        %1616 = vmatpush1.xpose.msra.mxu0 0.0
        %1617 = vmatprep.subr.mxu0 0.0
        %1618 = vmatpush1.xpose.msra.mxu0 0.0
        %1619 = vmatprep.subr.mxu0 0.0
        %1620 = vmatpush1.xpose.msra.mxu0 0.0
        %1621 = vmatprep.subr.mxu0 0.0
        %1622 = vmatpush1.xpose.msra.mxu0 0.0
        %1623 = vmatprep.subr.mxu0 0.0
        %1624 = vmatpush1.xpose.msra.mxu0 0.0
        %1625 = vmatprep.subr.mxu0 0.0
        %1626 = vmatpush1.xpose.msra.mxu0 0.0
        %1627 = vmatprep.subr.mxu0 0.0
        %1628 = vmatpush1.xpose.msra.mxu0 0.0
        %1629 = vmatprep.subr.mxu0 0.0
        %1630 = vmatpush1.xpose.msra.mxu0 0.0
        %1631 = vmatprep.subr.mxu0 0.0
        %1632 = vmatpush1.xpose.msra.mxu0 0.0
        %1633 = vmatprep.subr.mxu0 0.0
        %1634 = vmatpush1.xpose.msra.mxu0 0.0
        %1635 = vmatprep.subr.mxu0 0.0
        %1636 = vmatpush1.xpose.msra.mxu0 0.0
        %1637 = vmatprep.subr.mxu0 0.0
        %1638 = vmatpush1.xpose.msra.mxu0 0.0
        %1639 = vmatprep.subr.mxu0 0.0
        %1640 = vmatpush1.xpose.msra.mxu0 %v1607
        %1641 = vmatprep.subr.mxu0 0.0
        %1642 = vmatpush2.xpose.msra.mxu0 0.0
        %1643 = vmatprep.subr.mxu0 0.0
        %1644 = vmatpush2.xpose.msra.mxu0 0.0
        %1645 = vmatprep.subr.mxu0 0.0
        %1646 = vmatpush2.xpose.msra.mxu0 0.0
        %1647 = vmatprep.subr.mxu0 0.0
        %1648 = vmatpush2.xpose.msra.mxu0 0.0
        %1649 = vmatprep.subr.mxu0 0.0
        %1650 = vmatpush2.xpose.msra.mxu0 0.0
        %1651 = vmatprep.subr.mxu0 0.0
        %1652 = vmatpush2.xpose.msra.mxu0 0.0
        %1653 = vmatprep.subr.mxu0 0.0
        %1654 = vmatpush2.xpose.msra.mxu0 0.0
        %1655 = vmatprep.subr.mxu0 0.0
        %1656 = vmatpush2.xpose.msra.mxu0 0.0
        %1657 = vmatprep.subr.mxu0 0.0
        %1658 = vmatpush2.xpose.msra.mxu0 0.0
        %1659 = vmatprep.subr.mxu0 0.0
        %1660 = vmatpush2.xpose.msra.mxu0 0.0
        %1661 = vmatprep.subr.mxu0 0.0
        %1662 = vmatpush2.xpose.msra.mxu0 0.0
        %1663 = vmatprep.subr.mxu0 0.0
        %1664 = vmatpush2.xpose.msra.mxu0 0.0
        %1665 = vmatprep.subr.mxu0 0.0
        %1666 = vmatpush2.xpose.msra.mxu0 0.0
        %1667 = vmatprep.subr.mxu0 0.0
        %1668 = vmatpush2.xpose.msra.mxu0 0.0
        %1669 = vmatprep.subr.mxu0 0.0
        %1670 = vmatpush2.xpose.msra.mxu0 0.0
        %1671 = vmatprep.subr.mxu0 0.0
        %1672 = vmatpush2.xpose.msra.mxu0 0.0
        %1673 = vmatprep.mubr.f32.mxu0 0.0
        %1674 = vmatmul.mubr.f32.gmra.mxu0 %v1605
        %v1675 = vpop.f32.mrf.mxu0
        %v1676 = vadd.f32 %v853, %v1675
        %v1677 = vpop.f32.mrf.mxu0
        %1678 = vdwg.mxu0
        %1679 = vrot.lane.b32.xlu0 %v834, 120
        %v1680 = vpop.permute.xlu0 %1679
        %1681 = vrot.lane.b32.xlu0 %v834, 88
        %v1682 = vpop.permute.xlu0 %1681
        %v1683 = vsel %vm869, %v1680, 0
        %v1685 = vsel %vm869, %v1682, 0
        %1687 = vmatprep.subr.mxu0 0.0
        %1688 = vmatpush1.xpose.msra.mxu0 0.0
        %1689 = vmatprep.subr.mxu0 0.0
        %1690 = vmatpush1.xpose.msra.mxu0 0.0
        %1691 = vmatprep.subr.mxu0 0.0
        %1692 = vmatpush1.xpose.msra.mxu0 0.0
        %1693 = vmatprep.subr.mxu0 0.0
        %1694 = vmatpush1.xpose.msra.mxu0 0.0
        %1695 = vmatprep.subr.mxu0 0.0
        %1696 = vmatpush1.xpose.msra.mxu0 0.0
        %1697 = vmatprep.subr.mxu0 0.0
        %1698 = vmatpush1.xpose.msra.mxu0 0.0
        %1699 = vmatprep.subr.mxu0 0.0
        %1700 = vmatpush1.xpose.msra.mxu0 0.0
        %1701 = vmatprep.subr.mxu0 0.0
        %1702 = vmatpush1.xpose.msra.mxu0 0.0
        %1703 = vmatprep.subr.mxu0 0.0
        %1704 = vmatpush1.xpose.msra.mxu0 0.0
        %1705 = vmatprep.subr.mxu0 0.0
        %1706 = vmatpush1.xpose.msra.mxu0 0.0
        %1707 = vmatprep.subr.mxu0 0.0
        %1708 = vmatpush1.xpose.msra.mxu0 0.0
        %1709 = vmatprep.subr.mxu0 0.0
        %1710 = vmatpush1.xpose.msra.mxu0 0.0
        %1711 = vmatprep.subr.mxu0 0.0
        %1712 = vmatpush1.xpose.msra.mxu0 0.0
        %1713 = vmatprep.subr.mxu0 0.0
        %1714 = vmatpush1.xpose.msra.mxu0 0.0
        %1715 = vmatprep.subr.mxu0 0.0
        %1716 = vmatpush1.xpose.msra.mxu0 0.0
        %1717 = vmatprep.subr.mxu0 0.0
        %1718 = vmatpush1.xpose.msra.mxu0 %v1685
        %1719 = vmatprep.subr.mxu0 0.0
        %1720 = vmatpush2.xpose.msra.mxu0 0.0
        %1721 = vmatprep.subr.mxu0 0.0
        %1722 = vmatpush2.xpose.msra.mxu0 0.0
        %1723 = vmatprep.subr.mxu0 0.0
        %1724 = vmatpush2.xpose.msra.mxu0 0.0
        %1725 = vmatprep.subr.mxu0 0.0
        %1726 = vmatpush2.xpose.msra.mxu0 0.0
        %1727 = vmatprep.subr.mxu0 0.0
        %1728 = vmatpush2.xpose.msra.mxu0 0.0
        %1729 = vmatprep.subr.mxu0 0.0
        %1730 = vmatpush2.xpose.msra.mxu0 0.0
        %1731 = vmatprep.subr.mxu0 0.0
        %1732 = vmatpush2.xpose.msra.mxu0 0.0
        %1733 = vmatprep.subr.mxu0 0.0
        %1734 = vmatpush2.xpose.msra.mxu0 0.0
        %1735 = vmatprep.subr.mxu0 0.0
        %1736 = vmatpush2.xpose.msra.mxu0 0.0
        %1737 = vmatprep.subr.mxu0 0.0
        %1738 = vmatpush2.xpose.msra.mxu0 0.0
        %1739 = vmatprep.subr.mxu0 0.0
        %1740 = vmatpush2.xpose.msra.mxu0 0.0
        %1741 = vmatprep.subr.mxu0 0.0
        %1742 = vmatpush2.xpose.msra.mxu0 0.0
        %1743 = vmatprep.subr.mxu0 0.0
        %1744 = vmatpush2.xpose.msra.mxu0 0.0
        %1745 = vmatprep.subr.mxu0 0.0
        %1746 = vmatpush2.xpose.msra.mxu0 0.0
        %1747 = vmatprep.subr.mxu0 0.0
        %1748 = vmatpush2.xpose.msra.mxu0 0.0
        %1749 = vmatprep.subr.mxu0 0.0
        %1750 = vmatpush2.xpose.msra.mxu0 0.0
        %1751 = vmatprep.mubr.f32.mxu0 0.0
        %1752 = vmatmul.mubr.f32.gmra.mxu0 %v1683
        %v1753 = vpop.f32.mrf.mxu0
        %v1754 = vadd.f32 %v857, %v1753
        %v1755 = vpop.f32.mrf.mxu0
        %1756 = vdwg.mxu0
        %1757 = vrot.lane.b32.xlu0 %v839, 120
        %v1758 = vpop.permute.xlu0 %1757
        %1759 = vrot.lane.b32.xlu0 %v839, 88
        %v1760 = vpop.permute.xlu0 %1759
        %v1761 = vsel %vm869, %v1758, 0
        %v1763 = vsel %vm869, %v1760, 0
        %1765 = vmatprep.subr.mxu0 0.0
        %1766 = vmatpush1.xpose.msra.mxu0 0.0
        %1767 = vmatprep.subr.mxu0 0.0
        %1768 = vmatpush1.xpose.msra.mxu0 0.0
        %1769 = vmatprep.subr.mxu0 0.0
        %1770 = vmatpush1.xpose.msra.mxu0 0.0
        %1771 = vmatprep.subr.mxu0 0.0
        %1772 = vmatpush1.xpose.msra.mxu0 0.0
        %1773 = vmatprep.subr.mxu0 0.0
        %1774 = vmatpush1.xpose.msra.mxu0 0.0
        %1775 = vmatprep.subr.mxu0 0.0
        %1776 = vmatpush1.xpose.msra.mxu0 0.0
        %1777 = vmatprep.subr.mxu0 0.0
        %1778 = vmatpush1.xpose.msra.mxu0 0.0
        %1779 = vmatprep.subr.mxu0 0.0
        %1780 = vmatpush1.xpose.msra.mxu0 0.0
        %1781 = vmatprep.subr.mxu0 0.0
        %1782 = vmatpush1.xpose.msra.mxu0 0.0
        %1783 = vmatprep.subr.mxu0 0.0
        %1784 = vmatpush1.xpose.msra.mxu0 0.0
        %1785 = vmatprep.subr.mxu0 0.0
        %1786 = vmatpush1.xpose.msra.mxu0 0.0
        %1787 = vmatprep.subr.mxu0 0.0
        %1788 = vmatpush1.xpose.msra.mxu0 0.0
        %1789 = vmatprep.subr.mxu0 0.0
        %1790 = vmatpush1.xpose.msra.mxu0 0.0
        %1791 = vmatprep.subr.mxu0 0.0
        %1792 = vmatpush1.xpose.msra.mxu0 0.0
        %1793 = vmatprep.subr.mxu0 0.0
        %1794 = vmatpush1.xpose.msra.mxu0 0.0
        %1795 = vmatprep.subr.mxu0 0.0
        %1796 = vmatpush1.xpose.msra.mxu0 %v1763
        %1797 = vmatprep.subr.mxu0 0.0
        %1798 = vmatpush2.xpose.msra.mxu0 0.0
        %1799 = vmatprep.subr.mxu0 0.0
        %1800 = vmatpush2.xpose.msra.mxu0 0.0
        %1801 = vmatprep.subr.mxu0 0.0
        %1802 = vmatpush2.xpose.msra.mxu0 0.0
        %1803 = vmatprep.subr.mxu0 0.0
        %1804 = vmatpush2.xpose.msra.mxu0 0.0
        %1805 = vmatprep.subr.mxu0 0.0
        %1806 = vmatpush2.xpose.msra.mxu0 0.0
        %1807 = vmatprep.subr.mxu0 0.0
        %1808 = vmatpush2.xpose.msra.mxu0 0.0
        %1809 = vmatprep.subr.mxu0 0.0
        %1810 = vmatpush2.xpose.msra.mxu0 0.0
        %1811 = vmatprep.subr.mxu0 0.0
        %1812 = vmatpush2.xpose.msra.mxu0 0.0
        %1813 = vmatprep.subr.mxu0 0.0
        %1814 = vmatpush2.xpose.msra.mxu0 0.0
        %1815 = vmatprep.subr.mxu0 0.0
        %1816 = vmatpush2.xpose.msra.mxu0 0.0
        %1817 = vmatprep.subr.mxu0 0.0
        %1818 = vmatpush2.xpose.msra.mxu0 0.0
        %1819 = vmatprep.subr.mxu0 0.0
        %1820 = vmatpush2.xpose.msra.mxu0 0.0
        %1821 = vmatprep.subr.mxu0 0.0
        %1822 = vmatpush2.xpose.msra.mxu0 0.0
        %1823 = vmatprep.subr.mxu0 0.0
        %1824 = vmatpush2.xpose.msra.mxu0 0.0
        %1825 = vmatprep.subr.mxu0 0.0
        %1826 = vmatpush2.xpose.msra.mxu0 0.0
        %1827 = vmatprep.subr.mxu0 0.0
        %1828 = vmatpush2.xpose.msra.mxu0 0.0
        %1829 = vmatprep.mubr.f32.mxu0 0.0
        %1830 = vmatmul.mubr.f32.gmra.mxu0 %v1761
        %v1831 = vpop.f32.mrf.mxu0
        %v1832 = vadd.f32 %v861, %v1831
        %v1833 = vpop.f32.mrf.mxu0
        %1834 = vdwg.mxu0
        %v1835 = vsel %vm869, %v1598, -inf
        %1836 = vmax.xlane.f32.xlu0 %v1835
        %v1837 = vpop.xlane.xlu0 %1836
        %v1838 = vsel %vm869, %v1676, -inf
        %1839 = vmax.xlane.f32.xlu0 %v1838
        %v1840 = vpop.xlane.xlu0 %1839
        %v1841 = vsel %vm869, %v1754, -inf
        %1842 = vmax.xlane.f32.xlu0 %v1841
        %v1843 = vpop.xlane.xlu0 %1842
        %v1844 = vsel %vm869, %v1832, -inf
        %1845 = vmax.xlane.f32.xlu0 %v1844
        %v1846 = vpop.xlane.xlu0 %1845
        %v1847 = vsub.f32 %v1598, %v1837
        %v1848 = vsub.f32 %v1676, %v1840
        %v1849 = vsub.f32 %v1754, %v1843
        %v1850 = vsub.f32 %v1832, %v1846
        %v1851 = vmul.f32 %v1847, 1.442695
        %v1852 = vpow.pop %v1851
        %v1853 = vmul.f32 %v1848, 1.442695
        %v1854 = vpow.pop %v1853
        %v1855 = vmul.f32 %v1849, 1.442695
        %v1856 = vpow.pop %v1855
        %v1857 = vmul.f32 %v1850, 1.442695
        %v1858 = vpow.pop %v1857
        %v1859 = vsel %vm869, %v1852, 0.0
        %1860 = vadd.xlane.f32.xlu0 %v1859
        %v1861 = vpop.xlane.xlu0 %1860
        %v1862 = vsel %vm869, %v1854, 0.0
        %1863 = vadd.xlane.f32.xlu0 %v1862
        %v1864 = vpop.xlane.xlu0 %1863
        %v1865 = vsel %vm869, %v1856, 0.0
        %1866 = vadd.xlane.f32.xlu0 %v1865
        %v1867 = vpop.xlane.xlu0 %1866
        %v1868 = vsel %vm869, %v1858, 0.0
        %1869 = vadd.xlane.f32.xlu0 %v1868
        %v1870 = vpop.xlane.xlu0 %1869
        %v1871 = vrcp.pop %v1861
        %v1872 = vmul.f32 %v1852, %v1871
        %v1873 = vrcp.pop %v1864
        %v1874 = vmul.f32 %v1854, %v1873
        %v1875 = vrcp.pop %v1867
        %v1876 = vmul.f32 %v1856, %v1875
        %v1877 = vrcp.pop %v1870
        %v1878 = vmul.f32 %v1858, %v1877
        %1879 = vrot.lane.b32.xlu0 %v824, 56
        %v1880 = vpop.permute.xlu0 %1879
        %v1883 = vsel %vm869, %v1872, 0
        %1885 = vmatprep.subr.mxu0 0.0
        %1886 = vmatpush1.msra.mxu0 0.0
        %1887 = vmatprep.subr.mxu0 0.0
        %1888 = vmatpush1.msra.mxu0 0.0
        %1889 = vmatprep.subr.mxu0 0.0
        %1890 = vmatpush1.msra.mxu0 0.0
        %1891 = vmatprep.subr.mxu0 0.0
        %1892 = vmatpush1.msra.mxu0 0.0
        %1893 = vmatprep.subr.mxu0 0.0
        %1894 = vmatpush1.msra.mxu0 0.0
        %1895 = vmatprep.subr.mxu0 0.0
        %1896 = vmatpush1.msra.mxu0 0.0
        %1897 = vmatprep.subr.mxu0 0.0
        %1898 = vmatpush1.msra.mxu0 0.0
        %1899 = vmatprep.subr.mxu0 0.0
        %1900 = vmatpush1.msra.mxu0 0.0
        %1901 = vmatprep.subr.mxu0 0.0
        %1902 = vmatpush1.msra.mxu0 0.0
        %1903 = vmatprep.subr.mxu0 0.0
        %1904 = vmatpush1.msra.mxu0 0.0
        %1905 = vmatprep.subr.mxu0 0.0
        %1906 = vmatpush1.msra.mxu0 0.0
        %1907 = vmatprep.subr.mxu0 0.0
        %1908 = vmatpush1.msra.mxu0 0.0
        %1909 = vmatprep.subr.mxu0 0.0
        %1910 = vmatpush1.msra.mxu0 0.0
        %1911 = vmatprep.subr.mxu0 0.0
        %1912 = vmatpush1.msra.mxu0 0.0
        %1913 = vmatprep.subr.mxu0 0.0
        %1914 = vmatpush1.msra.mxu0 0.0
        %1915 = vmatprep.subr.mxu0 0.0
        %1916 = vmatpush1.msra.mxu0 %v1880
        %1917 = vmatprep.subr.mxu0 0.0
        %1918 = vmatpush2.msra.mxu0 0.0
        %1919 = vmatprep.subr.mxu0 0.0
        %1920 = vmatpush2.msra.mxu0 0.0
        %1921 = vmatprep.subr.mxu0 0.0
        %1922 = vmatpush2.msra.mxu0 0.0
        %1923 = vmatprep.subr.mxu0 0.0
        %1924 = vmatpush2.msra.mxu0 0.0
        %1925 = vmatprep.subr.mxu0 0.0
        %1926 = vmatpush2.msra.mxu0 0.0
        %1927 = vmatprep.subr.mxu0 0.0
        %1928 = vmatpush2.msra.mxu0 0.0
        %1929 = vmatprep.subr.mxu0 0.0
        %1930 = vmatpush2.msra.mxu0 0.0
        %1931 = vmatprep.subr.mxu0 0.0
        %1932 = vmatpush2.msra.mxu0 0.0
        %1933 = vmatprep.subr.mxu0 0.0
        %1934 = vmatpush2.msra.mxu0 0.0
        %1935 = vmatprep.subr.mxu0 0.0
        %1936 = vmatpush2.msra.mxu0 0.0
        %1937 = vmatprep.subr.mxu0 0.0
        %1938 = vmatpush2.msra.mxu0 0.0
        %1939 = vmatprep.subr.mxu0 0.0
        %1940 = vmatpush2.msra.mxu0 0.0
        %1941 = vmatprep.subr.mxu0 0.0
        %1942 = vmatpush2.msra.mxu0 0.0
        %1943 = vmatprep.subr.mxu0 0.0
        %1944 = vmatpush2.msra.mxu0 0.0
        %1945 = vmatprep.subr.mxu0 0.0
        %1946 = vmatpush2.msra.mxu0 0.0
        %1947 = vmatprep.subr.mxu0 0.0
        %1948 = vmatpush2.msra.mxu0 0.0
        %1949 = vmatprep.mubr.f32.mxu0 0.0
        %1950 = vmatmul.mubr.f32.gmra.mxu0 %v1883
        %v1951 = vpop.f32.mrf.mxu0
        %v1952 = vadd.f32 0.0, %v1951
        %v1953 = vpop.f32.mrf.mxu0
        %1954 = vdwg.mxu0
        %1955 = vrot.lane.b32.xlu0 %v829, 56
        %v1956 = vpop.permute.xlu0 %1955
        %v1959 = vsel %vm869, %v1874, 0
        %1961 = vmatprep.subr.mxu0 0.0
        %1962 = vmatpush1.msra.mxu0 0.0
        %1963 = vmatprep.subr.mxu0 0.0
        %1964 = vmatpush1.msra.mxu0 0.0
        %1965 = vmatprep.subr.mxu0 0.0
        %1966 = vmatpush1.msra.mxu0 0.0
        %1967 = vmatprep.subr.mxu0 0.0
        %1968 = vmatpush1.msra.mxu0 0.0
        %1969 = vmatprep.subr.mxu0 0.0
        %1970 = vmatpush1.msra.mxu0 0.0
        %1971 = vmatprep.subr.mxu0 0.0
        %1972 = vmatpush1.msra.mxu0 0.0
        %1973 = vmatprep.subr.mxu0 0.0
        %1974 = vmatpush1.msra.mxu0 0.0
        %1975 = vmatprep.subr.mxu0 0.0
        %1976 = vmatpush1.msra.mxu0 0.0
        %1977 = vmatprep.subr.mxu0 0.0
        %1978 = vmatpush1.msra.mxu0 0.0
        %1979 = vmatprep.subr.mxu0 0.0
        %1980 = vmatpush1.msra.mxu0 0.0
        %1981 = vmatprep.subr.mxu0 0.0
        %1982 = vmatpush1.msra.mxu0 0.0
        %1983 = vmatprep.subr.mxu0 0.0
        %1984 = vmatpush1.msra.mxu0 0.0
        %1985 = vmatprep.subr.mxu0 0.0
        %1986 = vmatpush1.msra.mxu0 0.0
        %1987 = vmatprep.subr.mxu0 0.0
        %1988 = vmatpush1.msra.mxu0 0.0
        %1989 = vmatprep.subr.mxu0 0.0
        %1990 = vmatpush1.msra.mxu0 0.0
        %1991 = vmatprep.subr.mxu0 0.0
        %1992 = vmatpush1.msra.mxu0 %v1956
        %1993 = vmatprep.subr.mxu0 0.0
        %1994 = vmatpush2.msra.mxu0 0.0
        %1995 = vmatprep.subr.mxu0 0.0
        %1996 = vmatpush2.msra.mxu0 0.0
        %1997 = vmatprep.subr.mxu0 0.0
        %1998 = vmatpush2.msra.mxu0 0.0
        %1999 = vmatprep.subr.mxu0 0.0
        %2000 = vmatpush2.msra.mxu0 0.0
        %2001 = vmatprep.subr.mxu0 0.0
        %2002 = vmatpush2.msra.mxu0 0.0
        %2003 = vmatprep.subr.mxu0 0.0
        %2004 = vmatpush2.msra.mxu0 0.0
        %2005 = vmatprep.subr.mxu0 0.0
        %2006 = vmatpush2.msra.mxu0 0.0
        %2007 = vmatprep.subr.mxu0 0.0
        %2008 = vmatpush2.msra.mxu0 0.0
        %2009 = vmatprep.subr.mxu0 0.0
        %2010 = vmatpush2.msra.mxu0 0.0
        %2011 = vmatprep.subr.mxu0 0.0
        %2012 = vmatpush2.msra.mxu0 0.0
        %2013 = vmatprep.subr.mxu0 0.0
        %2014 = vmatpush2.msra.mxu0 0.0
        %2015 = vmatprep.subr.mxu0 0.0
        %2016 = vmatpush2.msra.mxu0 0.0
        %2017 = vmatprep.subr.mxu0 0.0
        %2018 = vmatpush2.msra.mxu0 0.0
        %2019 = vmatprep.subr.mxu0 0.0
        %2020 = vmatpush2.msra.mxu0 0.0
        %2021 = vmatprep.subr.mxu0 0.0
        %2022 = vmatpush2.msra.mxu0 0.0
        %2023 = vmatprep.subr.mxu0 0.0
        %2024 = vmatpush2.msra.mxu0 0.0
        %2025 = vmatprep.mubr.f32.mxu0 0.0
        %2026 = vmatmul.mubr.f32.gmra.mxu0 %v1959
        %v2027 = vpop.f32.mrf.mxu0
        %v2028 = vadd.f32 0.0, %v2027
        %v2029 = vpop.f32.mrf.mxu0
        %2030 = vdwg.mxu0
        %2031 = vrot.lane.b32.xlu0 %v834, 56
        %v2032 = vpop.permute.xlu0 %2031
        %v2035 = vsel %vm869, %v1876, 0
        %2037 = vmatprep.subr.mxu0 0.0
        %2038 = vmatpush1.msra.mxu0 0.0
        %2039 = vmatprep.subr.mxu0 0.0
        %2040 = vmatpush1.msra.mxu0 0.0
        %2041 = vmatprep.subr.mxu0 0.0
        %2042 = vmatpush1.msra.mxu0 0.0
        %2043 = vmatprep.subr.mxu0 0.0
        %2044 = vmatpush1.msra.mxu0 0.0
        %2045 = vmatprep.subr.mxu0 0.0
        %2046 = vmatpush1.msra.mxu0 0.0
        %2047 = vmatprep.subr.mxu0 0.0
        %2048 = vmatpush1.msra.mxu0 0.0
        %2049 = vmatprep.subr.mxu0 0.0
        %2050 = vmatpush1.msra.mxu0 0.0
        %2051 = vmatprep.subr.mxu0 0.0
        %2052 = vmatpush1.msra.mxu0 0.0
        %2053 = vmatprep.subr.mxu0 0.0
        %2054 = vmatpush1.msra.mxu0 0.0
        %2055 = vmatprep.subr.mxu0 0.0
        %2056 = vmatpush1.msra.mxu0 0.0
        %2057 = vmatprep.subr.mxu0 0.0
        %2058 = vmatpush1.msra.mxu0 0.0
        %2059 = vmatprep.subr.mxu0 0.0
        %2060 = vmatpush1.msra.mxu0 0.0
        %2061 = vmatprep.subr.mxu0 0.0
        %2062 = vmatpush1.msra.mxu0 0.0
        %2063 = vmatprep.subr.mxu0 0.0
        %2064 = vmatpush1.msra.mxu0 0.0
        %2065 = vmatprep.subr.mxu0 0.0
        %2066 = vmatpush1.msra.mxu0 0.0
        %2067 = vmatprep.subr.mxu0 0.0
        %2068 = vmatpush1.msra.mxu0 %v2032
        %2069 = vmatprep.subr.mxu0 0.0
        %2070 = vmatpush2.msra.mxu0 0.0
        %2071 = vmatprep.subr.mxu0 0.0
        %2072 = vmatpush2.msra.mxu0 0.0
        %2073 = vmatprep.subr.mxu0 0.0
        %2074 = vmatpush2.msra.mxu0 0.0
        %2075 = vmatprep.subr.mxu0 0.0
        %2076 = vmatpush2.msra.mxu0 0.0
        %2077 = vmatprep.subr.mxu0 0.0
        %2078 = vmatpush2.msra.mxu0 0.0
        %2079 = vmatprep.subr.mxu0 0.0
        %2080 = vmatpush2.msra.mxu0 0.0
        %2081 = vmatprep.subr.mxu0 0.0
        %2082 = vmatpush2.msra.mxu0 0.0
        %2083 = vmatprep.subr.mxu0 0.0
        %2084 = vmatpush2.msra.mxu0 0.0
        %2085 = vmatprep.subr.mxu0 0.0
        %2086 = vmatpush2.msra.mxu0 0.0
        %2087 = vmatprep.subr.mxu0 0.0
        %2088 = vmatpush2.msra.mxu0 0.0
        %2089 = vmatprep.subr.mxu0 0.0
        %2090 = vmatpush2.msra.mxu0 0.0
        %2091 = vmatprep.subr.mxu0 0.0
        %2092 = vmatpush2.msra.mxu0 0.0
        %2093 = vmatprep.subr.mxu0 0.0
        %2094 = vmatpush2.msra.mxu0 0.0
        %2095 = vmatprep.subr.mxu0 0.0
        %2096 = vmatpush2.msra.mxu0 0.0
        %2097 = vmatprep.subr.mxu0 0.0
        %2098 = vmatpush2.msra.mxu0 0.0
        %2099 = vmatprep.subr.mxu0 0.0
        %2100 = vmatpush2.msra.mxu0 0.0
        %2101 = vmatprep.mubr.f32.mxu0 0.0
        %2102 = vmatmul.mubr.f32.gmra.mxu0 %v2035
        %v2103 = vpop.f32.mrf.mxu0
        %v2104 = vadd.f32 0.0, %v2103
        %v2105 = vpop.f32.mrf.mxu0
        %2106 = vdwg.mxu0
        %2107 = vrot.lane.b32.xlu0 %v839, 56
        %v2108 = vpop.permute.xlu0 %2107
        %v2111 = vsel %vm869, %v1878, 0
        %2113 = vmatprep.subr.mxu0 0.0
        %2114 = vmatpush1.msra.mxu0 0.0
        %2115 = vmatprep.subr.mxu0 0.0
        %2116 = vmatpush1.msra.mxu0 0.0
        %2117 = vmatprep.subr.mxu0 0.0
        %2118 = vmatpush1.msra.mxu0 0.0
        %2119 = vmatprep.subr.mxu0 0.0
        %2120 = vmatpush1.msra.mxu0 0.0
        %2121 = vmatprep.subr.mxu0 0.0
        %2122 = vmatpush1.msra.mxu0 0.0
        %2123 = vmatprep.subr.mxu0 0.0
        %2124 = vmatpush1.msra.mxu0 0.0
        %2125 = vmatprep.subr.mxu0 0.0
        %2126 = vmatpush1.msra.mxu0 0.0
        %2127 = vmatprep.subr.mxu0 0.0
        %2128 = vmatpush1.msra.mxu0 0.0
        %2129 = vmatprep.subr.mxu0 0.0
        %2130 = vmatpush1.msra.mxu0 0.0
        %2131 = vmatprep.subr.mxu0 0.0
        %2132 = vmatpush1.msra.mxu0 0.0
        %2133 = vmatprep.subr.mxu0 0.0
        %2134 = vmatpush1.msra.mxu0 0.0
        %2135 = vmatprep.subr.mxu0 0.0
        %2136 = vmatpush1.msra.mxu0 0.0
        %2137 = vmatprep.subr.mxu0 0.0
        %2138 = vmatpush1.msra.mxu0 0.0
        %2139 = vmatprep.subr.mxu0 0.0
        %2140 = vmatpush1.msra.mxu0 0.0
        %2141 = vmatprep.subr.mxu0 0.0
        %2142 = vmatpush1.msra.mxu0 0.0
        %2143 = vmatprep.subr.mxu0 0.0
        %2144 = vmatpush1.msra.mxu0 %v2108
        %2145 = vmatprep.subr.mxu0 0.0
        %2146 = vmatpush2.msra.mxu0 0.0
        %2147 = vmatprep.subr.mxu0 0.0
        %2148 = vmatpush2.msra.mxu0 0.0
        %2149 = vmatprep.subr.mxu0 0.0
        %2150 = vmatpush2.msra.mxu0 0.0
        %2151 = vmatprep.subr.mxu0 0.0
        %2152 = vmatpush2.msra.mxu0 0.0
        %2153 = vmatprep.subr.mxu0 0.0
        %2154 = vmatpush2.msra.mxu0 0.0
        %2155 = vmatprep.subr.mxu0 0.0
        %2156 = vmatpush2.msra.mxu0 0.0
        %2157 = vmatprep.subr.mxu0 0.0
        %2158 = vmatpush2.msra.mxu0 0.0
        %2159 = vmatprep.subr.mxu0 0.0
        %2160 = vmatpush2.msra.mxu0 0.0
        %2161 = vmatprep.subr.mxu0 0.0
        %2162 = vmatpush2.msra.mxu0 0.0
        %2163 = vmatprep.subr.mxu0 0.0
        %2164 = vmatpush2.msra.mxu0 0.0
        %2165 = vmatprep.subr.mxu0 0.0
        %2166 = vmatpush2.msra.mxu0 0.0
        %2167 = vmatprep.subr.mxu0 0.0
        %2168 = vmatpush2.msra.mxu0 0.0
        %2169 = vmatprep.subr.mxu0 0.0
        %2170 = vmatpush2.msra.mxu0 0.0
        %2171 = vmatprep.subr.mxu0 0.0
        %2172 = vmatpush2.msra.mxu0 0.0
        %2173 = vmatprep.subr.mxu0 0.0
        %2174 = vmatpush2.msra.mxu0 0.0
        %2175 = vmatprep.subr.mxu0 0.0
        %2176 = vmatpush2.msra.mxu0 0.0
        %2177 = vmatprep.mubr.f32.mxu0 0.0
        %2178 = vmatmul.mubr.f32.gmra.mxu0 %v2111
        %v2179 = vpop.f32.mrf.mxu0
        %v2180 = vadd.f32 0.0, %v2179
        %v2181 = vpop.f32.mrf.mxu0
        %2182 = vdwg.mxu0
        %2183 = vrot.lane.b32.xlu0 %v824, 112
        %v2184 = vpop.permute.xlu0 %2183
        %2185 = vrot.lane.b32.xlu0 %v824, 80
        %v2186 = vpop.permute.xlu0 %2185
        %v2187 = vsel %vm869, %v2184, 0
        %v2189 = vsel %vm869, %v2186, 0
        %2191 = vmatprep.subr.mxu0 0.0
        %2192 = vmatpush1.xpose.msra.mxu0 0.0
        %2193 = vmatprep.subr.mxu0 0.0
        %2194 = vmatpush1.xpose.msra.mxu0 0.0
        %2195 = vmatprep.subr.mxu0 0.0
        %2196 = vmatpush1.xpose.msra.mxu0 0.0
        %2197 = vmatprep.subr.mxu0 0.0
        %2198 = vmatpush1.xpose.msra.mxu0 0.0
        %2199 = vmatprep.subr.mxu0 0.0
        %2200 = vmatpush1.xpose.msra.mxu0 0.0
        %2201 = vmatprep.subr.mxu0 0.0
        %2202 = vmatpush1.xpose.msra.mxu0 0.0
        %2203 = vmatprep.subr.mxu0 0.0
        %2204 = vmatpush1.xpose.msra.mxu0 0.0
        %2205 = vmatprep.subr.mxu0 0.0
        %2206 = vmatpush1.xpose.msra.mxu0 0.0
        %2207 = vmatprep.subr.mxu0 0.0
        %2208 = vmatpush1.xpose.msra.mxu0 0.0
        %2209 = vmatprep.subr.mxu0 0.0
        %2210 = vmatpush1.xpose.msra.mxu0 0.0
        %2211 = vmatprep.subr.mxu0 0.0
        %2212 = vmatpush1.xpose.msra.mxu0 0.0
        %2213 = vmatprep.subr.mxu0 0.0
        %2214 = vmatpush1.xpose.msra.mxu0 0.0
        %2215 = vmatprep.subr.mxu0 0.0
        %2216 = vmatpush1.xpose.msra.mxu0 0.0
        %2217 = vmatprep.subr.mxu0 0.0
        %2218 = vmatpush1.xpose.msra.mxu0 0.0
        %2219 = vmatprep.subr.mxu0 0.0
        %2220 = vmatpush1.xpose.msra.mxu0 0.0
        %2221 = vmatprep.subr.mxu0 0.0
        %2222 = vmatpush1.xpose.msra.mxu0 %v2189
        %2223 = vmatprep.subr.mxu0 0.0
        %2224 = vmatpush2.xpose.msra.mxu0 0.0
        %2225 = vmatprep.subr.mxu0 0.0
        %2226 = vmatpush2.xpose.msra.mxu0 0.0
        %2227 = vmatprep.subr.mxu0 0.0
        %2228 = vmatpush2.xpose.msra.mxu0 0.0
        %2229 = vmatprep.subr.mxu0 0.0
        %2230 = vmatpush2.xpose.msra.mxu0 0.0
        %2231 = vmatprep.subr.mxu0 0.0
        %2232 = vmatpush2.xpose.msra.mxu0 0.0
        %2233 = vmatprep.subr.mxu0 0.0
        %2234 = vmatpush2.xpose.msra.mxu0 0.0
        %2235 = vmatprep.subr.mxu0 0.0
        %2236 = vmatpush2.xpose.msra.mxu0 0.0
        %2237 = vmatprep.subr.mxu0 0.0
        %2238 = vmatpush2.xpose.msra.mxu0 0.0
        %2239 = vmatprep.subr.mxu0 0.0
        %2240 = vmatpush2.xpose.msra.mxu0 0.0
        %2241 = vmatprep.subr.mxu0 0.0
        %2242 = vmatpush2.xpose.msra.mxu0 0.0
        %2243 = vmatprep.subr.mxu0 0.0
        %2244 = vmatpush2.xpose.msra.mxu0 0.0
        %2245 = vmatprep.subr.mxu0 0.0
        %2246 = vmatpush2.xpose.msra.mxu0 0.0
        %2247 = vmatprep.subr.mxu0 0.0
        %2248 = vmatpush2.xpose.msra.mxu0 0.0
        %2249 = vmatprep.subr.mxu0 0.0
        %2250 = vmatpush2.xpose.msra.mxu0 0.0
        %2251 = vmatprep.subr.mxu0 0.0
        %2252 = vmatpush2.xpose.msra.mxu0 0.0
        %2253 = vmatprep.subr.mxu0 0.0
        %2254 = vmatpush2.xpose.msra.mxu0 0.0
        %2255 = vmatprep.mubr.f32.mxu0 0.0
        %2256 = vmatmul.mubr.f32.gmra.mxu0 %v2187
        %v2257 = vpop.f32.mrf.mxu0
        %v2258 = vadd.f32 %v849, %v2257
        %v2259 = vpop.f32.mrf.mxu0
        %2260 = vdwg.mxu0
        %2261 = vrot.lane.b32.xlu0 %v829, 112
        %v2262 = vpop.permute.xlu0 %2261
        %2263 = vrot.lane.b32.xlu0 %v829, 80
        %v2264 = vpop.permute.xlu0 %2263
        %v2265 = vsel %vm869, %v2262, 0
        %v2267 = vsel %vm869, %v2264, 0
        %2269 = vmatprep.subr.mxu0 0.0
        %2270 = vmatpush1.xpose.msra.mxu0 0.0
        %2271 = vmatprep.subr.mxu0 0.0
        %2272 = vmatpush1.xpose.msra.mxu0 0.0
        %2273 = vmatprep.subr.mxu0 0.0
        %2274 = vmatpush1.xpose.msra.mxu0 0.0
        %2275 = vmatprep.subr.mxu0 0.0
        %2276 = vmatpush1.xpose.msra.mxu0 0.0
        %2277 = vmatprep.subr.mxu0 0.0
        %2278 = vmatpush1.xpose.msra.mxu0 0.0
        %2279 = vmatprep.subr.mxu0 0.0
        %2280 = vmatpush1.xpose.msra.mxu0 0.0
        %2281 = vmatprep.subr.mxu0 0.0
        %2282 = vmatpush1.xpose.msra.mxu0 0.0
        %2283 = vmatprep.subr.mxu0 0.0
        %2284 = vmatpush1.xpose.msra.mxu0 0.0
        %2285 = vmatprep.subr.mxu0 0.0
        %2286 = vmatpush1.xpose.msra.mxu0 0.0
        %2287 = vmatprep.subr.mxu0 0.0
        %2288 = vmatpush1.xpose.msra.mxu0 0.0
        %2289 = vmatprep.subr.mxu0 0.0
        %2290 = vmatpush1.xpose.msra.mxu0 0.0
        %2291 = vmatprep.subr.mxu0 0.0
        %2292 = vmatpush1.xpose.msra.mxu0 0.0
        %2293 = vmatprep.subr.mxu0 0.0
        %2294 = vmatpush1.xpose.msra.mxu0 0.0
        %2295 = vmatprep.subr.mxu0 0.0
        %2296 = vmatpush1.xpose.msra.mxu0 0.0
        %2297 = vmatprep.subr.mxu0 0.0
        %2298 = vmatpush1.xpose.msra.mxu0 0.0
        %2299 = vmatprep.subr.mxu0 0.0
        %2300 = vmatpush1.xpose.msra.mxu0 %v2267
        %2301 = vmatprep.subr.mxu0 0.0
        %2302 = vmatpush2.xpose.msra.mxu0 0.0
        %2303 = vmatprep.subr.mxu0 0.0
        %2304 = vmatpush2.xpose.msra.mxu0 0.0
        %2305 = vmatprep.subr.mxu0 0.0
        %2306 = vmatpush2.xpose.msra.mxu0 0.0
        %2307 = vmatprep.subr.mxu0 0.0
        %2308 = vmatpush2.xpose.msra.mxu0 0.0
        %2309 = vmatprep.subr.mxu0 0.0
        %2310 = vmatpush2.xpose.msra.mxu0 0.0
        %2311 = vmatprep.subr.mxu0 0.0
        %2312 = vmatpush2.xpose.msra.mxu0 0.0
        %2313 = vmatprep.subr.mxu0 0.0
        %2314 = vmatpush2.xpose.msra.mxu0 0.0
        %2315 = vmatprep.subr.mxu0 0.0
        %2316 = vmatpush2.xpose.msra.mxu0 0.0
        %2317 = vmatprep.subr.mxu0 0.0
        %2318 = vmatpush2.xpose.msra.mxu0 0.0
        %2319 = vmatprep.subr.mxu0 0.0
        %2320 = vmatpush2.xpose.msra.mxu0 0.0
        %2321 = vmatprep.subr.mxu0 0.0
        %2322 = vmatpush2.xpose.msra.mxu0 0.0
        %2323 = vmatprep.subr.mxu0 0.0
        %2324 = vmatpush2.xpose.msra.mxu0 0.0
        %2325 = vmatprep.subr.mxu0 0.0
        %2326 = vmatpush2.xpose.msra.mxu0 0.0
        %2327 = vmatprep.subr.mxu0 0.0
        %2328 = vmatpush2.xpose.msra.mxu0 0.0
        %2329 = vmatprep.subr.mxu0 0.0
        %2330 = vmatpush2.xpose.msra.mxu0 0.0
        %2331 = vmatprep.subr.mxu0 0.0
        %2332 = vmatpush2.xpose.msra.mxu0 0.0
        %2333 = vmatprep.mubr.f32.mxu0 0.0
        %2334 = vmatmul.mubr.f32.gmra.mxu0 %v2265
        %v2335 = vpop.f32.mrf.mxu0
        %v2336 = vadd.f32 %v853, %v2335
        %v2337 = vpop.f32.mrf.mxu0
        %2338 = vdwg.mxu0
        %2339 = vrot.lane.b32.xlu0 %v834, 112
        %v2340 = vpop.permute.xlu0 %2339
        %2341 = vrot.lane.b32.xlu0 %v834, 80
        %v2342 = vpop.permute.xlu0 %2341
        %v2343 = vsel %vm869, %v2340, 0
        %v2345 = vsel %vm869, %v2342, 0
        %2347 = vmatprep.subr.mxu0 0.0
        %2348 = vmatpush1.xpose.msra.mxu0 0.0
        %2349 = vmatprep.subr.mxu0 0.0
        %2350 = vmatpush1.xpose.msra.mxu0 0.0
        %2351 = vmatprep.subr.mxu0 0.0
        %2352 = vmatpush1.xpose.msra.mxu0 0.0
        %2353 = vmatprep.subr.mxu0 0.0
        %2354 = vmatpush1.xpose.msra.mxu0 0.0
        %2355 = vmatprep.subr.mxu0 0.0
        %2356 = vmatpush1.xpose.msra.mxu0 0.0
        %2357 = vmatprep.subr.mxu0 0.0
        %2358 = vmatpush1.xpose.msra.mxu0 0.0
        %2359 = vmatprep.subr.mxu0 0.0
        %2360 = vmatpush1.xpose.msra.mxu0 0.0
        %2361 = vmatprep.subr.mxu0 0.0
        %2362 = vmatpush1.xpose.msra.mxu0 0.0
        %2363 = vmatprep.subr.mxu0 0.0
        %2364 = vmatpush1.xpose.msra.mxu0 0.0
        %2365 = vmatprep.subr.mxu0 0.0
        %2366 = vmatpush1.xpose.msra.mxu0 0.0
        %2367 = vmatprep.subr.mxu0 0.0
        %2368 = vmatpush1.xpose.msra.mxu0 0.0
        %2369 = vmatprep.subr.mxu0 0.0
        %2370 = vmatpush1.xpose.msra.mxu0 0.0
        %2371 = vmatprep.subr.mxu0 0.0
        %2372 = vmatpush1.xpose.msra.mxu0 0.0
        %2373 = vmatprep.subr.mxu0 0.0
        %2374 = vmatpush1.xpose.msra.mxu0 0.0
        %2375 = vmatprep.subr.mxu0 0.0
        %2376 = vmatpush1.xpose.msra.mxu0 0.0
        %2377 = vmatprep.subr.mxu0 0.0
        %2378 = vmatpush1.xpose.msra.mxu0 %v2345
        %2379 = vmatprep.subr.mxu0 0.0
        %2380 = vmatpush2.xpose.msra.mxu0 0.0
        %2381 = vmatprep.subr.mxu0 0.0
        %2382 = vmatpush2.xpose.msra.mxu0 0.0
        %2383 = vmatprep.subr.mxu0 0.0
        %2384 = vmatpush2.xpose.msra.mxu0 0.0
        %2385 = vmatprep.subr.mxu0 0.0
        %2386 = vmatpush2.xpose.msra.mxu0 0.0
        %2387 = vmatprep.subr.mxu0 0.0
        %2388 = vmatpush2.xpose.msra.mxu0 0.0
        %2389 = vmatprep.subr.mxu0 0.0
        %2390 = vmatpush2.xpose.msra.mxu0 0.0
        %2391 = vmatprep.subr.mxu0 0.0
        %2392 = vmatpush2.xpose.msra.mxu0 0.0
        %2393 = vmatprep.subr.mxu0 0.0
        %2394 = vmatpush2.xpose.msra.mxu0 0.0
        %2395 = vmatprep.subr.mxu0 0.0
        %2396 = vmatpush2.xpose.msra.mxu0 0.0
        %2397 = vmatprep.subr.mxu0 0.0
        %2398 = vmatpush2.xpose.msra.mxu0 0.0
        %2399 = vmatprep.subr.mxu0 0.0
        %2400 = vmatpush2.xpose.msra.mxu0 0.0
        %2401 = vmatprep.subr.mxu0 0.0
        %2402 = vmatpush2.xpose.msra.mxu0 0.0
        %2403 = vmatprep.subr.mxu0 0.0
        %2404 = vmatpush2.xpose.msra.mxu0 0.0
        %2405 = vmatprep.subr.mxu0 0.0
        %2406 = vmatpush2.xpose.msra.mxu0 0.0
        %2407 = vmatprep.subr.mxu0 0.0
        %2408 = vmatpush2.xpose.msra.mxu0 0.0
        %2409 = vmatprep.subr.mxu0 0.0
        %2410 = vmatpush2.xpose.msra.mxu0 0.0
        %2411 = vmatprep.mubr.f32.mxu0 0.0
        %2412 = vmatmul.mubr.f32.gmra.mxu0 %v2343
        %v2413 = vpop.f32.mrf.mxu0
        %v2414 = vadd.f32 %v857, %v2413
        %v2415 = vpop.f32.mrf.mxu0
        %2416 = vdwg.mxu0
        %2417 = vrot.lane.b32.xlu0 %v839, 112
        %v2418 = vpop.permute.xlu0 %2417
        %2419 = vrot.lane.b32.xlu0 %v839, 80
        %v2420 = vpop.permute.xlu0 %2419
        %v2421 = vsel %vm869, %v2418, 0
        %v2423 = vsel %vm869, %v2420, 0
        %2425 = vmatprep.subr.mxu0 0.0
        %2426 = vmatpush1.xpose.msra.mxu0 0.0
        %2427 = vmatprep.subr.mxu0 0.0
        %2428 = vmatpush1.xpose.msra.mxu0 0.0
        %2429 = vmatprep.subr.mxu0 0.0
        %2430 = vmatpush1.xpose.msra.mxu0 0.0
        %2431 = vmatprep.subr.mxu0 0.0
        %2432 = vmatpush1.xpose.msra.mxu0 0.0
        %2433 = vmatprep.subr.mxu0 0.0
        %2434 = vmatpush1.xpose.msra.mxu0 0.0
        %2435 = vmatprep.subr.mxu0 0.0
        %2436 = vmatpush1.xpose.msra.mxu0 0.0
        %2437 = vmatprep.subr.mxu0 0.0
        %2438 = vmatpush1.xpose.msra.mxu0 0.0
        %2439 = vmatprep.subr.mxu0 0.0
        %2440 = vmatpush1.xpose.msra.mxu0 0.0
        %2441 = vmatprep.subr.mxu0 0.0
        %2442 = vmatpush1.xpose.msra.mxu0 0.0
        %2443 = vmatprep.subr.mxu0 0.0
        %2444 = vmatpush1.xpose.msra.mxu0 0.0
        %2445 = vmatprep.subr.mxu0 0.0
        %2446 = vmatpush1.xpose.msra.mxu0 0.0
        %2447 = vmatprep.subr.mxu0 0.0
        %2448 = vmatpush1.xpose.msra.mxu0 0.0
        %2449 = vmatprep.subr.mxu0 0.0
        %2450 = vmatpush1.xpose.msra.mxu0 0.0
        %2451 = vmatprep.subr.mxu0 0.0
        %2452 = vmatpush1.xpose.msra.mxu0 0.0
        %2453 = vmatprep.subr.mxu0 0.0
        %2454 = vmatpush1.xpose.msra.mxu0 0.0
        %2455 = vmatprep.subr.mxu0 0.0
        %2456 = vmatpush1.xpose.msra.mxu0 %v2423
        %2457 = vmatprep.subr.mxu0 0.0
        %2458 = vmatpush2.xpose.msra.mxu0 0.0
        %2459 = vmatprep.subr.mxu0 0.0
        %2460 = vmatpush2.xpose.msra.mxu0 0.0
        %2461 = vmatprep.subr.mxu0 0.0
        %2462 = vmatpush2.xpose.msra.mxu0 0.0
        %2463 = vmatprep.subr.mxu0 0.0
        %2464 = vmatpush2.xpose.msra.mxu0 0.0
        %2465 = vmatprep.subr.mxu0 0.0
        %2466 = vmatpush2.xpose.msra.mxu0 0.0
        %2467 = vmatprep.subr.mxu0 0.0
        %2468 = vmatpush2.xpose.msra.mxu0 0.0
        %2469 = vmatprep.subr.mxu0 0.0
        %2470 = vmatpush2.xpose.msra.mxu0 0.0
        %2471 = vmatprep.subr.mxu0 0.0
        %2472 = vmatpush2.xpose.msra.mxu0 0.0
        %2473 = vmatprep.subr.mxu0 0.0
        %2474 = vmatpush2.xpose.msra.mxu0 0.0
        %2475 = vmatprep.subr.mxu0 0.0
        %2476 = vmatpush2.xpose.msra.mxu0 0.0
        %2477 = vmatprep.subr.mxu0 0.0
        %2478 = vmatpush2.xpose.msra.mxu0 0.0
        %2479 = vmatprep.subr.mxu0 0.0
        %2480 = vmatpush2.xpose.msra.mxu0 0.0
        %2481 = vmatprep.subr.mxu0 0.0
        %2482 = vmatpush2.xpose.msra.mxu0 0.0
        %2483 = vmatprep.subr.mxu0 0.0
        %2484 = vmatpush2.xpose.msra.mxu0 0.0
        %2485 = vmatprep.subr.mxu0 0.0
        %2486 = vmatpush2.xpose.msra.mxu0 0.0
        %2487 = vmatprep.subr.mxu0 0.0
        %2488 = vmatpush2.xpose.msra.mxu0 0.0
        %2489 = vmatprep.mubr.f32.mxu0 0.0
        %2490 = vmatmul.mubr.f32.gmra.mxu0 %v2421
        %v2491 = vpop.f32.mrf.mxu0
        %v2492 = vadd.f32 %v861, %v2491
        %v2493 = vpop.f32.mrf.mxu0
        %2494 = vdwg.mxu0
        %v2495 = vsel %vm869, %v2258, -inf
        %2496 = vmax.xlane.f32.xlu0 %v2495
        %v2497 = vpop.xlane.xlu0 %2496
        %v2498 = vsel %vm869, %v2336, -inf
        %2499 = vmax.xlane.f32.xlu0 %v2498
        %v2500 = vpop.xlane.xlu0 %2499
        %v2501 = vsel %vm869, %v2414, -inf
        %2502 = vmax.xlane.f32.xlu0 %v2501
        %v2503 = vpop.xlane.xlu0 %2502
        %v2504 = vsel %vm869, %v2492, -inf
        %2505 = vmax.xlane.f32.xlu0 %v2504
        %v2506 = vpop.xlane.xlu0 %2505
        %v2507 = vsub.f32 %v2258, %v2497
        %v2508 = vsub.f32 %v2336, %v2500
        %v2509 = vsub.f32 %v2414, %v2503
        %v2510 = vsub.f32 %v2492, %v2506
        %v2511 = vmul.f32 %v2507, 1.442695
        %v2512 = vpow.pop %v2511
        %v2513 = vmul.f32 %v2508, 1.442695
        %v2514 = vpow.pop %v2513
        %v2515 = vmul.f32 %v2509, 1.442695
        %v2516 = vpow.pop %v2515
        %v2517 = vmul.f32 %v2510, 1.442695
        %v2518 = vpow.pop %v2517
        %v2519 = vsel %vm869, %v2512, 0.0
        %2520 = vadd.xlane.f32.xlu0 %v2519
        %v2521 = vpop.xlane.xlu0 %2520
        %v2522 = vsel %vm869, %v2514, 0.0
        %2523 = vadd.xlane.f32.xlu0 %v2522
        %v2524 = vpop.xlane.xlu0 %2523
        %v2525 = vsel %vm869, %v2516, 0.0
        %2526 = vadd.xlane.f32.xlu0 %v2525
        %v2527 = vpop.xlane.xlu0 %2526
        %v2528 = vsel %vm869, %v2518, 0.0
        %2529 = vadd.xlane.f32.xlu0 %v2528
        %v2530 = vpop.xlane.xlu0 %2529
        %v2531 = vrcp.pop %v2521
        %v2532 = vmul.f32 %v2512, %v2531
        %v2533 = vrcp.pop %v2524
        %v2534 = vmul.f32 %v2514, %v2533
        %v2535 = vrcp.pop %v2527
        %v2536 = vmul.f32 %v2516, %v2535
        %v2537 = vrcp.pop %v2530
        %v2538 = vmul.f32 %v2518, %v2537
        %2539 = vrot.lane.b32.xlu0 %v824, 48
        %v2540 = vpop.permute.xlu0 %2539
        %v2543 = vsel %vm869, %v2532, 0
        %2545 = vmatprep.subr.mxu0 0.0
        %2546 = vmatpush1.msra.mxu0 0.0
        %2547 = vmatprep.subr.mxu0 0.0
        %2548 = vmatpush1.msra.mxu0 0.0
        %2549 = vmatprep.subr.mxu0 0.0
        %2550 = vmatpush1.msra.mxu0 0.0
        %2551 = vmatprep.subr.mxu0 0.0
        %2552 = vmatpush1.msra.mxu0 0.0
        %2553 = vmatprep.subr.mxu0 0.0
        %2554 = vmatpush1.msra.mxu0 0.0
        %2555 = vmatprep.subr.mxu0 0.0
        %2556 = vmatpush1.msra.mxu0 0.0
        %2557 = vmatprep.subr.mxu0 0.0
        %2558 = vmatpush1.msra.mxu0 0.0
        %2559 = vmatprep.subr.mxu0 0.0
        %2560 = vmatpush1.msra.mxu0 0.0
        %2561 = vmatprep.subr.mxu0 0.0
        %2562 = vmatpush1.msra.mxu0 0.0
        %2563 = vmatprep.subr.mxu0 0.0
        %2564 = vmatpush1.msra.mxu0 0.0
        %2565 = vmatprep.subr.mxu0 0.0
        %2566 = vmatpush1.msra.mxu0 0.0
        %2567 = vmatprep.subr.mxu0 0.0
        %2568 = vmatpush1.msra.mxu0 0.0
        %2569 = vmatprep.subr.mxu0 0.0
        %2570 = vmatpush1.msra.mxu0 0.0
        %2571 = vmatprep.subr.mxu0 0.0
        %2572 = vmatpush1.msra.mxu0 0.0
        %2573 = vmatprep.subr.mxu0 0.0
        %2574 = vmatpush1.msra.mxu0 0.0
        %2575 = vmatprep.subr.mxu0 0.0
        %2576 = vmatpush1.msra.mxu0 %v2540
        %2577 = vmatprep.subr.mxu0 0.0
        %2578 = vmatpush2.msra.mxu0 0.0
        %2579 = vmatprep.subr.mxu0 0.0
        %2580 = vmatpush2.msra.mxu0 0.0
        %2581 = vmatprep.subr.mxu0 0.0
        %2582 = vmatpush2.msra.mxu0 0.0
        %2583 = vmatprep.subr.mxu0 0.0
        %2584 = vmatpush2.msra.mxu0 0.0
        %2585 = vmatprep.subr.mxu0 0.0
        %2586 = vmatpush2.msra.mxu0 0.0
        %2587 = vmatprep.subr.mxu0 0.0
        %2588 = vmatpush2.msra.mxu0 0.0
        %2589 = vmatprep.subr.mxu0 0.0
        %2590 = vmatpush2.msra.mxu0 0.0
        %2591 = vmatprep.subr.mxu0 0.0
        %2592 = vmatpush2.msra.mxu0 0.0
        %2593 = vmatprep.subr.mxu0 0.0
        %2594 = vmatpush2.msra.mxu0 0.0
        %2595 = vmatprep.subr.mxu0 0.0
        %2596 = vmatpush2.msra.mxu0 0.0
        %2597 = vmatprep.subr.mxu0 0.0
        %2598 = vmatpush2.msra.mxu0 0.0
        %2599 = vmatprep.subr.mxu0 0.0
        %2600 = vmatpush2.msra.mxu0 0.0
        %2601 = vmatprep.subr.mxu0 0.0
        %2602 = vmatpush2.msra.mxu0 0.0
        %2603 = vmatprep.subr.mxu0 0.0
        %2604 = vmatpush2.msra.mxu0 0.0
        %2605 = vmatprep.subr.mxu0 0.0
        %2606 = vmatpush2.msra.mxu0 0.0
        %2607 = vmatprep.subr.mxu0 0.0
        %2608 = vmatpush2.msra.mxu0 0.0
        %2609 = vmatprep.mubr.f32.mxu0 0.0
        %2610 = vmatmul.mubr.f32.gmra.mxu0 %v2543
        %v2611 = vpop.f32.mrf.mxu0
        %v2612 = vadd.f32 0.0, %v2611
        %v2613 = vpop.f32.mrf.mxu0
        %2614 = vdwg.mxu0
        %2615 = vrot.lane.b32.xlu0 %v829, 48
        %v2616 = vpop.permute.xlu0 %2615
        %v2619 = vsel %vm869, %v2534, 0
        %2621 = vmatprep.subr.mxu0 0.0
        %2622 = vmatpush1.msra.mxu0 0.0
        %2623 = vmatprep.subr.mxu0 0.0
        %2624 = vmatpush1.msra.mxu0 0.0
        %2625 = vmatprep.subr.mxu0 0.0
        %2626 = vmatpush1.msra.mxu0 0.0
        %2627 = vmatprep.subr.mxu0 0.0
        %2628 = vmatpush1.msra.mxu0 0.0
        %2629 = vmatprep.subr.mxu0 0.0
        %2630 = vmatpush1.msra.mxu0 0.0
        %2631 = vmatprep.subr.mxu0 0.0
        %2632 = vmatpush1.msra.mxu0 0.0
        %2633 = vmatprep.subr.mxu0 0.0
        %2634 = vmatpush1.msra.mxu0 0.0
        %2635 = vmatprep.subr.mxu0 0.0
        %2636 = vmatpush1.msra.mxu0 0.0
        %2637 = vmatprep.subr.mxu0 0.0
        %2638 = vmatpush1.msra.mxu0 0.0
        %2639 = vmatprep.subr.mxu0 0.0
        %2640 = vmatpush1.msra.mxu0 0.0
        %2641 = vmatprep.subr.mxu0 0.0
        %2642 = vmatpush1.msra.mxu0 0.0
        %2643 = vmatprep.subr.mxu0 0.0
        %2644 = vmatpush1.msra.mxu0 0.0
        %2645 = vmatprep.subr.mxu0 0.0
        %2646 = vmatpush1.msra.mxu0 0.0
        %2647 = vmatprep.subr.mxu0 0.0
        %2648 = vmatpush1.msra.mxu0 0.0
        %2649 = vmatprep.subr.mxu0 0.0
        %2650 = vmatpush1.msra.mxu0 0.0
        %2651 = vmatprep.subr.mxu0 0.0
        %2652 = vmatpush1.msra.mxu0 %v2616
        %2653 = vmatprep.subr.mxu0 0.0
        %2654 = vmatpush2.msra.mxu0 0.0
        %2655 = vmatprep.subr.mxu0 0.0
        %2656 = vmatpush2.msra.mxu0 0.0
        %2657 = vmatprep.subr.mxu0 0.0
        %2658 = vmatpush2.msra.mxu0 0.0
        %2659 = vmatprep.subr.mxu0 0.0
        %2660 = vmatpush2.msra.mxu0 0.0
        %2661 = vmatprep.subr.mxu0 0.0
        %2662 = vmatpush2.msra.mxu0 0.0
        %2663 = vmatprep.subr.mxu0 0.0
        %2664 = vmatpush2.msra.mxu0 0.0
        %2665 = vmatprep.subr.mxu0 0.0
        %2666 = vmatpush2.msra.mxu0 0.0
        %2667 = vmatprep.subr.mxu0 0.0
        %2668 = vmatpush2.msra.mxu0 0.0
        %2669 = vmatprep.subr.mxu0 0.0
        %2670 = vmatpush2.msra.mxu0 0.0
        %2671 = vmatprep.subr.mxu0 0.0
        %2672 = vmatpush2.msra.mxu0 0.0
        %2673 = vmatprep.subr.mxu0 0.0
        %2674 = vmatpush2.msra.mxu0 0.0
        %2675 = vmatprep.subr.mxu0 0.0
        %2676 = vmatpush2.msra.mxu0 0.0
        %2677 = vmatprep.subr.mxu0 0.0
        %2678 = vmatpush2.msra.mxu0 0.0
        %2679 = vmatprep.subr.mxu0 0.0
        %2680 = vmatpush2.msra.mxu0 0.0
        %2681 = vmatprep.subr.mxu0 0.0
        %2682 = vmatpush2.msra.mxu0 0.0
        %2683 = vmatprep.subr.mxu0 0.0
        %2684 = vmatpush2.msra.mxu0 0.0
        %2685 = vmatprep.mubr.f32.mxu0 0.0
        %2686 = vmatmul.mubr.f32.gmra.mxu0 %v2619
        %v2687 = vpop.f32.mrf.mxu0
        %v2688 = vadd.f32 0.0, %v2687
        %v2689 = vpop.f32.mrf.mxu0
        %2690 = vdwg.mxu0
        %2691 = vrot.lane.b32.xlu0 %v834, 48
        %v2692 = vpop.permute.xlu0 %2691
        %v2695 = vsel %vm869, %v2536, 0
        %2697 = vmatprep.subr.mxu0 0.0
        %2698 = vmatpush1.msra.mxu0 0.0
        %2699 = vmatprep.subr.mxu0 0.0
        %2700 = vmatpush1.msra.mxu0 0.0
        %2701 = vmatprep.subr.mxu0 0.0
        %2702 = vmatpush1.msra.mxu0 0.0
        %2703 = vmatprep.subr.mxu0 0.0
        %2704 = vmatpush1.msra.mxu0 0.0
        %2705 = vmatprep.subr.mxu0 0.0
        %2706 = vmatpush1.msra.mxu0 0.0
        %2707 = vmatprep.subr.mxu0 0.0
        %2708 = vmatpush1.msra.mxu0 0.0
        %2709 = vmatprep.subr.mxu0 0.0
        %2710 = vmatpush1.msra.mxu0 0.0
        %2711 = vmatprep.subr.mxu0 0.0
        %2712 = vmatpush1.msra.mxu0 0.0
        %2713 = vmatprep.subr.mxu0 0.0
        %2714 = vmatpush1.msra.mxu0 0.0
        %2715 = vmatprep.subr.mxu0 0.0
        %2716 = vmatpush1.msra.mxu0 0.0
        %2717 = vmatprep.subr.mxu0 0.0
        %2718 = vmatpush1.msra.mxu0 0.0
        %2719 = vmatprep.subr.mxu0 0.0
        %2720 = vmatpush1.msra.mxu0 0.0
        %2721 = vmatprep.subr.mxu0 0.0
        %2722 = vmatpush1.msra.mxu0 0.0
        %2723 = vmatprep.subr.mxu0 0.0
        %2724 = vmatpush1.msra.mxu0 0.0
        %2725 = vmatprep.subr.mxu0 0.0
        %2726 = vmatpush1.msra.mxu0 0.0
        %2727 = vmatprep.subr.mxu0 0.0
        %2728 = vmatpush1.msra.mxu0 %v2692
        %2729 = vmatprep.subr.mxu0 0.0
        %2730 = vmatpush2.msra.mxu0 0.0
        %2731 = vmatprep.subr.mxu0 0.0
        %2732 = vmatpush2.msra.mxu0 0.0
        %2733 = vmatprep.subr.mxu0 0.0
        %2734 = vmatpush2.msra.mxu0 0.0
        %2735 = vmatprep.subr.mxu0 0.0
        %2736 = vmatpush2.msra.mxu0 0.0
        %2737 = vmatprep.subr.mxu0 0.0
        %2738 = vmatpush2.msra.mxu0 0.0
        %2739 = vmatprep.subr.mxu0 0.0
        %2740 = vmatpush2.msra.mxu0 0.0
        %2741 = vmatprep.subr.mxu0 0.0
        %2742 = vmatpush2.msra.mxu0 0.0
        %2743 = vmatprep.subr.mxu0 0.0
        %2744 = vmatpush2.msra.mxu0 0.0
        %2745 = vmatprep.subr.mxu0 0.0
        %2746 = vmatpush2.msra.mxu0 0.0
        %2747 = vmatprep.subr.mxu0 0.0
        %2748 = vmatpush2.msra.mxu0 0.0
        %2749 = vmatprep.subr.mxu0 0.0
        %2750 = vmatpush2.msra.mxu0 0.0
        %2751 = vmatprep.subr.mxu0 0.0
        %2752 = vmatpush2.msra.mxu0 0.0
        %2753 = vmatprep.subr.mxu0 0.0
        %2754 = vmatpush2.msra.mxu0 0.0
        %2755 = vmatprep.subr.mxu0 0.0
        %2756 = vmatpush2.msra.mxu0 0.0
        %2757 = vmatprep.subr.mxu0 0.0
        %2758 = vmatpush2.msra.mxu0 0.0
        %2759 = vmatprep.subr.mxu0 0.0
        %2760 = vmatpush2.msra.mxu0 0.0
        %2761 = vmatprep.mubr.f32.mxu0 0.0
        %2762 = vmatmul.mubr.f32.gmra.mxu0 %v2695
        %v2763 = vpop.f32.mrf.mxu0
        %v2764 = vadd.f32 0.0, %v2763
        %v2765 = vpop.f32.mrf.mxu0
        %2766 = vdwg.mxu0
        %2767 = vrot.lane.b32.xlu0 %v839, 48
        %v2768 = vpop.permute.xlu0 %2767
        %v2771 = vsel %vm869, %v2538, 0
        %2773 = vmatprep.subr.mxu0 0.0
        %2774 = vmatpush1.msra.mxu0 0.0
        %2775 = vmatprep.subr.mxu0 0.0
        %2776 = vmatpush1.msra.mxu0 0.0
        %2777 = vmatprep.subr.mxu0 0.0
        %2778 = vmatpush1.msra.mxu0 0.0
        %2779 = vmatprep.subr.mxu0 0.0
        %2780 = vmatpush1.msra.mxu0 0.0
        %2781 = vmatprep.subr.mxu0 0.0
        %2782 = vmatpush1.msra.mxu0 0.0
        %2783 = vmatprep.subr.mxu0 0.0
        %2784 = vmatpush1.msra.mxu0 0.0
        %2785 = vmatprep.subr.mxu0 0.0
        %2786 = vmatpush1.msra.mxu0 0.0
        %2787 = vmatprep.subr.mxu0 0.0
        %2788 = vmatpush1.msra.mxu0 0.0
        %2789 = vmatprep.subr.mxu0 0.0
        %2790 = vmatpush1.msra.mxu0 0.0
        %2791 = vmatprep.subr.mxu0 0.0
        %2792 = vmatpush1.msra.mxu0 0.0
        %2793 = vmatprep.subr.mxu0 0.0
        %2794 = vmatpush1.msra.mxu0 0.0
        %2795 = vmatprep.subr.mxu0 0.0
        %2796 = vmatpush1.msra.mxu0 0.0
        %2797 = vmatprep.subr.mxu0 0.0
        %2798 = vmatpush1.msra.mxu0 0.0
        %2799 = vmatprep.subr.mxu0 0.0
        %2800 = vmatpush1.msra.mxu0 0.0
        %2801 = vmatprep.subr.mxu0 0.0
        %2802 = vmatpush1.msra.mxu0 0.0
        %2803 = vmatprep.subr.mxu0 0.0
        %2804 = vmatpush1.msra.mxu0 %v2768
        %2805 = vmatprep.subr.mxu0 0.0
        %2806 = vmatpush2.msra.mxu0 0.0
        %2807 = vmatprep.subr.mxu0 0.0
        %2808 = vmatpush2.msra.mxu0 0.0
        %2809 = vmatprep.subr.mxu0 0.0
        %2810 = vmatpush2.msra.mxu0 0.0
        %2811 = vmatprep.subr.mxu0 0.0
        %2812 = vmatpush2.msra.mxu0 0.0
        %2813 = vmatprep.subr.mxu0 0.0
        %2814 = vmatpush2.msra.mxu0 0.0
        %2815 = vmatprep.subr.mxu0 0.0
        %2816 = vmatpush2.msra.mxu0 0.0
        %2817 = vmatprep.subr.mxu0 0.0
        %2818 = vmatpush2.msra.mxu0 0.0
        %2819 = vmatprep.subr.mxu0 0.0
        %2820 = vmatpush2.msra.mxu0 0.0
        %2821 = vmatprep.subr.mxu0 0.0
        %2822 = vmatpush2.msra.mxu0 0.0
        %2823 = vmatprep.subr.mxu0 0.0
        %2824 = vmatpush2.msra.mxu0 0.0
        %2825 = vmatprep.subr.mxu0 0.0
        %2826 = vmatpush2.msra.mxu0 0.0
        %2827 = vmatprep.subr.mxu0 0.0
        %2828 = vmatpush2.msra.mxu0 0.0
        %2829 = vmatprep.subr.mxu0 0.0
        %2830 = vmatpush2.msra.mxu0 0.0
        %2831 = vmatprep.subr.mxu0 0.0
        %2832 = vmatpush2.msra.mxu0 0.0
        %2833 = vmatprep.subr.mxu0 0.0
        %2834 = vmatpush2.msra.mxu0 0.0
        %2835 = vmatprep.subr.mxu0 0.0
        %2836 = vmatpush2.msra.mxu0 0.0
        %2837 = vmatprep.mubr.f32.mxu0 0.0
        %2838 = vmatmul.mubr.f32.gmra.mxu0 %v2771
        %v2839 = vpop.f32.mrf.mxu0
        %v2840 = vadd.f32 0.0, %v2839
        %v2841 = vpop.f32.mrf.mxu0
        %2842 = vdwg.mxu0
        %2843 = vrot.lane.b32.xlu0 %v824, 104
        %v2844 = vpop.permute.xlu0 %2843
        %2845 = vrot.lane.b32.xlu0 %v824, 72
        %v2846 = vpop.permute.xlu0 %2845
        %v2847 = vsel %vm869, %v2844, 0
        %v2849 = vsel %vm869, %v2846, 0
        %2851 = vmatprep.subr.mxu0 0.0
        %2852 = vmatpush1.xpose.msra.mxu0 0.0
        %2853 = vmatprep.subr.mxu0 0.0
        %2854 = vmatpush1.xpose.msra.mxu0 0.0
        %2855 = vmatprep.subr.mxu0 0.0
        %2856 = vmatpush1.xpose.msra.mxu0 0.0
        %2857 = vmatprep.subr.mxu0 0.0
        %2858 = vmatpush1.xpose.msra.mxu0 0.0
        %2859 = vmatprep.subr.mxu0 0.0
        %2860 = vmatpush1.xpose.msra.mxu0 0.0
        %2861 = vmatprep.subr.mxu0 0.0
        %2862 = vmatpush1.xpose.msra.mxu0 0.0
        %2863 = vmatprep.subr.mxu0 0.0
        %2864 = vmatpush1.xpose.msra.mxu0 0.0
        %2865 = vmatprep.subr.mxu0 0.0
        %2866 = vmatpush1.xpose.msra.mxu0 0.0
        %2867 = vmatprep.subr.mxu0 0.0
        %2868 = vmatpush1.xpose.msra.mxu0 0.0
        %2869 = vmatprep.subr.mxu0 0.0
        %2870 = vmatpush1.xpose.msra.mxu0 0.0
        %2871 = vmatprep.subr.mxu0 0.0
        %2872 = vmatpush1.xpose.msra.mxu0 0.0
        %2873 = vmatprep.subr.mxu0 0.0
        %2874 = vmatpush1.xpose.msra.mxu0 0.0
        %2875 = vmatprep.subr.mxu0 0.0
        %2876 = vmatpush1.xpose.msra.mxu0 0.0
        %2877 = vmatprep.subr.mxu0 0.0
        %2878 = vmatpush1.xpose.msra.mxu0 0.0
        %2879 = vmatprep.subr.mxu0 0.0
        %2880 = vmatpush1.xpose.msra.mxu0 0.0
        %2881 = vmatprep.subr.mxu0 0.0
        %2882 = vmatpush1.xpose.msra.mxu0 %v2849
        %2883 = vmatprep.subr.mxu0 0.0
        %2884 = vmatpush2.xpose.msra.mxu0 0.0
        %2885 = vmatprep.subr.mxu0 0.0
        %2886 = vmatpush2.xpose.msra.mxu0 0.0
        %2887 = vmatprep.subr.mxu0 0.0
        %2888 = vmatpush2.xpose.msra.mxu0 0.0
        %2889 = vmatprep.subr.mxu0 0.0
        %2890 = vmatpush2.xpose.msra.mxu0 0.0
        %2891 = vmatprep.subr.mxu0 0.0
        %2892 = vmatpush2.xpose.msra.mxu0 0.0
        %2893 = vmatprep.subr.mxu0 0.0
        %2894 = vmatpush2.xpose.msra.mxu0 0.0
        %2895 = vmatprep.subr.mxu0 0.0
        %2896 = vmatpush2.xpose.msra.mxu0 0.0
        %2897 = vmatprep.subr.mxu0 0.0
        %2898 = vmatpush2.xpose.msra.mxu0 0.0
        %2899 = vmatprep.subr.mxu0 0.0
        %2900 = vmatpush2.xpose.msra.mxu0 0.0
        %2901 = vmatprep.subr.mxu0 0.0
        %2902 = vmatpush2.xpose.msra.mxu0 0.0
        %2903 = vmatprep.subr.mxu0 0.0
        %2904 = vmatpush2.xpose.msra.mxu0 0.0
        %2905 = vmatprep.subr.mxu0 0.0
        %2906 = vmatpush2.xpose.msra.mxu0 0.0
        %2907 = vmatprep.subr.mxu0 0.0
        %2908 = vmatpush2.xpose.msra.mxu0 0.0
        %2909 = vmatprep.subr.mxu0 0.0
        %2910 = vmatpush2.xpose.msra.mxu0 0.0
        %2911 = vmatprep.subr.mxu0 0.0
        %2912 = vmatpush2.xpose.msra.mxu0 0.0
        %2913 = vmatprep.subr.mxu0 0.0
        %2914 = vmatpush2.xpose.msra.mxu0 0.0
        %2915 = vmatprep.mubr.f32.mxu0 0.0
        %2916 = vmatmul.mubr.f32.gmra.mxu0 %v2847
        %v2917 = vpop.f32.mrf.mxu0
        %v2918 = vadd.f32 %v849, %v2917
        %v2919 = vpop.f32.mrf.mxu0
        %2920 = vdwg.mxu0
        %2921 = vrot.lane.b32.xlu0 %v829, 104
        %v2922 = vpop.permute.xlu0 %2921
        %2923 = vrot.lane.b32.xlu0 %v829, 72
        %v2924 = vpop.permute.xlu0 %2923
        %v2925 = vsel %vm869, %v2922, 0
        %v2927 = vsel %vm869, %v2924, 0
        %2929 = vmatprep.subr.mxu0 0.0
        %2930 = vmatpush1.xpose.msra.mxu0 0.0
        %2931 = vmatprep.subr.mxu0 0.0
        %2932 = vmatpush1.xpose.msra.mxu0 0.0
        %2933 = vmatprep.subr.mxu0 0.0
        %2934 = vmatpush1.xpose.msra.mxu0 0.0
        %2935 = vmatprep.subr.mxu0 0.0
        %2936 = vmatpush1.xpose.msra.mxu0 0.0
        %2937 = vmatprep.subr.mxu0 0.0
        %2938 = vmatpush1.xpose.msra.mxu0 0.0
        %2939 = vmatprep.subr.mxu0 0.0
        %2940 = vmatpush1.xpose.msra.mxu0 0.0
        %2941 = vmatprep.subr.mxu0 0.0
        %2942 = vmatpush1.xpose.msra.mxu0 0.0
        %2943 = vmatprep.subr.mxu0 0.0
        %2944 = vmatpush1.xpose.msra.mxu0 0.0
        %2945 = vmatprep.subr.mxu0 0.0
        %2946 = vmatpush1.xpose.msra.mxu0 0.0
        %2947 = vmatprep.subr.mxu0 0.0
        %2948 = vmatpush1.xpose.msra.mxu0 0.0
        %2949 = vmatprep.subr.mxu0 0.0
        %2950 = vmatpush1.xpose.msra.mxu0 0.0
        %2951 = vmatprep.subr.mxu0 0.0
        %2952 = vmatpush1.xpose.msra.mxu0 0.0
        %2953 = vmatprep.subr.mxu0 0.0
        %2954 = vmatpush1.xpose.msra.mxu0 0.0
        %2955 = vmatprep.subr.mxu0 0.0
        %2956 = vmatpush1.xpose.msra.mxu0 0.0
        %2957 = vmatprep.subr.mxu0 0.0
        %2958 = vmatpush1.xpose.msra.mxu0 0.0
        %2959 = vmatprep.subr.mxu0 0.0
        %2960 = vmatpush1.xpose.msra.mxu0 %v2927
        %2961 = vmatprep.subr.mxu0 0.0
        %2962 = vmatpush2.xpose.msra.mxu0 0.0
        %2963 = vmatprep.subr.mxu0 0.0
        %2964 = vmatpush2.xpose.msra.mxu0 0.0
        %2965 = vmatprep.subr.mxu0 0.0
        %2966 = vmatpush2.xpose.msra.mxu0 0.0
        %2967 = vmatprep.subr.mxu0 0.0
        %2968 = vmatpush2.xpose.msra.mxu0 0.0
        %2969 = vmatprep.subr.mxu0 0.0
        %2970 = vmatpush2.xpose.msra.mxu0 0.0
        %2971 = vmatprep.subr.mxu0 0.0
        %2972 = vmatpush2.xpose.msra.mxu0 0.0
        %2973 = vmatprep.subr.mxu0 0.0
        %2974 = vmatpush2.xpose.msra.mxu0 0.0
        %2975 = vmatprep.subr.mxu0 0.0
        %2976 = vmatpush2.xpose.msra.mxu0 0.0
        %2977 = vmatprep.subr.mxu0 0.0
        %2978 = vmatpush2.xpose.msra.mxu0 0.0
        %2979 = vmatprep.subr.mxu0 0.0
        %2980 = vmatpush2.xpose.msra.mxu0 0.0
        %2981 = vmatprep.subr.mxu0 0.0
        %2982 = vmatpush2.xpose.msra.mxu0 0.0
        %2983 = vmatprep.subr.mxu0 0.0
        %2984 = vmatpush2.xpose.msra.mxu0 0.0
        %2985 = vmatprep.subr.mxu0 0.0
        %2986 = vmatpush2.xpose.msra.mxu0 0.0
        %2987 = vmatprep.subr.mxu0 0.0
        %2988 = vmatpush2.xpose.msra.mxu0 0.0
        %2989 = vmatprep.subr.mxu0 0.0
        %2990 = vmatpush2.xpose.msra.mxu0 0.0
        %2991 = vmatprep.subr.mxu0 0.0
        %2992 = vmatpush2.xpose.msra.mxu0 0.0
        %2993 = vmatprep.mubr.f32.mxu0 0.0
        %2994 = vmatmul.mubr.f32.gmra.mxu0 %v2925
        %v2995 = vpop.f32.mrf.mxu0
        %v2996 = vadd.f32 %v853, %v2995
        %v2997 = vpop.f32.mrf.mxu0
        %2998 = vdwg.mxu0
        %2999 = vrot.lane.b32.xlu0 %v834, 104
        %v3000 = vpop.permute.xlu0 %2999
        %3001 = vrot.lane.b32.xlu0 %v834, 72
        %v3002 = vpop.permute.xlu0 %3001
        %v3003 = vsel %vm869, %v3000, 0
        %v3005 = vsel %vm869, %v3002, 0
        %3007 = vmatprep.subr.mxu0 0.0
        %3008 = vmatpush1.xpose.msra.mxu0 0.0
        %3009 = vmatprep.subr.mxu0 0.0
        %3010 = vmatpush1.xpose.msra.mxu0 0.0
        %3011 = vmatprep.subr.mxu0 0.0
        %3012 = vmatpush1.xpose.msra.mxu0 0.0
        %3013 = vmatprep.subr.mxu0 0.0
        %3014 = vmatpush1.xpose.msra.mxu0 0.0
        %3015 = vmatprep.subr.mxu0 0.0
        %3016 = vmatpush1.xpose.msra.mxu0 0.0
        %3017 = vmatprep.subr.mxu0 0.0
        %3018 = vmatpush1.xpose.msra.mxu0 0.0
        %3019 = vmatprep.subr.mxu0 0.0
        %3020 = vmatpush1.xpose.msra.mxu0 0.0
        %3021 = vmatprep.subr.mxu0 0.0
        %3022 = vmatpush1.xpose.msra.mxu0 0.0
        %3023 = vmatprep.subr.mxu0 0.0
        %3024 = vmatpush1.xpose.msra.mxu0 0.0
        %3025 = vmatprep.subr.mxu0 0.0
        %3026 = vmatpush1.xpose.msra.mxu0 0.0
        %3027 = vmatprep.subr.mxu0 0.0
        %3028 = vmatpush1.xpose.msra.mxu0 0.0
        %3029 = vmatprep.subr.mxu0 0.0
        %3030 = vmatpush1.xpose.msra.mxu0 0.0
        %3031 = vmatprep.subr.mxu0 0.0
        %3032 = vmatpush1.xpose.msra.mxu0 0.0
        %3033 = vmatprep.subr.mxu0 0.0
        %3034 = vmatpush1.xpose.msra.mxu0 0.0
        %3035 = vmatprep.subr.mxu0 0.0
        %3036 = vmatpush1.xpose.msra.mxu0 0.0
        %3037 = vmatprep.subr.mxu0 0.0
        %3038 = vmatpush1.xpose.msra.mxu0 %v3005
        %3039 = vmatprep.subr.mxu0 0.0
        %3040 = vmatpush2.xpose.msra.mxu0 0.0
        %3041 = vmatprep.subr.mxu0 0.0
        %3042 = vmatpush2.xpose.msra.mxu0 0.0
        %3043 = vmatprep.subr.mxu0 0.0
        %3044 = vmatpush2.xpose.msra.mxu0 0.0
        %3045 = vmatprep.subr.mxu0 0.0
        %3046 = vmatpush2.xpose.msra.mxu0 0.0
        %3047 = vmatprep.subr.mxu0 0.0
        %3048 = vmatpush2.xpose.msra.mxu0 0.0
        %3049 = vmatprep.subr.mxu0 0.0
        %3050 = vmatpush2.xpose.msra.mxu0 0.0
        %3051 = vmatprep.subr.mxu0 0.0
        %3052 = vmatpush2.xpose.msra.mxu0 0.0
        %3053 = vmatprep.subr.mxu0 0.0
        %3054 = vmatpush2.xpose.msra.mxu0 0.0
        %3055 = vmatprep.subr.mxu0 0.0
        %3056 = vmatpush2.xpose.msra.mxu0 0.0
        %3057 = vmatprep.subr.mxu0 0.0
        %3058 = vmatpush2.xpose.msra.mxu0 0.0
        %3059 = vmatprep.subr.mxu0 0.0
        %3060 = vmatpush2.xpose.msra.mxu0 0.0
        %3061 = vmatprep.subr.mxu0 0.0
        %3062 = vmatpush2.xpose.msra.mxu0 0.0
        %3063 = vmatprep.subr.mxu0 0.0
        %3064 = vmatpush2.xpose.msra.mxu0 0.0
        %3065 = vmatprep.subr.mxu0 0.0
        %3066 = vmatpush2.xpose.msra.mxu0 0.0
        %3067 = vmatprep.subr.mxu0 0.0
        %3068 = vmatpush2.xpose.msra.mxu0 0.0
        %3069 = vmatprep.subr.mxu0 0.0
        %3070 = vmatpush2.xpose.msra.mxu0 0.0
        %3071 = vmatprep.mubr.f32.mxu0 0.0
        %3072 = vmatmul.mubr.f32.gmra.mxu0 %v3003
        %v3073 = vpop.f32.mrf.mxu0
        %v3074 = vadd.f32 %v857, %v3073
        %v3075 = vpop.f32.mrf.mxu0
        %3076 = vdwg.mxu0
        %3077 = vrot.lane.b32.xlu0 %v839, 104
        %v3078 = vpop.permute.xlu0 %3077
        %3079 = vrot.lane.b32.xlu0 %v839, 72
        %v3080 = vpop.permute.xlu0 %3079
        %v3081 = vsel %vm869, %v3078, 0
        %v3083 = vsel %vm869, %v3080, 0
        %3085 = vmatprep.subr.mxu0 0.0
        %3086 = vmatpush1.xpose.msra.mxu0 0.0
        %3087 = vmatprep.subr.mxu0 0.0
        %3088 = vmatpush1.xpose.msra.mxu0 0.0
        %3089 = vmatprep.subr.mxu0 0.0
        %3090 = vmatpush1.xpose.msra.mxu0 0.0
        %3091 = vmatprep.subr.mxu0 0.0
        %3092 = vmatpush1.xpose.msra.mxu0 0.0
        %3093 = vmatprep.subr.mxu0 0.0
        %3094 = vmatpush1.xpose.msra.mxu0 0.0
        %3095 = vmatprep.subr.mxu0 0.0
        %3096 = vmatpush1.xpose.msra.mxu0 0.0
        %3097 = vmatprep.subr.mxu0 0.0
        %3098 = vmatpush1.xpose.msra.mxu0 0.0
        %3099 = vmatprep.subr.mxu0 0.0
        %3100 = vmatpush1.xpose.msra.mxu0 0.0
        %3101 = vmatprep.subr.mxu0 0.0
        %3102 = vmatpush1.xpose.msra.mxu0 0.0
        %3103 = vmatprep.subr.mxu0 0.0
        %3104 = vmatpush1.xpose.msra.mxu0 0.0
        %3105 = vmatprep.subr.mxu0 0.0
        %3106 = vmatpush1.xpose.msra.mxu0 0.0
        %3107 = vmatprep.subr.mxu0 0.0
        %3108 = vmatpush1.xpose.msra.mxu0 0.0
        %3109 = vmatprep.subr.mxu0 0.0
        %3110 = vmatpush1.xpose.msra.mxu0 0.0
        %3111 = vmatprep.subr.mxu0 0.0
        %3112 = vmatpush1.xpose.msra.mxu0 0.0
        %3113 = vmatprep.subr.mxu0 0.0
        %3114 = vmatpush1.xpose.msra.mxu0 0.0
        %3115 = vmatprep.subr.mxu0 0.0
        %3116 = vmatpush1.xpose.msra.mxu0 %v3083
        %3117 = vmatprep.subr.mxu0 0.0
        %3118 = vmatpush2.xpose.msra.mxu0 0.0
        %3119 = vmatprep.subr.mxu0 0.0
        %3120 = vmatpush2.xpose.msra.mxu0 0.0
        %3121 = vmatprep.subr.mxu0 0.0
        %3122 = vmatpush2.xpose.msra.mxu0 0.0
        %3123 = vmatprep.subr.mxu0 0.0
        %3124 = vmatpush2.xpose.msra.mxu0 0.0
        %3125 = vmatprep.subr.mxu0 0.0
        %3126 = vmatpush2.xpose.msra.mxu0 0.0
        %3127 = vmatprep.subr.mxu0 0.0
        %3128 = vmatpush2.xpose.msra.mxu0 0.0
        %3129 = vmatprep.subr.mxu0 0.0
        %3130 = vmatpush2.xpose.msra.mxu0 0.0
        %3131 = vmatprep.subr.mxu0 0.0
        %3132 = vmatpush2.xpose.msra.mxu0 0.0
        %3133 = vmatprep.subr.mxu0 0.0
        %3134 = vmatpush2.xpose.msra.mxu0 0.0
        %3135 = vmatprep.subr.mxu0 0.0
        %3136 = vmatpush2.xpose.msra.mxu0 0.0
        %3137 = vmatprep.subr.mxu0 0.0
        %3138 = vmatpush2.xpose.msra.mxu0 0.0
        %3139 = vmatprep.subr.mxu0 0.0
        %3140 = vmatpush2.xpose.msra.mxu0 0.0
        %3141 = vmatprep.subr.mxu0 0.0
        %3142 = vmatpush2.xpose.msra.mxu0 0.0
        %3143 = vmatprep.subr.mxu0 0.0
        %3144 = vmatpush2.xpose.msra.mxu0 0.0
        %3145 = vmatprep.subr.mxu0 0.0
        %3146 = vmatpush2.xpose.msra.mxu0 0.0
        %3147 = vmatprep.subr.mxu0 0.0
        %3148 = vmatpush2.xpose.msra.mxu0 0.0
        %3149 = vmatprep.mubr.f32.mxu0 0.0
        %3150 = vmatmul.mubr.f32.gmra.mxu0 %v3081
        %v3151 = vpop.f32.mrf.mxu0
        %v3152 = vadd.f32 %v861, %v3151
        %v3153 = vpop.f32.mrf.mxu0
        %3154 = vdwg.mxu0
        %v3155 = vsel %vm869, %v2918, -inf
        %3156 = vmax.xlane.f32.xlu0 %v3155
        %v3157 = vpop.xlane.xlu0 %3156
        %v3158 = vsel %vm869, %v2996, -inf
        %3159 = vmax.xlane.f32.xlu0 %v3158
        %v3160 = vpop.xlane.xlu0 %3159
        %v3161 = vsel %vm869, %v3074, -inf
        %3162 = vmax.xlane.f32.xlu0 %v3161
        %v3163 = vpop.xlane.xlu0 %3162
        %v3164 = vsel %vm869, %v3152, -inf
        %3165 = vmax.xlane.f32.xlu0 %v3164
        %v3166 = vpop.xlane.xlu0 %3165
        %v3167 = vsub.f32 %v2918, %v3157
        %v3168 = vsub.f32 %v2996, %v3160
        %v3169 = vsub.f32 %v3074, %v3163
        %v3170 = vsub.f32 %v3152, %v3166
        %v3171 = vmul.f32 %v3167, 1.442695
        %v3172 = vpow.pop %v3171
        %v3173 = vmul.f32 %v3168, 1.442695
        %v3174 = vpow.pop %v3173
        %v3175 = vmul.f32 %v3169, 1.442695
        %v3176 = vpow.pop %v3175
        %v3177 = vmul.f32 %v3170, 1.442695
        %v3178 = vpow.pop %v3177
        %v3179 = vsel %vm869, %v3172, 0.0
        %3180 = vadd.xlane.f32.xlu0 %v3179
        %v3181 = vpop.xlane.xlu0 %3180
        %v3182 = vsel %vm869, %v3174, 0.0
        %3183 = vadd.xlane.f32.xlu0 %v3182
        %v3184 = vpop.xlane.xlu0 %3183
        %v3185 = vsel %vm869, %v3176, 0.0
        %3186 = vadd.xlane.f32.xlu0 %v3185
        %v3187 = vpop.xlane.xlu0 %3186
        %v3188 = vsel %vm869, %v3178, 0.0
        %3189 = vadd.xlane.f32.xlu0 %v3188
        %v3190 = vpop.xlane.xlu0 %3189
        %v3191 = vrcp.pop %v3181
        %v3192 = vmul.f32 %v3172, %v3191
        %v3193 = vrcp.pop %v3184
        %v3194 = vmul.f32 %v3174, %v3193
        %v3195 = vrcp.pop %v3187
        %v3196 = vmul.f32 %v3176, %v3195
        %v3197 = vrcp.pop %v3190
        %v3198 = vmul.f32 %v3178, %v3197
        %3199 = vrot.lane.b32.xlu0 %v824, 40
        %v3200 = vpop.permute.xlu0 %3199
        %v3203 = vsel %vm869, %v3192, 0
        %3205 = vmatprep.subr.mxu0 0.0
        %3206 = vmatpush1.msra.mxu0 0.0
        %3207 = vmatprep.subr.mxu0 0.0
        %3208 = vmatpush1.msra.mxu0 0.0
        %3209 = vmatprep.subr.mxu0 0.0
        %3210 = vmatpush1.msra.mxu0 0.0
        %3211 = vmatprep.subr.mxu0 0.0
        %3212 = vmatpush1.msra.mxu0 0.0
        %3213 = vmatprep.subr.mxu0 0.0
        %3214 = vmatpush1.msra.mxu0 0.0
        %3215 = vmatprep.subr.mxu0 0.0
        %3216 = vmatpush1.msra.mxu0 0.0
        %3217 = vmatprep.subr.mxu0 0.0
        %3218 = vmatpush1.msra.mxu0 0.0
        %3219 = vmatprep.subr.mxu0 0.0
        %3220 = vmatpush1.msra.mxu0 0.0
        %3221 = vmatprep.subr.mxu0 0.0
        %3222 = vmatpush1.msra.mxu0 0.0
        %3223 = vmatprep.subr.mxu0 0.0
        %3224 = vmatpush1.msra.mxu0 0.0
        %3225 = vmatprep.subr.mxu0 0.0
        %3226 = vmatpush1.msra.mxu0 0.0
        %3227 = vmatprep.subr.mxu0 0.0
        %3228 = vmatpush1.msra.mxu0 0.0
        %3229 = vmatprep.subr.mxu0 0.0
        %3230 = vmatpush1.msra.mxu0 0.0
        %3231 = vmatprep.subr.mxu0 0.0
        %3232 = vmatpush1.msra.mxu0 0.0
        %3233 = vmatprep.subr.mxu0 0.0
        %3234 = vmatpush1.msra.mxu0 0.0
        %3235 = vmatprep.subr.mxu0 0.0
        %3236 = vmatpush1.msra.mxu0 %v3200
        %3237 = vmatprep.subr.mxu0 0.0
        %3238 = vmatpush2.msra.mxu0 0.0
        %3239 = vmatprep.subr.mxu0 0.0
        %3240 = vmatpush2.msra.mxu0 0.0
        %3241 = vmatprep.subr.mxu0 0.0
        %3242 = vmatpush2.msra.mxu0 0.0
        %3243 = vmatprep.subr.mxu0 0.0
        %3244 = vmatpush2.msra.mxu0 0.0
        %3245 = vmatprep.subr.mxu0 0.0
        %3246 = vmatpush2.msra.mxu0 0.0
        %3247 = vmatprep.subr.mxu0 0.0
        %3248 = vmatpush2.msra.mxu0 0.0
        %3249 = vmatprep.subr.mxu0 0.0
        %3250 = vmatpush2.msra.mxu0 0.0
        %3251 = vmatprep.subr.mxu0 0.0
        %3252 = vmatpush2.msra.mxu0 0.0
        %3253 = vmatprep.subr.mxu0 0.0
        %3254 = vmatpush2.msra.mxu0 0.0
        %3255 = vmatprep.subr.mxu0 0.0
        %3256 = vmatpush2.msra.mxu0 0.0
        %3257 = vmatprep.subr.mxu0 0.0
        %3258 = vmatpush2.msra.mxu0 0.0
        %3259 = vmatprep.subr.mxu0 0.0
        %3260 = vmatpush2.msra.mxu0 0.0
        %3261 = vmatprep.subr.mxu0 0.0
        %3262 = vmatpush2.msra.mxu0 0.0
        %3263 = vmatprep.subr.mxu0 0.0
        %3264 = vmatpush2.msra.mxu0 0.0
        %3265 = vmatprep.subr.mxu0 0.0
        %3266 = vmatpush2.msra.mxu0 0.0
        %3267 = vmatprep.subr.mxu0 0.0
        %3268 = vmatpush2.msra.mxu0 0.0
        %3269 = vmatprep.mubr.f32.mxu0 0.0
        %3270 = vmatmul.mubr.f32.gmra.mxu0 %v3203
        %v3271 = vpop.f32.mrf.mxu0
        %v3272 = vadd.f32 0.0, %v3271
        %v3273 = vpop.f32.mrf.mxu0
        %3274 = vdwg.mxu0
        %3275 = vrot.lane.b32.xlu0 %v829, 40
        %v3276 = vpop.permute.xlu0 %3275
        %v3279 = vsel %vm869, %v3194, 0
        %3281 = vmatprep.subr.mxu0 0.0
        %3282 = vmatpush1.msra.mxu0 0.0
        %3283 = vmatprep.subr.mxu0 0.0
        %3284 = vmatpush1.msra.mxu0 0.0
        %3285 = vmatprep.subr.mxu0 0.0
        %3286 = vmatpush1.msra.mxu0 0.0
        %3287 = vmatprep.subr.mxu0 0.0
        %3288 = vmatpush1.msra.mxu0 0.0
        %3289 = vmatprep.subr.mxu0 0.0
        %3290 = vmatpush1.msra.mxu0 0.0
        %3291 = vmatprep.subr.mxu0 0.0
        %3292 = vmatpush1.msra.mxu0 0.0
        %3293 = vmatprep.subr.mxu0 0.0
        %3294 = vmatpush1.msra.mxu0 0.0
        %3295 = vmatprep.subr.mxu0 0.0
        %3296 = vmatpush1.msra.mxu0 0.0
        %3297 = vmatprep.subr.mxu0 0.0
        %3298 = vmatpush1.msra.mxu0 0.0
        %3299 = vmatprep.subr.mxu0 0.0
        %3300 = vmatpush1.msra.mxu0 0.0
        %3301 = vmatprep.subr.mxu0 0.0
        %3302 = vmatpush1.msra.mxu0 0.0
        %3303 = vmatprep.subr.mxu0 0.0
        %3304 = vmatpush1.msra.mxu0 0.0
        %3305 = vmatprep.subr.mxu0 0.0
        %3306 = vmatpush1.msra.mxu0 0.0
        %3307 = vmatprep.subr.mxu0 0.0
        %3308 = vmatpush1.msra.mxu0 0.0
        %3309 = vmatprep.subr.mxu0 0.0
        %3310 = vmatpush1.msra.mxu0 0.0
        %3311 = vmatprep.subr.mxu0 0.0
        %3312 = vmatpush1.msra.mxu0 %v3276
        %3313 = vmatprep.subr.mxu0 0.0
        %3314 = vmatpush2.msra.mxu0 0.0
        %3315 = vmatprep.subr.mxu0 0.0
        %3316 = vmatpush2.msra.mxu0 0.0
        %3317 = vmatprep.subr.mxu0 0.0
        %3318 = vmatpush2.msra.mxu0 0.0
        %3319 = vmatprep.subr.mxu0 0.0
        %3320 = vmatpush2.msra.mxu0 0.0
        %3321 = vmatprep.subr.mxu0 0.0
        %3322 = vmatpush2.msra.mxu0 0.0
        %3323 = vmatprep.subr.mxu0 0.0
        %3324 = vmatpush2.msra.mxu0 0.0
        %3325 = vmatprep.subr.mxu0 0.0
        %3326 = vmatpush2.msra.mxu0 0.0
        %3327 = vmatprep.subr.mxu0 0.0
        %3328 = vmatpush2.msra.mxu0 0.0
        %3329 = vmatprep.subr.mxu0 0.0
        %3330 = vmatpush2.msra.mxu0 0.0
        %3331 = vmatprep.subr.mxu0 0.0
        %3332 = vmatpush2.msra.mxu0 0.0
        %3333 = vmatprep.subr.mxu0 0.0
        %3334 = vmatpush2.msra.mxu0 0.0
        %3335 = vmatprep.subr.mxu0 0.0
        %3336 = vmatpush2.msra.mxu0 0.0
        %3337 = vmatprep.subr.mxu0 0.0
        %3338 = vmatpush2.msra.mxu0 0.0
        %3339 = vmatprep.subr.mxu0 0.0
        %3340 = vmatpush2.msra.mxu0 0.0
        %3341 = vmatprep.subr.mxu0 0.0
        %3342 = vmatpush2.msra.mxu0 0.0
        %3343 = vmatprep.subr.mxu0 0.0
        %3344 = vmatpush2.msra.mxu0 0.0
        %3345 = vmatprep.mubr.f32.mxu0 0.0
        %3346 = vmatmul.mubr.f32.gmra.mxu0 %v3279
        %v3347 = vpop.f32.mrf.mxu0
        %v3348 = vadd.f32 0.0, %v3347
        %v3349 = vpop.f32.mrf.mxu0
        %3350 = vdwg.mxu0
        %3351 = vrot.lane.b32.xlu0 %v834, 40
        %v3352 = vpop.permute.xlu0 %3351
        %v3355 = vsel %vm869, %v3196, 0
        %3357 = vmatprep.subr.mxu0 0.0
        %3358 = vmatpush1.msra.mxu0 0.0
        %3359 = vmatprep.subr.mxu0 0.0
        %3360 = vmatpush1.msra.mxu0 0.0
        %3361 = vmatprep.subr.mxu0 0.0
        %3362 = vmatpush1.msra.mxu0 0.0
        %3363 = vmatprep.subr.mxu0 0.0
        %3364 = vmatpush1.msra.mxu0 0.0
        %3365 = vmatprep.subr.mxu0 0.0
        %3366 = vmatpush1.msra.mxu0 0.0
        %3367 = vmatprep.subr.mxu0 0.0
        %3368 = vmatpush1.msra.mxu0 0.0
        %3369 = vmatprep.subr.mxu0 0.0
        %3370 = vmatpush1.msra.mxu0 0.0
        %3371 = vmatprep.subr.mxu0 0.0
        %3372 = vmatpush1.msra.mxu0 0.0
        %3373 = vmatprep.subr.mxu0 0.0
        %3374 = vmatpush1.msra.mxu0 0.0
        %3375 = vmatprep.subr.mxu0 0.0
        %3376 = vmatpush1.msra.mxu0 0.0
        %3377 = vmatprep.subr.mxu0 0.0
        %3378 = vmatpush1.msra.mxu0 0.0
        %3379 = vmatprep.subr.mxu0 0.0
        %3380 = vmatpush1.msra.mxu0 0.0
        %3381 = vmatprep.subr.mxu0 0.0
        %3382 = vmatpush1.msra.mxu0 0.0
        %3383 = vmatprep.subr.mxu0 0.0
        %3384 = vmatpush1.msra.mxu0 0.0
        %3385 = vmatprep.subr.mxu0 0.0
        %3386 = vmatpush1.msra.mxu0 0.0
        %3387 = vmatprep.subr.mxu0 0.0
        %3388 = vmatpush1.msra.mxu0 %v3352
        %3389 = vmatprep.subr.mxu0 0.0
        %3390 = vmatpush2.msra.mxu0 0.0
        %3391 = vmatprep.subr.mxu0 0.0
        %3392 = vmatpush2.msra.mxu0 0.0
        %3393 = vmatprep.subr.mxu0 0.0
        %3394 = vmatpush2.msra.mxu0 0.0
        %3395 = vmatprep.subr.mxu0 0.0
        %3396 = vmatpush2.msra.mxu0 0.0
        %3397 = vmatprep.subr.mxu0 0.0
        %3398 = vmatpush2.msra.mxu0 0.0
        %3399 = vmatprep.subr.mxu0 0.0
        %3400 = vmatpush2.msra.mxu0 0.0
        %3401 = vmatprep.subr.mxu0 0.0
        %3402 = vmatpush2.msra.mxu0 0.0
        %3403 = vmatprep.subr.mxu0 0.0
        %3404 = vmatpush2.msra.mxu0 0.0
        %3405 = vmatprep.subr.mxu0 0.0
        %3406 = vmatpush2.msra.mxu0 0.0
        %3407 = vmatprep.subr.mxu0 0.0
        %3408 = vmatpush2.msra.mxu0 0.0
        %3409 = vmatprep.subr.mxu0 0.0
        %3410 = vmatpush2.msra.mxu0 0.0
        %3411 = vmatprep.subr.mxu0 0.0
        %3412 = vmatpush2.msra.mxu0 0.0
        %3413 = vmatprep.subr.mxu0 0.0
        %3414 = vmatpush2.msra.mxu0 0.0
        %3415 = vmatprep.subr.mxu0 0.0
        %3416 = vmatpush2.msra.mxu0 0.0
        %3417 = vmatprep.subr.mxu0 0.0
        %3418 = vmatpush2.msra.mxu0 0.0
        %3419 = vmatprep.subr.mxu0 0.0
        %3420 = vmatpush2.msra.mxu0 0.0
        %3421 = vmatprep.mubr.f32.mxu0 0.0
        %3422 = vmatmul.mubr.f32.gmra.mxu0 %v3355
        %v3423 = vpop.f32.mrf.mxu0
        %v3424 = vadd.f32 0.0, %v3423
        %v3425 = vpop.f32.mrf.mxu0
        %3426 = vdwg.mxu0
        %3427 = vrot.lane.b32.xlu0 %v839, 40
        %v3428 = vpop.permute.xlu0 %3427
        %v3431 = vsel %vm869, %v3198, 0
        %3433 = vmatprep.subr.mxu0 0.0
        %3434 = vmatpush1.msra.mxu0 0.0
        %3435 = vmatprep.subr.mxu0 0.0
        %3436 = vmatpush1.msra.mxu0 0.0
        %3437 = vmatprep.subr.mxu0 0.0
        %3438 = vmatpush1.msra.mxu0 0.0
        %3439 = vmatprep.subr.mxu0 0.0
        %3440 = vmatpush1.msra.mxu0 0.0
        %3441 = vmatprep.subr.mxu0 0.0
        %3442 = vmatpush1.msra.mxu0 0.0
        %3443 = vmatprep.subr.mxu0 0.0
        %3444 = vmatpush1.msra.mxu0 0.0
        %3445 = vmatprep.subr.mxu0 0.0
        %3446 = vmatpush1.msra.mxu0 0.0
        %3447 = vmatprep.subr.mxu0 0.0
        %3448 = vmatpush1.msra.mxu0 0.0
        %3449 = vmatprep.subr.mxu0 0.0
        %3450 = vmatpush1.msra.mxu0 0.0
        %3451 = vmatprep.subr.mxu0 0.0
        %3452 = vmatpush1.msra.mxu0 0.0
        %3453 = vmatprep.subr.mxu0 0.0
        %3454 = vmatpush1.msra.mxu0 0.0
        %3455 = vmatprep.subr.mxu0 0.0
        %3456 = vmatpush1.msra.mxu0 0.0
        %3457 = vmatprep.subr.mxu0 0.0
        %3458 = vmatpush1.msra.mxu0 0.0
        %3459 = vmatprep.subr.mxu0 0.0
        %3460 = vmatpush1.msra.mxu0 0.0
        %3461 = vmatprep.subr.mxu0 0.0
        %3462 = vmatpush1.msra.mxu0 0.0
        %3463 = vmatprep.subr.mxu0 0.0
        %3464 = vmatpush1.msra.mxu0 %v3428
        %3465 = vmatprep.subr.mxu0 0.0
        %3466 = vmatpush2.msra.mxu0 0.0
        %3467 = vmatprep.subr.mxu0 0.0
        %3468 = vmatpush2.msra.mxu0 0.0
        %3469 = vmatprep.subr.mxu0 0.0
        %3470 = vmatpush2.msra.mxu0 0.0
        %3471 = vmatprep.subr.mxu0 0.0
        %3472 = vmatpush2.msra.mxu0 0.0
        %3473 = vmatprep.subr.mxu0 0.0
        %3474 = vmatpush2.msra.mxu0 0.0
        %3475 = vmatprep.subr.mxu0 0.0
        %3476 = vmatpush2.msra.mxu0 0.0
        %3477 = vmatprep.subr.mxu0 0.0
        %3478 = vmatpush2.msra.mxu0 0.0
        %3479 = vmatprep.subr.mxu0 0.0
        %3480 = vmatpush2.msra.mxu0 0.0
        %3481 = vmatprep.subr.mxu0 0.0
        %3482 = vmatpush2.msra.mxu0 0.0
        %3483 = vmatprep.subr.mxu0 0.0
        %3484 = vmatpush2.msra.mxu0 0.0
        %3485 = vmatprep.subr.mxu0 0.0
        %3486 = vmatpush2.msra.mxu0 0.0
        %3487 = vmatprep.subr.mxu0 0.0
        %3488 = vmatpush2.msra.mxu0 0.0
        %3489 = vmatprep.subr.mxu0 0.0
        %3490 = vmatpush2.msra.mxu0 0.0
        %3491 = vmatprep.subr.mxu0 0.0
        %3492 = vmatpush2.msra.mxu0 0.0
        %3493 = vmatprep.subr.mxu0 0.0
        %3494 = vmatpush2.msra.mxu0 0.0
        %3495 = vmatprep.subr.mxu0 0.0
        %3496 = vmatpush2.msra.mxu0 0.0
        %3497 = vmatprep.mubr.f32.mxu0 0.0
        %3498 = vmatmul.mubr.f32.gmra.mxu0 %v3431
        %v3499 = vpop.f32.mrf.mxu0
        %v3500 = vadd.f32 0.0, %v3499
        %v3501 = vpop.f32.mrf.mxu0
        %3502 = vdwg.mxu0
        %3507 = vrot.lane.b32.xlu0 %v1952, 8
        %v3508 = vpop.permute.xlu0 %3507
        %3509 = vrot.lane.b32.xlu0 %v2028, 8
        %v3510 = vpop.permute.xlu0 %3509
        %3511 = vrot.lane.b32.xlu0 %v2104, 8
        %v3512 = vpop.permute.xlu0 %3511
        %3513 = vrot.lane.b32.xlu0 %v2180, 8
        %v3514 = vpop.permute.xlu0 %3513
        %3523 = vrot.lane.b32.xlu0 %v2612, 16
        %v3524 = vpop.permute.xlu0 %3523
        %3525 = vrot.lane.b32.xlu0 %v2688, 16
        %v3526 = vpop.permute.xlu0 %3525
        %3527 = vrot.lane.b32.xlu0 %v2764, 16
        %v3528 = vpop.permute.xlu0 %3527
        %3529 = vrot.lane.b32.xlu0 %v2840, 16
        %v3530 = vpop.permute.xlu0 %3529
        %3539 = vrot.lane.b32.xlu0 %v3272, 24
        %v3540 = vpop.permute.xlu0 %3539
        %3541 = vrot.lane.b32.xlu0 %v3348, 24
        %v3542 = vpop.permute.xlu0 %3541
        %3543 = vrot.lane.b32.xlu0 %v3424, 24
        %v3544 = vpop.permute.xlu0 %3543
        %3545 = vrot.lane.b32.xlu0 %v3500, 24
        %v3546 = vpop.permute.xlu0 %3545
        %v3551 = vsel %vm869, %v1292, %v3508
        %v3552 = vsel %vm869, %v1368, %v3510
        %v3553 = vsel %vm869, %v1444, %v3512
        %v3554 = vsel %vm869, %v1520, %v3514
        %vm3555 = vcmask 130048
        %v3556 = vsel %vm3555, %v3551, %v3524
        %v3557 = vsel %vm3555, %v3552, %v3526
        %v3558 = vsel %vm3555, %v3553, %v3528
        %v3559 = vsel %vm3555, %v3554, %v3530
        %vm3560 = vcmask 195584
        %v3561 = vsel %vm3560, %v3556, %v3540
        %v3562 = vsel %vm3560, %v3557, %v3542
        %v3563 = vsel %vm3560, %v3558, %v3544
        %v3564 = vsel %vm3560, %v3559, %v3546
        %v3565 = vld [vmem:[%s6] sm:$0xff]
        %v3566 = vld [vmem:[%s6 + $0x8] sm:$0xff]
        %v3567 = vld [vmem:[%s6 + $0x10] sm:$0xff]
        %v3568 = vld [vmem:[%s6 + $0x18] sm:$0xff]
        %v3569 = vld [vmem:[%s7] sm:$0x1]
        %v3571 = vlaneseq
        %v3572 = vshrl.u32 %v3571, 7
        %v3573 = vsub.s32 0, %v3572
        %v3574 = vrot.slane %v3569, %v3573
        %v3577 = vsel %vm660, %v3561, 0
        %v3580 = vsel %vm660, %v3562, 0
        %v3583 = vsel %vm660, %v3563, 0
        %v3586 = vsel %vm660, %v3564, 0
        %3588 = vmatprep.subr.mxu0 0.0
        %3589 = vmatpush1.msra.mxu0 0.0
        %3590 = vmatprep.subr.mxu0 0.0
        %3591 = vmatpush1.msra.mxu0 0.0
        %3592 = vmatprep.subr.mxu0 0.0
        %3593 = vmatpush1.msra.mxu0 0.0
        %3594 = vmatprep.subr.mxu0 0.0
        %3595 = vmatpush1.msra.mxu0 0.0
        %3596 = vmatprep.subr.mxu0 0.0
        %3597 = vmatpush1.msra.mxu0 0.0
        %3598 = vmatprep.subr.mxu0 0.0
        %3599 = vmatpush1.msra.mxu0 0.0
        %3600 = vmatprep.subr.mxu0 0.0
        %3601 = vmatpush1.msra.mxu0 0.0
        %3602 = vmatprep.subr.mxu0 0.0
        %3603 = vmatpush1.msra.mxu0 0.0
        %3604 = vmatprep.subr.mxu0 0.0
        %3605 = vmatpush1.msra.mxu0 0.0
        %3606 = vmatprep.subr.mxu0 0.0
        %3607 = vmatpush1.msra.mxu0 0.0
        %3608 = vmatprep.subr.mxu0 0.0
        %3609 = vmatpush1.msra.mxu0 0.0
        %3610 = vmatprep.subr.mxu0 0.0
        %3611 = vmatpush1.msra.mxu0 0.0
        %3612 = vmatprep.subr.mxu0 0.0
        %3613 = vmatpush1.msra.mxu0 %v3568
        %3614 = vmatprep.subr.mxu0 0.0
        %3615 = vmatpush1.msra.mxu0 %v3567
        %3616 = vmatprep.subr.mxu0 0.0
        %3617 = vmatpush1.msra.mxu0 %v3566
        %3618 = vmatprep.subr.mxu0 0.0
        %3619 = vmatpush1.msra.mxu0 %v3565
        %3620 = vmatprep.subr.mxu0 0.0
        %3621 = vmatpush2.msra.mxu0 0.0
        %3622 = vmatprep.subr.mxu0 0.0
        %3623 = vmatpush2.msra.mxu0 0.0
        %3624 = vmatprep.subr.mxu0 0.0
        %3625 = vmatpush2.msra.mxu0 0.0
        %3626 = vmatprep.subr.mxu0 0.0
        %3627 = vmatpush2.msra.mxu0 0.0
        %3628 = vmatprep.subr.mxu0 0.0
        %3629 = vmatpush2.msra.mxu0 0.0
        %3630 = vmatprep.subr.mxu0 0.0
        %3631 = vmatpush2.msra.mxu0 0.0
        %3632 = vmatprep.subr.mxu0 0.0
        %3633 = vmatpush2.msra.mxu0 0.0
        %3634 = vmatprep.subr.mxu0 0.0
        %3635 = vmatpush2.msra.mxu0 0.0
        %3636 = vmatprep.subr.mxu0 0.0
        %3637 = vmatpush2.msra.mxu0 0.0
        %3638 = vmatprep.subr.mxu0 0.0
        %3639 = vmatpush2.msra.mxu0 0.0
        %3640 = vmatprep.subr.mxu0 0.0
        %3641 = vmatpush2.msra.mxu0 0.0
        %3642 = vmatprep.subr.mxu0 0.0
        %3643 = vmatpush2.msra.mxu0 0.0
        %3644 = vmatprep.subr.mxu0 0.0
        %3645 = vmatpush2.msra.mxu0 0.0
        %3646 = vmatprep.subr.mxu0 0.0
        %3647 = vmatpush2.msra.mxu0 0.0
        %3648 = vmatprep.subr.mxu0 0.0
        %3649 = vmatpush2.msra.mxu0 0.0
        %3650 = vmatprep.subr.mxu0 0.0
        %3651 = vmatpush2.msra.mxu0 0.0
        %3652 = vmatprep.mubr.f32.mxu0 0.0
        %3653 = vmatmul.mubr.f32.gmra.mxu0 %v3577
        %v3654 = vpop.f32.mrf.mxu0
        %v3655 = vadd.f32 %v3574, %v3654
        %v3656 = vpop.f32.mrf.mxu0
        %3657 = vmatprep.mubr.f32.mxu0 0.0
        %3658 = vmatmul.mubr.f32.gmra.mxu0 %v3580
        %v3659 = vpop.f32.mrf.mxu0
        %v3660 = vadd.f32 %v3574, %v3659
        %v3661 = vpop.f32.mrf.mxu0
        %3662 = vmatprep.mubr.f32.mxu0 0.0
        %3663 = vmatmul.mubr.f32.gmra.mxu0 %v3583
        %v3664 = vpop.f32.mrf.mxu0
        %v3665 = vadd.f32 %v3574, %v3664
        %v3666 = vpop.f32.mrf.mxu0
        %3667 = vmatprep.mubr.f32.mxu0 0.0
        %3668 = vmatmul.mubr.f32.gmra.mxu0 %v3586
        %v3669 = vpop.f32.mrf.mxu0
        %v3670 = vadd.f32 %v3574, %v3669
        %v3671 = vpop.f32.mrf.mxu0
        %3672 = vdwg.mxu0
        %v3673 = vadd.f32 %v3655, %v730
        %v3674 = vadd.f32 %v3660, %v731
        %v3675 = vadd.f32 %v3665, %v732
        %v3676 = vadd.f32 %v3670, %v733
        %v3677 = vld [vmem:[%s8] sm:$0x1]
        %v3678 = vld [vmem:[%s9] sm:$0x1]
        %v3679 = vsel %vm660, %v3673, 0.0
        %3680 = vadd.xlane.f32.xlu0 %v3679
        %v3681 = vpop.xlane.xlu0 %3680
        %v3682 = vsel %vm660, %v3674, 0.0
        %3683 = vadd.xlane.f32.xlu0 %v3682
        %v3684 = vpop.xlane.xlu0 %3683
        %v3685 = vsel %vm660, %v3675, 0.0
        %3686 = vadd.xlane.f32.xlu0 %v3685
        %v3687 = vpop.xlane.xlu0 %3686
        %v3688 = vsel %vm660, %v3676, 0.0
        %3689 = vadd.xlane.f32.xlu0 %v3688
        %v3690 = vpop.xlane.xlu0 %3689
        %v3691 = vmul.f32 %v3681, %v673
        %v3692 = vmul.f32 %v3684, %v673
        %v3693 = vmul.f32 %v3687, %v673
        %v3694 = vmul.f32 %v3690, %v673
        %v3695 = vsub.f32 %v3673, %v3691
        %v3696 = vsub.f32 %v3674, %v3692
        %v3697 = vsub.f32 %v3675, %v3693
        %v3698 = vsub.f32 %v3676, %v3694
        %v3699 = vmul.f32 %v3695, %v3695
        %v3700 = vmul.f32 %v3696, %v3696
        %v3701 = vmul.f32 %v3697, %v3697
        %v3702 = vmul.f32 %v3698, %v3698
        %v3703 = vsel %vm660, %v3699, 0.0
        %3704 = vadd.xlane.f32.xlu0 %v3703
        %v3705 = vpop.xlane.xlu0 %3704
        %v3706 = vsel %vm660, %v3700, 0.0
        %3707 = vadd.xlane.f32.xlu0 %v3706
        %v3708 = vpop.xlane.xlu0 %3707
        %v3709 = vsel %vm660, %v3701, 0.0
        %3710 = vadd.xlane.f32.xlu0 %v3709
        %v3711 = vpop.xlane.xlu0 %3710
        %v3712 = vsel %vm660, %v3702, 0.0
        %3713 = vadd.xlane.f32.xlu0 %v3712
        %v3714 = vpop.xlane.xlu0 %3713
        %v3715 = vmul.f32 %v3705, %v673
        %v3716 = vmul.f32 %v3708, %v673
        %v3717 = vmul.f32 %v3711, %v673
        %v3718 = vmul.f32 %v3714, %v673
        %v3719 = vadd.f32 %v3715, 1e-12
        %v3720 = vadd.f32 %v3716, 1e-12
        %v3721 = vadd.f32 %v3717, 1e-12
        %v3722 = vadd.f32 %v3718, 1e-12
        %v3723 = vrsqrt.pop %v3719
        %v3724 = vrsqrt.pop %v3720
        %v3725 = vrsqrt.pop %v3721
        %v3726 = vrsqrt.pop %v3722
        %v3727 = vmul.f32 %v3695, %v3723
        %v3728 = vmul.f32 %v3696, %v3724
        %v3729 = vmul.f32 %v3697, %v3725
        %v3730 = vmul.f32 %v3698, %v3726
        %v3732 = vlaneseq
        %v3733 = vshrl.u32 %v3732, 7
        %v3734 = vsub.s32 0, %v3733
        %v3735 = vrot.slane %v3677, %v3734
        %v3737 = vmul.f32 %v3727, %v3735
        %v3738 = vmul.f32 %v3728, %v3735
        %v3739 = vmul.f32 %v3729, %v3735
        %v3740 = vmul.f32 %v3730, %v3735
        %v3742 = vlaneseq
        %v3743 = vshrl.u32 %v3742, 7
        %v3744 = vsub.s32 0, %v3743
        %v3745 = vrot.slane %v3678, %v3744
        %v3747 = vadd.f32 %v3737, %v3745
        %v3748 = vadd.f32 %v3738, %v3745
        %v3749 = vadd.f32 %v3739, %v3745
        %v3750 = vadd.f32 %v3740, %v3745
        %v3751 = vld [vmem:[%s10] sm:$0xff]
        %v3752 = vld [vmem:[%s10 + $0x8] sm:$0xff]
        %v3753 = vld [vmem:[%s10 + $0x10] sm:$0xff]
        %v3754 = vld [vmem:[%s10 + $0x18] sm:$0xff]
        %v3755 = vld [vmem:[%s11] sm:$0x1]
        %v3757 = vlaneseq
        %v3758 = vshrl.u32 %v3757, 7
        %v3759 = vsub.s32 0, %v3758
        %v3760 = vrot.slane %v3755, %v3759
        %v3763 = vsel %vm660, %v3747, 0
        %v3766 = vsel %vm660, %v3748, 0
        %v3769 = vsel %vm660, %v3749, 0
        %v3772 = vsel %vm660, %v3750, 0
        %3774 = vmatprep.subr.mxu0 0.0
        %3775 = vmatpush1.msra.mxu0 0.0
        %3776 = vmatprep.subr.mxu0 0.0
        %3777 = vmatpush1.msra.mxu0 0.0
        %3778 = vmatprep.subr.mxu0 0.0
        %3779 = vmatpush1.msra.mxu0 0.0
        %3780 = vmatprep.subr.mxu0 0.0
        %3781 = vmatpush1.msra.mxu0 0.0
        %3782 = vmatprep.subr.mxu0 0.0
        %3783 = vmatpush1.msra.mxu0 0.0
        %3784 = vmatprep.subr.mxu0 0.0
        %3785 = vmatpush1.msra.mxu0 0.0
        %3786 = vmatprep.subr.mxu0 0.0
        %3787 = vmatpush1.msra.mxu0 0.0
        %3788 = vmatprep.subr.mxu0 0.0
        %3789 = vmatpush1.msra.mxu0 0.0
        %3790 = vmatprep.subr.mxu0 0.0
        %3791 = vmatpush1.msra.mxu0 0.0
        %3792 = vmatprep.subr.mxu0 0.0
        %3793 = vmatpush1.msra.mxu0 0.0
        %3794 = vmatprep.subr.mxu0 0.0
        %3795 = vmatpush1.msra.mxu0 0.0
        %3796 = vmatprep.subr.mxu0 0.0
        %3797 = vmatpush1.msra.mxu0 0.0
        %3798 = vmatprep.subr.mxu0 0.0
        %3799 = vmatpush1.msra.mxu0 %v3754
        %3800 = vmatprep.subr.mxu0 0.0
        %3801 = vmatpush1.msra.mxu0 %v3753
        %3802 = vmatprep.subr.mxu0 0.0
        %3803 = vmatpush1.msra.mxu0 %v3752
        %3804 = vmatprep.subr.mxu0 0.0
        %3805 = vmatpush1.msra.mxu0 %v3751
        %3806 = vmatprep.subr.mxu0 0.0
        %3807 = vmatpush2.msra.mxu0 0.0
        %3808 = vmatprep.subr.mxu0 0.0
        %3809 = vmatpush2.msra.mxu0 0.0
        %3810 = vmatprep.subr.mxu0 0.0
        %3811 = vmatpush2.msra.mxu0 0.0
        %3812 = vmatprep.subr.mxu0 0.0
        %3813 = vmatpush2.msra.mxu0 0.0
        %3814 = vmatprep.subr.mxu0 0.0
        %3815 = vmatpush2.msra.mxu0 0.0
        %3816 = vmatprep.subr.mxu0 0.0
        %3817 = vmatpush2.msra.mxu0 0.0
        %3818 = vmatprep.subr.mxu0 0.0
        %3819 = vmatpush2.msra.mxu0 0.0
        %3820 = vmatprep.subr.mxu0 0.0
        %3821 = vmatpush2.msra.mxu0 0.0
        %3822 = vmatprep.subr.mxu0 0.0
        %3823 = vmatpush2.msra.mxu0 0.0
        %3824 = vmatprep.subr.mxu0 0.0
        %3825 = vmatpush2.msra.mxu0 0.0
        %3826 = vmatprep.subr.mxu0 0.0
        %3827 = vmatpush2.msra.mxu0 0.0
        %3828 = vmatprep.subr.mxu0 0.0
        %3829 = vmatpush2.msra.mxu0 0.0
        %3830 = vmatprep.subr.mxu0 0.0
        %3831 = vmatpush2.msra.mxu0 0.0
        %3832 = vmatprep.subr.mxu0 0.0
        %3833 = vmatpush2.msra.mxu0 0.0
        %3834 = vmatprep.subr.mxu0 0.0
        %3835 = vmatpush2.msra.mxu0 0.0
        %3836 = vmatprep.subr.mxu0 0.0
        %3837 = vmatpush2.msra.mxu0 0.0
        %3838 = vmatprep.mubr.f32.mxu0 0.0
        %3839 = vmatmul.mubr.f32.gmra.mxu0 %v3763
        %v3840 = vpop.f32.mrf.mxu0
        %v3841 = vadd.f32 %v3760, %v3840
        %v3842 = vpop.f32.mrf.mxu0
        %3843 = vmatprep.mubr.f32.mxu0 0.0
        %3844 = vmatmul.mubr.f32.gmra.mxu0 %v3766
        %v3845 = vpop.f32.mrf.mxu0
        %v3846 = vadd.f32 %v3760, %v3845
        %v3847 = vpop.f32.mrf.mxu0
        %3848 = vmatprep.mubr.f32.mxu0 0.0
        %3849 = vmatmul.mubr.f32.gmra.mxu0 %v3769
        %v3850 = vpop.f32.mrf.mxu0
        %v3851 = vadd.f32 %v3760, %v3850
        %v3852 = vpop.f32.mrf.mxu0
        %3853 = vmatprep.mubr.f32.mxu0 0.0
        %3854 = vmatmul.mubr.f32.gmra.mxu0 %v3772
        %v3855 = vpop.f32.mrf.mxu0
        %v3856 = vadd.f32 %v3760, %v3855
        %v3857 = vpop.f32.mrf.mxu0
        %3858 = vdwg.mxu0
        %v3859 = vmul.f32 %v3841, 0.5
        %v3860 = vmul.f32 %v3846, 0.5
        %v3861 = vmul.f32 %v3851, 0.5
        %v3862 = vmul.f32 %v3856, 0.5
        %v3863 = vmul.f32 %v3841, 0.044715
        %v3864 = vmul.f32 %v3846, 0.044715
        %v3865 = vmul.f32 %v3851, 0.044715
        %v3866 = vmul.f32 %v3856, 0.044715
        %v3867 = vmul.f32 %v3863, %v3841
        %v3868 = vmul.f32 %v3864, %v3846
        %v3869 = vmul.f32 %v3865, %v3851
        %v3870 = vmul.f32 %v3866, %v3856
        %v3871 = vmul.f32 %v3867, %v3841
        %v3872 = vmul.f32 %v3868, %v3846
        %v3873 = vmul.f32 %v3869, %v3851
        %v3874 = vmul.f32 %v3870, %v3856
        %v3875 = vadd.f32 %v3841, %v3871
        %v3876 = vadd.f32 %v3846, %v3872
        %v3877 = vadd.f32 %v3851, %v3873
        %v3878 = vadd.f32 %v3856, %v3874
        %v3879 = vmul.f32 %v3875, 0.7978846
        %v3880 = vmul.f32 %v3876, 0.7978846
        %v3881 = vmul.f32 %v3877, 0.7978846
        %v3882 = vmul.f32 %v3878, 0.7978846
        %v3883 = vtanh.pop %v3879
        %v3884 = vtanh.pop %v3880
        %v3885 = vtanh.pop %v3881
        %v3886 = vtanh.pop %v3882
        %v3887 = vadd.f32 %v3883, 1.0
        %v3888 = vadd.f32 %v3884, 1.0
        %v3889 = vadd.f32 %v3885, 1.0
        %v3890 = vadd.f32 %v3886, 1.0
        %v3891 = vmul.f32 %v3859, %v3887
        %v3892 = vmul.f32 %v3860, %v3888
        %v3893 = vmul.f32 %v3861, %v3889
        %v3894 = vmul.f32 %v3862, %v3890
        %v3895 = vld [vmem:[%s12] sm:$0xff]
        %v3896 = vld [vmem:[%s12 + $0x8] sm:$0xff]
        %v3897 = vld [vmem:[%s12 + $0x10] sm:$0xff]
        %v3898 = vld [vmem:[%s12 + $0x18] sm:$0xff]
        %v3899 = vld [vmem:[%s12 + $0x20] sm:$0xff]
        %v3900 = vld [vmem:[%s12 + $0x28] sm:$0xff]
        %v3901 = vld [vmem:[%s12 + $0x30] sm:$0xff]
        %v3902 = vld [vmem:[%s12 + $0x38] sm:$0xff]
        %v3903 = vld [vmem:[%s13] sm:$0x1]
        %v3905 = vlaneseq
        %v3906 = vshrl.u32 %v3905, 7
        %v3907 = vsub.s32 0, %v3906
        %v3908 = vrot.slane %v3903, %v3907
        %vm3910 = vcmask 523264
        %v3912 = vsel %vm3910, %v3891, 0
        %v3915 = vsel %vm3910, %v3892, 0
        %v3918 = vsel %vm3910, %v3893, 0
        %v3921 = vsel %vm3910, %v3894, 0
        %3923 = vmatprep.subr.mxu0 0.0
        %3924 = vmatpush1.msra.mxu0 0.0
        %3925 = vmatprep.subr.mxu0 0.0
        %3926 = vmatpush1.msra.mxu0 0.0
        %3927 = vmatprep.subr.mxu0 0.0
        %3928 = vmatpush1.msra.mxu0 0.0
        %3929 = vmatprep.subr.mxu0 0.0
        %3930 = vmatpush1.msra.mxu0 0.0
        %3931 = vmatprep.subr.mxu0 0.0
        %3932 = vmatpush1.msra.mxu0 0.0
        %3933 = vmatprep.subr.mxu0 0.0
        %3934 = vmatpush1.msra.mxu0 0.0
        %3935 = vmatprep.subr.mxu0 0.0
        %3936 = vmatpush1.msra.mxu0 0.0
        %3937 = vmatprep.subr.mxu0 0.0
        %3938 = vmatpush1.msra.mxu0 0.0
        %3939 = vmatprep.subr.mxu0 0.0
        %3940 = vmatpush1.msra.mxu0 %v3902
        %3941 = vmatprep.subr.mxu0 0.0
        %3942 = vmatpush1.msra.mxu0 %v3901
        %3943 = vmatprep.subr.mxu0 0.0
        %3944 = vmatpush1.msra.mxu0 %v3900
        %3945 = vmatprep.subr.mxu0 0.0
        %3946 = vmatpush1.msra.mxu0 %v3899
        %3947 = vmatprep.subr.mxu0 0.0
        %3948 = vmatpush1.msra.mxu0 %v3898
        %3949 = vmatprep.subr.mxu0 0.0
        %3950 = vmatpush1.msra.mxu0 %v3897
        %3951 = vmatprep.subr.mxu0 0.0
        %3952 = vmatpush1.msra.mxu0 %v3896
        %3953 = vmatprep.subr.mxu0 0.0
        %3954 = vmatpush1.msra.mxu0 %v3895
        %3955 = vmatprep.subr.mxu0 0.0
        %3956 = vmatpush2.msra.mxu0 0.0
        %3957 = vmatprep.subr.mxu0 0.0
        %3958 = vmatpush2.msra.mxu0 0.0
        %3959 = vmatprep.subr.mxu0 0.0
        %3960 = vmatpush2.msra.mxu0 0.0
        %3961 = vmatprep.subr.mxu0 0.0
        %3962 = vmatpush2.msra.mxu0 0.0
        %3963 = vmatprep.subr.mxu0 0.0
        %3964 = vmatpush2.msra.mxu0 0.0
        %3965 = vmatprep.subr.mxu0 0.0
        %3966 = vmatpush2.msra.mxu0 0.0
        %3967 = vmatprep.subr.mxu0 0.0
        %3968 = vmatpush2.msra.mxu0 0.0
        %3969 = vmatprep.subr.mxu0 0.0
        %3970 = vmatpush2.msra.mxu0 0.0
        %3971 = vmatprep.subr.mxu0 0.0
        %3972 = vmatpush2.msra.mxu0 0.0
        %3973 = vmatprep.subr.mxu0 0.0
        %3974 = vmatpush2.msra.mxu0 0.0
        %3975 = vmatprep.subr.mxu0 0.0
        %3976 = vmatpush2.msra.mxu0 0.0
        %3977 = vmatprep.subr.mxu0 0.0
        %3978 = vmatpush2.msra.mxu0 0.0
        %3979 = vmatprep.subr.mxu0 0.0
        %3980 = vmatpush2.msra.mxu0 0.0
        %3981 = vmatprep.subr.mxu0 0.0
        %3982 = vmatpush2.msra.mxu0 0.0
        %3983 = vmatprep.subr.mxu0 0.0
        %3984 = vmatpush2.msra.mxu0 0.0
        %3985 = vmatprep.subr.mxu0 0.0
        %3986 = vmatpush2.msra.mxu0 0.0
        %3987 = vmatprep.mubr.f32.mxu0 0.0
        %3988 = vmatmul.mubr.f32.gmra.mxu0 %v3912
        %v3989 = vpop.f32.mrf.mxu0
        %v3990 = vadd.f32 %v3908, %v3989
        %v3991 = vpop.f32.mrf.mxu0
        %3992 = vmatprep.mubr.f32.mxu0 0.0
        %3993 = vmatmul.mubr.f32.gmra.mxu0 %v3915
        %v3994 = vpop.f32.mrf.mxu0
        %v3995 = vadd.f32 %v3908, %v3994
        %v3996 = vpop.f32.mrf.mxu0
        %3997 = vmatprep.mubr.f32.mxu0 0.0
        %3998 = vmatmul.mubr.f32.gmra.mxu0 %v3918
        %v3999 = vpop.f32.mrf.mxu0
        %v4000 = vadd.f32 %v3908, %v3999
        %v4001 = vpop.f32.mrf.mxu0
        %4002 = vmatprep.mubr.f32.mxu0 0.0
        %4003 = vmatmul.mubr.f32.gmra.mxu0 %v3921
        %v4004 = vpop.f32.mrf.mxu0
        %v4005 = vadd.f32 %v3908, %v4004
        %v4006 = vpop.f32.mrf.mxu0
        %4007 = vdwg.mxu0
        %v4008 = vadd.f32 %v3990, %v3747
        %v4009 = vadd.f32 %v3995, %v3748
        %v4010 = vadd.f32 %v4000, %v3749
        %v4011 = vadd.f32 %v4005, %v3750
        %v4012 = vld [vmem:[%s14] sm:$0x1]
        %v4013 = vld [vmem:[%s15] sm:$0x1]
        %v4014 = vsel %vm660, %v4008, 0.0
        %4015 = vadd.xlane.f32.xlu0 %v4014
        %v4016 = vpop.xlane.xlu0 %4015
        %v4017 = vsel %vm660, %v4009, 0.0
        %4018 = vadd.xlane.f32.xlu0 %v4017
        %v4019 = vpop.xlane.xlu0 %4018
        %v4020 = vsel %vm660, %v4010, 0.0
        %4021 = vadd.xlane.f32.xlu0 %v4020
        %v4022 = vpop.xlane.xlu0 %4021
        %v4023 = vsel %vm660, %v4011, 0.0
        %4024 = vadd.xlane.f32.xlu0 %v4023
        %v4025 = vpop.xlane.xlu0 %4024
        %v4026 = vmul.f32 %v4016, %v673
        %v4027 = vmul.f32 %v4019, %v673
        %v4028 = vmul.f32 %v4022, %v673
        %v4029 = vmul.f32 %v4025, %v673
        %v4030 = vsub.f32 %v4008, %v4026
        %v4031 = vsub.f32 %v4009, %v4027
        %v4032 = vsub.f32 %v4010, %v4028
        %v4033 = vsub.f32 %v4011, %v4029
        %v4034 = vmul.f32 %v4030, %v4030
        %v4035 = vmul.f32 %v4031, %v4031
        %v4036 = vmul.f32 %v4032, %v4032
        %v4037 = vmul.f32 %v4033, %v4033
        %v4038 = vsel %vm660, %v4034, 0.0
        %4039 = vadd.xlane.f32.xlu0 %v4038
        %v4040 = vpop.xlane.xlu0 %4039
        %v4041 = vsel %vm660, %v4035, 0.0
        %4042 = vadd.xlane.f32.xlu0 %v4041
        %v4043 = vpop.xlane.xlu0 %4042
        %v4044 = vsel %vm660, %v4036, 0.0
        %4045 = vadd.xlane.f32.xlu0 %v4044
        %v4046 = vpop.xlane.xlu0 %4045
        %v4047 = vsel %vm660, %v4037, 0.0
        %4048 = vadd.xlane.f32.xlu0 %v4047
        %v4049 = vpop.xlane.xlu0 %4048
        %v4050 = vmul.f32 %v4040, %v673
        %v4051 = vmul.f32 %v4043, %v673
        %v4052 = vmul.f32 %v4046, %v673
        %v4053 = vmul.f32 %v4049, %v673
        %v4054 = vadd.f32 %v4050, 1e-12
        %v4055 = vadd.f32 %v4051, 1e-12
        %v4056 = vadd.f32 %v4052, 1e-12
        %v4057 = vadd.f32 %v4053, 1e-12
        %v4058 = vrsqrt.pop %v4054
        %v4059 = vrsqrt.pop %v4055
        %v4060 = vrsqrt.pop %v4056
        %v4061 = vrsqrt.pop %v4057
        %v4062 = vmul.f32 %v4030, %v4058
        %v4063 = vmul.f32 %v4031, %v4059
        %v4064 = vmul.f32 %v4032, %v4060
        %v4065 = vmul.f32 %v4033, %v4061
        %v4067 = vlaneseq
        %v4068 = vshrl.u32 %v4067, 7
        %v4069 = vsub.s32 0, %v4068
        %v4070 = vrot.slane %v4012, %v4069
        %v4072 = vmul.f32 %v4062, %v4070
        %v4073 = vmul.f32 %v4063, %v4070
        %v4074 = vmul.f32 %v4064, %v4070
        %v4075 = vmul.f32 %v4065, %v4070
        %v4077 = vlaneseq
        %v4078 = vshrl.u32 %v4077, 7
        %v4079 = vsub.s32 0, %v4078
        %v4080 = vrot.slane %v4013, %v4079
        %v4082 = vadd.f32 %v4072, %v4080
        %v4083 = vadd.f32 %v4073, %v4080
        %v4084 = vadd.f32 %v4074, %v4080
        %v4085 = vadd.f32 %v4075, %v4080
        %s4086 = scalar_lea.vmem %s4, 32
        %v4087 = vld [vmem:[%s4086] sm:$0xff]
        %v4088 = vld [vmem:[%s4086 + $0x8] sm:$0xff]
        %v4089 = vld [vmem:[%s4086 + $0x10] sm:$0xff]
        %v4090 = vld [vmem:[%s4086 + $0x18] sm:$0xff]
        %s4091 = scalar_lea.vmem %s5, 1
        %v4092 = vld [vmem:[%s4091] sm:$0x1]
        %v4094 = vlaneseq
        %v4095 = vshrl.u32 %v4094, 7
        %v4096 = vsub.s32 0, %v4095
        %v4097 = vrot.slane %v4092, %v4096
        %v4100 = vsel %vm660, %v4082, 0
        %v4103 = vsel %vm660, %v4083, 0
        %v4106 = vsel %vm660, %v4084, 0
        %v4109 = vsel %vm660, %v4085, 0
        %4111 = vmatprep.subr.mxu0 0.0
        %4112 = vmatpush1.msra.mxu0 0.0
        %4113 = vmatprep.subr.mxu0 0.0
        %4114 = vmatpush1.msra.mxu0 0.0
        %4115 = vmatprep.subr.mxu0 0.0
        %4116 = vmatpush1.msra.mxu0 0.0
        %4117 = vmatprep.subr.mxu0 0.0
        %4118 = vmatpush1.msra.mxu0 0.0
        %4119 = vmatprep.subr.mxu0 0.0
        %4120 = vmatpush1.msra.mxu0 0.0
        %4121 = vmatprep.subr.mxu0 0.0
        %4122 = vmatpush1.msra.mxu0 0.0
        %4123 = vmatprep.subr.mxu0 0.0
        %4124 = vmatpush1.msra.mxu0 0.0
        %4125 = vmatprep.subr.mxu0 0.0
        %4126 = vmatpush1.msra.mxu0 0.0
        %4127 = vmatprep.subr.mxu0 0.0
        %4128 = vmatpush1.msra.mxu0 0.0
        %4129 = vmatprep.subr.mxu0 0.0
        %4130 = vmatpush1.msra.mxu0 0.0
        %4131 = vmatprep.subr.mxu0 0.0
        %4132 = vmatpush1.msra.mxu0 0.0
        %4133 = vmatprep.subr.mxu0 0.0
        %4134 = vmatpush1.msra.mxu0 0.0
        %4135 = vmatprep.subr.mxu0 0.0
        %4136 = vmatpush1.msra.mxu0 %v4090
        %4137 = vmatprep.subr.mxu0 0.0
        %4138 = vmatpush1.msra.mxu0 %v4089
        %4139 = vmatprep.subr.mxu0 0.0
        %4140 = vmatpush1.msra.mxu0 %v4088
        %4141 = vmatprep.subr.mxu0 0.0
        %4142 = vmatpush1.msra.mxu0 %v4087
        %4143 = vmatprep.subr.mxu0 0.0
        %4144 = vmatpush2.msra.mxu0 0.0
        %4145 = vmatprep.subr.mxu0 0.0
        %4146 = vmatpush2.msra.mxu0 0.0
        %4147 = vmatprep.subr.mxu0 0.0
        %4148 = vmatpush2.msra.mxu0 0.0
        %4149 = vmatprep.subr.mxu0 0.0
        %4150 = vmatpush2.msra.mxu0 0.0
        %4151 = vmatprep.subr.mxu0 0.0
        %4152 = vmatpush2.msra.mxu0 0.0
        %4153 = vmatprep.subr.mxu0 0.0
        %4154 = vmatpush2.msra.mxu0 0.0
        %4155 = vmatprep.subr.mxu0 0.0
        %4156 = vmatpush2.msra.mxu0 0.0
        %4157 = vmatprep.subr.mxu0 0.0
        %4158 = vmatpush2.msra.mxu0 0.0
        %4159 = vmatprep.subr.mxu0 0.0
        %4160 = vmatpush2.msra.mxu0 0.0
        %4161 = vmatprep.subr.mxu0 0.0
        %4162 = vmatpush2.msra.mxu0 0.0
        %4163 = vmatprep.subr.mxu0 0.0
        %4164 = vmatpush2.msra.mxu0 0.0
        %4165 = vmatprep.subr.mxu0 0.0
        %4166 = vmatpush2.msra.mxu0 0.0
        %4167 = vmatprep.subr.mxu0 0.0
        %4168 = vmatpush2.msra.mxu0 0.0
        %4169 = vmatprep.subr.mxu0 0.0
        %4170 = vmatpush2.msra.mxu0 0.0
        %4171 = vmatprep.subr.mxu0 0.0
        %4172 = vmatpush2.msra.mxu0 0.0
        %4173 = vmatprep.subr.mxu0 0.0
        %4174 = vmatpush2.msra.mxu0 0.0
        %4175 = vmatprep.mubr.f32.mxu0 0.0
        %4176 = vmatmul.mubr.f32.gmra.mxu0 %v4100
        %v4177 = vpop.f32.mrf.mxu0
        %v4178 = vadd.f32 %v4097, %v4177
        %v4179 = vpop.f32.mrf.mxu0
        %4180 = vmatprep.mubr.f32.mxu0 0.0
        %4181 = vmatmul.mubr.f32.gmra.mxu0 %v4103
        %v4182 = vpop.f32.mrf.mxu0
        %v4183 = vadd.f32 %v4097, %v4182
        %v4184 = vpop.f32.mrf.mxu0
        %4185 = vmatprep.mubr.f32.mxu0 0.0
        %4186 = vmatmul.mubr.f32.gmra.mxu0 %v4106
        %v4187 = vpop.f32.mrf.mxu0
        %v4188 = vadd.f32 %v4097, %v4187
        %v4189 = vpop.f32.mrf.mxu0
        %4190 = vmatprep.mubr.f32.mxu0 0.0
        %4191 = vmatmul.mubr.f32.gmra.mxu0 %v4109
        %v4192 = vpop.f32.mrf.mxu0
        %v4193 = vadd.f32 %v4097, %v4192
        %v4194 = vpop.f32.mrf.mxu0
        %4195 = vdwg.mxu0
        %4197 = vrot.lane.b32.xlu0 %v4178, 96
        %v4198 = vpop.permute.xlu0 %4197
        %v4199 = vsel %vm869, %v4178, 0
        %v4201 = vsel %vm869, %v4198, 0
        %4203 = vmatprep.subr.mxu0 0.0
        %4204 = vmatpush1.xpose.msra.mxu0 0.0
        %4205 = vmatprep.subr.mxu0 0.0
        %4206 = vmatpush1.xpose.msra.mxu0 0.0
        %4207 = vmatprep.subr.mxu0 0.0
        %4208 = vmatpush1.xpose.msra.mxu0 0.0
        %4209 = vmatprep.subr.mxu0 0.0
        %4210 = vmatpush1.xpose.msra.mxu0 0.0
        %4211 = vmatprep.subr.mxu0 0.0
        %4212 = vmatpush1.xpose.msra.mxu0 0.0
        %4213 = vmatprep.subr.mxu0 0.0
        %4214 = vmatpush1.xpose.msra.mxu0 0.0
        %4215 = vmatprep.subr.mxu0 0.0
        %4216 = vmatpush1.xpose.msra.mxu0 0.0
        %4217 = vmatprep.subr.mxu0 0.0
        %4218 = vmatpush1.xpose.msra.mxu0 0.0
        %4219 = vmatprep.subr.mxu0 0.0
        %4220 = vmatpush1.xpose.msra.mxu0 0.0
        %4221 = vmatprep.subr.mxu0 0.0
        %4222 = vmatpush1.xpose.msra.mxu0 0.0
        %4223 = vmatprep.subr.mxu0 0.0
        %4224 = vmatpush1.xpose.msra.mxu0 0.0
        %4225 = vmatprep.subr.mxu0 0.0
        %4226 = vmatpush1.xpose.msra.mxu0 0.0
        %4227 = vmatprep.subr.mxu0 0.0
        %4228 = vmatpush1.xpose.msra.mxu0 0.0
        %4229 = vmatprep.subr.mxu0 0.0
        %4230 = vmatpush1.xpose.msra.mxu0 0.0
        %4231 = vmatprep.subr.mxu0 0.0
        %4232 = vmatpush1.xpose.msra.mxu0 0.0
        %4233 = vmatprep.subr.mxu0 0.0
        %4234 = vmatpush1.xpose.msra.mxu0 %v4201
        %4235 = vmatprep.subr.mxu0 0.0
        %4236 = vmatpush2.xpose.msra.mxu0 0.0
        %4237 = vmatprep.subr.mxu0 0.0
        %4238 = vmatpush2.xpose.msra.mxu0 0.0
        %4239 = vmatprep.subr.mxu0 0.0
        %4240 = vmatpush2.xpose.msra.mxu0 0.0
        %4241 = vmatprep.subr.mxu0 0.0
        %4242 = vmatpush2.xpose.msra.mxu0 0.0
        %4243 = vmatprep.subr.mxu0 0.0
        %4244 = vmatpush2.xpose.msra.mxu0 0.0
        %4245 = vmatprep.subr.mxu0 0.0
        %4246 = vmatpush2.xpose.msra.mxu0 0.0
        %4247 = vmatprep.subr.mxu0 0.0
        %4248 = vmatpush2.xpose.msra.mxu0 0.0
        %4249 = vmatprep.subr.mxu0 0.0
        %4250 = vmatpush2.xpose.msra.mxu0 0.0
        %4251 = vmatprep.subr.mxu0 0.0
        %4252 = vmatpush2.xpose.msra.mxu0 0.0
        %4253 = vmatprep.subr.mxu0 0.0
        %4254 = vmatpush2.xpose.msra.mxu0 0.0
        %4255 = vmatprep.subr.mxu0 0.0
        %4256 = vmatpush2.xpose.msra.mxu0 0.0
        %4257 = vmatprep.subr.mxu0 0.0
        %4258 = vmatpush2.xpose.msra.mxu0 0.0
        %4259 = vmatprep.subr.mxu0 0.0
        %4260 = vmatpush2.xpose.msra.mxu0 0.0
        %4261 = vmatprep.subr.mxu0 0.0
        %4262 = vmatpush2.xpose.msra.mxu0 0.0
        %4263 = vmatprep.subr.mxu0 0.0
        %4264 = vmatpush2.xpose.msra.mxu0 0.0
        %4265 = vmatprep.subr.mxu0 0.0
        %4266 = vmatpush2.xpose.msra.mxu0 0.0
        %4267 = vmatprep.mubr.f32.mxu0 0.0
        %4268 = vmatmul.mubr.f32.gmra.mxu0 %v4199
        %v4269 = vpop.f32.mrf.mxu0
        %v4270 = vadd.f32 %v849, %v4269
        %v4271 = vpop.f32.mrf.mxu0
        %4272 = vdwg.mxu0
        %4274 = vrot.lane.b32.xlu0 %v4183, 96
        %v4275 = vpop.permute.xlu0 %4274
        %v4276 = vsel %vm869, %v4183, 0
        %v4278 = vsel %vm869, %v4275, 0
        %4280 = vmatprep.subr.mxu0 0.0
        %4281 = vmatpush1.xpose.msra.mxu0 0.0
        %4282 = vmatprep.subr.mxu0 0.0
        %4283 = vmatpush1.xpose.msra.mxu0 0.0
        %4284 = vmatprep.subr.mxu0 0.0
        %4285 = vmatpush1.xpose.msra.mxu0 0.0
        %4286 = vmatprep.subr.mxu0 0.0
        %4287 = vmatpush1.xpose.msra.mxu0 0.0
        %4288 = vmatprep.subr.mxu0 0.0
        %4289 = vmatpush1.xpose.msra.mxu0 0.0
        %4290 = vmatprep.subr.mxu0 0.0
        %4291 = vmatpush1.xpose.msra.mxu0 0.0
        %4292 = vmatprep.subr.mxu0 0.0
        %4293 = vmatpush1.xpose.msra.mxu0 0.0
        %4294 = vmatprep.subr.mxu0 0.0
        %4295 = vmatpush1.xpose.msra.mxu0 0.0
        %4296 = vmatprep.subr.mxu0 0.0
        %4297 = vmatpush1.xpose.msra.mxu0 0.0
        %4298 = vmatprep.subr.mxu0 0.0
        %4299 = vmatpush1.xpose.msra.mxu0 0.0
        %4300 = vmatprep.subr.mxu0 0.0
        %4301 = vmatpush1.xpose.msra.mxu0 0.0
        %4302 = vmatprep.subr.mxu0 0.0
        %4303 = vmatpush1.xpose.msra.mxu0 0.0
        %4304 = vmatprep.subr.mxu0 0.0
        %4305 = vmatpush1.xpose.msra.mxu0 0.0
        %4306 = vmatprep.subr.mxu0 0.0
        %4307 = vmatpush1.xpose.msra.mxu0 0.0
        %4308 = vmatprep.subr.mxu0 0.0
        %4309 = vmatpush1.xpose.msra.mxu0 0.0
        %4310 = vmatprep.subr.mxu0 0.0
        %4311 = vmatpush1.xpose.msra.mxu0 %v4278
        %4312 = vmatprep.subr.mxu0 0.0
        %4313 = vmatpush2.xpose.msra.mxu0 0.0
        %4314 = vmatprep.subr.mxu0 0.0
        %4315 = vmatpush2.xpose.msra.mxu0 0.0
        %4316 = vmatprep.subr.mxu0 0.0
        %4317 = vmatpush2.xpose.msra.mxu0 0.0
        %4318 = vmatprep.subr.mxu0 0.0
        %4319 = vmatpush2.xpose.msra.mxu0 0.0
        %4320 = vmatprep.subr.mxu0 0.0
        %4321 = vmatpush2.xpose.msra.mxu0 0.0
        %4322 = vmatprep.subr.mxu0 0.0
        %4323 = vmatpush2.xpose.msra.mxu0 0.0
        %4324 = vmatprep.subr.mxu0 0.0
        %4325 = vmatpush2.xpose.msra.mxu0 0.0
        %4326 = vmatprep.subr.mxu0 0.0
        %4327 = vmatpush2.xpose.msra.mxu0 0.0
        %4328 = vmatprep.subr.mxu0 0.0
        %4329 = vmatpush2.xpose.msra.mxu0 0.0
        %4330 = vmatprep.subr.mxu0 0.0
        %4331 = vmatpush2.xpose.msra.mxu0 0.0
        %4332 = vmatprep.subr.mxu0 0.0
        %4333 = vmatpush2.xpose.msra.mxu0 0.0
        %4334 = vmatprep.subr.mxu0 0.0
        %4335 = vmatpush2.xpose.msra.mxu0 0.0
        %4336 = vmatprep.subr.mxu0 0.0
        %4337 = vmatpush2.xpose.msra.mxu0 0.0
        %4338 = vmatprep.subr.mxu0 0.0
        %4339 = vmatpush2.xpose.msra.mxu0 0.0
        %4340 = vmatprep.subr.mxu0 0.0
        %4341 = vmatpush2.xpose.msra.mxu0 0.0
        %4342 = vmatprep.subr.mxu0 0.0
        %4343 = vmatpush2.xpose.msra.mxu0 0.0
        %4344 = vmatprep.mubr.f32.mxu0 0.0
        %4345 = vmatmul.mubr.f32.gmra.mxu0 %v4276
        %v4346 = vpop.f32.mrf.mxu0
        %v4347 = vadd.f32 %v853, %v4346
        %v4348 = vpop.f32.mrf.mxu0
        %4349 = vdwg.mxu0
        %4351 = vrot.lane.b32.xlu0 %v4188, 96
        %v4352 = vpop.permute.xlu0 %4351
        %v4353 = vsel %vm869, %v4188, 0
        %v4355 = vsel %vm869, %v4352, 0
        %4357 = vmatprep.subr.mxu0 0.0
        %4358 = vmatpush1.xpose.msra.mxu0 0.0
        %4359 = vmatprep.subr.mxu0 0.0
        %4360 = vmatpush1.xpose.msra.mxu0 0.0
        %4361 = vmatprep.subr.mxu0 0.0
        %4362 = vmatpush1.xpose.msra.mxu0 0.0
        %4363 = vmatprep.subr.mxu0 0.0
        %4364 = vmatpush1.xpose.msra.mxu0 0.0
        %4365 = vmatprep.subr.mxu0 0.0
        %4366 = vmatpush1.xpose.msra.mxu0 0.0
        %4367 = vmatprep.subr.mxu0 0.0
        %4368 = vmatpush1.xpose.msra.mxu0 0.0
        %4369 = vmatprep.subr.mxu0 0.0
        %4370 = vmatpush1.xpose.msra.mxu0 0.0
        %4371 = vmatprep.subr.mxu0 0.0
        %4372 = vmatpush1.xpose.msra.mxu0 0.0
        %4373 = vmatprep.subr.mxu0 0.0
        %4374 = vmatpush1.xpose.msra.mxu0 0.0
        %4375 = vmatprep.subr.mxu0 0.0
        %4376 = vmatpush1.xpose.msra.mxu0 0.0
        %4377 = vmatprep.subr.mxu0 0.0
        %4378 = vmatpush1.xpose.msra.mxu0 0.0
        %4379 = vmatprep.subr.mxu0 0.0
        %4380 = vmatpush1.xpose.msra.mxu0 0.0
        %4381 = vmatprep.subr.mxu0 0.0
        %4382 = vmatpush1.xpose.msra.mxu0 0.0
        %4383 = vmatprep.subr.mxu0 0.0
        %4384 = vmatpush1.xpose.msra.mxu0 0.0
        %4385 = vmatprep.subr.mxu0 0.0
        %4386 = vmatpush1.xpose.msra.mxu0 0.0
        %4387 = vmatprep.subr.mxu0 0.0
        %4388 = vmatpush1.xpose.msra.mxu0 %v4355
        %4389 = vmatprep.subr.mxu0 0.0
        %4390 = vmatpush2.xpose.msra.mxu0 0.0
        %4391 = vmatprep.subr.mxu0 0.0
        %4392 = vmatpush2.xpose.msra.mxu0 0.0
        %4393 = vmatprep.subr.mxu0 0.0
        %4394 = vmatpush2.xpose.msra.mxu0 0.0
        %4395 = vmatprep.subr.mxu0 0.0
        %4396 = vmatpush2.xpose.msra.mxu0 0.0
        %4397 = vmatprep.subr.mxu0 0.0
        %4398 = vmatpush2.xpose.msra.mxu0 0.0
        %4399 = vmatprep.subr.mxu0 0.0
        %4400 = vmatpush2.xpose.msra.mxu0 0.0
        %4401 = vmatprep.subr.mxu0 0.0
        %4402 = vmatpush2.xpose.msra.mxu0 0.0
        %4403 = vmatprep.subr.mxu0 0.0
        %4404 = vmatpush2.xpose.msra.mxu0 0.0
        %4405 = vmatprep.subr.mxu0 0.0
        %4406 = vmatpush2.xpose.msra.mxu0 0.0
        %4407 = vmatprep.subr.mxu0 0.0
        %4408 = vmatpush2.xpose.msra.mxu0 0.0
        %4409 = vmatprep.subr.mxu0 0.0
        %4410 = vmatpush2.xpose.msra.mxu0 0.0
        %4411 = vmatprep.subr.mxu0 0.0
        %4412 = vmatpush2.xpose.msra.mxu0 0.0
        %4413 = vmatprep.subr.mxu0 0.0
        %4414 = vmatpush2.xpose.msra.mxu0 0.0
        %4415 = vmatprep.subr.mxu0 0.0
        %4416 = vmatpush2.xpose.msra.mxu0 0.0
        %4417 = vmatprep.subr.mxu0 0.0
        %4418 = vmatpush2.xpose.msra.mxu0 0.0
        %4419 = vmatprep.subr.mxu0 0.0
        %4420 = vmatpush2.xpose.msra.mxu0 0.0
        %4421 = vmatprep.mubr.f32.mxu0 0.0
        %4422 = vmatmul.mubr.f32.gmra.mxu0 %v4353
        %v4423 = vpop.f32.mrf.mxu0
        %v4424 = vadd.f32 %v857, %v4423
        %v4425 = vpop.f32.mrf.mxu0
        %4426 = vdwg.mxu0
        %4428 = vrot.lane.b32.xlu0 %v4193, 96
        %v4429 = vpop.permute.xlu0 %4428
        %v4430 = vsel %vm869, %v4193, 0
        %v4432 = vsel %vm869, %v4429, 0
        %4434 = vmatprep.subr.mxu0 0.0
        %4435 = vmatpush1.xpose.msra.mxu0 0.0
        %4436 = vmatprep.subr.mxu0 0.0
        %4437 = vmatpush1.xpose.msra.mxu0 0.0
        %4438 = vmatprep.subr.mxu0 0.0
        %4439 = vmatpush1.xpose.msra.mxu0 0.0
        %4440 = vmatprep.subr.mxu0 0.0
        %4441 = vmatpush1.xpose.msra.mxu0 0.0
        %4442 = vmatprep.subr.mxu0 0.0
        %4443 = vmatpush1.xpose.msra.mxu0 0.0
        %4444 = vmatprep.subr.mxu0 0.0
        %4445 = vmatpush1.xpose.msra.mxu0 0.0
        %4446 = vmatprep.subr.mxu0 0.0
        %4447 = vmatpush1.xpose.msra.mxu0 0.0
        %4448 = vmatprep.subr.mxu0 0.0
        %4449 = vmatpush1.xpose.msra.mxu0 0.0
        %4450 = vmatprep.subr.mxu0 0.0
        %4451 = vmatpush1.xpose.msra.mxu0 0.0
        %4452 = vmatprep.subr.mxu0 0.0
        %4453 = vmatpush1.xpose.msra.mxu0 0.0
        %4454 = vmatprep.subr.mxu0 0.0
        %4455 = vmatpush1.xpose.msra.mxu0 0.0
        %4456 = vmatprep.subr.mxu0 0.0
        %4457 = vmatpush1.xpose.msra.mxu0 0.0
        %4458 = vmatprep.subr.mxu0 0.0
        %4459 = vmatpush1.xpose.msra.mxu0 0.0
        %4460 = vmatprep.subr.mxu0 0.0
        %4461 = vmatpush1.xpose.msra.mxu0 0.0
        %4462 = vmatprep.subr.mxu0 0.0
        %4463 = vmatpush1.xpose.msra.mxu0 0.0
        %4464 = vmatprep.subr.mxu0 0.0
        %4465 = vmatpush1.xpose.msra.mxu0 %v4432
        %4466 = vmatprep.subr.mxu0 0.0
        %4467 = vmatpush2.xpose.msra.mxu0 0.0
        %4468 = vmatprep.subr.mxu0 0.0
        %4469 = vmatpush2.xpose.msra.mxu0 0.0
        %4470 = vmatprep.subr.mxu0 0.0
        %4471 = vmatpush2.xpose.msra.mxu0 0.0
        %4472 = vmatprep.subr.mxu0 0.0
        %4473 = vmatpush2.xpose.msra.mxu0 0.0
        %4474 = vmatprep.subr.mxu0 0.0
        %4475 = vmatpush2.xpose.msra.mxu0 0.0
        %4476 = vmatprep.subr.mxu0 0.0
        %4477 = vmatpush2.xpose.msra.mxu0 0.0
        %4478 = vmatprep.subr.mxu0 0.0
        %4479 = vmatpush2.xpose.msra.mxu0 0.0
        %4480 = vmatprep.subr.mxu0 0.0
        %4481 = vmatpush2.xpose.msra.mxu0 0.0
        %4482 = vmatprep.subr.mxu0 0.0
        %4483 = vmatpush2.xpose.msra.mxu0 0.0
        %4484 = vmatprep.subr.mxu0 0.0
        %4485 = vmatpush2.xpose.msra.mxu0 0.0
        %4486 = vmatprep.subr.mxu0 0.0
        %4487 = vmatpush2.xpose.msra.mxu0 0.0
        %4488 = vmatprep.subr.mxu0 0.0
        %4489 = vmatpush2.xpose.msra.mxu0 0.0
        %4490 = vmatprep.subr.mxu0 0.0
        %4491 = vmatpush2.xpose.msra.mxu0 0.0
        %4492 = vmatprep.subr.mxu0 0.0
        %4493 = vmatpush2.xpose.msra.mxu0 0.0
        %4494 = vmatprep.subr.mxu0 0.0
        %4495 = vmatpush2.xpose.msra.mxu0 0.0
        %4496 = vmatprep.subr.mxu0 0.0
        %4497 = vmatpush2.xpose.msra.mxu0 0.0
        %4498 = vmatprep.mubr.f32.mxu0 0.0
        %4499 = vmatmul.mubr.f32.gmra.mxu0 %v4430
        %v4500 = vpop.f32.mrf.mxu0
        %v4501 = vadd.f32 %v861, %v4500
        %v4502 = vpop.f32.mrf.mxu0
        %4503 = vdwg.mxu0
        %v4504 = vsel %vm869, %v4270, -inf
        %4505 = vmax.xlane.f32.xlu0 %v4504
        %v4506 = vpop.xlane.xlu0 %4505
        %v4507 = vsel %vm869, %v4347, -inf
        %4508 = vmax.xlane.f32.xlu0 %v4507
        %v4509 = vpop.xlane.xlu0 %4508
        %v4510 = vsel %vm869, %v4424, -inf
        %4511 = vmax.xlane.f32.xlu0 %v4510
        %v4512 = vpop.xlane.xlu0 %4511
        %v4513 = vsel %vm869, %v4501, -inf
        %4514 = vmax.xlane.f32.xlu0 %v4513
        %v4515 = vpop.xlane.xlu0 %4514
        %v4516 = vsub.f32 %v4270, %v4506
        %v4517 = vsub.f32 %v4347, %v4509
        %v4518 = vsub.f32 %v4424, %v4512
        %v4519 = vsub.f32 %v4501, %v4515
        %v4520 = vmul.f32 %v4516, 1.442695
        %v4521 = vpow.pop %v4520
        %v4522 = vmul.f32 %v4517, 1.442695
        %v4523 = vpow.pop %v4522
        %v4524 = vmul.f32 %v4518, 1.442695
        %v4525 = vpow.pop %v4524
        %v4526 = vmul.f32 %v4519, 1.442695
        %v4527 = vpow.pop %v4526
        %v4528 = vsel %vm869, %v4521, 0.0
        %4529 = vadd.xlane.f32.xlu0 %v4528
        %v4530 = vpop.xlane.xlu0 %4529
        %v4531 = vsel %vm869, %v4523, 0.0
        %4532 = vadd.xlane.f32.xlu0 %v4531
        %v4533 = vpop.xlane.xlu0 %4532
        %v4534 = vsel %vm869, %v4525, 0.0
        %4535 = vadd.xlane.f32.xlu0 %v4534
        %v4536 = vpop.xlane.xlu0 %4535
        %v4537 = vsel %vm869, %v4527, 0.0
        %4538 = vadd.xlane.f32.xlu0 %v4537
        %v4539 = vpop.xlane.xlu0 %4538
        %v4540 = vrcp.pop %v4530
        %v4541 = vmul.f32 %v4521, %v4540
        %v4542 = vrcp.pop %v4533
        %v4543 = vmul.f32 %v4523, %v4542
        %v4544 = vrcp.pop %v4536
        %v4545 = vmul.f32 %v4525, %v4544
        %v4546 = vrcp.pop %v4539
        %v4547 = vmul.f32 %v4527, %v4546
        %4548 = vrot.lane.b32.xlu0 %v4178, 64
        %v4549 = vpop.permute.xlu0 %4548
        %v4552 = vsel %vm869, %v4541, 0
        %4554 = vmatprep.subr.mxu0 0.0
        %4555 = vmatpush1.msra.mxu0 0.0
        %4556 = vmatprep.subr.mxu0 0.0
        %4557 = vmatpush1.msra.mxu0 0.0
        %4558 = vmatprep.subr.mxu0 0.0
        %4559 = vmatpush1.msra.mxu0 0.0
        %4560 = vmatprep.subr.mxu0 0.0
        %4561 = vmatpush1.msra.mxu0 0.0
        %4562 = vmatprep.subr.mxu0 0.0
        %4563 = vmatpush1.msra.mxu0 0.0
        %4564 = vmatprep.subr.mxu0 0.0
        %4565 = vmatpush1.msra.mxu0 0.0
        %4566 = vmatprep.subr.mxu0 0.0
        %4567 = vmatpush1.msra.mxu0 0.0
        %4568 = vmatprep.subr.mxu0 0.0
        %4569 = vmatpush1.msra.mxu0 0.0
        %4570 = vmatprep.subr.mxu0 0.0
        %4571 = vmatpush1.msra.mxu0 0.0
        %4572 = vmatprep.subr.mxu0 0.0
        %4573 = vmatpush1.msra.mxu0 0.0
        %4574 = vmatprep.subr.mxu0 0.0
        %4575 = vmatpush1.msra.mxu0 0.0
        %4576 = vmatprep.subr.mxu0 0.0
        %4577 = vmatpush1.msra.mxu0 0.0
        %4578 = vmatprep.subr.mxu0 0.0
        %4579 = vmatpush1.msra.mxu0 0.0
        %4580 = vmatprep.subr.mxu0 0.0
        %4581 = vmatpush1.msra.mxu0 0.0
        %4582 = vmatprep.subr.mxu0 0.0
        %4583 = vmatpush1.msra.mxu0 0.0
        %4584 = vmatprep.subr.mxu0 0.0
        %4585 = vmatpush1.msra.mxu0 %v4549
        %4586 = vmatprep.subr.mxu0 0.0
        %4587 = vmatpush2.msra.mxu0 0.0
        %4588 = vmatprep.subr.mxu0 0.0
        %4589 = vmatpush2.msra.mxu0 0.0
        %4590 = vmatprep.subr.mxu0 0.0
        %4591 = vmatpush2.msra.mxu0 0.0
        %4592 = vmatprep.subr.mxu0 0.0
        %4593 = vmatpush2.msra.mxu0 0.0
        %4594 = vmatprep.subr.mxu0 0.0
        %4595 = vmatpush2.msra.mxu0 0.0
        %4596 = vmatprep.subr.mxu0 0.0
        %4597 = vmatpush2.msra.mxu0 0.0
        %4598 = vmatprep.subr.mxu0 0.0
        %4599 = vmatpush2.msra.mxu0 0.0
        %4600 = vmatprep.subr.mxu0 0.0
        %4601 = vmatpush2.msra.mxu0 0.0
        %4602 = vmatprep.subr.mxu0 0.0
        %4603 = vmatpush2.msra.mxu0 0.0
        %4604 = vmatprep.subr.mxu0 0.0
        %4605 = vmatpush2.msra.mxu0 0.0
        %4606 = vmatprep.subr.mxu0 0.0
        %4607 = vmatpush2.msra.mxu0 0.0
        %4608 = vmatprep.subr.mxu0 0.0
        %4609 = vmatpush2.msra.mxu0 0.0
        %4610 = vmatprep.subr.mxu0 0.0
        %4611 = vmatpush2.msra.mxu0 0.0
        %4612 = vmatprep.subr.mxu0 0.0
        %4613 = vmatpush2.msra.mxu0 0.0
        %4614 = vmatprep.subr.mxu0 0.0
        %4615 = vmatpush2.msra.mxu0 0.0
        %4616 = vmatprep.subr.mxu0 0.0
        %4617 = vmatpush2.msra.mxu0 0.0
        %4618 = vmatprep.mubr.f32.mxu0 0.0
        %4619 = vmatmul.mubr.f32.gmra.mxu0 %v4552
        %v4620 = vpop.f32.mrf.mxu0
        %v4621 = vadd.f32 0.0, %v4620
        %v4622 = vpop.f32.mrf.mxu0
        %4623 = vdwg.mxu0
        %4624 = vrot.lane.b32.xlu0 %v4183, 64
        %v4625 = vpop.permute.xlu0 %4624
        %v4628 = vsel %vm869, %v4543, 0
        %4630 = vmatprep.subr.mxu0 0.0
        %4631 = vmatpush1.msra.mxu0 0.0
        %4632 = vmatprep.subr.mxu0 0.0
        %4633 = vmatpush1.msra.mxu0 0.0
        %4634 = vmatprep.subr.mxu0 0.0
        %4635 = vmatpush1.msra.mxu0 0.0
        %4636 = vmatprep.subr.mxu0 0.0
        %4637 = vmatpush1.msra.mxu0 0.0
        %4638 = vmatprep.subr.mxu0 0.0
        %4639 = vmatpush1.msra.mxu0 0.0
        %4640 = vmatprep.subr.mxu0 0.0
        %4641 = vmatpush1.msra.mxu0 0.0
        %4642 = vmatprep.subr.mxu0 0.0
        %4643 = vmatpush1.msra.mxu0 0.0
        %4644 = vmatprep.subr.mxu0 0.0
        %4645 = vmatpush1.msra.mxu0 0.0
        %4646 = vmatprep.subr.mxu0 0.0
        %4647 = vmatpush1.msra.mxu0 0.0
        %4648 = vmatprep.subr.mxu0 0.0
        %4649 = vmatpush1.msra.mxu0 0.0
        %4650 = vmatprep.subr.mxu0 0.0
        %4651 = vmatpush1.msra.mxu0 0.0
        %4652 = vmatprep.subr.mxu0 0.0
        %4653 = vmatpush1.msra.mxu0 0.0
        %4654 = vmatprep.subr.mxu0 0.0
        %4655 = vmatpush1.msra.mxu0 0.0
        %4656 = vmatprep.subr.mxu0 0.0
        %4657 = vmatpush1.msra.mxu0 0.0
        %4658 = vmatprep.subr.mxu0 0.0
        %4659 = vmatpush1.msra.mxu0 0.0
        %4660 = vmatprep.subr.mxu0 0.0
        %4661 = vmatpush1.msra.mxu0 %v4625
        %4662 = vmatprep.subr.mxu0 0.0
        %4663 = vmatpush2.msra.mxu0 0.0
        %4664 = vmatprep.subr.mxu0 0.0
        %4665 = vmatpush2.msra.mxu0 0.0
        %4666 = vmatprep.subr.mxu0 0.0
        %4667 = vmatpush2.msra.mxu0 0.0
        %4668 = vmatprep.subr.mxu0 0.0
        %4669 = vmatpush2.msra.mxu0 0.0
        %4670 = vmatprep.subr.mxu0 0.0
        %4671 = vmatpush2.msra.mxu0 0.0
        %4672 = vmatprep.subr.mxu0 0.0
        %4673 = vmatpush2.msra.mxu0 0.0
        %4674 = vmatprep.subr.mxu0 0.0
        %4675 = vmatpush2.msra.mxu0 0.0
        %4676 = vmatprep.subr.mxu0 0.0
        %4677 = vmatpush2.msra.mxu0 0.0
        %4678 = vmatprep.subr.mxu0 0.0
        %4679 = vmatpush2.msra.mxu0 0.0
        %4680 = vmatprep.subr.mxu0 0.0
        %4681 = vmatpush2.msra.mxu0 0.0
        %4682 = vmatprep.subr.mxu0 0.0
        %4683 = vmatpush2.msra.mxu0 0.0
        %4684 = vmatprep.subr.mxu0 0.0
        %4685 = vmatpush2.msra.mxu0 0.0
        %4686 = vmatprep.subr.mxu0 0.0
        %4687 = vmatpush2.msra.mxu0 0.0
        %4688 = vmatprep.subr.mxu0 0.0
        %4689 = vmatpush2.msra.mxu0 0.0
        %4690 = vmatprep.subr.mxu0 0.0
        %4691 = vmatpush2.msra.mxu0 0.0
        %4692 = vmatprep.subr.mxu0 0.0
        %4693 = vmatpush2.msra.mxu0 0.0
        %4694 = vmatprep.mubr.f32.mxu0 0.0
        %4695 = vmatmul.mubr.f32.gmra.mxu0 %v4628
        %v4696 = vpop.f32.mrf.mxu0
        %v4697 = vadd.f32 0.0, %v4696
        %v4698 = vpop.f32.mrf.mxu0
        %4699 = vdwg.mxu0
        %4700 = vrot.lane.b32.xlu0 %v4188, 64
        %v4701 = vpop.permute.xlu0 %4700
        %v4704 = vsel %vm869, %v4545, 0
        %4706 = vmatprep.subr.mxu0 0.0
        %4707 = vmatpush1.msra.mxu0 0.0
        %4708 = vmatprep.subr.mxu0 0.0
        %4709 = vmatpush1.msra.mxu0 0.0
        %4710 = vmatprep.subr.mxu0 0.0
        %4711 = vmatpush1.msra.mxu0 0.0
        %4712 = vmatprep.subr.mxu0 0.0
        %4713 = vmatpush1.msra.mxu0 0.0
        %4714 = vmatprep.subr.mxu0 0.0
        %4715 = vmatpush1.msra.mxu0 0.0
        %4716 = vmatprep.subr.mxu0 0.0
        %4717 = vmatpush1.msra.mxu0 0.0
        %4718 = vmatprep.subr.mxu0 0.0
        %4719 = vmatpush1.msra.mxu0 0.0
        %4720 = vmatprep.subr.mxu0 0.0
        %4721 = vmatpush1.msra.mxu0 0.0
        %4722 = vmatprep.subr.mxu0 0.0
        %4723 = vmatpush1.msra.mxu0 0.0
        %4724 = vmatprep.subr.mxu0 0.0
        %4725 = vmatpush1.msra.mxu0 0.0
        %4726 = vmatprep.subr.mxu0 0.0
        %4727 = vmatpush1.msra.mxu0 0.0
        %4728 = vmatprep.subr.mxu0 0.0
        %4729 = vmatpush1.msra.mxu0 0.0
        %4730 = vmatprep.subr.mxu0 0.0
        %4731 = vmatpush1.msra.mxu0 0.0
        %4732 = vmatprep.subr.mxu0 0.0
        %4733 = vmatpush1.msra.mxu0 0.0
        %4734 = vmatprep.subr.mxu0 0.0
        %4735 = vmatpush1.msra.mxu0 0.0
        %4736 = vmatprep.subr.mxu0 0.0
        %4737 = vmatpush1.msra.mxu0 %v4701
        %4738 = vmatprep.subr.mxu0 0.0
        %4739 = vmatpush2.msra.mxu0 0.0
        %4740 = vmatprep.subr.mxu0 0.0
        %4741 = vmatpush2.msra.mxu0 0.0
        %4742 = vmatprep.subr.mxu0 0.0
        %4743 = vmatpush2.msra.mxu0 0.0
        %4744 = vmatprep.subr.mxu0 0.0
        %4745 = vmatpush2.msra.mxu0 0.0
        %4746 = vmatprep.subr.mxu0 0.0
        %4747 = vmatpush2.msra.mxu0 0.0
        %4748 = vmatprep.subr.mxu0 0.0
        %4749 = vmatpush2.msra.mxu0 0.0
        %4750 = vmatprep.subr.mxu0 0.0
        %4751 = vmatpush2.msra.mxu0 0.0
        %4752 = vmatprep.subr.mxu0 0.0
        %4753 = vmatpush2.msra.mxu0 0.0
        %4754 = vmatprep.subr.mxu0 0.0
        %4755 = vmatpush2.msra.mxu0 0.0
        %4756 = vmatprep.subr.mxu0 0.0
        %4757 = vmatpush2.msra.mxu0 0.0
        %4758 = vmatprep.subr.mxu0 0.0
        %4759 = vmatpush2.msra.mxu0 0.0
        %4760 = vmatprep.subr.mxu0 0.0
        %4761 = vmatpush2.msra.mxu0 0.0
        %4762 = vmatprep.subr.mxu0 0.0
        %4763 = vmatpush2.msra.mxu0 0.0
        %4764 = vmatprep.subr.mxu0 0.0
        %4765 = vmatpush2.msra.mxu0 0.0
        %4766 = vmatprep.subr.mxu0 0.0
        %4767 = vmatpush2.msra.mxu0 0.0
        %4768 = vmatprep.subr.mxu0 0.0
        %4769 = vmatpush2.msra.mxu0 0.0
        %4770 = vmatprep.mubr.f32.mxu0 0.0
        %4771 = vmatmul.mubr.f32.gmra.mxu0 %v4704
        %v4772 = vpop.f32.mrf.mxu0
        %v4773 = vadd.f32 0.0, %v4772
        %v4774 = vpop.f32.mrf.mxu0
        %4775 = vdwg.mxu0
        %4776 = vrot.lane.b32.xlu0 %v4193, 64
        %v4777 = vpop.permute.xlu0 %4776
        %v4780 = vsel %vm869, %v4547, 0
        %4782 = vmatprep.subr.mxu0 0.0
        %4783 = vmatpush1.msra.mxu0 0.0
        %4784 = vmatprep.subr.mxu0 0.0
        %4785 = vmatpush1.msra.mxu0 0.0
        %4786 = vmatprep.subr.mxu0 0.0
        %4787 = vmatpush1.msra.mxu0 0.0
        %4788 = vmatprep.subr.mxu0 0.0
        %4789 = vmatpush1.msra.mxu0 0.0
        %4790 = vmatprep.subr.mxu0 0.0
        %4791 = vmatpush1.msra.mxu0 0.0
        %4792 = vmatprep.subr.mxu0 0.0
        %4793 = vmatpush1.msra.mxu0 0.0
        %4794 = vmatprep.subr.mxu0 0.0
        %4795 = vmatpush1.msra.mxu0 0.0
        %4796 = vmatprep.subr.mxu0 0.0
        %4797 = vmatpush1.msra.mxu0 0.0
        %4798 = vmatprep.subr.mxu0 0.0
        %4799 = vmatpush1.msra.mxu0 0.0
        %4800 = vmatprep.subr.mxu0 0.0
        %4801 = vmatpush1.msra.mxu0 0.0
        %4802 = vmatprep.subr.mxu0 0.0
        %4803 = vmatpush1.msra.mxu0 0.0
        %4804 = vmatprep.subr.mxu0 0.0
        %4805 = vmatpush1.msra.mxu0 0.0
        %4806 = vmatprep.subr.mxu0 0.0
        %4807 = vmatpush1.msra.mxu0 0.0
        %4808 = vmatprep.subr.mxu0 0.0
        %4809 = vmatpush1.msra.mxu0 0.0
        %4810 = vmatprep.subr.mxu0 0.0
        %4811 = vmatpush1.msra.mxu0 0.0
        %4812 = vmatprep.subr.mxu0 0.0
        %4813 = vmatpush1.msra.mxu0 %v4777
        %4814 = vmatprep.subr.mxu0 0.0
        %4815 = vmatpush2.msra.mxu0 0.0
        %4816 = vmatprep.subr.mxu0 0.0
        %4817 = vmatpush2.msra.mxu0 0.0
        %4818 = vmatprep.subr.mxu0 0.0
        %4819 = vmatpush2.msra.mxu0 0.0
        %4820 = vmatprep.subr.mxu0 0.0
        %4821 = vmatpush2.msra.mxu0 0.0
        %4822 = vmatprep.subr.mxu0 0.0
        %4823 = vmatpush2.msra.mxu0 0.0
        %4824 = vmatprep.subr.mxu0 0.0
        %4825 = vmatpush2.msra.mxu0 0.0
        %4826 = vmatprep.subr.mxu0 0.0
        %4827 = vmatpush2.msra.mxu0 0.0
        %4828 = vmatprep.subr.mxu0 0.0
        %4829 = vmatpush2.msra.mxu0 0.0
        %4830 = vmatprep.subr.mxu0 0.0
        %4831 = vmatpush2.msra.mxu0 0.0
        %4832 = vmatprep.subr.mxu0 0.0
        %4833 = vmatpush2.msra.mxu0 0.0
        %4834 = vmatprep.subr.mxu0 0.0
        %4835 = vmatpush2.msra.mxu0 0.0
        %4836 = vmatprep.subr.mxu0 0.0
        %4837 = vmatpush2.msra.mxu0 0.0
        %4838 = vmatprep.subr.mxu0 0.0
        %4839 = vmatpush2.msra.mxu0 0.0
        %4840 = vmatprep.subr.mxu0 0.0
        %4841 = vmatpush2.msra.mxu0 0.0
        %4842 = vmatprep.subr.mxu0 0.0
        %4843 = vmatpush2.msra.mxu0 0.0
        %4844 = vmatprep.subr.mxu0 0.0
        %4845 = vmatpush2.msra.mxu0 0.0
        %4846 = vmatprep.mubr.f32.mxu0 0.0
        %4847 = vmatmul.mubr.f32.gmra.mxu0 %v4780
        %v4848 = vpop.f32.mrf.mxu0
        %v4849 = vadd.f32 0.0, %v4848
        %v4850 = vpop.f32.mrf.mxu0
        %4851 = vdwg.mxu0
        %4852 = vrot.lane.b32.xlu0 %v4178, 120
        %v4853 = vpop.permute.xlu0 %4852
        %4854 = vrot.lane.b32.xlu0 %v4178, 88
        %v4855 = vpop.permute.xlu0 %4854
        %v4856 = vsel %vm869, %v4853, 0
        %v4858 = vsel %vm869, %v4855, 0
        %4860 = vmatprep.subr.mxu0 0.0
        %4861 = vmatpush1.xpose.msra.mxu0 0.0
        %4862 = vmatprep.subr.mxu0 0.0
        %4863 = vmatpush1.xpose.msra.mxu0 0.0
        %4864 = vmatprep.subr.mxu0 0.0
        %4865 = vmatpush1.xpose.msra.mxu0 0.0
        %4866 = vmatprep.subr.mxu0 0.0
        %4867 = vmatpush1.xpose.msra.mxu0 0.0
        %4868 = vmatprep.subr.mxu0 0.0
        %4869 = vmatpush1.xpose.msra.mxu0 0.0
        %4870 = vmatprep.subr.mxu0 0.0
        %4871 = vmatpush1.xpose.msra.mxu0 0.0
        %4872 = vmatprep.subr.mxu0 0.0
        %4873 = vmatpush1.xpose.msra.mxu0 0.0
        %4874 = vmatprep.subr.mxu0 0.0
        %4875 = vmatpush1.xpose.msra.mxu0 0.0
        %4876 = vmatprep.subr.mxu0 0.0
        %4877 = vmatpush1.xpose.msra.mxu0 0.0
        %4878 = vmatprep.subr.mxu0 0.0
        %4879 = vmatpush1.xpose.msra.mxu0 0.0
        %4880 = vmatprep.subr.mxu0 0.0
        %4881 = vmatpush1.xpose.msra.mxu0 0.0
        %4882 = vmatprep.subr.mxu0 0.0
        %4883 = vmatpush1.xpose.msra.mxu0 0.0
        %4884 = vmatprep.subr.mxu0 0.0
        %4885 = vmatpush1.xpose.msra.mxu0 0.0
        %4886 = vmatprep.subr.mxu0 0.0
        %4887 = vmatpush1.xpose.msra.mxu0 0.0
        %4888 = vmatprep.subr.mxu0 0.0
        %4889 = vmatpush1.xpose.msra.mxu0 0.0
        %4890 = vmatprep.subr.mxu0 0.0
        %4891 = vmatpush1.xpose.msra.mxu0 %v4858
        %4892 = vmatprep.subr.mxu0 0.0
        %4893 = vmatpush2.xpose.msra.mxu0 0.0
        %4894 = vmatprep.subr.mxu0 0.0
        %4895 = vmatpush2.xpose.msra.mxu0 0.0
        %4896 = vmatprep.subr.mxu0 0.0
        %4897 = vmatpush2.xpose.msra.mxu0 0.0
        %4898 = vmatprep.subr.mxu0 0.0
        %4899 = vmatpush2.xpose.msra.mxu0 0.0
        %4900 = vmatprep.subr.mxu0 0.0
        %4901 = vmatpush2.xpose.msra.mxu0 0.0
        %4902 = vmatprep.subr.mxu0 0.0
        %4903 = vmatpush2.xpose.msra.mxu0 0.0
        %4904 = vmatprep.subr.mxu0 0.0
        %4905 = vmatpush2.xpose.msra.mxu0 0.0
        %4906 = vmatprep.subr.mxu0 0.0
        %4907 = vmatpush2.xpose.msra.mxu0 0.0
        %4908 = vmatprep.subr.mxu0 0.0
        %4909 = vmatpush2.xpose.msra.mxu0 0.0
        %4910 = vmatprep.subr.mxu0 0.0
        %4911 = vmatpush2.xpose.msra.mxu0 0.0
        %4912 = vmatprep.subr.mxu0 0.0
        %4913 = vmatpush2.xpose.msra.mxu0 0.0
        %4914 = vmatprep.subr.mxu0 0.0
        %4915 = vmatpush2.xpose.msra.mxu0 0.0
        %4916 = vmatprep.subr.mxu0 0.0
        %4917 = vmatpush2.xpose.msra.mxu0 0.0
        %4918 = vmatprep.subr.mxu0 0.0
        %4919 = vmatpush2.xpose.msra.mxu0 0.0
        %4920 = vmatprep.subr.mxu0 0.0
        %4921 = vmatpush2.xpose.msra.mxu0 0.0
        %4922 = vmatprep.subr.mxu0 0.0
        %4923 = vmatpush2.xpose.msra.mxu0 0.0
        %4924 = vmatprep.mubr.f32.mxu0 0.0
        %4925 = vmatmul.mubr.f32.gmra.mxu0 %v4856
        %v4926 = vpop.f32.mrf.mxu0
        %v4927 = vadd.f32 %v849, %v4926
        %v4928 = vpop.f32.mrf.mxu0
        %4929 = vdwg.mxu0
        %4930 = vrot.lane.b32.xlu0 %v4183, 120
        %v4931 = vpop.permute.xlu0 %4930
        %4932 = vrot.lane.b32.xlu0 %v4183, 88
        %v4933 = vpop.permute.xlu0 %4932
        %v4934 = vsel %vm869, %v4931, 0
        %v4936 = vsel %vm869, %v4933, 0
        %4938 = vmatprep.subr.mxu0 0.0
        %4939 = vmatpush1.xpose.msra.mxu0 0.0
        %4940 = vmatprep.subr.mxu0 0.0
        %4941 = vmatpush1.xpose.msra.mxu0 0.0
        %4942 = vmatprep.subr.mxu0 0.0
        %4943 = vmatpush1.xpose.msra.mxu0 0.0
        %4944 = vmatprep.subr.mxu0 0.0
        %4945 = vmatpush1.xpose.msra.mxu0 0.0
        %4946 = vmatprep.subr.mxu0 0.0
        %4947 = vmatpush1.xpose.msra.mxu0 0.0
        %4948 = vmatprep.subr.mxu0 0.0
        %4949 = vmatpush1.xpose.msra.mxu0 0.0
        %4950 = vmatprep.subr.mxu0 0.0
        %4951 = vmatpush1.xpose.msra.mxu0 0.0
        %4952 = vmatprep.subr.mxu0 0.0
        %4953 = vmatpush1.xpose.msra.mxu0 0.0
        %4954 = vmatprep.subr.mxu0 0.0
        %4955 = vmatpush1.xpose.msra.mxu0 0.0
        %4956 = vmatprep.subr.mxu0 0.0
        %4957 = vmatpush1.xpose.msra.mxu0 0.0
        %4958 = vmatprep.subr.mxu0 0.0
        %4959 = vmatpush1.xpose.msra.mxu0 0.0
        %4960 = vmatprep.subr.mxu0 0.0
        %4961 = vmatpush1.xpose.msra.mxu0 0.0
        %4962 = vmatprep.subr.mxu0 0.0
        %4963 = vmatpush1.xpose.msra.mxu0 0.0
        %4964 = vmatprep.subr.mxu0 0.0
        %4965 = vmatpush1.xpose.msra.mxu0 0.0
        %4966 = vmatprep.subr.mxu0 0.0
        %4967 = vmatpush1.xpose.msra.mxu0 0.0
        %4968 = vmatprep.subr.mxu0 0.0
        %4969 = vmatpush1.xpose.msra.mxu0 %v4936
        %4970 = vmatprep.subr.mxu0 0.0
        %4971 = vmatpush2.xpose.msra.mxu0 0.0
        %4972 = vmatprep.subr.mxu0 0.0
        %4973 = vmatpush2.xpose.msra.mxu0 0.0
        %4974 = vmatprep.subr.mxu0 0.0
        %4975 = vmatpush2.xpose.msra.mxu0 0.0
        %4976 = vmatprep.subr.mxu0 0.0
        %4977 = vmatpush2.xpose.msra.mxu0 0.0
        %4978 = vmatprep.subr.mxu0 0.0
        %4979 = vmatpush2.xpose.msra.mxu0 0.0
        %4980 = vmatprep.subr.mxu0 0.0
        %4981 = vmatpush2.xpose.msra.mxu0 0.0
        %4982 = vmatprep.subr.mxu0 0.0
        %4983 = vmatpush2.xpose.msra.mxu0 0.0
        %4984 = vmatprep.subr.mxu0 0.0
        %4985 = vmatpush2.xpose.msra.mxu0 0.0
        %4986 = vmatprep.subr.mxu0 0.0
        %4987 = vmatpush2.xpose.msra.mxu0 0.0
        %4988 = vmatprep.subr.mxu0 0.0
        %4989 = vmatpush2.xpose.msra.mxu0 0.0
        %4990 = vmatprep.subr.mxu0 0.0
        %4991 = vmatpush2.xpose.msra.mxu0 0.0
        %4992 = vmatprep.subr.mxu0 0.0
        %4993 = vmatpush2.xpose.msra.mxu0 0.0
        %4994 = vmatprep.subr.mxu0 0.0
        %4995 = vmatpush2.xpose.msra.mxu0 0.0
        %4996 = vmatprep.subr.mxu0 0.0
        %4997 = vmatpush2.xpose.msra.mxu0 0.0
        %4998 = vmatprep.subr.mxu0 0.0
        %4999 = vmatpush2.xpose.msra.mxu0 0.0
        %5000 = vmatprep.subr.mxu0 0.0
        %5001 = vmatpush2.xpose.msra.mxu0 0.0
        %5002 = vmatprep.mubr.f32.mxu0 0.0
        %5003 = vmatmul.mubr.f32.gmra.mxu0 %v4934
        %v5004 = vpop.f32.mrf.mxu0
        %v5005 = vadd.f32 %v853, %v5004
        %v5006 = vpop.f32.mrf.mxu0
        %5007 = vdwg.mxu0
        %5008 = vrot.lane.b32.xlu0 %v4188, 120
        %v5009 = vpop.permute.xlu0 %5008
        %5010 = vrot.lane.b32.xlu0 %v4188, 88
        %v5011 = vpop.permute.xlu0 %5010
        %v5012 = vsel %vm869, %v5009, 0
        %v5014 = vsel %vm869, %v5011, 0
        %5016 = vmatprep.subr.mxu0 0.0
        %5017 = vmatpush1.xpose.msra.mxu0 0.0
        %5018 = vmatprep.subr.mxu0 0.0
        %5019 = vmatpush1.xpose.msra.mxu0 0.0
        %5020 = vmatprep.subr.mxu0 0.0
        %5021 = vmatpush1.xpose.msra.mxu0 0.0
        %5022 = vmatprep.subr.mxu0 0.0
        %5023 = vmatpush1.xpose.msra.mxu0 0.0
        %5024 = vmatprep.subr.mxu0 0.0
        %5025 = vmatpush1.xpose.msra.mxu0 0.0
        %5026 = vmatprep.subr.mxu0 0.0
        %5027 = vmatpush1.xpose.msra.mxu0 0.0
        %5028 = vmatprep.subr.mxu0 0.0
        %5029 = vmatpush1.xpose.msra.mxu0 0.0
        %5030 = vmatprep.subr.mxu0 0.0
        %5031 = vmatpush1.xpose.msra.mxu0 0.0
        %5032 = vmatprep.subr.mxu0 0.0
        %5033 = vmatpush1.xpose.msra.mxu0 0.0
        %5034 = vmatprep.subr.mxu0 0.0
        %5035 = vmatpush1.xpose.msra.mxu0 0.0
        %5036 = vmatprep.subr.mxu0 0.0
        %5037 = vmatpush1.xpose.msra.mxu0 0.0
        %5038 = vmatprep.subr.mxu0 0.0
        %5039 = vmatpush1.xpose.msra.mxu0 0.0
        %5040 = vmatprep.subr.mxu0 0.0
        %5041 = vmatpush1.xpose.msra.mxu0 0.0
        %5042 = vmatprep.subr.mxu0 0.0
        %5043 = vmatpush1.xpose.msra.mxu0 0.0
        %5044 = vmatprep.subr.mxu0 0.0
        %5045 = vmatpush1.xpose.msra.mxu0 0.0
        %5046 = vmatprep.subr.mxu0 0.0
        %5047 = vmatpush1.xpose.msra.mxu0 %v5014
        %5048 = vmatprep.subr.mxu0 0.0
        %5049 = vmatpush2.xpose.msra.mxu0 0.0
        %5050 = vmatprep.subr.mxu0 0.0
        %5051 = vmatpush2.xpose.msra.mxu0 0.0
        %5052 = vmatprep.subr.mxu0 0.0
        %5053 = vmatpush2.xpose.msra.mxu0 0.0
        %5054 = vmatprep.subr.mxu0 0.0
        %5055 = vmatpush2.xpose.msra.mxu0 0.0
        %5056 = vmatprep.subr.mxu0 0.0
        %5057 = vmatpush2.xpose.msra.mxu0 0.0
        %5058 = vmatprep.subr.mxu0 0.0
        %5059 = vmatpush2.xpose.msra.mxu0 0.0
        %5060 = vmatprep.subr.mxu0 0.0
        %5061 = vmatpush2.xpose.msra.mxu0 0.0
        %5062 = vmatprep.subr.mxu0 0.0
        %5063 = vmatpush2.xpose.msra.mxu0 0.0
        %5064 = vmatprep.subr.mxu0 0.0
        %5065 = vmatpush2.xpose.msra.mxu0 0.0
        %5066 = vmatprep.subr.mxu0 0.0
        %5067 = vmatpush2.xpose.msra.mxu0 0.0
        %5068 = vmatprep.subr.mxu0 0.0
        %5069 = vmatpush2.xpose.msra.mxu0 0.0
        %5070 = vmatprep.subr.mxu0 0.0
        %5071 = vmatpush2.xpose.msra.mxu0 0.0
        %5072 = vmatprep.subr.mxu0 0.0
        %5073 = vmatpush2.xpose.msra.mxu0 0.0
        %5074 = vmatprep.subr.mxu0 0.0
        %5075 = vmatpush2.xpose.msra.mxu0 0.0
        %5076 = vmatprep.subr.mxu0 0.0
        %5077 = vmatpush2.xpose.msra.mxu0 0.0
        %5078 = vmatprep.subr.mxu0 0.0
        %5079 = vmatpush2.xpose.msra.mxu0 0.0
        %5080 = vmatprep.mubr.f32.mxu0 0.0
        %5081 = vmatmul.mubr.f32.gmra.mxu0 %v5012
        %v5082 = vpop.f32.mrf.mxu0
        %v5083 = vadd.f32 %v857, %v5082
        %v5084 = vpop.f32.mrf.mxu0
        %5085 = vdwg.mxu0
        %5086 = vrot.lane.b32.xlu0 %v4193, 120
        %v5087 = vpop.permute.xlu0 %5086
        %5088 = vrot.lane.b32.xlu0 %v4193, 88
        %v5089 = vpop.permute.xlu0 %5088
        %v5090 = vsel %vm869, %v5087, 0
        %v5092 = vsel %vm869, %v5089, 0
        %5094 = vmatprep.subr.mxu0 0.0
        %5095 = vmatpush1.xpose.msra.mxu0 0.0
        %5096 = vmatprep.subr.mxu0 0.0
        %5097 = vmatpush1.xpose.msra.mxu0 0.0
        %5098 = vmatprep.subr.mxu0 0.0
        %5099 = vmatpush1.xpose.msra.mxu0 0.0
        %5100 = vmatprep.subr.mxu0 0.0
        %5101 = vmatpush1.xpose.msra.mxu0 0.0
        %5102 = vmatprep.subr.mxu0 0.0
        %5103 = vmatpush1.xpose.msra.mxu0 0.0
        %5104 = vmatprep.subr.mxu0 0.0
        %5105 = vmatpush1.xpose.msra.mxu0 0.0
        %5106 = vmatprep.subr.mxu0 0.0
        %5107 = vmatpush1.xpose.msra.mxu0 0.0
        %5108 = vmatprep.subr.mxu0 0.0
        %5109 = vmatpush1.xpose.msra.mxu0 0.0
        %5110 = vmatprep.subr.mxu0 0.0
        %5111 = vmatpush1.xpose.msra.mxu0 0.0
        %5112 = vmatprep.subr.mxu0 0.0
        %5113 = vmatpush1.xpose.msra.mxu0 0.0
        %5114 = vmatprep.subr.mxu0 0.0
        %5115 = vmatpush1.xpose.msra.mxu0 0.0
        %5116 = vmatprep.subr.mxu0 0.0
        %5117 = vmatpush1.xpose.msra.mxu0 0.0
        %5118 = vmatprep.subr.mxu0 0.0
        %5119 = vmatpush1.xpose.msra.mxu0 0.0
        %5120 = vmatprep.subr.mxu0 0.0
        %5121 = vmatpush1.xpose.msra.mxu0 0.0
        %5122 = vmatprep.subr.mxu0 0.0
        %5123 = vmatpush1.xpose.msra.mxu0 0.0
        %5124 = vmatprep.subr.mxu0 0.0
        %5125 = vmatpush1.xpose.msra.mxu0 %v5092
        %5126 = vmatprep.subr.mxu0 0.0
        %5127 = vmatpush2.xpose.msra.mxu0 0.0
        %5128 = vmatprep.subr.mxu0 0.0
        %5129 = vmatpush2.xpose.msra.mxu0 0.0
        %5130 = vmatprep.subr.mxu0 0.0
        %5131 = vmatpush2.xpose.msra.mxu0 0.0
        %5132 = vmatprep.subr.mxu0 0.0
        %5133 = vmatpush2.xpose.msra.mxu0 0.0
        %5134 = vmatprep.subr.mxu0 0.0
        %5135 = vmatpush2.xpose.msra.mxu0 0.0
        %5136 = vmatprep.subr.mxu0 0.0
        %5137 = vmatpush2.xpose.msra.mxu0 0.0
        %5138 = vmatprep.subr.mxu0 0.0
        %5139 = vmatpush2.xpose.msra.mxu0 0.0
        %5140 = vmatprep.subr.mxu0 0.0
        %5141 = vmatpush2.xpose.msra.mxu0 0.0
        %5142 = vmatprep.subr.mxu0 0.0
        %5143 = vmatpush2.xpose.msra.mxu0 0.0
        %5144 = vmatprep.subr.mxu0 0.0
        %5145 = vmatpush2.xpose.msra.mxu0 0.0
        %5146 = vmatprep.subr.mxu0 0.0
        %5147 = vmatpush2.xpose.msra.mxu0 0.0
        %5148 = vmatprep.subr.mxu0 0.0
        %5149 = vmatpush2.xpose.msra.mxu0 0.0
        %5150 = vmatprep.subr.mxu0 0.0
        %5151 = vmatpush2.xpose.msra.mxu0 0.0
        %5152 = vmatprep.subr.mxu0 0.0
        %5153 = vmatpush2.xpose.msra.mxu0 0.0
        %5154 = vmatprep.subr.mxu0 0.0
        %5155 = vmatpush2.xpose.msra.mxu0 0.0
        %5156 = vmatprep.subr.mxu0 0.0
        %5157 = vmatpush2.xpose.msra.mxu0 0.0
        %5158 = vmatprep.mubr.f32.mxu0 0.0
        %5159 = vmatmul.mubr.f32.gmra.mxu0 %v5090
        %v5160 = vpop.f32.mrf.mxu0
        %v5161 = vadd.f32 %v861, %v5160
        %v5162 = vpop.f32.mrf.mxu0
        %5163 = vdwg.mxu0
        %v5164 = vsel %vm869, %v4927, -inf
        %5165 = vmax.xlane.f32.xlu0 %v5164
        %v5166 = vpop.xlane.xlu0 %5165
        %v5167 = vsel %vm869, %v5005, -inf
        %5168 = vmax.xlane.f32.xlu0 %v5167
        %v5169 = vpop.xlane.xlu0 %5168
        %v5170 = vsel %vm869, %v5083, -inf
        %5171 = vmax.xlane.f32.xlu0 %v5170
        %v5172 = vpop.xlane.xlu0 %5171
        %v5173 = vsel %vm869, %v5161, -inf
        %5174 = vmax.xlane.f32.xlu0 %v5173
        %v5175 = vpop.xlane.xlu0 %5174
        %v5176 = vsub.f32 %v4927, %v5166
        %v5177 = vsub.f32 %v5005, %v5169
        %v5178 = vsub.f32 %v5083, %v5172
        %v5179 = vsub.f32 %v5161, %v5175
        %v5180 = vmul.f32 %v5176, 1.442695
        %v5181 = vpow.pop %v5180
        %v5182 = vmul.f32 %v5177, 1.442695
        %v5183 = vpow.pop %v5182
        %v5184 = vmul.f32 %v5178, 1.442695
        %v5185 = vpow.pop %v5184
        %v5186 = vmul.f32 %v5179, 1.442695
        %v5187 = vpow.pop %v5186
        %v5188 = vsel %vm869, %v5181, 0.0
        %5189 = vadd.xlane.f32.xlu0 %v5188
        %v5190 = vpop.xlane.xlu0 %5189
        %v5191 = vsel %vm869, %v5183, 0.0
        %5192 = vadd.xlane.f32.xlu0 %v5191
        %v5193 = vpop.xlane.xlu0 %5192
        %v5194 = vsel %vm869, %v5185, 0.0
        %5195 = vadd.xlane.f32.xlu0 %v5194
        %v5196 = vpop.xlane.xlu0 %5195
        %v5197 = vsel %vm869, %v5187, 0.0
        %5198 = vadd.xlane.f32.xlu0 %v5197
        %v5199 = vpop.xlane.xlu0 %5198
        %v5200 = vrcp.pop %v5190
        %v5201 = vmul.f32 %v5181, %v5200
        %v5202 = vrcp.pop %v5193
        %v5203 = vmul.f32 %v5183, %v5202
        %v5204 = vrcp.pop %v5196
        %v5205 = vmul.f32 %v5185, %v5204
        %v5206 = vrcp.pop %v5199
        %v5207 = vmul.f32 %v5187, %v5206
        %5208 = vrot.lane.b32.xlu0 %v4178, 56
        %v5209 = vpop.permute.xlu0 %5208
        %v5212 = vsel %vm869, %v5201, 0
        %5214 = vmatprep.subr.mxu0 0.0
        %5215 = vmatpush1.msra.mxu0 0.0
        %5216 = vmatprep.subr.mxu0 0.0
        %5217 = vmatpush1.msra.mxu0 0.0
        %5218 = vmatprep.subr.mxu0 0.0
        %5219 = vmatpush1.msra.mxu0 0.0
        %5220 = vmatprep.subr.mxu0 0.0
        %5221 = vmatpush1.msra.mxu0 0.0
        %5222 = vmatprep.subr.mxu0 0.0
        %5223 = vmatpush1.msra.mxu0 0.0
        %5224 = vmatprep.subr.mxu0 0.0
        %5225 = vmatpush1.msra.mxu0 0.0
        %5226 = vmatprep.subr.mxu0 0.0
        %5227 = vmatpush1.msra.mxu0 0.0
        %5228 = vmatprep.subr.mxu0 0.0
        %5229 = vmatpush1.msra.mxu0 0.0
        %5230 = vmatprep.subr.mxu0 0.0
        %5231 = vmatpush1.msra.mxu0 0.0
        %5232 = vmatprep.subr.mxu0 0.0
        %5233 = vmatpush1.msra.mxu0 0.0
        %5234 = vmatprep.subr.mxu0 0.0
        %5235 = vmatpush1.msra.mxu0 0.0
        %5236 = vmatprep.subr.mxu0 0.0
        %5237 = vmatpush1.msra.mxu0 0.0
        %5238 = vmatprep.subr.mxu0 0.0
        %5239 = vmatpush1.msra.mxu0 0.0
        %5240 = vmatprep.subr.mxu0 0.0
        %5241 = vmatpush1.msra.mxu0 0.0
        %5242 = vmatprep.subr.mxu0 0.0
        %5243 = vmatpush1.msra.mxu0 0.0
        %5244 = vmatprep.subr.mxu0 0.0
        %5245 = vmatpush1.msra.mxu0 %v5209
        %5246 = vmatprep.subr.mxu0 0.0
        %5247 = vmatpush2.msra.mxu0 0.0
        %5248 = vmatprep.subr.mxu0 0.0
        %5249 = vmatpush2.msra.mxu0 0.0
        %5250 = vmatprep.subr.mxu0 0.0
        %5251 = vmatpush2.msra.mxu0 0.0
        %5252 = vmatprep.subr.mxu0 0.0
        %5253 = vmatpush2.msra.mxu0 0.0
        %5254 = vmatprep.subr.mxu0 0.0
        %5255 = vmatpush2.msra.mxu0 0.0
        %5256 = vmatprep.subr.mxu0 0.0
        %5257 = vmatpush2.msra.mxu0 0.0
        %5258 = vmatprep.subr.mxu0 0.0
        %5259 = vmatpush2.msra.mxu0 0.0
        %5260 = vmatprep.subr.mxu0 0.0
        %5261 = vmatpush2.msra.mxu0 0.0
        %5262 = vmatprep.subr.mxu0 0.0
        %5263 = vmatpush2.msra.mxu0 0.0
        %5264 = vmatprep.subr.mxu0 0.0
        %5265 = vmatpush2.msra.mxu0 0.0
        %5266 = vmatprep.subr.mxu0 0.0
        %5267 = vmatpush2.msra.mxu0 0.0
        %5268 = vmatprep.subr.mxu0 0.0
        %5269 = vmatpush2.msra.mxu0 0.0
        %5270 = vmatprep.subr.mxu0 0.0
        %5271 = vmatpush2.msra.mxu0 0.0
        %5272 = vmatprep.subr.mxu0 0.0
        %5273 = vmatpush2.msra.mxu0 0.0
        %5274 = vmatprep.subr.mxu0 0.0
        %5275 = vmatpush2.msra.mxu0 0.0
        %5276 = vmatprep.subr.mxu0 0.0
        %5277 = vmatpush2.msra.mxu0 0.0
        %5278 = vmatprep.mubr.f32.mxu0 0.0
        %5279 = vmatmul.mubr.f32.gmra.mxu0 %v5212
        %v5280 = vpop.f32.mrf.mxu0
        %v5281 = vadd.f32 0.0, %v5280
        %v5282 = vpop.f32.mrf.mxu0
        %5283 = vdwg.mxu0
        %5284 = vrot.lane.b32.xlu0 %v4183, 56
        %v5285 = vpop.permute.xlu0 %5284
        %v5288 = vsel %vm869, %v5203, 0
        %5290 = vmatprep.subr.mxu0 0.0
        %5291 = vmatpush1.msra.mxu0 0.0
        %5292 = vmatprep.subr.mxu0 0.0
        %5293 = vmatpush1.msra.mxu0 0.0
        %5294 = vmatprep.subr.mxu0 0.0
        %5295 = vmatpush1.msra.mxu0 0.0
        %5296 = vmatprep.subr.mxu0 0.0
        %5297 = vmatpush1.msra.mxu0 0.0
        %5298 = vmatprep.subr.mxu0 0.0
        %5299 = vmatpush1.msra.mxu0 0.0
        %5300 = vmatprep.subr.mxu0 0.0
        %5301 = vmatpush1.msra.mxu0 0.0
        %5302 = vmatprep.subr.mxu0 0.0
        %5303 = vmatpush1.msra.mxu0 0.0
        %5304 = vmatprep.subr.mxu0 0.0
        %5305 = vmatpush1.msra.mxu0 0.0
        %5306 = vmatprep.subr.mxu0 0.0
        %5307 = vmatpush1.msra.mxu0 0.0
        %5308 = vmatprep.subr.mxu0 0.0
        %5309 = vmatpush1.msra.mxu0 0.0
        %5310 = vmatprep.subr.mxu0 0.0
        %5311 = vmatpush1.msra.mxu0 0.0
        %5312 = vmatprep.subr.mxu0 0.0
        %5313 = vmatpush1.msra.mxu0 0.0
        %5314 = vmatprep.subr.mxu0 0.0
        %5315 = vmatpush1.msra.mxu0 0.0
        %5316 = vmatprep.subr.mxu0 0.0
        %5317 = vmatpush1.msra.mxu0 0.0
        %5318 = vmatprep.subr.mxu0 0.0
        %5319 = vmatpush1.msra.mxu0 0.0
        %5320 = vmatprep.subr.mxu0 0.0
        %5321 = vmatpush1.msra.mxu0 %v5285
        %5322 = vmatprep.subr.mxu0 0.0
        %5323 = vmatpush2.msra.mxu0 0.0
        %5324 = vmatprep.subr.mxu0 0.0
        %5325 = vmatpush2.msra.mxu0 0.0
        %5326 = vmatprep.subr.mxu0 0.0
        %5327 = vmatpush2.msra.mxu0 0.0
        %5328 = vmatprep.subr.mxu0 0.0
        %5329 = vmatpush2.msra.mxu0 0.0
        %5330 = vmatprep.subr.mxu0 0.0
        %5331 = vmatpush2.msra.mxu0 0.0
        %5332 = vmatprep.subr.mxu0 0.0
        %5333 = vmatpush2.msra.mxu0 0.0
        %5334 = vmatprep.subr.mxu0 0.0
        %5335 = vmatpush2.msra.mxu0 0.0
        %5336 = vmatprep.subr.mxu0 0.0
        %5337 = vmatpush2.msra.mxu0 0.0
        %5338 = vmatprep.subr.mxu0 0.0
        %5339 = vmatpush2.msra.mxu0 0.0
        %5340 = vmatprep.subr.mxu0 0.0
        %5341 = vmatpush2.msra.mxu0 0.0
        %5342 = vmatprep.subr.mxu0 0.0
        %5343 = vmatpush2.msra.mxu0 0.0
        %5344 = vmatprep.subr.mxu0 0.0
        %5345 = vmatpush2.msra.mxu0 0.0
        %5346 = vmatprep.subr.mxu0 0.0
        %5347 = vmatpush2.msra.mxu0 0.0
        %5348 = vmatprep.subr.mxu0 0.0
        %5349 = vmatpush2.msra.mxu0 0.0
        %5350 = vmatprep.subr.mxu0 0.0
        %5351 = vmatpush2.msra.mxu0 0.0
        %5352 = vmatprep.subr.mxu0 0.0
        %5353 = vmatpush2.msra.mxu0 0.0
        %5354 = vmatprep.mubr.f32.mxu0 0.0
        %5355 = vmatmul.mubr.f32.gmra.mxu0 %v5288
        %v5356 = vpop.f32.mrf.mxu0
        %v5357 = vadd.f32 0.0, %v5356
        %v5358 = vpop.f32.mrf.mxu0
        %5359 = vdwg.mxu0
        %5360 = vrot.lane.b32.xlu0 %v4188, 56
        %v5361 = vpop.permute.xlu0 %5360
        %v5364 = vsel %vm869, %v5205, 0
        %5366 = vmatprep.subr.mxu0 0.0
        %5367 = vmatpush1.msra.mxu0 0.0
        %5368 = vmatprep.subr.mxu0 0.0
        %5369 = vmatpush1.msra.mxu0 0.0
        %5370 = vmatprep.subr.mxu0 0.0
        %5371 = vmatpush1.msra.mxu0 0.0
        %5372 = vmatprep.subr.mxu0 0.0
        %5373 = vmatpush1.msra.mxu0 0.0
        %5374 = vmatprep.subr.mxu0 0.0
        %5375 = vmatpush1.msra.mxu0 0.0
        %5376 = vmatprep.subr.mxu0 0.0
        %5377 = vmatpush1.msra.mxu0 0.0
        %5378 = vmatprep.subr.mxu0 0.0
        %5379 = vmatpush1.msra.mxu0 0.0
        %5380 = vmatprep.subr.mxu0 0.0
        %5381 = vmatpush1.msra.mxu0 0.0
        %5382 = vmatprep.subr.mxu0 0.0
        %5383 = vmatpush1.msra.mxu0 0.0
        %5384 = vmatprep.subr.mxu0 0.0
        %5385 = vmatpush1.msra.mxu0 0.0
        %5386 = vmatprep.subr.mxu0 0.0
        %5387 = vmatpush1.msra.mxu0 0.0
        %5388 = vmatprep.subr.mxu0 0.0
        %5389 = vmatpush1.msra.mxu0 0.0
        %5390 = vmatprep.subr.mxu0 0.0
        %5391 = vmatpush1.msra.mxu0 0.0
        %5392 = vmatprep.subr.mxu0 0.0
        %5393 = vmatpush1.msra.mxu0 0.0
        %5394 = vmatprep.subr.mxu0 0.0
        %5395 = vmatpush1.msra.mxu0 0.0
        %5396 = vmatprep.subr.mxu0 0.0
        %5397 = vmatpush1.msra.mxu0 %v5361
        %5398 = vmatprep.subr.mxu0 0.0
        %5399 = vmatpush2.msra.mxu0 0.0
        %5400 = vmatprep.subr.mxu0 0.0
        %5401 = vmatpush2.msra.mxu0 0.0
        %5402 = vmatprep.subr.mxu0 0.0
        %5403 = vmatpush2.msra.mxu0 0.0
        %5404 = vmatprep.subr.mxu0 0.0
        %5405 = vmatpush2.msra.mxu0 0.0
        %5406 = vmatprep.subr.mxu0 0.0
        %5407 = vmatpush2.msra.mxu0 0.0
        %5408 = vmatprep.subr.mxu0 0.0
        %5409 = vmatpush2.msra.mxu0 0.0
        %5410 = vmatprep.subr.mxu0 0.0
        %5411 = vmatpush2.msra.mxu0 0.0
        %5412 = vmatprep.subr.mxu0 0.0
        %5413 = vmatpush2.msra.mxu0 0.0
        %5414 = vmatprep.subr.mxu0 0.0
        %5415 = vmatpush2.msra.mxu0 0.0
        %5416 = vmatprep.subr.mxu0 0.0
        %5417 = vmatpush2.msra.mxu0 0.0
        %5418 = vmatprep.subr.mxu0 0.0
        %5419 = vmatpush2.msra.mxu0 0.0
        %5420 = vmatprep.subr.mxu0 0.0
        %5421 = vmatpush2.msra.mxu0 0.0
        %5422 = vmatprep.subr.mxu0 0.0
        %5423 = vmatpush2.msra.mxu0 0.0
        %5424 = vmatprep.subr.mxu0 0.0
        %5425 = vmatpush2.msra.mxu0 0.0
        %5426 = vmatprep.subr.mxu0 0.0
        %5427 = vmatpush2.msra.mxu0 0.0
        %5428 = vmatprep.subr.mxu0 0.0
        %5429 = vmatpush2.msra.mxu0 0.0
        %5430 = vmatprep.mubr.f32.mxu0 0.0
        %5431 = vmatmul.mubr.f32.gmra.mxu0 %v5364
        %v5432 = vpop.f32.mrf.mxu0
        %v5433 = vadd.f32 0.0, %v5432
        %v5434 = vpop.f32.mrf.mxu0
        %5435 = vdwg.mxu0
        %5436 = vrot.lane.b32.xlu0 %v4193, 56
        %v5437 = vpop.permute.xlu0 %5436
        %v5440 = vsel %vm869, %v5207, 0
        %5442 = vmatprep.subr.mxu0 0.0
        %5443 = vmatpush1.msra.mxu0 0.0
        %5444 = vmatprep.subr.mxu0 0.0
        %5445 = vmatpush1.msra.mxu0 0.0
        %5446 = vmatprep.subr.mxu0 0.0
        %5447 = vmatpush1.msra.mxu0 0.0
        %5448 = vmatprep.subr.mxu0 0.0
        %5449 = vmatpush1.msra.mxu0 0.0
        %5450 = vmatprep.subr.mxu0 0.0
        %5451 = vmatpush1.msra.mxu0 0.0
        %5452 = vmatprep.subr.mxu0 0.0
        %5453 = vmatpush1.msra.mxu0 0.0
        %5454 = vmatprep.subr.mxu0 0.0
        %5455 = vmatpush1.msra.mxu0 0.0
        %5456 = vmatprep.subr.mxu0 0.0
        %5457 = vmatpush1.msra.mxu0 0.0
        %5458 = vmatprep.subr.mxu0 0.0
        %5459 = vmatpush1.msra.mxu0 0.0
        %5460 = vmatprep.subr.mxu0 0.0
        %5461 = vmatpush1.msra.mxu0 0.0
        %5462 = vmatprep.subr.mxu0 0.0
        %5463 = vmatpush1.msra.mxu0 0.0
        %5464 = vmatprep.subr.mxu0 0.0
        %5465 = vmatpush1.msra.mxu0 0.0
        %5466 = vmatprep.subr.mxu0 0.0
        %5467 = vmatpush1.msra.mxu0 0.0
        %5468 = vmatprep.subr.mxu0 0.0
        %5469 = vmatpush1.msra.mxu0 0.0
        %5470 = vmatprep.subr.mxu0 0.0
        %5471 = vmatpush1.msra.mxu0 0.0
        %5472 = vmatprep.subr.mxu0 0.0
        %5473 = vmatpush1.msra.mxu0 %v5437
        %5474 = vmatprep.subr.mxu0 0.0
        %5475 = vmatpush2.msra.mxu0 0.0
        %5476 = vmatprep.subr.mxu0 0.0
        %5477 = vmatpush2.msra.mxu0 0.0
        %5478 = vmatprep.subr.mxu0 0.0
        %5479 = vmatpush2.msra.mxu0 0.0
        %5480 = vmatprep.subr.mxu0 0.0
        %5481 = vmatpush2.msra.mxu0 0.0
        %5482 = vmatprep.subr.mxu0 0.0
        %5483 = vmatpush2.msra.mxu0 0.0
        %5484 = vmatprep.subr.mxu0 0.0
        %5485 = vmatpush2.msra.mxu0 0.0
        %5486 = vmatprep.subr.mxu0 0.0
        %5487 = vmatpush2.msra.mxu0 0.0
        %5488 = vmatprep.subr.mxu0 0.0
        %5489 = vmatpush2.msra.mxu0 0.0
        %5490 = vmatprep.subr.mxu0 0.0
        %5491 = vmatpush2.msra.mxu0 0.0
        %5492 = vmatprep.subr.mxu0 0.0
        %5493 = vmatpush2.msra.mxu0 0.0
        %5494 = vmatprep.subr.mxu0 0.0
        %5495 = vmatpush2.msra.mxu0 0.0
        %5496 = vmatprep.subr.mxu0 0.0
        %5497 = vmatpush2.msra.mxu0 0.0
        %5498 = vmatprep.subr.mxu0 0.0
        %5499 = vmatpush2.msra.mxu0 0.0
        %5500 = vmatprep.subr.mxu0 0.0
        %5501 = vmatpush2.msra.mxu0 0.0
        %5502 = vmatprep.subr.mxu0 0.0
        %5503 = vmatpush2.msra.mxu0 0.0
        %5504 = vmatprep.subr.mxu0 0.0
        %5505 = vmatpush2.msra.mxu0 0.0
        %5506 = vmatprep.mubr.f32.mxu0 0.0
        %5507 = vmatmul.mubr.f32.gmra.mxu0 %v5440
        %v5508 = vpop.f32.mrf.mxu0
        %v5509 = vadd.f32 0.0, %v5508
        %v5510 = vpop.f32.mrf.mxu0
        %5511 = vdwg.mxu0
        %5512 = vrot.lane.b32.xlu0 %v4178, 112
        %v5513 = vpop.permute.xlu0 %5512
        %5514 = vrot.lane.b32.xlu0 %v4178, 80
        %v5515 = vpop.permute.xlu0 %5514
        %v5516 = vsel %vm869, %v5513, 0
        %v5518 = vsel %vm869, %v5515, 0
        %5520 = vmatprep.subr.mxu0 0.0
        %5521 = vmatpush1.xpose.msra.mxu0 0.0
        %5522 = vmatprep.subr.mxu0 0.0
        %5523 = vmatpush1.xpose.msra.mxu0 0.0
        %5524 = vmatprep.subr.mxu0 0.0
        %5525 = vmatpush1.xpose.msra.mxu0 0.0
        %5526 = vmatprep.subr.mxu0 0.0
        %5527 = vmatpush1.xpose.msra.mxu0 0.0
        %5528 = vmatprep.subr.mxu0 0.0
        %5529 = vmatpush1.xpose.msra.mxu0 0.0
        %5530 = vmatprep.subr.mxu0 0.0
        %5531 = vmatpush1.xpose.msra.mxu0 0.0
        %5532 = vmatprep.subr.mxu0 0.0
        %5533 = vmatpush1.xpose.msra.mxu0 0.0
        %5534 = vmatprep.subr.mxu0 0.0
        %5535 = vmatpush1.xpose.msra.mxu0 0.0
        %5536 = vmatprep.subr.mxu0 0.0
        %5537 = vmatpush1.xpose.msra.mxu0 0.0
        %5538 = vmatprep.subr.mxu0 0.0
        %5539 = vmatpush1.xpose.msra.mxu0 0.0
        %5540 = vmatprep.subr.mxu0 0.0
        %5541 = vmatpush1.xpose.msra.mxu0 0.0
        %5542 = vmatprep.subr.mxu0 0.0
        %5543 = vmatpush1.xpose.msra.mxu0 0.0
        %5544 = vmatprep.subr.mxu0 0.0
        %5545 = vmatpush1.xpose.msra.mxu0 0.0
        %5546 = vmatprep.subr.mxu0 0.0
        %5547 = vmatpush1.xpose.msra.mxu0 0.0
        %5548 = vmatprep.subr.mxu0 0.0
        %5549 = vmatpush1.xpose.msra.mxu0 0.0
        %5550 = vmatprep.subr.mxu0 0.0
        %5551 = vmatpush1.xpose.msra.mxu0 %v5518
        %5552 = vmatprep.subr.mxu0 0.0
        %5553 = vmatpush2.xpose.msra.mxu0 0.0
        %5554 = vmatprep.subr.mxu0 0.0
        %5555 = vmatpush2.xpose.msra.mxu0 0.0
        %5556 = vmatprep.subr.mxu0 0.0
        %5557 = vmatpush2.xpose.msra.mxu0 0.0
        %5558 = vmatprep.subr.mxu0 0.0
        %5559 = vmatpush2.xpose.msra.mxu0 0.0
        %5560 = vmatprep.subr.mxu0 0.0
        %5561 = vmatpush2.xpose.msra.mxu0 0.0
        %5562 = vmatprep.subr.mxu0 0.0
        %5563 = vmatpush2.xpose.msra.mxu0 0.0
        %5564 = vmatprep.subr.mxu0 0.0
        %5565 = vmatpush2.xpose.msra.mxu0 0.0
        %5566 = vmatprep.subr.mxu0 0.0
        %5567 = vmatpush2.xpose.msra.mxu0 0.0
        %5568 = vmatprep.subr.mxu0 0.0
        %5569 = vmatpush2.xpose.msra.mxu0 0.0
        %5570 = vmatprep.subr.mxu0 0.0
        %5571 = vmatpush2.xpose.msra.mxu0 0.0
        %5572 = vmatprep.subr.mxu0 0.0
        %5573 = vmatpush2.xpose.msra.mxu0 0.0
        %5574 = vmatprep.subr.mxu0 0.0
        %5575 = vmatpush2.xpose.msra.mxu0 0.0
        %5576 = vmatprep.subr.mxu0 0.0
        %5577 = vmatpush2.xpose.msra.mxu0 0.0
        %5578 = vmatprep.subr.mxu0 0.0
        %5579 = vmatpush2.xpose.msra.mxu0 0.0
        %5580 = vmatprep.subr.mxu0 0.0
        %5581 = vmatpush2.xpose.msra.mxu0 0.0
        %5582 = vmatprep.subr.mxu0 0.0
        %5583 = vmatpush2.xpose.msra.mxu0 0.0
        %5584 = vmatprep.mubr.f32.mxu0 0.0
        %5585 = vmatmul.mubr.f32.gmra.mxu0 %v5516
        %v5586 = vpop.f32.mrf.mxu0
        %v5587 = vadd.f32 %v849, %v5586
        %v5588 = vpop.f32.mrf.mxu0
        %5589 = vdwg.mxu0
        %5590 = vrot.lane.b32.xlu0 %v4183, 112
        %v5591 = vpop.permute.xlu0 %5590
        %5592 = vrot.lane.b32.xlu0 %v4183, 80
        %v5593 = vpop.permute.xlu0 %5592
        %v5594 = vsel %vm869, %v5591, 0
        %v5596 = vsel %vm869, %v5593, 0
        %5598 = vmatprep.subr.mxu0 0.0
        %5599 = vmatpush1.xpose.msra.mxu0 0.0
        %5600 = vmatprep.subr.mxu0 0.0
        %5601 = vmatpush1.xpose.msra.mxu0 0.0
        %5602 = vmatprep.subr.mxu0 0.0
        %5603 = vmatpush1.xpose.msra.mxu0 0.0
        %5604 = vmatprep.subr.mxu0 0.0
        %5605 = vmatpush1.xpose.msra.mxu0 0.0
        %5606 = vmatprep.subr.mxu0 0.0
        %5607 = vmatpush1.xpose.msra.mxu0 0.0
        %5608 = vmatprep.subr.mxu0 0.0
        %5609 = vmatpush1.xpose.msra.mxu0 0.0
        %5610 = vmatprep.subr.mxu0 0.0
        %5611 = vmatpush1.xpose.msra.mxu0 0.0
        %5612 = vmatprep.subr.mxu0 0.0
        %5613 = vmatpush1.xpose.msra.mxu0 0.0
        %5614 = vmatprep.subr.mxu0 0.0
        %5615 = vmatpush1.xpose.msra.mxu0 0.0
        %5616 = vmatprep.subr.mxu0 0.0
        %5617 = vmatpush1.xpose.msra.mxu0 0.0
        %5618 = vmatprep.subr.mxu0 0.0
        %5619 = vmatpush1.xpose.msra.mxu0 0.0
        %5620 = vmatprep.subr.mxu0 0.0
        %5621 = vmatpush1.xpose.msra.mxu0 0.0
        %5622 = vmatprep.subr.mxu0 0.0
        %5623 = vmatpush1.xpose.msra.mxu0 0.0
        %5624 = vmatprep.subr.mxu0 0.0
        %5625 = vmatpush1.xpose.msra.mxu0 0.0
        %5626 = vmatprep.subr.mxu0 0.0
        %5627 = vmatpush1.xpose.msra.mxu0 0.0
        %5628 = vmatprep.subr.mxu0 0.0
        %5629 = vmatpush1.xpose.msra.mxu0 %v5596
        %5630 = vmatprep.subr.mxu0 0.0
        %5631 = vmatpush2.xpose.msra.mxu0 0.0
        %5632 = vmatprep.subr.mxu0 0.0
        %5633 = vmatpush2.xpose.msra.mxu0 0.0
        %5634 = vmatprep.subr.mxu0 0.0
        %5635 = vmatpush2.xpose.msra.mxu0 0.0
        %5636 = vmatprep.subr.mxu0 0.0
        %5637 = vmatpush2.xpose.msra.mxu0 0.0
        %5638 = vmatprep.subr.mxu0 0.0
        %5639 = vmatpush2.xpose.msra.mxu0 0.0
        %5640 = vmatprep.subr.mxu0 0.0
        %5641 = vmatpush2.xpose.msra.mxu0 0.0
        %5642 = vmatprep.subr.mxu0 0.0
        %5643 = vmatpush2.xpose.msra.mxu0 0.0
        %5644 = vmatprep.subr.mxu0 0.0
        %5645 = vmatpush2.xpose.msra.mxu0 0.0
        %5646 = vmatprep.subr.mxu0 0.0
        %5647 = vmatpush2.xpose.msra.mxu0 0.0
        %5648 = vmatprep.subr.mxu0 0.0
        %5649 = vmatpush2.xpose.msra.mxu0 0.0
        %5650 = vmatprep.subr.mxu0 0.0
        %5651 = vmatpush2.xpose.msra.mxu0 0.0
        %5652 = vmatprep.subr.mxu0 0.0
        %5653 = vmatpush2.xpose.msra.mxu0 0.0
        %5654 = vmatprep.subr.mxu0 0.0
        %5655 = vmatpush2.xpose.msra.mxu0 0.0
        %5656 = vmatprep.subr.mxu0 0.0
        %5657 = vmatpush2.xpose.msra.mxu0 0.0
        %5658 = vmatprep.subr.mxu0 0.0
        %5659 = vmatpush2.xpose.msra.mxu0 0.0
        %5660 = vmatprep.subr.mxu0 0.0
        %5661 = vmatpush2.xpose.msra.mxu0 0.0
        %5662 = vmatprep.mubr.f32.mxu0 0.0
        %5663 = vmatmul.mubr.f32.gmra.mxu0 %v5594
        %v5664 = vpop.f32.mrf.mxu0
        %v5665 = vadd.f32 %v853, %v5664
        %v5666 = vpop.f32.mrf.mxu0
        %5667 = vdwg.mxu0
        %5668 = vrot.lane.b32.xlu0 %v4188, 112
        %v5669 = vpop.permute.xlu0 %5668
        %5670 = vrot.lane.b32.xlu0 %v4188, 80
        %v5671 = vpop.permute.xlu0 %5670
        %v5672 = vsel %vm869, %v5669, 0
        %v5674 = vsel %vm869, %v5671, 0
        %5676 = vmatprep.subr.mxu0 0.0
        %5677 = vmatpush1.xpose.msra.mxu0 0.0
        %5678 = vmatprep.subr.mxu0 0.0
        %5679 = vmatpush1.xpose.msra.mxu0 0.0
        %5680 = vmatprep.subr.mxu0 0.0
        %5681 = vmatpush1.xpose.msra.mxu0 0.0
        %5682 = vmatprep.subr.mxu0 0.0
        %5683 = vmatpush1.xpose.msra.mxu0 0.0
        %5684 = vmatprep.subr.mxu0 0.0
        %5685 = vmatpush1.xpose.msra.mxu0 0.0
        %5686 = vmatprep.subr.mxu0 0.0
        %5687 = vmatpush1.xpose.msra.mxu0 0.0
        %5688 = vmatprep.subr.mxu0 0.0
        %5689 = vmatpush1.xpose.msra.mxu0 0.0
        %5690 = vmatprep.subr.mxu0 0.0
        %5691 = vmatpush1.xpose.msra.mxu0 0.0
        %5692 = vmatprep.subr.mxu0 0.0
        %5693 = vmatpush1.xpose.msra.mxu0 0.0
        %5694 = vmatprep.subr.mxu0 0.0
        %5695 = vmatpush1.xpose.msra.mxu0 0.0
        %5696 = vmatprep.subr.mxu0 0.0
        %5697 = vmatpush1.xpose.msra.mxu0 0.0
        %5698 = vmatprep.subr.mxu0 0.0
        %5699 = vmatpush1.xpose.msra.mxu0 0.0
        %5700 = vmatprep.subr.mxu0 0.0
        %5701 = vmatpush1.xpose.msra.mxu0 0.0
        %5702 = vmatprep.subr.mxu0 0.0
        %5703 = vmatpush1.xpose.msra.mxu0 0.0
        %5704 = vmatprep.subr.mxu0 0.0
        %5705 = vmatpush1.xpose.msra.mxu0 0.0
        %5706 = vmatprep.subr.mxu0 0.0
        %5707 = vmatpush1.xpose.msra.mxu0 %v5674
        %5708 = vmatprep.subr.mxu0 0.0
        %5709 = vmatpush2.xpose.msra.mxu0 0.0
        %5710 = vmatprep.subr.mxu0 0.0
        %5711 = vmatpush2.xpose.msra.mxu0 0.0
        %5712 = vmatprep.subr.mxu0 0.0
        %5713 = vmatpush2.xpose.msra.mxu0 0.0
        %5714 = vmatprep.subr.mxu0 0.0
        %5715 = vmatpush2.xpose.msra.mxu0 0.0
        %5716 = vmatprep.subr.mxu0 0.0
        %5717 = vmatpush2.xpose.msra.mxu0 0.0
        %5718 = vmatprep.subr.mxu0 0.0
        %5719 = vmatpush2.xpose.msra.mxu0 0.0
        %5720 = vmatprep.subr.mxu0 0.0
        %5721 = vmatpush2.xpose.msra.mxu0 0.0
        %5722 = vmatprep.subr.mxu0 0.0
        %5723 = vmatpush2.xpose.msra.mxu0 0.0
        %5724 = vmatprep.subr.mxu0 0.0
        %5725 = vmatpush2.xpose.msra.mxu0 0.0
        %5726 = vmatprep.subr.mxu0 0.0
        %5727 = vmatpush2.xpose.msra.mxu0 0.0
        %5728 = vmatprep.subr.mxu0 0.0
        %5729 = vmatpush2.xpose.msra.mxu0 0.0
        %5730 = vmatprep.subr.mxu0 0.0
        %5731 = vmatpush2.xpose.msra.mxu0 0.0
        %5732 = vmatprep.subr.mxu0 0.0
        %5733 = vmatpush2.xpose.msra.mxu0 0.0
        %5734 = vmatprep.subr.mxu0 0.0
        %5735 = vmatpush2.xpose.msra.mxu0 0.0
        %5736 = vmatprep.subr.mxu0 0.0
        %5737 = vmatpush2.xpose.msra.mxu0 0.0
        %5738 = vmatprep.subr.mxu0 0.0
        %5739 = vmatpush2.xpose.msra.mxu0 0.0
        %5740 = vmatprep.mubr.f32.mxu0 0.0
        %5741 = vmatmul.mubr.f32.gmra.mxu0 %v5672
        %v5742 = vpop.f32.mrf.mxu0
        %v5743 = vadd.f32 %v857, %v5742
        %v5744 = vpop.f32.mrf.mxu0
        %5745 = vdwg.mxu0
        %5746 = vrot.lane.b32.xlu0 %v4193, 112
        %v5747 = vpop.permute.xlu0 %5746
        %5748 = vrot.lane.b32.xlu0 %v4193, 80
        %v5749 = vpop.permute.xlu0 %5748
        %v5750 = vsel %vm869, %v5747, 0
        %v5752 = vsel %vm869, %v5749, 0
        %5754 = vmatprep.subr.mxu0 0.0
        %5755 = vmatpush1.xpose.msra.mxu0 0.0
        %5756 = vmatprep.subr.mxu0 0.0
        %5757 = vmatpush1.xpose.msra.mxu0 0.0
        %5758 = vmatprep.subr.mxu0 0.0
        %5759 = vmatpush1.xpose.msra.mxu0 0.0
        %5760 = vmatprep.subr.mxu0 0.0
        %5761 = vmatpush1.xpose.msra.mxu0 0.0
        %5762 = vmatprep.subr.mxu0 0.0
        %5763 = vmatpush1.xpose.msra.mxu0 0.0
        %5764 = vmatprep.subr.mxu0 0.0
        %5765 = vmatpush1.xpose.msra.mxu0 0.0
        %5766 = vmatprep.subr.mxu0 0.0
        %5767 = vmatpush1.xpose.msra.mxu0 0.0
        %5768 = vmatprep.subr.mxu0 0.0
        %5769 = vmatpush1.xpose.msra.mxu0 0.0
        %5770 = vmatprep.subr.mxu0 0.0
        %5771 = vmatpush1.xpose.msra.mxu0 0.0
        %5772 = vmatprep.subr.mxu0 0.0
        %5773 = vmatpush1.xpose.msra.mxu0 0.0
        %5774 = vmatprep.subr.mxu0 0.0
        %5775 = vmatpush1.xpose.msra.mxu0 0.0
        %5776 = vmatprep.subr.mxu0 0.0
        %5777 = vmatpush1.xpose.msra.mxu0 0.0
        %5778 = vmatprep.subr.mxu0 0.0
        %5779 = vmatpush1.xpose.msra.mxu0 0.0
        %5780 = vmatprep.subr.mxu0 0.0
        %5781 = vmatpush1.xpose.msra.mxu0 0.0
        %5782 = vmatprep.subr.mxu0 0.0
        %5783 = vmatpush1.xpose.msra.mxu0 0.0
        %5784 = vmatprep.subr.mxu0 0.0
        %5785 = vmatpush1.xpose.msra.mxu0 %v5752
        %5786 = vmatprep.subr.mxu0 0.0
        %5787 = vmatpush2.xpose.msra.mxu0 0.0
        %5788 = vmatprep.subr.mxu0 0.0
        %5789 = vmatpush2.xpose.msra.mxu0 0.0
        %5790 = vmatprep.subr.mxu0 0.0
        %5791 = vmatpush2.xpose.msra.mxu0 0.0
        %5792 = vmatprep.subr.mxu0 0.0
        %5793 = vmatpush2.xpose.msra.mxu0 0.0
        %5794 = vmatprep.subr.mxu0 0.0
        %5795 = vmatpush2.xpose.msra.mxu0 0.0
        %5796 = vmatprep.subr.mxu0 0.0
        %5797 = vmatpush2.xpose.msra.mxu0 0.0
        %5798 = vmatprep.subr.mxu0 0.0
        %5799 = vmatpush2.xpose.msra.mxu0 0.0
        %5800 = vmatprep.subr.mxu0 0.0
        %5801 = vmatpush2.xpose.msra.mxu0 0.0
        %5802 = vmatprep.subr.mxu0 0.0
        %5803 = vmatpush2.xpose.msra.mxu0 0.0
        %5804 = vmatprep.subr.mxu0 0.0
        %5805 = vmatpush2.xpose.msra.mxu0 0.0
        %5806 = vmatprep.subr.mxu0 0.0
        %5807 = vmatpush2.xpose.msra.mxu0 0.0
        %5808 = vmatprep.subr.mxu0 0.0
        %5809 = vmatpush2.xpose.msra.mxu0 0.0
        %5810 = vmatprep.subr.mxu0 0.0
        %5811 = vmatpush2.xpose.msra.mxu0 0.0
        %5812 = vmatprep.subr.mxu0 0.0
        %5813 = vmatpush2.xpose.msra.mxu0 0.0
        %5814 = vmatprep.subr.mxu0 0.0
        %5815 = vmatpush2.xpose.msra.mxu0 0.0
        %5816 = vmatprep.subr.mxu0 0.0
        %5817 = vmatpush2.xpose.msra.mxu0 0.0
        %5818 = vmatprep.mubr.f32.mxu0 0.0
        %5819 = vmatmul.mubr.f32.gmra.mxu0 %v5750
        %v5820 = vpop.f32.mrf.mxu0
        %v5821 = vadd.f32 %v861, %v5820
        %v5822 = vpop.f32.mrf.mxu0
        %5823 = vdwg.mxu0
        %v5824 = vsel %vm869, %v5587, -inf
        %5825 = vmax.xlane.f32.xlu0 %v5824
        %v5826 = vpop.xlane.xlu0 %5825
        %v5827 = vsel %vm869, %v5665, -inf
        %5828 = vmax.xlane.f32.xlu0 %v5827
        %v5829 = vpop.xlane.xlu0 %5828
        %v5830 = vsel %vm869, %v5743, -inf
        %5831 = vmax.xlane.f32.xlu0 %v5830
        %v5832 = vpop.xlane.xlu0 %5831
        %v5833 = vsel %vm869, %v5821, -inf
        %5834 = vmax.xlane.f32.xlu0 %v5833
        %v5835 = vpop.xlane.xlu0 %5834
        %v5836 = vsub.f32 %v5587, %v5826
        %v5837 = vsub.f32 %v5665, %v5829
        %v5838 = vsub.f32 %v5743, %v5832
        %v5839 = vsub.f32 %v5821, %v5835
        %v5840 = vmul.f32 %v5836, 1.442695
        %v5841 = vpow.pop %v5840
        %v5842 = vmul.f32 %v5837, 1.442695
        %v5843 = vpow.pop %v5842
        %v5844 = vmul.f32 %v5838, 1.442695
        %v5845 = vpow.pop %v5844
        %v5846 = vmul.f32 %v5839, 1.442695
        %v5847 = vpow.pop %v5846
        %v5848 = vsel %vm869, %v5841, 0.0
        %5849 = vadd.xlane.f32.xlu0 %v5848
        %v5850 = vpop.xlane.xlu0 %5849
        %v5851 = vsel %vm869, %v5843, 0.0
        %5852 = vadd.xlane.f32.xlu0 %v5851
        %v5853 = vpop.xlane.xlu0 %5852
        %v5854 = vsel %vm869, %v5845, 0.0
        %5855 = vadd.xlane.f32.xlu0 %v5854
        %v5856 = vpop.xlane.xlu0 %5855
        %v5857 = vsel %vm869, %v5847, 0.0
        %5858 = vadd.xlane.f32.xlu0 %v5857
        %v5859 = vpop.xlane.xlu0 %5858
        %v5860 = vrcp.pop %v5850
        %v5861 = vmul.f32 %v5841, %v5860
        %v5862 = vrcp.pop %v5853
        %v5863 = vmul.f32 %v5843, %v5862
        %v5864 = vrcp.pop %v5856
        %v5865 = vmul.f32 %v5845, %v5864
        %v5866 = vrcp.pop %v5859
        %v5867 = vmul.f32 %v5847, %v5866
        %5868 = vrot.lane.b32.xlu0 %v4178, 48
        %v5869 = vpop.permute.xlu0 %5868
        %v5872 = vsel %vm869, %v5861, 0
        %5874 = vmatprep.subr.mxu0 0.0
        %5875 = vmatpush1.msra.mxu0 0.0
        %5876 = vmatprep.subr.mxu0 0.0
        %5877 = vmatpush1.msra.mxu0 0.0
        %5878 = vmatprep.subr.mxu0 0.0
        %5879 = vmatpush1.msra.mxu0 0.0
        %5880 = vmatprep.subr.mxu0 0.0
        %5881 = vmatpush1.msra.mxu0 0.0
        %5882 = vmatprep.subr.mxu0 0.0
        %5883 = vmatpush1.msra.mxu0 0.0
        %5884 = vmatprep.subr.mxu0 0.0
        %5885 = vmatpush1.msra.mxu0 0.0
        %5886 = vmatprep.subr.mxu0 0.0
        %5887 = vmatpush1.msra.mxu0 0.0
        %5888 = vmatprep.subr.mxu0 0.0
        %5889 = vmatpush1.msra.mxu0 0.0
        %5890 = vmatprep.subr.mxu0 0.0
        %5891 = vmatpush1.msra.mxu0 0.0
        %5892 = vmatprep.subr.mxu0 0.0
        %5893 = vmatpush1.msra.mxu0 0.0
        %5894 = vmatprep.subr.mxu0 0.0
        %5895 = vmatpush1.msra.mxu0 0.0
        %5896 = vmatprep.subr.mxu0 0.0
        %5897 = vmatpush1.msra.mxu0 0.0
        %5898 = vmatprep.subr.mxu0 0.0
        %5899 = vmatpush1.msra.mxu0 0.0
        %5900 = vmatprep.subr.mxu0 0.0
        %5901 = vmatpush1.msra.mxu0 0.0
        %5902 = vmatprep.subr.mxu0 0.0
        %5903 = vmatpush1.msra.mxu0 0.0
        %5904 = vmatprep.subr.mxu0 0.0
        %5905 = vmatpush1.msra.mxu0 %v5869
        %5906 = vmatprep.subr.mxu0 0.0
        %5907 = vmatpush2.msra.mxu0 0.0
        %5908 = vmatprep.subr.mxu0 0.0
        %5909 = vmatpush2.msra.mxu0 0.0
        %5910 = vmatprep.subr.mxu0 0.0
        %5911 = vmatpush2.msra.mxu0 0.0
        %5912 = vmatprep.subr.mxu0 0.0
        %5913 = vmatpush2.msra.mxu0 0.0
        %5914 = vmatprep.subr.mxu0 0.0
        %5915 = vmatpush2.msra.mxu0 0.0
        %5916 = vmatprep.subr.mxu0 0.0
        %5917 = vmatpush2.msra.mxu0 0.0
        %5918 = vmatprep.subr.mxu0 0.0
        %5919 = vmatpush2.msra.mxu0 0.0
        %5920 = vmatprep.subr.mxu0 0.0
        %5921 = vmatpush2.msra.mxu0 0.0
        %5922 = vmatprep.subr.mxu0 0.0
        %5923 = vmatpush2.msra.mxu0 0.0
        %5924 = vmatprep.subr.mxu0 0.0
        %5925 = vmatpush2.msra.mxu0 0.0
        %5926 = vmatprep.subr.mxu0 0.0
        %5927 = vmatpush2.msra.mxu0 0.0
        %5928 = vmatprep.subr.mxu0 0.0
        %5929 = vmatpush2.msra.mxu0 0.0
        %5930 = vmatprep.subr.mxu0 0.0
        %5931 = vmatpush2.msra.mxu0 0.0
        %5932 = vmatprep.subr.mxu0 0.0
        %5933 = vmatpush2.msra.mxu0 0.0
        %5934 = vmatprep.subr.mxu0 0.0
        %5935 = vmatpush2.msra.mxu0 0.0
        %5936 = vmatprep.subr.mxu0 0.0
        %5937 = vmatpush2.msra.mxu0 0.0
        %5938 = vmatprep.mubr.f32.mxu0 0.0
        %5939 = vmatmul.mubr.f32.gmra.mxu0 %v5872
        %v5940 = vpop.f32.mrf.mxu0
        %v5941 = vadd.f32 0.0, %v5940
        %v5942 = vpop.f32.mrf.mxu0
        %5943 = vdwg.mxu0
        %5944 = vrot.lane.b32.xlu0 %v4183, 48
        %v5945 = vpop.permute.xlu0 %5944
        %v5948 = vsel %vm869, %v5863, 0
        %5950 = vmatprep.subr.mxu0 0.0
        %5951 = vmatpush1.msra.mxu0 0.0
        %5952 = vmatprep.subr.mxu0 0.0
        %5953 = vmatpush1.msra.mxu0 0.0
        %5954 = vmatprep.subr.mxu0 0.0
        %5955 = vmatpush1.msra.mxu0 0.0
        %5956 = vmatprep.subr.mxu0 0.0
        %5957 = vmatpush1.msra.mxu0 0.0
        %5958 = vmatprep.subr.mxu0 0.0
        %5959 = vmatpush1.msra.mxu0 0.0
        %5960 = vmatprep.subr.mxu0 0.0
        %5961 = vmatpush1.msra.mxu0 0.0
        %5962 = vmatprep.subr.mxu0 0.0
        %5963 = vmatpush1.msra.mxu0 0.0
        %5964 = vmatprep.subr.mxu0 0.0
        %5965 = vmatpush1.msra.mxu0 0.0
        %5966 = vmatprep.subr.mxu0 0.0
        %5967 = vmatpush1.msra.mxu0 0.0
        %5968 = vmatprep.subr.mxu0 0.0
        %5969 = vmatpush1.msra.mxu0 0.0
        %5970 = vmatprep.subr.mxu0 0.0
        %5971 = vmatpush1.msra.mxu0 0.0
        %5972 = vmatprep.subr.mxu0 0.0
        %5973 = vmatpush1.msra.mxu0 0.0
        %5974 = vmatprep.subr.mxu0 0.0
        %5975 = vmatpush1.msra.mxu0 0.0
        %5976 = vmatprep.subr.mxu0 0.0
        %5977 = vmatpush1.msra.mxu0 0.0
        %5978 = vmatprep.subr.mxu0 0.0
        %5979 = vmatpush1.msra.mxu0 0.0
        %5980 = vmatprep.subr.mxu0 0.0
        %5981 = vmatpush1.msra.mxu0 %v5945
        %5982 = vmatprep.subr.mxu0 0.0
        %5983 = vmatpush2.msra.mxu0 0.0
        %5984 = vmatprep.subr.mxu0 0.0
        %5985 = vmatpush2.msra.mxu0 0.0
        %5986 = vmatprep.subr.mxu0 0.0
        %5987 = vmatpush2.msra.mxu0 0.0
        %5988 = vmatprep.subr.mxu0 0.0
        %5989 = vmatpush2.msra.mxu0 0.0
        %5990 = vmatprep.subr.mxu0 0.0
        %5991 = vmatpush2.msra.mxu0 0.0
        %5992 = vmatprep.subr.mxu0 0.0
        %5993 = vmatpush2.msra.mxu0 0.0
        %5994 = vmatprep.subr.mxu0 0.0
        %5995 = vmatpush2.msra.mxu0 0.0
        %5996 = vmatprep.subr.mxu0 0.0
        %5997 = vmatpush2.msra.mxu0 0.0
        %5998 = vmatprep.subr.mxu0 0.0
        %5999 = vmatpush2.msra.mxu0 0.0
        %6000 = vmatprep.subr.mxu0 0.0
        %6001 = vmatpush2.msra.mxu0 0.0
        %6002 = vmatprep.subr.mxu0 0.0
        %6003 = vmatpush2.msra.mxu0 0.0
        %6004 = vmatprep.subr.mxu0 0.0
        %6005 = vmatpush2.msra.mxu0 0.0
        %6006 = vmatprep.subr.mxu0 0.0
        %6007 = vmatpush2.msra.mxu0 0.0
        %6008 = vmatprep.subr.mxu0 0.0
        %6009 = vmatpush2.msra.mxu0 0.0
        %6010 = vmatprep.subr.mxu0 0.0
        %6011 = vmatpush2.msra.mxu0 0.0
        %6012 = vmatprep.subr.mxu0 0.0
        %6013 = vmatpush2.msra.mxu0 0.0
        %6014 = vmatprep.mubr.f32.mxu0 0.0
        %6015 = vmatmul.mubr.f32.gmra.mxu0 %v5948
        %v6016 = vpop.f32.mrf.mxu0
        %v6017 = vadd.f32 0.0, %v6016
        %v6018 = vpop.f32.mrf.mxu0
        %6019 = vdwg.mxu0
        %6020 = vrot.lane.b32.xlu0 %v4188, 48
        %v6021 = vpop.permute.xlu0 %6020
        %v6024 = vsel %vm869, %v5865, 0
        %6026 = vmatprep.subr.mxu0 0.0
        %6027 = vmatpush1.msra.mxu0 0.0
        %6028 = vmatprep.subr.mxu0 0.0
        %6029 = vmatpush1.msra.mxu0 0.0
        %6030 = vmatprep.subr.mxu0 0.0
        %6031 = vmatpush1.msra.mxu0 0.0
        %6032 = vmatprep.subr.mxu0 0.0
        %6033 = vmatpush1.msra.mxu0 0.0
        %6034 = vmatprep.subr.mxu0 0.0
        %6035 = vmatpush1.msra.mxu0 0.0
        %6036 = vmatprep.subr.mxu0 0.0
        %6037 = vmatpush1.msra.mxu0 0.0
        %6038 = vmatprep.subr.mxu0 0.0
        %6039 = vmatpush1.msra.mxu0 0.0
        %6040 = vmatprep.subr.mxu0 0.0
        %6041 = vmatpush1.msra.mxu0 0.0
        %6042 = vmatprep.subr.mxu0 0.0
        %6043 = vmatpush1.msra.mxu0 0.0
        %6044 = vmatprep.subr.mxu0 0.0
        %6045 = vmatpush1.msra.mxu0 0.0
        %6046 = vmatprep.subr.mxu0 0.0
        %6047 = vmatpush1.msra.mxu0 0.0
        %6048 = vmatprep.subr.mxu0 0.0
        %6049 = vmatpush1.msra.mxu0 0.0
        %6050 = vmatprep.subr.mxu0 0.0
        %6051 = vmatpush1.msra.mxu0 0.0
        %6052 = vmatprep.subr.mxu0 0.0
        %6053 = vmatpush1.msra.mxu0 0.0
        %6054 = vmatprep.subr.mxu0 0.0
        %6055 = vmatpush1.msra.mxu0 0.0
        %6056 = vmatprep.subr.mxu0 0.0
        %6057 = vmatpush1.msra.mxu0 %v6021
        %6058 = vmatprep.subr.mxu0 0.0
        %6059 = vmatpush2.msra.mxu0 0.0
        %6060 = vmatprep.subr.mxu0 0.0
        %6061 = vmatpush2.msra.mxu0 0.0
        %6062 = vmatprep.subr.mxu0 0.0
        %6063 = vmatpush2.msra.mxu0 0.0
        %6064 = vmatprep.subr.mxu0 0.0
        %6065 = vmatpush2.msra.mxu0 0.0
        %6066 = vmatprep.subr.mxu0 0.0
        %6067 = vmatpush2.msra.mxu0 0.0
        %6068 = vmatprep.subr.mxu0 0.0
        %6069 = vmatpush2.msra.mxu0 0.0
        %6070 = vmatprep.subr.mxu0 0.0
        %6071 = vmatpush2.msra.mxu0 0.0
        %6072 = vmatprep.subr.mxu0 0.0
        %6073 = vmatpush2.msra.mxu0 0.0
        %6074 = vmatprep.subr.mxu0 0.0
        %6075 = vmatpush2.msra.mxu0 0.0
        %6076 = vmatprep.subr.mxu0 0.0
        %6077 = vmatpush2.msra.mxu0 0.0
        %6078 = vmatprep.subr.mxu0 0.0
        %6079 = vmatpush2.msra.mxu0 0.0
        %6080 = vmatprep.subr.mxu0 0.0
        %6081 = vmatpush2.msra.mxu0 0.0
        %6082 = vmatprep.subr.mxu0 0.0
        %6083 = vmatpush2.msra.mxu0 0.0
        %6084 = vmatprep.subr.mxu0 0.0
        %6085 = vmatpush2.msra.mxu0 0.0
        %6086 = vmatprep.subr.mxu0 0.0
        %6087 = vmatpush2.msra.mxu0 0.0
        %6088 = vmatprep.subr.mxu0 0.0
        %6089 = vmatpush2.msra.mxu0 0.0
        %6090 = vmatprep.mubr.f32.mxu0 0.0
        %6091 = vmatmul.mubr.f32.gmra.mxu0 %v6024
        %v6092 = vpop.f32.mrf.mxu0
        %v6093 = vadd.f32 0.0, %v6092
        %v6094 = vpop.f32.mrf.mxu0
        %6095 = vdwg.mxu0
        %6096 = vrot.lane.b32.xlu0 %v4193, 48
        %v6097 = vpop.permute.xlu0 %6096
        %v6100 = vsel %vm869, %v5867, 0
        %6102 = vmatprep.subr.mxu0 0.0
        %6103 = vmatpush1.msra.mxu0 0.0
        %6104 = vmatprep.subr.mxu0 0.0
        %6105 = vmatpush1.msra.mxu0 0.0
        %6106 = vmatprep.subr.mxu0 0.0
        %6107 = vmatpush1.msra.mxu0 0.0
        %6108 = vmatprep.subr.mxu0 0.0
        %6109 = vmatpush1.msra.mxu0 0.0
        %6110 = vmatprep.subr.mxu0 0.0
        %6111 = vmatpush1.msra.mxu0 0.0
        %6112 = vmatprep.subr.mxu0 0.0
        %6113 = vmatpush1.msra.mxu0 0.0
        %6114 = vmatprep.subr.mxu0 0.0
        %6115 = vmatpush1.msra.mxu0 0.0
        %6116 = vmatprep.subr.mxu0 0.0
        %6117 = vmatpush1.msra.mxu0 0.0
        %6118 = vmatprep.subr.mxu0 0.0
        %6119 = vmatpush1.msra.mxu0 0.0
        %6120 = vmatprep.subr.mxu0 0.0
        %6121 = vmatpush1.msra.mxu0 0.0
        %6122 = vmatprep.subr.mxu0 0.0
        %6123 = vmatpush1.msra.mxu0 0.0
        %6124 = vmatprep.subr.mxu0 0.0
        %6125 = vmatpush1.msra.mxu0 0.0
        %6126 = vmatprep.subr.mxu0 0.0
        %6127 = vmatpush1.msra.mxu0 0.0
        %6128 = vmatprep.subr.mxu0 0.0
        %6129 = vmatpush1.msra.mxu0 0.0
        %6130 = vmatprep.subr.mxu0 0.0
        %6131 = vmatpush1.msra.mxu0 0.0
        %6132 = vmatprep.subr.mxu0 0.0
        %6133 = vmatpush1.msra.mxu0 %v6097
        %6134 = vmatprep.subr.mxu0 0.0
        %6135 = vmatpush2.msra.mxu0 0.0
        %6136 = vmatprep.subr.mxu0 0.0
        %6137 = vmatpush2.msra.mxu0 0.0
        %6138 = vmatprep.subr.mxu0 0.0
        %6139 = vmatpush2.msra.mxu0 0.0
        %6140 = vmatprep.subr.mxu0 0.0
        %6141 = vmatpush2.msra.mxu0 0.0
        %6142 = vmatprep.subr.mxu0 0.0
        %6143 = vmatpush2.msra.mxu0 0.0
        %6144 = vmatprep.subr.mxu0 0.0
        %6145 = vmatpush2.msra.mxu0 0.0
        %6146 = vmatprep.subr.mxu0 0.0
        %6147 = vmatpush2.msra.mxu0 0.0
        %6148 = vmatprep.subr.mxu0 0.0
        %6149 = vmatpush2.msra.mxu0 0.0
        %6150 = vmatprep.subr.mxu0 0.0
        %6151 = vmatpush2.msra.mxu0 0.0
        %6152 = vmatprep.subr.mxu0 0.0
        %6153 = vmatpush2.msra.mxu0 0.0
        %6154 = vmatprep.subr.mxu0 0.0
        %6155 = vmatpush2.msra.mxu0 0.0
        %6156 = vmatprep.subr.mxu0 0.0
        %6157 = vmatpush2.msra.mxu0 0.0
        %6158 = vmatprep.subr.mxu0 0.0
        %6159 = vmatpush2.msra.mxu0 0.0
        %6160 = vmatprep.subr.mxu0 0.0
        %6161 = vmatpush2.msra.mxu0 0.0
        %6162 = vmatprep.subr.mxu0 0.0
        %6163 = vmatpush2.msra.mxu0 0.0
        %6164 = vmatprep.subr.mxu0 0.0
        %6165 = vmatpush2.msra.mxu0 0.0
        %6166 = vmatprep.mubr.f32.mxu0 0.0
        %6167 = vmatmul.mubr.f32.gmra.mxu0 %v6100
        %v6168 = vpop.f32.mrf.mxu0
        %v6169 = vadd.f32 0.0, %v6168
        %v6170 = vpop.f32.mrf.mxu0
        %6171 = vdwg.mxu0
        %6172 = vrot.lane.b32.xlu0 %v4178, 104
        %v6173 = vpop.permute.xlu0 %6172
        %6174 = vrot.lane.b32.xlu0 %v4178, 72
        %v6175 = vpop.permute.xlu0 %6174
        %v6176 = vsel %vm869, %v6173, 0
        %v6178 = vsel %vm869, %v6175, 0
        %6180 = vmatprep.subr.mxu0 0.0
        %6181 = vmatpush1.xpose.msra.mxu0 0.0
        %6182 = vmatprep.subr.mxu0 0.0
        %6183 = vmatpush1.xpose.msra.mxu0 0.0
        %6184 = vmatprep.subr.mxu0 0.0
        %6185 = vmatpush1.xpose.msra.mxu0 0.0
        %6186 = vmatprep.subr.mxu0 0.0
        %6187 = vmatpush1.xpose.msra.mxu0 0.0
        %6188 = vmatprep.subr.mxu0 0.0
        %6189 = vmatpush1.xpose.msra.mxu0 0.0
        %6190 = vmatprep.subr.mxu0 0.0
        %6191 = vmatpush1.xpose.msra.mxu0 0.0
        %6192 = vmatprep.subr.mxu0 0.0
        %6193 = vmatpush1.xpose.msra.mxu0 0.0
        %6194 = vmatprep.subr.mxu0 0.0
        %6195 = vmatpush1.xpose.msra.mxu0 0.0
        %6196 = vmatprep.subr.mxu0 0.0
        %6197 = vmatpush1.xpose.msra.mxu0 0.0
        %6198 = vmatprep.subr.mxu0 0.0
        %6199 = vmatpush1.xpose.msra.mxu0 0.0
        %6200 = vmatprep.subr.mxu0 0.0
        %6201 = vmatpush1.xpose.msra.mxu0 0.0
        %6202 = vmatprep.subr.mxu0 0.0
        %6203 = vmatpush1.xpose.msra.mxu0 0.0
        %6204 = vmatprep.subr.mxu0 0.0
        %6205 = vmatpush1.xpose.msra.mxu0 0.0
        %6206 = vmatprep.subr.mxu0 0.0
        %6207 = vmatpush1.xpose.msra.mxu0 0.0
        %6208 = vmatprep.subr.mxu0 0.0
        %6209 = vmatpush1.xpose.msra.mxu0 0.0
        %6210 = vmatprep.subr.mxu0 0.0
        %6211 = vmatpush1.xpose.msra.mxu0 %v6178
        %6212 = vmatprep.subr.mxu0 0.0
        %6213 = vmatpush2.xpose.msra.mxu0 0.0
        %6214 = vmatprep.subr.mxu0 0.0
        %6215 = vmatpush2.xpose.msra.mxu0 0.0
        %6216 = vmatprep.subr.mxu0 0.0
        %6217 = vmatpush2.xpose.msra.mxu0 0.0
        %6218 = vmatprep.subr.mxu0 0.0
        %6219 = vmatpush2.xpose.msra.mxu0 0.0
        %6220 = vmatprep.subr.mxu0 0.0
        %6221 = vmatpush2.xpose.msra.mxu0 0.0
        %6222 = vmatprep.subr.mxu0 0.0
        %6223 = vmatpush2.xpose.msra.mxu0 0.0
        %6224 = vmatprep.subr.mxu0 0.0
        %6225 = vmatpush2.xpose.msra.mxu0 0.0
        %6226 = vmatprep.subr.mxu0 0.0
        %6227 = vmatpush2.xpose.msra.mxu0 0.0
        %6228 = vmatprep.subr.mxu0 0.0
        %6229 = vmatpush2.xpose.msra.mxu0 0.0
        %6230 = vmatprep.subr.mxu0 0.0
        %6231 = vmatpush2.xpose.msra.mxu0 0.0
        %6232 = vmatprep.subr.mxu0 0.0
        %6233 = vmatpush2.xpose.msra.mxu0 0.0
        %6234 = vmatprep.subr.mxu0 0.0
        %6235 = vmatpush2.xpose.msra.mxu0 0.0
        %6236 = vmatprep.subr.mxu0 0.0
        %6237 = vmatpush2.xpose.msra.mxu0 0.0
        %6238 = vmatprep.subr.mxu0 0.0
        %6239 = vmatpush2.xpose.msra.mxu0 0.0
        %6240 = vmatprep.subr.mxu0 0.0
        %6241 = vmatpush2.xpose.msra.mxu0 0.0
        %6242 = vmatprep.subr.mxu0 0.0
        %6243 = vmatpush2.xpose.msra.mxu0 0.0
        %6244 = vmatprep.mubr.f32.mxu0 0.0
        %6245 = vmatmul.mubr.f32.gmra.mxu0 %v6176
        %v6246 = vpop.f32.mrf.mxu0
        %v6247 = vadd.f32 %v849, %v6246
        %v6248 = vpop.f32.mrf.mxu0
        %6249 = vdwg.mxu0
        %6250 = vrot.lane.b32.xlu0 %v4183, 104
        %v6251 = vpop.permute.xlu0 %6250
        %6252 = vrot.lane.b32.xlu0 %v4183, 72
        %v6253 = vpop.permute.xlu0 %6252
        %v6254 = vsel %vm869, %v6251, 0
        %v6256 = vsel %vm869, %v6253, 0
        %6258 = vmatprep.subr.mxu0 0.0
        %6259 = vmatpush1.xpose.msra.mxu0 0.0
        %6260 = vmatprep.subr.mxu0 0.0
        %6261 = vmatpush1.xpose.msra.mxu0 0.0
        %6262 = vmatprep.subr.mxu0 0.0
        %6263 = vmatpush1.xpose.msra.mxu0 0.0
        %6264 = vmatprep.subr.mxu0 0.0
        %6265 = vmatpush1.xpose.msra.mxu0 0.0
        %6266 = vmatprep.subr.mxu0 0.0
        %6267 = vmatpush1.xpose.msra.mxu0 0.0
        %6268 = vmatprep.subr.mxu0 0.0
        %6269 = vmatpush1.xpose.msra.mxu0 0.0
        %6270 = vmatprep.subr.mxu0 0.0
        %6271 = vmatpush1.xpose.msra.mxu0 0.0
        %6272 = vmatprep.subr.mxu0 0.0
        %6273 = vmatpush1.xpose.msra.mxu0 0.0
        %6274 = vmatprep.subr.mxu0 0.0
        %6275 = vmatpush1.xpose.msra.mxu0 0.0
        %6276 = vmatprep.subr.mxu0 0.0
        %6277 = vmatpush1.xpose.msra.mxu0 0.0
        %6278 = vmatprep.subr.mxu0 0.0
        %6279 = vmatpush1.xpose.msra.mxu0 0.0
        %6280 = vmatprep.subr.mxu0 0.0
        %6281 = vmatpush1.xpose.msra.mxu0 0.0
        %6282 = vmatprep.subr.mxu0 0.0
        %6283 = vmatpush1.xpose.msra.mxu0 0.0
        %6284 = vmatprep.subr.mxu0 0.0
        %6285 = vmatpush1.xpose.msra.mxu0 0.0
        %6286 = vmatprep.subr.mxu0 0.0
        %6287 = vmatpush1.xpose.msra.mxu0 0.0
        %6288 = vmatprep.subr.mxu0 0.0
        %6289 = vmatpush1.xpose.msra.mxu0 %v6256
        %6290 = vmatprep.subr.mxu0 0.0
        %6291 = vmatpush2.xpose.msra.mxu0 0.0
        %6292 = vmatprep.subr.mxu0 0.0
        %6293 = vmatpush2.xpose.msra.mxu0 0.0
        %6294 = vmatprep.subr.mxu0 0.0
        %6295 = vmatpush2.xpose.msra.mxu0 0.0
        %6296 = vmatprep.subr.mxu0 0.0
        %6297 = vmatpush2.xpose.msra.mxu0 0.0
        %6298 = vmatprep.subr.mxu0 0.0
        %6299 = vmatpush2.xpose.msra.mxu0 0.0
        %6300 = vmatprep.subr.mxu0 0.0
        %6301 = vmatpush2.xpose.msra.mxu0 0.0
        %6302 = vmatprep.subr.mxu0 0.0
        %6303 = vmatpush2.xpose.msra.mxu0 0.0
        %6304 = vmatprep.subr.mxu0 0.0
        %6305 = vmatpush2.xpose.msra.mxu0 0.0
        %6306 = vmatprep.subr.mxu0 0.0
        %6307 = vmatpush2.xpose.msra.mxu0 0.0
        %6308 = vmatprep.subr.mxu0 0.0
        %6309 = vmatpush2.xpose.msra.mxu0 0.0
        %6310 = vmatprep.subr.mxu0 0.0
        %6311 = vmatpush2.xpose.msra.mxu0 0.0
        %6312 = vmatprep.subr.mxu0 0.0
        %6313 = vmatpush2.xpose.msra.mxu0 0.0
        %6314 = vmatprep.subr.mxu0 0.0
        %6315 = vmatpush2.xpose.msra.mxu0 0.0
        %6316 = vmatprep.subr.mxu0 0.0
        %6317 = vmatpush2.xpose.msra.mxu0 0.0
        %6318 = vmatprep.subr.mxu0 0.0
        %6319 = vmatpush2.xpose.msra.mxu0 0.0
        %6320 = vmatprep.subr.mxu0 0.0
        %6321 = vmatpush2.xpose.msra.mxu0 0.0
        %6322 = vmatprep.mubr.f32.mxu0 0.0
        %6323 = vmatmul.mubr.f32.gmra.mxu0 %v6254
        %v6324 = vpop.f32.mrf.mxu0
        %v6325 = vadd.f32 %v853, %v6324
        %v6326 = vpop.f32.mrf.mxu0
        %6327 = vdwg.mxu0
        %6328 = vrot.lane.b32.xlu0 %v4188, 104
        %v6329 = vpop.permute.xlu0 %6328
        %6330 = vrot.lane.b32.xlu0 %v4188, 72
        %v6331 = vpop.permute.xlu0 %6330
        %v6332 = vsel %vm869, %v6329, 0
        %v6334 = vsel %vm869, %v6331, 0
        %6336 = vmatprep.subr.mxu0 0.0
        %6337 = vmatpush1.xpose.msra.mxu0 0.0
        %6338 = vmatprep.subr.mxu0 0.0
        %6339 = vmatpush1.xpose.msra.mxu0 0.0
        %6340 = vmatprep.subr.mxu0 0.0
        %6341 = vmatpush1.xpose.msra.mxu0 0.0
        %6342 = vmatprep.subr.mxu0 0.0
        %6343 = vmatpush1.xpose.msra.mxu0 0.0
        %6344 = vmatprep.subr.mxu0 0.0
        %6345 = vmatpush1.xpose.msra.mxu0 0.0
        %6346 = vmatprep.subr.mxu0 0.0
        %6347 = vmatpush1.xpose.msra.mxu0 0.0
        %6348 = vmatprep.subr.mxu0 0.0
        %6349 = vmatpush1.xpose.msra.mxu0 0.0
        %6350 = vmatprep.subr.mxu0 0.0
        %6351 = vmatpush1.xpose.msra.mxu0 0.0
        %6352 = vmatprep.subr.mxu0 0.0
        %6353 = vmatpush1.xpose.msra.mxu0 0.0
        %6354 = vmatprep.subr.mxu0 0.0
        %6355 = vmatpush1.xpose.msra.mxu0 0.0
        %6356 = vmatprep.subr.mxu0 0.0
        %6357 = vmatpush1.xpose.msra.mxu0 0.0
        %6358 = vmatprep.subr.mxu0 0.0
        %6359 = vmatpush1.xpose.msra.mxu0 0.0
        %6360 = vmatprep.subr.mxu0 0.0
        %6361 = vmatpush1.xpose.msra.mxu0 0.0
        %6362 = vmatprep.subr.mxu0 0.0
        %6363 = vmatpush1.xpose.msra.mxu0 0.0
        %6364 = vmatprep.subr.mxu0 0.0
        %6365 = vmatpush1.xpose.msra.mxu0 0.0
        %6366 = vmatprep.subr.mxu0 0.0
        %6367 = vmatpush1.xpose.msra.mxu0 %v6334
        %6368 = vmatprep.subr.mxu0 0.0
        %6369 = vmatpush2.xpose.msra.mxu0 0.0
        %6370 = vmatprep.subr.mxu0 0.0
        %6371 = vmatpush2.xpose.msra.mxu0 0.0
        %6372 = vmatprep.subr.mxu0 0.0
        %6373 = vmatpush2.xpose.msra.mxu0 0.0
        %6374 = vmatprep.subr.mxu0 0.0
        %6375 = vmatpush2.xpose.msra.mxu0 0.0
        %6376 = vmatprep.subr.mxu0 0.0
        %6377 = vmatpush2.xpose.msra.mxu0 0.0
        %6378 = vmatprep.subr.mxu0 0.0
        %6379 = vmatpush2.xpose.msra.mxu0 0.0
        %6380 = vmatprep.subr.mxu0 0.0
        %6381 = vmatpush2.xpose.msra.mxu0 0.0
        %6382 = vmatprep.subr.mxu0 0.0
        %6383 = vmatpush2.xpose.msra.mxu0 0.0
        %6384 = vmatprep.subr.mxu0 0.0
        %6385 = vmatpush2.xpose.msra.mxu0 0.0
        %6386 = vmatprep.subr.mxu0 0.0
        %6387 = vmatpush2.xpose.msra.mxu0 0.0
        %6388 = vmatprep.subr.mxu0 0.0
        %6389 = vmatpush2.xpose.msra.mxu0 0.0
        %6390 = vmatprep.subr.mxu0 0.0
        %6391 = vmatpush2.xpose.msra.mxu0 0.0
        %6392 = vmatprep.subr.mxu0 0.0
        %6393 = vmatpush2.xpose.msra.mxu0 0.0
        %6394 = vmatprep.subr.mxu0 0.0
        %6395 = vmatpush2.xpose.msra.mxu0 0.0
        %6396 = vmatprep.subr.mxu0 0.0
        %6397 = vmatpush2.xpose.msra.mxu0 0.0
        %6398 = vmatprep.subr.mxu0 0.0
        %6399 = vmatpush2.xpose.msra.mxu0 0.0
        %6400 = vmatprep.mubr.f32.mxu0 0.0
        %6401 = vmatmul.mubr.f32.gmra.mxu0 %v6332
        %v6402 = vpop.f32.mrf.mxu0
        %v6403 = vadd.f32 %v857, %v6402
        %v6404 = vpop.f32.mrf.mxu0
        %6405 = vdwg.mxu0
        %6406 = vrot.lane.b32.xlu0 %v4193, 104
        %v6407 = vpop.permute.xlu0 %6406
        %6408 = vrot.lane.b32.xlu0 %v4193, 72
        %v6409 = vpop.permute.xlu0 %6408
        %v6410 = vsel %vm869, %v6407, 0
        %v6412 = vsel %vm869, %v6409, 0
        %6414 = vmatprep.subr.mxu0 0.0
        %6415 = vmatpush1.xpose.msra.mxu0 0.0
        %6416 = vmatprep.subr.mxu0 0.0
        %6417 = vmatpush1.xpose.msra.mxu0 0.0
        %6418 = vmatprep.subr.mxu0 0.0
        %6419 = vmatpush1.xpose.msra.mxu0 0.0
        %6420 = vmatprep.subr.mxu0 0.0
        %6421 = vmatpush1.xpose.msra.mxu0 0.0
        %6422 = vmatprep.subr.mxu0 0.0
        %6423 = vmatpush1.xpose.msra.mxu0 0.0
        %6424 = vmatprep.subr.mxu0 0.0
        %6425 = vmatpush1.xpose.msra.mxu0 0.0
        %6426 = vmatprep.subr.mxu0 0.0
        %6427 = vmatpush1.xpose.msra.mxu0 0.0
        %6428 = vmatprep.subr.mxu0 0.0
        %6429 = vmatpush1.xpose.msra.mxu0 0.0
        %6430 = vmatprep.subr.mxu0 0.0
        %6431 = vmatpush1.xpose.msra.mxu0 0.0
        %6432 = vmatprep.subr.mxu0 0.0
        %6433 = vmatpush1.xpose.msra.mxu0 0.0
        %6434 = vmatprep.subr.mxu0 0.0
        %6435 = vmatpush1.xpose.msra.mxu0 0.0
        %6436 = vmatprep.subr.mxu0 0.0
        %6437 = vmatpush1.xpose.msra.mxu0 0.0
        %6438 = vmatprep.subr.mxu0 0.0
        %6439 = vmatpush1.xpose.msra.mxu0 0.0
        %6440 = vmatprep.subr.mxu0 0.0
        %6441 = vmatpush1.xpose.msra.mxu0 0.0
        %6442 = vmatprep.subr.mxu0 0.0
        %6443 = vmatpush1.xpose.msra.mxu0 0.0
        %6444 = vmatprep.subr.mxu0 0.0
        %6445 = vmatpush1.xpose.msra.mxu0 %v6412
        %6446 = vmatprep.subr.mxu0 0.0
        %6447 = vmatpush2.xpose.msra.mxu0 0.0
        %6448 = vmatprep.subr.mxu0 0.0
        %6449 = vmatpush2.xpose.msra.mxu0 0.0
        %6450 = vmatprep.subr.mxu0 0.0
        %6451 = vmatpush2.xpose.msra.mxu0 0.0
        %6452 = vmatprep.subr.mxu0 0.0
        %6453 = vmatpush2.xpose.msra.mxu0 0.0
        %6454 = vmatprep.subr.mxu0 0.0
        %6455 = vmatpush2.xpose.msra.mxu0 0.0
        %6456 = vmatprep.subr.mxu0 0.0
        %6457 = vmatpush2.xpose.msra.mxu0 0.0
        %6458 = vmatprep.subr.mxu0 0.0
        %6459 = vmatpush2.xpose.msra.mxu0 0.0
        %6460 = vmatprep.subr.mxu0 0.0
        %6461 = vmatpush2.xpose.msra.mxu0 0.0
        %6462 = vmatprep.subr.mxu0 0.0
        %6463 = vmatpush2.xpose.msra.mxu0 0.0
        %6464 = vmatprep.subr.mxu0 0.0
        %6465 = vmatpush2.xpose.msra.mxu0 0.0
        %6466 = vmatprep.subr.mxu0 0.0
        %6467 = vmatpush2.xpose.msra.mxu0 0.0
        %6468 = vmatprep.subr.mxu0 0.0
        %6469 = vmatpush2.xpose.msra.mxu0 0.0
        %6470 = vmatprep.subr.mxu0 0.0
        %6471 = vmatpush2.xpose.msra.mxu0 0.0
        %6472 = vmatprep.subr.mxu0 0.0
        %6473 = vmatpush2.xpose.msra.mxu0 0.0
        %6474 = vmatprep.subr.mxu0 0.0
        %6475 = vmatpush2.xpose.msra.mxu0 0.0
        %6476 = vmatprep.subr.mxu0 0.0
        %6477 = vmatpush2.xpose.msra.mxu0 0.0
        %6478 = vmatprep.mubr.f32.mxu0 0.0
        %6479 = vmatmul.mubr.f32.gmra.mxu0 %v6410
        %v6480 = vpop.f32.mrf.mxu0
        %v6481 = vadd.f32 %v861, %v6480
        %v6482 = vpop.f32.mrf.mxu0
        %6483 = vdwg.mxu0
        %v6484 = vsel %vm869, %v6247, -inf
        %6485 = vmax.xlane.f32.xlu0 %v6484
        %v6486 = vpop.xlane.xlu0 %6485
        %v6487 = vsel %vm869, %v6325, -inf
        %6488 = vmax.xlane.f32.xlu0 %v6487
        %v6489 = vpop.xlane.xlu0 %6488
        %v6490 = vsel %vm869, %v6403, -inf
        %6491 = vmax.xlane.f32.xlu0 %v6490
        %v6492 = vpop.xlane.xlu0 %6491
        %v6493 = vsel %vm869, %v6481, -inf
        %6494 = vmax.xlane.f32.xlu0 %v6493
        %v6495 = vpop.xlane.xlu0 %6494
        %v6496 = vsub.f32 %v6247, %v6486
        %v6497 = vsub.f32 %v6325, %v6489
        %v6498 = vsub.f32 %v6403, %v6492
        %v6499 = vsub.f32 %v6481, %v6495
        %v6500 = vmul.f32 %v6496, 1.442695
        %v6501 = vpow.pop %v6500
        %v6502 = vmul.f32 %v6497, 1.442695
        %v6503 = vpow.pop %v6502
        %v6504 = vmul.f32 %v6498, 1.442695
        %v6505 = vpow.pop %v6504
        %v6506 = vmul.f32 %v6499, 1.442695
        %v6507 = vpow.pop %v6506
        %v6508 = vsel %vm869, %v6501, 0.0
        %6509 = vadd.xlane.f32.xlu0 %v6508
        %v6510 = vpop.xlane.xlu0 %6509
        %v6511 = vsel %vm869, %v6503, 0.0
        %6512 = vadd.xlane.f32.xlu0 %v6511
        %v6513 = vpop.xlane.xlu0 %6512
        %v6514 = vsel %vm869, %v6505, 0.0
        %6515 = vadd.xlane.f32.xlu0 %v6514
        %v6516 = vpop.xlane.xlu0 %6515
        %v6517 = vsel %vm869, %v6507, 0.0
        %6518 = vadd.xlane.f32.xlu0 %v6517
        %v6519 = vpop.xlane.xlu0 %6518
        %v6520 = vrcp.pop %v6510
        %v6521 = vmul.f32 %v6501, %v6520
        %v6522 = vrcp.pop %v6513
        %v6523 = vmul.f32 %v6503, %v6522
        %v6524 = vrcp.pop %v6516
        %v6525 = vmul.f32 %v6505, %v6524
        %v6526 = vrcp.pop %v6519
        %v6527 = vmul.f32 %v6507, %v6526
        %6528 = vrot.lane.b32.xlu0 %v4178, 40
        %v6529 = vpop.permute.xlu0 %6528
        %v6532 = vsel %vm869, %v6521, 0
        %6534 = vmatprep.subr.mxu0 0.0
        %6535 = vmatpush1.msra.mxu0 0.0
        %6536 = vmatprep.subr.mxu0 0.0
        %6537 = vmatpush1.msra.mxu0 0.0
        %6538 = vmatprep.subr.mxu0 0.0
        %6539 = vmatpush1.msra.mxu0 0.0
        %6540 = vmatprep.subr.mxu0 0.0
        %6541 = vmatpush1.msra.mxu0 0.0
        %6542 = vmatprep.subr.mxu0 0.0
        %6543 = vmatpush1.msra.mxu0 0.0
        %6544 = vmatprep.subr.mxu0 0.0
        %6545 = vmatpush1.msra.mxu0 0.0
        %6546 = vmatprep.subr.mxu0 0.0
        %6547 = vmatpush1.msra.mxu0 0.0
        %6548 = vmatprep.subr.mxu0 0.0
        %6549 = vmatpush1.msra.mxu0 0.0
        %6550 = vmatprep.subr.mxu0 0.0
        %6551 = vmatpush1.msra.mxu0 0.0
        %6552 = vmatprep.subr.mxu0 0.0
        %6553 = vmatpush1.msra.mxu0 0.0
        %6554 = vmatprep.subr.mxu0 0.0
        %6555 = vmatpush1.msra.mxu0 0.0
        %6556 = vmatprep.subr.mxu0 0.0
        %6557 = vmatpush1.msra.mxu0 0.0
        %6558 = vmatprep.subr.mxu0 0.0
        %6559 = vmatpush1.msra.mxu0 0.0
        %6560 = vmatprep.subr.mxu0 0.0
        %6561 = vmatpush1.msra.mxu0 0.0
        %6562 = vmatprep.subr.mxu0 0.0
        %6563 = vmatpush1.msra.mxu0 0.0
        %6564 = vmatprep.subr.mxu0 0.0
        %6565 = vmatpush1.msra.mxu0 %v6529
        %6566 = vmatprep.subr.mxu0 0.0
        %6567 = vmatpush2.msra.mxu0 0.0
        %6568 = vmatprep.subr.mxu0 0.0
        %6569 = vmatpush2.msra.mxu0 0.0
        %6570 = vmatprep.subr.mxu0 0.0
        %6571 = vmatpush2.msra.mxu0 0.0
        %6572 = vmatprep.subr.mxu0 0.0
        %6573 = vmatpush2.msra.mxu0 0.0
        %6574 = vmatprep.subr.mxu0 0.0
        %6575 = vmatpush2.msra.mxu0 0.0
        %6576 = vmatprep.subr.mxu0 0.0
        %6577 = vmatpush2.msra.mxu0 0.0
        %6578 = vmatprep.subr.mxu0 0.0
        %6579 = vmatpush2.msra.mxu0 0.0
        %6580 = vmatprep.subr.mxu0 0.0
        %6581 = vmatpush2.msra.mxu0 0.0
        %6582 = vmatprep.subr.mxu0 0.0
        %6583 = vmatpush2.msra.mxu0 0.0
        %6584 = vmatprep.subr.mxu0 0.0
        %6585 = vmatpush2.msra.mxu0 0.0
        %6586 = vmatprep.subr.mxu0 0.0
        %6587 = vmatpush2.msra.mxu0 0.0
        %6588 = vmatprep.subr.mxu0 0.0
        %6589 = vmatpush2.msra.mxu0 0.0
        %6590 = vmatprep.subr.mxu0 0.0
        %6591 = vmatpush2.msra.mxu0 0.0
        %6592 = vmatprep.subr.mxu0 0.0
        %6593 = vmatpush2.msra.mxu0 0.0
        %6594 = vmatprep.subr.mxu0 0.0
        %6595 = vmatpush2.msra.mxu0 0.0
        %6596 = vmatprep.subr.mxu0 0.0
        %6597 = vmatpush2.msra.mxu0 0.0
        %6598 = vmatprep.mubr.f32.mxu0 0.0
        %6599 = vmatmul.mubr.f32.gmra.mxu0 %v6532
        %v6600 = vpop.f32.mrf.mxu0
        %v6601 = vadd.f32 0.0, %v6600
        %v6602 = vpop.f32.mrf.mxu0
        %6603 = vdwg.mxu0
        %6604 = vrot.lane.b32.xlu0 %v4183, 40
        %v6605 = vpop.permute.xlu0 %6604
        %v6608 = vsel %vm869, %v6523, 0
        %6610 = vmatprep.subr.mxu0 0.0
        %6611 = vmatpush1.msra.mxu0 0.0
        %6612 = vmatprep.subr.mxu0 0.0
        %6613 = vmatpush1.msra.mxu0 0.0
        %6614 = vmatprep.subr.mxu0 0.0
        %6615 = vmatpush1.msra.mxu0 0.0
        %6616 = vmatprep.subr.mxu0 0.0
        %6617 = vmatpush1.msra.mxu0 0.0
        %6618 = vmatprep.subr.mxu0 0.0
        %6619 = vmatpush1.msra.mxu0 0.0
        %6620 = vmatprep.subr.mxu0 0.0
        %6621 = vmatpush1.msra.mxu0 0.0
        %6622 = vmatprep.subr.mxu0 0.0
        %6623 = vmatpush1.msra.mxu0 0.0
        %6624 = vmatprep.subr.mxu0 0.0
        %6625 = vmatpush1.msra.mxu0 0.0
        %6626 = vmatprep.subr.mxu0 0.0
        %6627 = vmatpush1.msra.mxu0 0.0
        %6628 = vmatprep.subr.mxu0 0.0
        %6629 = vmatpush1.msra.mxu0 0.0
        %6630 = vmatprep.subr.mxu0 0.0
        %6631 = vmatpush1.msra.mxu0 0.0
        %6632 = vmatprep.subr.mxu0 0.0
        %6633 = vmatpush1.msra.mxu0 0.0
        %6634 = vmatprep.subr.mxu0 0.0
        %6635 = vmatpush1.msra.mxu0 0.0
        %6636 = vmatprep.subr.mxu0 0.0
        %6637 = vmatpush1.msra.mxu0 0.0
        %6638 = vmatprep.subr.mxu0 0.0
        %6639 = vmatpush1.msra.mxu0 0.0
        %6640 = vmatprep.subr.mxu0 0.0
        %6641 = vmatpush1.msra.mxu0 %v6605
        %6642 = vmatprep.subr.mxu0 0.0
        %6643 = vmatpush2.msra.mxu0 0.0
        %6644 = vmatprep.subr.mxu0 0.0
        %6645 = vmatpush2.msra.mxu0 0.0
        %6646 = vmatprep.subr.mxu0 0.0
        %6647 = vmatpush2.msra.mxu0 0.0
        %6648 = vmatprep.subr.mxu0 0.0
        %6649 = vmatpush2.msra.mxu0 0.0
        %6650 = vmatprep.subr.mxu0 0.0
        %6651 = vmatpush2.msra.mxu0 0.0
        %6652 = vmatprep.subr.mxu0 0.0
        %6653 = vmatpush2.msra.mxu0 0.0
        %6654 = vmatprep.subr.mxu0 0.0
        %6655 = vmatpush2.msra.mxu0 0.0
        %6656 = vmatprep.subr.mxu0 0.0
        %6657 = vmatpush2.msra.mxu0 0.0
        %6658 = vmatprep.subr.mxu0 0.0
        %6659 = vmatpush2.msra.mxu0 0.0
        %6660 = vmatprep.subr.mxu0 0.0
        %6661 = vmatpush2.msra.mxu0 0.0
        %6662 = vmatprep.subr.mxu0 0.0
        %6663 = vmatpush2.msra.mxu0 0.0
        %6664 = vmatprep.subr.mxu0 0.0
        %6665 = vmatpush2.msra.mxu0 0.0
        %6666 = vmatprep.subr.mxu0 0.0
        %6667 = vmatpush2.msra.mxu0 0.0
        %6668 = vmatprep.subr.mxu0 0.0
        %6669 = vmatpush2.msra.mxu0 0.0
        %6670 = vmatprep.subr.mxu0 0.0
        %6671 = vmatpush2.msra.mxu0 0.0
        %6672 = vmatprep.subr.mxu0 0.0
        %6673 = vmatpush2.msra.mxu0 0.0
        %6674 = vmatprep.mubr.f32.mxu0 0.0
        %6675 = vmatmul.mubr.f32.gmra.mxu0 %v6608
        %v6676 = vpop.f32.mrf.mxu0
        %v6677 = vadd.f32 0.0, %v6676
        %v6678 = vpop.f32.mrf.mxu0
        %6679 = vdwg.mxu0
        %6680 = vrot.lane.b32.xlu0 %v4188, 40
        %v6681 = vpop.permute.xlu0 %6680
        %v6684 = vsel %vm869, %v6525, 0
        %6686 = vmatprep.subr.mxu0 0.0
        %6687 = vmatpush1.msra.mxu0 0.0
        %6688 = vmatprep.subr.mxu0 0.0
        %6689 = vmatpush1.msra.mxu0 0.0
        %6690 = vmatprep.subr.mxu0 0.0
        %6691 = vmatpush1.msra.mxu0 0.0
        %6692 = vmatprep.subr.mxu0 0.0
        %6693 = vmatpush1.msra.mxu0 0.0
        %6694 = vmatprep.subr.mxu0 0.0
        %6695 = vmatpush1.msra.mxu0 0.0
        %6696 = vmatprep.subr.mxu0 0.0
        %6697 = vmatpush1.msra.mxu0 0.0
        %6698 = vmatprep.subr.mxu0 0.0
        %6699 = vmatpush1.msra.mxu0 0.0
        %6700 = vmatprep.subr.mxu0 0.0
        %6701 = vmatpush1.msra.mxu0 0.0
        %6702 = vmatprep.subr.mxu0 0.0
        %6703 = vmatpush1.msra.mxu0 0.0
        %6704 = vmatprep.subr.mxu0 0.0
        %6705 = vmatpush1.msra.mxu0 0.0
        %6706 = vmatprep.subr.mxu0 0.0
        %6707 = vmatpush1.msra.mxu0 0.0
        %6708 = vmatprep.subr.mxu0 0.0
        %6709 = vmatpush1.msra.mxu0 0.0
        %6710 = vmatprep.subr.mxu0 0.0
        %6711 = vmatpush1.msra.mxu0 0.0
        %6712 = vmatprep.subr.mxu0 0.0
        %6713 = vmatpush1.msra.mxu0 0.0
        %6714 = vmatprep.subr.mxu0 0.0
        %6715 = vmatpush1.msra.mxu0 0.0
        %6716 = vmatprep.subr.mxu0 0.0
        %6717 = vmatpush1.msra.mxu0 %v6681
        %6718 = vmatprep.subr.mxu0 0.0
        %6719 = vmatpush2.msra.mxu0 0.0
        %6720 = vmatprep.subr.mxu0 0.0
        %6721 = vmatpush2.msra.mxu0 0.0
        %6722 = vmatprep.subr.mxu0 0.0
        %6723 = vmatpush2.msra.mxu0 0.0
        %6724 = vmatprep.subr.mxu0 0.0
        %6725 = vmatpush2.msra.mxu0 0.0
        %6726 = vmatprep.subr.mxu0 0.0
        %6727 = vmatpush2.msra.mxu0 0.0
        %6728 = vmatprep.subr.mxu0 0.0
        %6729 = vmatpush2.msra.mxu0 0.0
        %6730 = vmatprep.subr.mxu0 0.0
        %6731 = vmatpush2.msra.mxu0 0.0
        %6732 = vmatprep.subr.mxu0 0.0
        %6733 = vmatpush2.msra.mxu0 0.0
        %6734 = vmatprep.subr.mxu0 0.0
        %6735 = vmatpush2.msra.mxu0 0.0
        %6736 = vmatprep.subr.mxu0 0.0
        %6737 = vmatpush2.msra.mxu0 0.0
        %6738 = vmatprep.subr.mxu0 0.0
        %6739 = vmatpush2.msra.mxu0 0.0
        %6740 = vmatprep.subr.mxu0 0.0
        %6741 = vmatpush2.msra.mxu0 0.0
        %6742 = vmatprep.subr.mxu0 0.0
        %6743 = vmatpush2.msra.mxu0 0.0
        %6744 = vmatprep.subr.mxu0 0.0
        %6745 = vmatpush2.msra.mxu0 0.0
        %6746 = vmatprep.subr.mxu0 0.0
        %6747 = vmatpush2.msra.mxu0 0.0
        %6748 = vmatprep.subr.mxu0 0.0
        %6749 = vmatpush2.msra.mxu0 0.0
        %6750 = vmatprep.mubr.f32.mxu0 0.0
        %6751 = vmatmul.mubr.f32.gmra.mxu0 %v6684
        %v6752 = vpop.f32.mrf.mxu0
        %v6753 = vadd.f32 0.0, %v6752
        %v6754 = vpop.f32.mrf.mxu0
        %6755 = vdwg.mxu0
        %6756 = vrot.lane.b32.xlu0 %v4193, 40
        %v6757 = vpop.permute.xlu0 %6756
        %v6760 = vsel %vm869, %v6527, 0
        %6762 = vmatprep.subr.mxu0 0.0
        %6763 = vmatpush1.msra.mxu0 0.0
        %6764 = vmatprep.subr.mxu0 0.0
        %6765 = vmatpush1.msra.mxu0 0.0
        %6766 = vmatprep.subr.mxu0 0.0
        %6767 = vmatpush1.msra.mxu0 0.0
        %6768 = vmatprep.subr.mxu0 0.0
        %6769 = vmatpush1.msra.mxu0 0.0
        %6770 = vmatprep.subr.mxu0 0.0
        %6771 = vmatpush1.msra.mxu0 0.0
        %6772 = vmatprep.subr.mxu0 0.0
        %6773 = vmatpush1.msra.mxu0 0.0
        %6774 = vmatprep.subr.mxu0 0.0
        %6775 = vmatpush1.msra.mxu0 0.0
        %6776 = vmatprep.subr.mxu0 0.0
        %6777 = vmatpush1.msra.mxu0 0.0
        %6778 = vmatprep.subr.mxu0 0.0
        %6779 = vmatpush1.msra.mxu0 0.0
        %6780 = vmatprep.subr.mxu0 0.0
        %6781 = vmatpush1.msra.mxu0 0.0
        %6782 = vmatprep.subr.mxu0 0.0
        %6783 = vmatpush1.msra.mxu0 0.0
        %6784 = vmatprep.subr.mxu0 0.0
        %6785 = vmatpush1.msra.mxu0 0.0
        %6786 = vmatprep.subr.mxu0 0.0
        %6787 = vmatpush1.msra.mxu0 0.0
        %6788 = vmatprep.subr.mxu0 0.0
        %6789 = vmatpush1.msra.mxu0 0.0
        %6790 = vmatprep.subr.mxu0 0.0
        %6791 = vmatpush1.msra.mxu0 0.0
        %6792 = vmatprep.subr.mxu0 0.0
        %6793 = vmatpush1.msra.mxu0 %v6757
        %6794 = vmatprep.subr.mxu0 0.0
        %6795 = vmatpush2.msra.mxu0 0.0
        %6796 = vmatprep.subr.mxu0 0.0
        %6797 = vmatpush2.msra.mxu0 0.0
        %6798 = vmatprep.subr.mxu0 0.0
        %6799 = vmatpush2.msra.mxu0 0.0
        %6800 = vmatprep.subr.mxu0 0.0
        %6801 = vmatpush2.msra.mxu0 0.0
        %6802 = vmatprep.subr.mxu0 0.0
        %6803 = vmatpush2.msra.mxu0 0.0
        %6804 = vmatprep.subr.mxu0 0.0
        %6805 = vmatpush2.msra.mxu0 0.0
        %6806 = vmatprep.subr.mxu0 0.0
        %6807 = vmatpush2.msra.mxu0 0.0
        %6808 = vmatprep.subr.mxu0 0.0
        %6809 = vmatpush2.msra.mxu0 0.0
        %6810 = vmatprep.subr.mxu0 0.0
        %6811 = vmatpush2.msra.mxu0 0.0
        %6812 = vmatprep.subr.mxu0 0.0
        %6813 = vmatpush2.msra.mxu0 0.0
        %6814 = vmatprep.subr.mxu0 0.0
        %6815 = vmatpush2.msra.mxu0 0.0
        %6816 = vmatprep.subr.mxu0 0.0
        %6817 = vmatpush2.msra.mxu0 0.0
        %6818 = vmatprep.subr.mxu0 0.0
        %6819 = vmatpush2.msra.mxu0 0.0
        %6820 = vmatprep.subr.mxu0 0.0
        %6821 = vmatpush2.msra.mxu0 0.0
        %6822 = vmatprep.subr.mxu0 0.0
        %6823 = vmatpush2.msra.mxu0 0.0
        %6824 = vmatprep.subr.mxu0 0.0
        %6825 = vmatpush2.msra.mxu0 0.0
        %6826 = vmatprep.mubr.f32.mxu0 0.0
        %6827 = vmatmul.mubr.f32.gmra.mxu0 %v6760
        %v6828 = vpop.f32.mrf.mxu0
        %v6829 = vadd.f32 0.0, %v6828
        %v6830 = vpop.f32.mrf.mxu0
        %6831 = vdwg.mxu0
        %6836 = vrot.lane.b32.xlu0 %v5281, 8
        %v6837 = vpop.permute.xlu0 %6836
        %6838 = vrot.lane.b32.xlu0 %v5357, 8
        %v6839 = vpop.permute.xlu0 %6838
        %6840 = vrot.lane.b32.xlu0 %v5433, 8
        %v6841 = vpop.permute.xlu0 %6840
        %6842 = vrot.lane.b32.xlu0 %v5509, 8
        %v6843 = vpop.permute.xlu0 %6842
        %6852 = vrot.lane.b32.xlu0 %v5941, 16
        %v6853 = vpop.permute.xlu0 %6852
        %6854 = vrot.lane.b32.xlu0 %v6017, 16
        %v6855 = vpop.permute.xlu0 %6854
        %6856 = vrot.lane.b32.xlu0 %v6093, 16
        %v6857 = vpop.permute.xlu0 %6856
        %6858 = vrot.lane.b32.xlu0 %v6169, 16
        %v6859 = vpop.permute.xlu0 %6858
        %6868 = vrot.lane.b32.xlu0 %v6601, 24
        %v6869 = vpop.permute.xlu0 %6868
        %6870 = vrot.lane.b32.xlu0 %v6677, 24
        %v6871 = vpop.permute.xlu0 %6870
        %6872 = vrot.lane.b32.xlu0 %v6753, 24
        %v6873 = vpop.permute.xlu0 %6872
        %6874 = vrot.lane.b32.xlu0 %v6829, 24
        %v6875 = vpop.permute.xlu0 %6874
        %v6880 = vsel %vm869, %v4621, %v6837
        %v6881 = vsel %vm869, %v4697, %v6839
        %v6882 = vsel %vm869, %v4773, %v6841
        %v6883 = vsel %vm869, %v4849, %v6843
        %v6884 = vsel %vm3555, %v6880, %v6853
        %v6885 = vsel %vm3555, %v6881, %v6855
        %v6886 = vsel %vm3555, %v6882, %v6857
        %v6887 = vsel %vm3555, %v6883, %v6859
        %v6888 = vsel %vm3560, %v6884, %v6869
        %v6889 = vsel %vm3560, %v6885, %v6871
        %v6890 = vsel %vm3560, %v6886, %v6873
        %v6891 = vsel %vm3560, %v6887, %v6875
        %s6892 = scalar_lea.vmem %s6, 32
        %v6893 = vld [vmem:[%s6892] sm:$0xff]
        %v6894 = vld [vmem:[%s6892 + $0x8] sm:$0xff]
        %v6895 = vld [vmem:[%s6892 + $0x10] sm:$0xff]
        %v6896 = vld [vmem:[%s6892 + $0x18] sm:$0xff]
        %s6897 = scalar_lea.vmem %s7, 1
        %v6898 = vld [vmem:[%s6897] sm:$0x1]
        %v6900 = vlaneseq
        %v6901 = vshrl.u32 %v6900, 7
        %v6902 = vsub.s32 0, %v6901
        %v6903 = vrot.slane %v6898, %v6902
        %v6906 = vsel %vm660, %v6888, 0
        %v6909 = vsel %vm660, %v6889, 0
        %v6912 = vsel %vm660, %v6890, 0
        %v6915 = vsel %vm660, %v6891, 0
        %6917 = vmatprep.subr.mxu0 0.0
        %6918 = vmatpush1.msra.mxu0 0.0
        %6919 = vmatprep.subr.mxu0 0.0
        %6920 = vmatpush1.msra.mxu0 0.0
        %6921 = vmatprep.subr.mxu0 0.0
        %6922 = vmatpush1.msra.mxu0 0.0
        %6923 = vmatprep.subr.mxu0 0.0
        %6924 = vmatpush1.msra.mxu0 0.0
        %6925 = vmatprep.subr.mxu0 0.0
        %6926 = vmatpush1.msra.mxu0 0.0
        %6927 = vmatprep.subr.mxu0 0.0
        %6928 = vmatpush1.msra.mxu0 0.0
        %6929 = vmatprep.subr.mxu0 0.0
        %6930 = vmatpush1.msra.mxu0 0.0
        %6931 = vmatprep.subr.mxu0 0.0
        %6932 = vmatpush1.msra.mxu0 0.0
        %6933 = vmatprep.subr.mxu0 0.0
        %6934 = vmatpush1.msra.mxu0 0.0
        %6935 = vmatprep.subr.mxu0 0.0
        %6936 = vmatpush1.msra.mxu0 0.0
        %6937 = vmatprep.subr.mxu0 0.0
        %6938 = vmatpush1.msra.mxu0 0.0
        %6939 = vmatprep.subr.mxu0 0.0
        %6940 = vmatpush1.msra.mxu0 0.0
        %6941 = vmatprep.subr.mxu0 0.0
        %6942 = vmatpush1.msra.mxu0 %v6896
        %6943 = vmatprep.subr.mxu0 0.0
        %6944 = vmatpush1.msra.mxu0 %v6895
        %6945 = vmatprep.subr.mxu0 0.0
        %6946 = vmatpush1.msra.mxu0 %v6894
        %6947 = vmatprep.subr.mxu0 0.0
        %6948 = vmatpush1.msra.mxu0 %v6893
        %6949 = vmatprep.subr.mxu0 0.0
        %6950 = vmatpush2.msra.mxu0 0.0
        %6951 = vmatprep.subr.mxu0 0.0
        %6952 = vmatpush2.msra.mxu0 0.0
        %6953 = vmatprep.subr.mxu0 0.0
        %6954 = vmatpush2.msra.mxu0 0.0
        %6955 = vmatprep.subr.mxu0 0.0
        %6956 = vmatpush2.msra.mxu0 0.0
        %6957 = vmatprep.subr.mxu0 0.0
        %6958 = vmatpush2.msra.mxu0 0.0
        %6959 = vmatprep.subr.mxu0 0.0
        %6960 = vmatpush2.msra.mxu0 0.0
        %6961 = vmatprep.subr.mxu0 0.0
        %6962 = vmatpush2.msra.mxu0 0.0
        %6963 = vmatprep.subr.mxu0 0.0
        %6964 = vmatpush2.msra.mxu0 0.0
        %6965 = vmatprep.subr.mxu0 0.0
        %6966 = vmatpush2.msra.mxu0 0.0
        %6967 = vmatprep.subr.mxu0 0.0
        %6968 = vmatpush2.msra.mxu0 0.0
        %6969 = vmatprep.subr.mxu0 0.0
        %6970 = vmatpush2.msra.mxu0 0.0
        %6971 = vmatprep.subr.mxu0 0.0
        %6972 = vmatpush2.msra.mxu0 0.0
        %6973 = vmatprep.subr.mxu0 0.0
        %6974 = vmatpush2.msra.mxu0 0.0
        %6975 = vmatprep.subr.mxu0 0.0
        %6976 = vmatpush2.msra.mxu0 0.0
        %6977 = vmatprep.subr.mxu0 0.0
        %6978 = vmatpush2.msra.mxu0 0.0
        %6979 = vmatprep.subr.mxu0 0.0
        %6980 = vmatpush2.msra.mxu0 0.0
        %6981 = vmatprep.mubr.f32.mxu0 0.0
        %6982 = vmatmul.mubr.f32.gmra.mxu0 %v6906
        %v6983 = vpop.f32.mrf.mxu0
        %v6984 = vadd.f32 %v6903, %v6983
        %v6985 = vpop.f32.mrf.mxu0
        %6986 = vmatprep.mubr.f32.mxu0 0.0
        %6987 = vmatmul.mubr.f32.gmra.mxu0 %v6909
        %v6988 = vpop.f32.mrf.mxu0
        %v6989 = vadd.f32 %v6903, %v6988
        %v6990 = vpop.f32.mrf.mxu0
        %6991 = vmatprep.mubr.f32.mxu0 0.0
        %6992 = vmatmul.mubr.f32.gmra.mxu0 %v6912
        %v6993 = vpop.f32.mrf.mxu0
        %v6994 = vadd.f32 %v6903, %v6993
        %v6995 = vpop.f32.mrf.mxu0
        %6996 = vmatprep.mubr.f32.mxu0 0.0
        %6997 = vmatmul.mubr.f32.gmra.mxu0 %v6915
        %v6998 = vpop.f32.mrf.mxu0
        %v6999 = vadd.f32 %v6903, %v6998
        %v7000 = vpop.f32.mrf.mxu0
        %7001 = vdwg.mxu0
        %v7002 = vadd.f32 %v6984, %v4082
        %v7003 = vadd.f32 %v6989, %v4083
        %v7004 = vadd.f32 %v6994, %v4084
        %v7005 = vadd.f32 %v6999, %v4085
        %s7006 = scalar_lea.vmem %s8, 1
        %v7007 = vld [vmem:[%s7006] sm:$0x1]
        %s7008 = scalar_lea.vmem %s9, 1
        %v7009 = vld [vmem:[%s7008] sm:$0x1]
        %v7010 = vsel %vm660, %v7002, 0.0
        %7011 = vadd.xlane.f32.xlu0 %v7010
        %v7012 = vpop.xlane.xlu0 %7011
        %v7013 = vsel %vm660, %v7003, 0.0
        %7014 = vadd.xlane.f32.xlu0 %v7013
        %v7015 = vpop.xlane.xlu0 %7014
        %v7016 = vsel %vm660, %v7004, 0.0
        %7017 = vadd.xlane.f32.xlu0 %v7016
        %v7018 = vpop.xlane.xlu0 %7017
        %v7019 = vsel %vm660, %v7005, 0.0
        %7020 = vadd.xlane.f32.xlu0 %v7019
        %v7021 = vpop.xlane.xlu0 %7020
        %v7022 = vmul.f32 %v7012, %v673
        %v7023 = vmul.f32 %v7015, %v673
        %v7024 = vmul.f32 %v7018, %v673
        %v7025 = vmul.f32 %v7021, %v673
        %v7026 = vsub.f32 %v7002, %v7022
        %v7027 = vsub.f32 %v7003, %v7023
        %v7028 = vsub.f32 %v7004, %v7024
        %v7029 = vsub.f32 %v7005, %v7025
        %v7030 = vmul.f32 %v7026, %v7026
        %v7031 = vmul.f32 %v7027, %v7027
        %v7032 = vmul.f32 %v7028, %v7028
        %v7033 = vmul.f32 %v7029, %v7029
        %v7034 = vsel %vm660, %v7030, 0.0
        %7035 = vadd.xlane.f32.xlu0 %v7034
        %v7036 = vpop.xlane.xlu0 %7035
        %v7037 = vsel %vm660, %v7031, 0.0
        %7038 = vadd.xlane.f32.xlu0 %v7037
        %v7039 = vpop.xlane.xlu0 %7038
        %v7040 = vsel %vm660, %v7032, 0.0
        %7041 = vadd.xlane.f32.xlu0 %v7040
        %v7042 = vpop.xlane.xlu0 %7041
        %v7043 = vsel %vm660, %v7033, 0.0
        %7044 = vadd.xlane.f32.xlu0 %v7043
        %v7045 = vpop.xlane.xlu0 %7044
        %v7046 = vmul.f32 %v7036, %v673
        %v7047 = vmul.f32 %v7039, %v673
        %v7048 = vmul.f32 %v7042, %v673
        %v7049 = vmul.f32 %v7045, %v673
        %v7050 = vadd.f32 %v7046, 1e-12
        %v7051 = vadd.f32 %v7047, 1e-12
        %v7052 = vadd.f32 %v7048, 1e-12
        %v7053 = vadd.f32 %v7049, 1e-12
        %v7054 = vrsqrt.pop %v7050
        %v7055 = vrsqrt.pop %v7051
        %v7056 = vrsqrt.pop %v7052
        %v7057 = vrsqrt.pop %v7053
        %v7058 = vmul.f32 %v7026, %v7054
        %v7059 = vmul.f32 %v7027, %v7055
        %v7060 = vmul.f32 %v7028, %v7056
        %v7061 = vmul.f32 %v7029, %v7057
        %v7063 = vlaneseq
        %v7064 = vshrl.u32 %v7063, 7
        %v7065 = vsub.s32 0, %v7064
        %v7066 = vrot.slane %v7007, %v7065
        %v7068 = vmul.f32 %v7058, %v7066
        %v7069 = vmul.f32 %v7059, %v7066
        %v7070 = vmul.f32 %v7060, %v7066
        %v7071 = vmul.f32 %v7061, %v7066
        %v7073 = vlaneseq
        %v7074 = vshrl.u32 %v7073, 7
        %v7075 = vsub.s32 0, %v7074
        %v7076 = vrot.slane %v7009, %v7075
        %v7078 = vadd.f32 %v7068, %v7076
        %v7079 = vadd.f32 %v7069, %v7076
        %v7080 = vadd.f32 %v7070, %v7076
        %v7081 = vadd.f32 %v7071, %v7076
        %s7082 = scalar_lea.vmem %s10, 32
        %v7083 = vld [vmem:[%s7082] sm:$0xff]
        %v7084 = vld [vmem:[%s7082 + $0x8] sm:$0xff]
        %v7085 = vld [vmem:[%s7082 + $0x10] sm:$0xff]
        %v7086 = vld [vmem:[%s7082 + $0x18] sm:$0xff]
        %s7087 = scalar_lea.vmem %s11, 1
        %v7088 = vld [vmem:[%s7087] sm:$0x1]
        %v7090 = vlaneseq
        %v7091 = vshrl.u32 %v7090, 7
        %v7092 = vsub.s32 0, %v7091
        %v7093 = vrot.slane %v7088, %v7092
        %v7096 = vsel %vm660, %v7078, 0
        %v7099 = vsel %vm660, %v7079, 0
        %v7102 = vsel %vm660, %v7080, 0
        %v7105 = vsel %vm660, %v7081, 0
        %7107 = vmatprep.subr.mxu0 0.0
        %7108 = vmatpush1.msra.mxu0 0.0
        %7109 = vmatprep.subr.mxu0 0.0
        %7110 = vmatpush1.msra.mxu0 0.0
        %7111 = vmatprep.subr.mxu0 0.0
        %7112 = vmatpush1.msra.mxu0 0.0
        %7113 = vmatprep.subr.mxu0 0.0
        %7114 = vmatpush1.msra.mxu0 0.0
        %7115 = vmatprep.subr.mxu0 0.0
        %7116 = vmatpush1.msra.mxu0 0.0
        %7117 = vmatprep.subr.mxu0 0.0
        %7118 = vmatpush1.msra.mxu0 0.0
        %7119 = vmatprep.subr.mxu0 0.0
        %7120 = vmatpush1.msra.mxu0 0.0
        %7121 = vmatprep.subr.mxu0 0.0
        %7122 = vmatpush1.msra.mxu0 0.0
        %7123 = vmatprep.subr.mxu0 0.0
        %7124 = vmatpush1.msra.mxu0 0.0
        %7125 = vmatprep.subr.mxu0 0.0
        %7126 = vmatpush1.msra.mxu0 0.0
        %7127 = vmatprep.subr.mxu0 0.0
        %7128 = vmatpush1.msra.mxu0 0.0
        %7129 = vmatprep.subr.mxu0 0.0
        %7130 = vmatpush1.msra.mxu0 0.0
        %7131 = vmatprep.subr.mxu0 0.0
        %7132 = vmatpush1.msra.mxu0 %v7086
        %7133 = vmatprep.subr.mxu0 0.0
        %7134 = vmatpush1.msra.mxu0 %v7085
        %7135 = vmatprep.subr.mxu0 0.0
        %7136 = vmatpush1.msra.mxu0 %v7084
        %7137 = vmatprep.subr.mxu0 0.0
        %7138 = vmatpush1.msra.mxu0 %v7083
        %7139 = vmatprep.subr.mxu0 0.0
        %7140 = vmatpush2.msra.mxu0 0.0
        %7141 = vmatprep.subr.mxu0 0.0
        %7142 = vmatpush2.msra.mxu0 0.0
        %7143 = vmatprep.subr.mxu0 0.0
        %7144 = vmatpush2.msra.mxu0 0.0
        %7145 = vmatprep.subr.mxu0 0.0
        %7146 = vmatpush2.msra.mxu0 0.0
        %7147 = vmatprep.subr.mxu0 0.0
        %7148 = vmatpush2.msra.mxu0 0.0
        %7149 = vmatprep.subr.mxu0 0.0
        %7150 = vmatpush2.msra.mxu0 0.0
        %7151 = vmatprep.subr.mxu0 0.0
        %7152 = vmatpush2.msra.mxu0 0.0
        %7153 = vmatprep.subr.mxu0 0.0
        %7154 = vmatpush2.msra.mxu0 0.0
        %7155 = vmatprep.subr.mxu0 0.0
        %7156 = vmatpush2.msra.mxu0 0.0
        %7157 = vmatprep.subr.mxu0 0.0
        %7158 = vmatpush2.msra.mxu0 0.0
        %7159 = vmatprep.subr.mxu0 0.0
        %7160 = vmatpush2.msra.mxu0 0.0
        %7161 = vmatprep.subr.mxu0 0.0
        %7162 = vmatpush2.msra.mxu0 0.0
        %7163 = vmatprep.subr.mxu0 0.0
        %7164 = vmatpush2.msra.mxu0 0.0
        %7165 = vmatprep.subr.mxu0 0.0
        %7166 = vmatpush2.msra.mxu0 0.0
        %7167 = vmatprep.subr.mxu0 0.0
        %7168 = vmatpush2.msra.mxu0 0.0
        %7169 = vmatprep.subr.mxu0 0.0
        %7170 = vmatpush2.msra.mxu0 0.0
        %7171 = vmatprep.mubr.f32.mxu0 0.0
        %7172 = vmatmul.mubr.f32.gmra.mxu0 %v7096
        %v7173 = vpop.f32.mrf.mxu0
        %v7174 = vadd.f32 %v7093, %v7173
        %v7175 = vpop.f32.mrf.mxu0
        %7176 = vmatprep.mubr.f32.mxu0 0.0
        %7177 = vmatmul.mubr.f32.gmra.mxu0 %v7099
        %v7178 = vpop.f32.mrf.mxu0
        %v7179 = vadd.f32 %v7093, %v7178
        %v7180 = vpop.f32.mrf.mxu0
        %7181 = vmatprep.mubr.f32.mxu0 0.0
        %7182 = vmatmul.mubr.f32.gmra.mxu0 %v7102
        %v7183 = vpop.f32.mrf.mxu0
        %v7184 = vadd.f32 %v7093, %v7183
        %v7185 = vpop.f32.mrf.mxu0
        %7186 = vmatprep.mubr.f32.mxu0 0.0
        %7187 = vmatmul.mubr.f32.gmra.mxu0 %v7105
        %v7188 = vpop.f32.mrf.mxu0
        %v7189 = vadd.f32 %v7093, %v7188
        %v7190 = vpop.f32.mrf.mxu0
        %7191 = vdwg.mxu0
        %v7192 = vmul.f32 %v7174, 0.5
        %v7193 = vmul.f32 %v7179, 0.5
        %v7194 = vmul.f32 %v7184, 0.5
        %v7195 = vmul.f32 %v7189, 0.5
        %v7196 = vmul.f32 %v7174, 0.044715
        %v7197 = vmul.f32 %v7179, 0.044715
        %v7198 = vmul.f32 %v7184, 0.044715
        %v7199 = vmul.f32 %v7189, 0.044715
        %v7200 = vmul.f32 %v7196, %v7174
        %v7201 = vmul.f32 %v7197, %v7179
        %v7202 = vmul.f32 %v7198, %v7184
        %v7203 = vmul.f32 %v7199, %v7189
        %v7204 = vmul.f32 %v7200, %v7174
        %v7205 = vmul.f32 %v7201, %v7179
        %v7206 = vmul.f32 %v7202, %v7184
        %v7207 = vmul.f32 %v7203, %v7189
        %v7208 = vadd.f32 %v7174, %v7204
        %v7209 = vadd.f32 %v7179, %v7205
        %v7210 = vadd.f32 %v7184, %v7206
        %v7211 = vadd.f32 %v7189, %v7207
        %v7212 = vmul.f32 %v7208, 0.7978846
        %v7213 = vmul.f32 %v7209, 0.7978846
        %v7214 = vmul.f32 %v7210, 0.7978846
        %v7215 = vmul.f32 %v7211, 0.7978846
        %v7216 = vtanh.pop %v7212
        %v7217 = vtanh.pop %v7213
        %v7218 = vtanh.pop %v7214
        %v7219 = vtanh.pop %v7215
        %v7220 = vadd.f32 %v7216, 1.0
        %v7221 = vadd.f32 %v7217, 1.0
        %v7222 = vadd.f32 %v7218, 1.0
        %v7223 = vadd.f32 %v7219, 1.0
        %v7224 = vmul.f32 %v7192, %v7220
        %v7225 = vmul.f32 %v7193, %v7221
        %v7226 = vmul.f32 %v7194, %v7222
        %v7227 = vmul.f32 %v7195, %v7223
        %s7228 = scalar_lea.vmem %s12, 64
        %v7229 = vld [vmem:[%s7228] sm:$0xff]
        %v7230 = vld [vmem:[%s7228 + $0x8] sm:$0xff]
        %v7231 = vld [vmem:[%s7228 + $0x10] sm:$0xff]
        %v7232 = vld [vmem:[%s7228 + $0x18] sm:$0xff]
        %v7233 = vld [vmem:[%s7228 + $0x20] sm:$0xff]
        %v7234 = vld [vmem:[%s7228 + $0x28] sm:$0xff]
        %v7235 = vld [vmem:[%s7228 + $0x30] sm:$0xff]
        %v7236 = vld [vmem:[%s7228 + $0x38] sm:$0xff]
        %s7237 = scalar_lea.vmem %s13, 1
        %v7238 = vld [vmem:[%s7237] sm:$0x1]
        %v7240 = vlaneseq
        %v7241 = vshrl.u32 %v7240, 7
        %v7242 = vsub.s32 0, %v7241
        %v7243 = vrot.slane %v7238, %v7242
        %v7246 = vsel %vm3910, %v7224, 0
        %v7249 = vsel %vm3910, %v7225, 0
        %v7252 = vsel %vm3910, %v7226, 0
        %v7255 = vsel %vm3910, %v7227, 0
        %7257 = vmatprep.subr.mxu0 0.0
        %7258 = vmatpush1.msra.mxu0 0.0
        %7259 = vmatprep.subr.mxu0 0.0
        %7260 = vmatpush1.msra.mxu0 0.0
        %7261 = vmatprep.subr.mxu0 0.0
        %7262 = vmatpush1.msra.mxu0 0.0
        %7263 = vmatprep.subr.mxu0 0.0
        %7264 = vmatpush1.msra.mxu0 0.0
        %7265 = vmatprep.subr.mxu0 0.0
        %7266 = vmatpush1.msra.mxu0 0.0
        %7267 = vmatprep.subr.mxu0 0.0
        %7268 = vmatpush1.msra.mxu0 0.0
        %7269 = vmatprep.subr.mxu0 0.0
        %7270 = vmatpush1.msra.mxu0 0.0
        %7271 = vmatprep.subr.mxu0 0.0
        %7272 = vmatpush1.msra.mxu0 0.0
        %7273 = vmatprep.subr.mxu0 0.0
        %7274 = vmatpush1.msra.mxu0 %v7236
        %7275 = vmatprep.subr.mxu0 0.0
        %7276 = vmatpush1.msra.mxu0 %v7235
        %7277 = vmatprep.subr.mxu0 0.0
        %7278 = vmatpush1.msra.mxu0 %v7234
        %7279 = vmatprep.subr.mxu0 0.0
        %7280 = vmatpush1.msra.mxu0 %v7233
        %7281 = vmatprep.subr.mxu0 0.0
        %7282 = vmatpush1.msra.mxu0 %v7232
        %7283 = vmatprep.subr.mxu0 0.0
        %7284 = vmatpush1.msra.mxu0 %v7231
        %7285 = vmatprep.subr.mxu0 0.0
        %7286 = vmatpush1.msra.mxu0 %v7230
        %7287 = vmatprep.subr.mxu0 0.0
        %7288 = vmatpush1.msra.mxu0 %v7229
        %7289 = vmatprep.subr.mxu0 0.0
        %7290 = vmatpush2.msra.mxu0 0.0
        %7291 = vmatprep.subr.mxu0 0.0
        %7292 = vmatpush2.msra.mxu0 0.0
        %7293 = vmatprep.subr.mxu0 0.0
        %7294 = vmatpush2.msra.mxu0 0.0
        %7295 = vmatprep.subr.mxu0 0.0
        %7296 = vmatpush2.msra.mxu0 0.0
        %7297 = vmatprep.subr.mxu0 0.0
        %7298 = vmatpush2.msra.mxu0 0.0
        %7299 = vmatprep.subr.mxu0 0.0
        %7300 = vmatpush2.msra.mxu0 0.0
        %7301 = vmatprep.subr.mxu0 0.0
        %7302 = vmatpush2.msra.mxu0 0.0
        %7303 = vmatprep.subr.mxu0 0.0
        %7304 = vmatpush2.msra.mxu0 0.0
        %7305 = vmatprep.subr.mxu0 0.0
        %7306 = vmatpush2.msra.mxu0 0.0
        %7307 = vmatprep.subr.mxu0 0.0
        %7308 = vmatpush2.msra.mxu0 0.0
        %7309 = vmatprep.subr.mxu0 0.0
        %7310 = vmatpush2.msra.mxu0 0.0
        %7311 = vmatprep.subr.mxu0 0.0
        %7312 = vmatpush2.msra.mxu0 0.0
        %7313 = vmatprep.subr.mxu0 0.0
        %7314 = vmatpush2.msra.mxu0 0.0
        %7315 = vmatprep.subr.mxu0 0.0
        %7316 = vmatpush2.msra.mxu0 0.0
        %7317 = vmatprep.subr.mxu0 0.0
        %7318 = vmatpush2.msra.mxu0 0.0
        %7319 = vmatprep.subr.mxu0 0.0
        %7320 = vmatpush2.msra.mxu0 0.0
        %7321 = vmatprep.mubr.f32.mxu0 0.0
        %7322 = vmatmul.mubr.f32.gmra.mxu0 %v7246
        %v7323 = vpop.f32.mrf.mxu0
        %v7324 = vadd.f32 %v7243, %v7323
        %v7325 = vpop.f32.mrf.mxu0
        %7326 = vmatprep.mubr.f32.mxu0 0.0
        %7327 = vmatmul.mubr.f32.gmra.mxu0 %v7249
        %v7328 = vpop.f32.mrf.mxu0
        %v7329 = vadd.f32 %v7243, %v7328
        %v7330 = vpop.f32.mrf.mxu0
        %7331 = vmatprep.mubr.f32.mxu0 0.0
        %7332 = vmatmul.mubr.f32.gmra.mxu0 %v7252
        %v7333 = vpop.f32.mrf.mxu0
        %v7334 = vadd.f32 %v7243, %v7333
        %v7335 = vpop.f32.mrf.mxu0
        %7336 = vmatprep.mubr.f32.mxu0 0.0
        %7337 = vmatmul.mubr.f32.gmra.mxu0 %v7255
        %v7338 = vpop.f32.mrf.mxu0
        %v7339 = vadd.f32 %v7243, %v7338
        %v7340 = vpop.f32.mrf.mxu0
        %7341 = vdwg.mxu0
        %v7342 = vadd.f32 %v7324, %v7078
        %v7343 = vadd.f32 %v7329, %v7079
        %v7344 = vadd.f32 %v7334, %v7080
        %v7345 = vadd.f32 %v7339, %v7081
        %s7346 = scalar_lea.vmem %s14, 1
        %v7347 = vld [vmem:[%s7346] sm:$0x1]
        %s7348 = scalar_lea.vmem %s15, 1
        %v7349 = vld [vmem:[%s7348] sm:$0x1]
        %v7350 = vsel %vm660, %v7342, 0.0
        %7351 = vadd.xlane.f32.xlu0 %v7350
        %v7352 = vpop.xlane.xlu0 %7351
        %v7353 = vsel %vm660, %v7343, 0.0
        %7354 = vadd.xlane.f32.xlu0 %v7353
        %v7355 = vpop.xlane.xlu0 %7354
        %v7356 = vsel %vm660, %v7344, 0.0
        %7357 = vadd.xlane.f32.xlu0 %v7356
        %v7358 = vpop.xlane.xlu0 %7357
        %v7359 = vsel %vm660, %v7345, 0.0
        %7360 = vadd.xlane.f32.xlu0 %v7359
        %v7361 = vpop.xlane.xlu0 %7360
        %v7362 = vmul.f32 %v7352, %v673
        %v7363 = vmul.f32 %v7355, %v673
        %v7364 = vmul.f32 %v7358, %v673
        %v7365 = vmul.f32 %v7361, %v673
        %v7366 = vsub.f32 %v7342, %v7362
        %v7367 = vsub.f32 %v7343, %v7363
        %v7368 = vsub.f32 %v7344, %v7364
        %v7369 = vsub.f32 %v7345, %v7365
        %v7370 = vmul.f32 %v7366, %v7366
        %v7371 = vmul.f32 %v7367, %v7367
        %v7372 = vmul.f32 %v7368, %v7368
        %v7373 = vmul.f32 %v7369, %v7369
        %v7374 = vsel %vm660, %v7370, 0.0
        %7375 = vadd.xlane.f32.xlu0 %v7374
        %v7376 = vpop.xlane.xlu0 %7375
        %v7377 = vsel %vm660, %v7371, 0.0
        %7378 = vadd.xlane.f32.xlu0 %v7377
        %v7379 = vpop.xlane.xlu0 %7378
        %v7380 = vsel %vm660, %v7372, 0.0
        %7381 = vadd.xlane.f32.xlu0 %v7380
        %v7382 = vpop.xlane.xlu0 %7381
        %v7383 = vsel %vm660, %v7373, 0.0
        %7384 = vadd.xlane.f32.xlu0 %v7383
        %v7385 = vpop.xlane.xlu0 %7384
        %v7386 = vmul.f32 %v7376, %v673
        %v7387 = vmul.f32 %v7379, %v673
        %v7388 = vmul.f32 %v7382, %v673
        %v7389 = vmul.f32 %v7385, %v673
        %v7390 = vadd.f32 %v7386, 1e-12
        %v7391 = vadd.f32 %v7387, 1e-12
        %v7392 = vadd.f32 %v7388, 1e-12
        %v7393 = vadd.f32 %v7389, 1e-12
        %v7394 = vrsqrt.pop %v7390
        %v7395 = vrsqrt.pop %v7391
        %v7396 = vrsqrt.pop %v7392
        %v7397 = vrsqrt.pop %v7393
        %v7398 = vmul.f32 %v7366, %v7394
        %v7399 = vmul.f32 %v7367, %v7395
        %v7400 = vmul.f32 %v7368, %v7396
        %v7401 = vmul.f32 %v7369, %v7397
        %v7403 = vlaneseq
        %v7404 = vshrl.u32 %v7403, 7
        %v7405 = vsub.s32 0, %v7404
        %v7406 = vrot.slane %v7347, %v7405
        %v7408 = vmul.f32 %v7398, %v7406
        %v7409 = vmul.f32 %v7399, %v7406
        %v7410 = vmul.f32 %v7400, %v7406
        %v7411 = vmul.f32 %v7401, %v7406
        %v7413 = vlaneseq
        %v7414 = vshrl.u32 %v7413, 7
        %v7415 = vsub.s32 0, %v7414
        %v7416 = vrot.slane %v7349, %v7415
        %v7418 = vadd.f32 %v7408, %v7416
        %v7419 = vadd.f32 %v7409, %v7416
        %v7420 = vadd.f32 %v7410, %v7416
        %v7421 = vadd.f32 %v7411, %v7416
        %v7422 = vld [vmem:[%s16] sm:$0xff]
        %v7423 = vld [vmem:[%s16 + $0x8] sm:$0xff]
        %v7424 = vld [vmem:[%s16 + $0x10] sm:$0xff]
        %v7425 = vld [vmem:[%s16 + $0x18] sm:$0xff]
        %v7426 = vld [vmem:[%s17] sm:$0x1]
        %v7428 = vlaneseq
        %v7429 = vshrl.u32 %v7428, 7
        %v7430 = vsub.s32 0, %v7429
        %v7431 = vrot.slane %v7426, %v7430
        %v7437 = vrot.slane %v7419, 7
        %vm7438 = vcmask 1041409
        %v7439 = vsel %vm7438, %v7437, %v7418
        %v7440 = vrot.slane %v7420, 6
        %vm7441 = vcmask 1042434
        %v7442 = vsel %vm7441, %v7440, %v7439
        %v7443 = vrot.slane %v7421, 5
        %vm7444 = vcmask 1043459
        %v7445 = vsel %vm7444, %v7443, %v7442
        %v7446 = vsel %vm660, %v7445, 0
        %7448 = vmatprep.subr.mxu0 0.0
        %7449 = vmatpush1.msra.mxu0 0.0
        %7450 = vmatprep.subr.mxu0 0.0
        %7451 = vmatpush1.msra.mxu0 0.0
        %7452 = vmatprep.subr.mxu0 0.0
        %7453 = vmatpush1.msra.mxu0 0.0
        %7454 = vmatprep.subr.mxu0 0.0
        %7455 = vmatpush1.msra.mxu0 0.0
        %7456 = vmatprep.subr.mxu0 0.0
        %7457 = vmatpush1.msra.mxu0 0.0
        %7458 = vmatprep.subr.mxu0 0.0
        %7459 = vmatpush1.msra.mxu0 0.0
        %7460 = vmatprep.subr.mxu0 0.0
        %7461 = vmatpush1.msra.mxu0 0.0
        %7462 = vmatprep.subr.mxu0 0.0
        %7463 = vmatpush1.msra.mxu0 0.0
        %7464 = vmatprep.subr.mxu0 0.0
        %7465 = vmatpush1.msra.mxu0 0.0
        %7466 = vmatprep.subr.mxu0 0.0
        %7467 = vmatpush1.msra.mxu0 0.0
        %7468 = vmatprep.subr.mxu0 0.0
        %7469 = vmatpush1.msra.mxu0 0.0
        %7470 = vmatprep.subr.mxu0 0.0
        %7471 = vmatpush1.msra.mxu0 0.0
        %7472 = vmatprep.subr.mxu0 0.0
        %7473 = vmatpush1.msra.mxu0 %v7425
        %7474 = vmatprep.subr.mxu0 0.0
        %7475 = vmatpush1.msra.mxu0 %v7424
        %7476 = vmatprep.subr.mxu0 0.0
        %7477 = vmatpush1.msra.mxu0 %v7423
        %7478 = vmatprep.subr.mxu0 0.0
        %7479 = vmatpush1.msra.mxu0 %v7422
        %7480 = vmatprep.subr.mxu0 0.0
        %7481 = vmatpush2.msra.mxu0 0.0
        %7482 = vmatprep.subr.mxu0 0.0
        %7483 = vmatpush2.msra.mxu0 0.0
        %7484 = vmatprep.subr.mxu0 0.0
        %7485 = vmatpush2.msra.mxu0 0.0
        %7486 = vmatprep.subr.mxu0 0.0
        %7487 = vmatpush2.msra.mxu0 0.0
        %7488 = vmatprep.subr.mxu0 0.0
        %7489 = vmatpush2.msra.mxu0 0.0
        %7490 = vmatprep.subr.mxu0 0.0
        %7491 = vmatpush2.msra.mxu0 0.0
        %7492 = vmatprep.subr.mxu0 0.0
        %7493 = vmatpush2.msra.mxu0 0.0
        %7494 = vmatprep.subr.mxu0 0.0
        %7495 = vmatpush2.msra.mxu0 0.0
        %7496 = vmatprep.subr.mxu0 0.0
        %7497 = vmatpush2.msra.mxu0 0.0
        %7498 = vmatprep.subr.mxu0 0.0
        %7499 = vmatpush2.msra.mxu0 0.0
        %7500 = vmatprep.subr.mxu0 0.0
        %7501 = vmatpush2.msra.mxu0 0.0
        %7502 = vmatprep.subr.mxu0 0.0
        %7503 = vmatpush2.msra.mxu0 0.0
        %7504 = vmatprep.subr.mxu0 0.0
        %7505 = vmatpush2.msra.mxu0 0.0
        %7506 = vmatprep.subr.mxu0 0.0
        %7507 = vmatpush2.msra.mxu0 0.0
        %7508 = vmatprep.subr.mxu0 0.0
        %7509 = vmatpush2.msra.mxu0 0.0
        %7510 = vmatprep.subr.mxu0 0.0
        %7511 = vmatpush2.msra.mxu0 0.0
        %7512 = vmatprep.mubr.f32.mxu0 0.0
        %7513 = vmatmul.mubr.f32.gmra.mxu0 %v7446
        %v7514 = vpop.f32.mrf.mxu0
        %v7515 = vadd.f32 %v7431, %v7514
        %v7516 = vpop.f32.mrf.mxu0
        %7517 = vdwg.mxu0
        %v7518 = vtanh.pop %v7515
        %v7519 = vld [vmem:[%s18] sm:$0xff]
        %v7520 = vld [vmem:[%s18 + $0x8] sm:$0xff]
        %v7521 = vld [vmem:[%s18 + $0x10] sm:$0xff]
        %v7522 = vld [vmem:[%s18 + $0x18] sm:$0xff]
        %v7523 = vld [vmem:[%s19] sm:$0x1]
        %v7525 = vlaneseq
        %v7526 = vshrl.u32 %v7525, 7
        %v7527 = vsub.s32 0, %v7526
        %v7528 = vrot.slane %v7523, %v7527
        %v7531 = vsel %vm660, %v7518, 0
        %7533 = vmatprep.subr.mxu0 0.0
        %7534 = vmatpush1.msra.mxu0 0.0
        %7535 = vmatprep.subr.mxu0 0.0
        %7536 = vmatpush1.msra.mxu0 0.0
        %7537 = vmatprep.subr.mxu0 0.0
        %7538 = vmatpush1.msra.mxu0 0.0
        %7539 = vmatprep.subr.mxu0 0.0
        %7540 = vmatpush1.msra.mxu0 0.0
        %7541 = vmatprep.subr.mxu0 0.0
        %7542 = vmatpush1.msra.mxu0 0.0
        %7543 = vmatprep.subr.mxu0 0.0
        %7544 = vmatpush1.msra.mxu0 0.0
        %7545 = vmatprep.subr.mxu0 0.0
        %7546 = vmatpush1.msra.mxu0 0.0
        %7547 = vmatprep.subr.mxu0 0.0
        %7548 = vmatpush1.msra.mxu0 0.0
        %7549 = vmatprep.subr.mxu0 0.0
        %7550 = vmatpush1.msra.mxu0 0.0
        %7551 = vmatprep.subr.mxu0 0.0
        %7552 = vmatpush1.msra.mxu0 0.0
        %7553 = vmatprep.subr.mxu0 0.0
        %7554 = vmatpush1.msra.mxu0 0.0
        %7555 = vmatprep.subr.mxu0 0.0
        %7556 = vmatpush1.msra.mxu0 0.0
        %7557 = vmatprep.subr.mxu0 0.0
        %7558 = vmatpush1.msra.mxu0 %v7522
        %7559 = vmatprep.subr.mxu0 0.0
        %7560 = vmatpush1.msra.mxu0 %v7521
        %7561 = vmatprep.subr.mxu0 0.0
        %7562 = vmatpush1.msra.mxu0 %v7520
        %7563 = vmatprep.subr.mxu0 0.0
        %7564 = vmatpush1.msra.mxu0 %v7519
        %7565 = vmatprep.subr.mxu0 0.0
        %7566 = vmatpush2.msra.mxu0 0.0
        %7567 = vmatprep.subr.mxu0 0.0
        %7568 = vmatpush2.msra.mxu0 0.0
        %7569 = vmatprep.subr.mxu0 0.0
        %7570 = vmatpush2.msra.mxu0 0.0
        %7571 = vmatprep.subr.mxu0 0.0
        %7572 = vmatpush2.msra.mxu0 0.0
        %7573 = vmatprep.subr.mxu0 0.0
        %7574 = vmatpush2.msra.mxu0 0.0
        %7575 = vmatprep.subr.mxu0 0.0
        %7576 = vmatpush2.msra.mxu0 0.0
        %7577 = vmatprep.subr.mxu0 0.0
        %7578 = vmatpush2.msra.mxu0 0.0
        %7579 = vmatprep.subr.mxu0 0.0
        %7580 = vmatpush2.msra.mxu0 0.0
        %7581 = vmatprep.subr.mxu0 0.0
        %7582 = vmatpush2.msra.mxu0 0.0
        %7583 = vmatprep.subr.mxu0 0.0
        %7584 = vmatpush2.msra.mxu0 0.0
        %7585 = vmatprep.subr.mxu0 0.0
        %7586 = vmatpush2.msra.mxu0 0.0
        %7587 = vmatprep.subr.mxu0 0.0
        %7588 = vmatpush2.msra.mxu0 0.0
        %7589 = vmatprep.subr.mxu0 0.0
        %7590 = vmatpush2.msra.mxu0 0.0
        %7591 = vmatprep.subr.mxu0 0.0
        %7592 = vmatpush2.msra.mxu0 0.0
        %7593 = vmatprep.subr.mxu0 0.0
        %7594 = vmatpush2.msra.mxu0 0.0
        %7595 = vmatprep.subr.mxu0 0.0
        %7596 = vmatpush2.msra.mxu0 0.0
        %7597 = vmatprep.mubr.f32.mxu0 0.0
        %7598 = vmatmul.mubr.f32.gmra.mxu0 %v7531
        %v7599 = vpop.f32.mrf.mxu0
        %v7600 = vadd.f32 %v7528, %v7599
        %v7601 = vpop.f32.mrf.mxu0
        %7602 = vdwg.mxu0
        %v7605 = vunpack.c.l.s4 1966171168
        %v7606 = vunpack.c.0.s8 %v7605
        %v7607 = vlaneseq
        %v7608 = vshrl.u32 %v7607, 7
        %v7609 = vsub.s32 %v7606, %v7608
        %v7610 = vrot.slane %v7600, %v7609
        %v7611 = vcombine.high %v7610, %v7610
        %v7613 = vunpack.c.l.s4 1966171168
        %v7614 = vunpack.c.0.s8 %v7613
        %v7615 = vlaneseq
        %v7616 = vshrl.u32 %v7615, 7
        %v7617 = vsub.s32 %v7614, %v7616
        %v7618 = vrot.slane %v7610, %v7617
        %v7620 = vunpack.c.l.s4 1966171168
        %v7621 = vunpack.c.0.s8 %v7620
        %v7622 = vlaneseq
        %v7623 = vshrl.u32 %v7622, 7
        %v7624 = vsub.s32 %v7621, %v7623
        %v7625 = vrot.slane %v7611, %v7624
        %v7626 = vcombine.high %v7618, %v7618
        %v7627 = vcombine.high %v7625, %v7625
        %7632 = vst [vmem:[%s637] sm:$0x1] %v7618
        %7633 = vst [vmem:[%s637 + $0x1] sm:$0x1] %v7625
        %7634 = vst [vmem:[%s637 + $0x2] sm:$0x1] %v7626
        %7635 = vst [vmem:[%s637 + $0x3] sm:$0x1] %v7627
        %s7636 = sand.u32 %s472, 1
        %s7637 = scalar_lea.sflag [#allocation3], %s7636
        %s7638 = sand.u32 %s472, 1
        %s7639 = smul.addr %s7638, 4
        %s7640 = scalar_lea.vmem [#allocation2], %s7639
        // Predicated region
        $region101: #{transformer_forward.1} parent=99 // pred_check
          %p7641 = pneg %p482
        $region102: #{transformer_forward.1} parent=99 // pred_check_branch
          %7643 = sbr.rel (%p7641) target = $region104
        $region103: #{transformer_forward.1} parent=99 // pred_region
          %s7644 = smul.u32 4, %s34
          %s7646 = ssub.s32 64, 64
          %7647 = vsyncadd %s7637, %s7646
          %s7648 = smul.addr %s7644, 16
          %s7649 = scalar_lea.hbm %s20, %s7648
          %s7650 = sshll.u32 %s7640, 4
          %s7651 = int_to_ptr.vmem [resolvable:$true] %s7650
          %7656 = dma.vmem_to_hbm [thread:$0]  %s7651, 64, %s7649, %s7637, 16, 16, 1
        $region104: #{transformer_forward.1} parent=99 // pred_fallthru
          _
      $region100: #{transformer_forward.1} parent=5 // pred_fallthru
        _
      %p7657 = scmp.le.s32.totalorder 2, %s29
      // Predicated region
      $region105: #{transformer_forward.1} parent=5 // pred_check
        %p7658 = pneg %p7657
      $region106: #{transformer_forward.1} parent=5 // pred_check_branch
        %7660 = sbr.rel (%p7658) target = $region108
      $region107: #{transformer_forward.1} parent=5 // pred_region
        %s7661 = ssub.s32 %s29, 2
        // Predicated region
        $region109: #{transformer_forward.1} parent=107 // pred_check
          %p7662 = pneg %p488
        $region110: #{transformer_forward.1} parent=107 // pred_check_branch
          %7664 = sbr.rel (%p7662) target = $region112
        $region111: #{transformer_forward.1} parent=107 // pred_region
          %s7665 = sand.u32 %s473, 1
          %s7666 = scalar_lea.sflag [#allocation3], %s7665
          %s7667 = sand.u32 %s473, 1
          %s7668 = smul.addr %s7667, 4
          %s7669 = scalar_lea.vmem [#allocation2], %s7668
          %7670 = dma.done %s7666, 64
        $region112: #{transformer_forward.1} parent=107 // pred_fallthru
          _
      $region108: #{transformer_forward.1} parent=5 // pred_fallthru
        _
    $region6: #{transformer_forward.1} parent=1 // loop_footer
      %s33 = sadd.s32 1, %s29
    $region7: #{transformer_forward.1} parent=1 // loop_footer_branch
      %28 = sbr.rel target = $region3
    $region8: #{transformer_forward.1} parent=1 // loop_exit
      _
    %7671 = vsyncpa [#allocation3], 1
    %s7672 = scalar_lea.sflag [#allocation3], 1
    %7673 = vsyncpa %s7672, 1

</llo_original>
